<compile_context>
chip_gen: v5e
topology: v5e:2x2
jax: 0.10.0
libtpu: 0.0.40
codegen_flags: <defaults>
</compile_context>

<pallas_src>
import functools

import numpy as np
import jax
import jax.numpy as jnp
from jax import lax
from jax.experimental import pallas as pl
from jax.experimental.pallas import tpu as pltpu


def _round_up(x, m):
    return ((x + m - 1) // m) * m


# ----------------------------- Pallas GEMM kernels ----------------------------

def _mm_kernel(a_ref, w_ref, b_ref, o_ref, *, relu):
    acc = jnp.dot(a_ref[...], w_ref[...], preferred_element_type=jnp.float32)
    acc = acc + b_ref[...]
    if relu:
        acc = jnp.maximum(acc, 0.0)
    o_ref[...] = acc


def _mm_res_kernel(a_ref, w_ref, b_ref, r_ref, o_ref, *, relu):
    # GEMM + bias + residual add (+ReLU) fused epilogue (AsterBlock tail).
    acc = jnp.dot(a_ref[...], w_ref[...], preferred_element_type=jnp.float32)
    acc = acc + b_ref[...] + r_ref[...]
    if relu:
        acc = jnp.maximum(acc, 0.0)
    o_ref[...] = acc


def pallas_linear(a, w, b=None, relu=False, residual=None, mxu_dtype=jnp.bfloat16):
    """out = a @ w + b (+ residual) (optional ReLU).

    a: (M, K), w: (K, N), b: (N,), residual: (M, N).
    MXU operands are cast to bf16 (f32 accumulation); output N is padded to a
    multiple of 128 so stores are lane-dense, then sliced back.
    """
    M, K = a.shape
    N = w.shape[1]
    Np = _round_up(N, 128)
    if b is None:
        b = jnp.zeros((N,), jnp.float32)
    w = w.astype(jnp.float32)
    b = b.astype(jnp.float32)
    if Np != N:
        w = jnp.pad(w, ((0, 0), (0, Np - N)))
        b = jnp.pad(b, ((0, Np - N),))
    b2 = b.reshape(1, Np)

    TM = min(512, _round_up(M, 8))
    Mp = _round_up(M, TM)
    a = a.astype(mxu_dtype)
    w = w.astype(mxu_dtype)
    if Mp != M:
        a = jnp.pad(a, ((0, Mp - M), (0, 0)))

    in_specs = [
        pl.BlockSpec((TM, K), lambda i: (i, 0)),
        pl.BlockSpec((K, Np), lambda i: (0, 0)),
        pl.BlockSpec((1, Np), lambda i: (0, 0)),
    ]
    args = [a, w, b2]
    if residual is not None:
        r = residual.astype(jnp.float32)
        if Np != N:
            r = jnp.pad(r, ((0, 0), (0, Np - N)))
        if Mp != M:
            r = jnp.pad(r, ((0, Mp - M), (0, 0)))
        in_specs.append(pl.BlockSpec((TM, Np), lambda i: (i, 0)))
        args.append(r)
        kern = functools.partial(_mm_res_kernel, relu=relu)
    else:
        kern = functools.partial(_mm_kernel, relu=relu)

    out = pl.pallas_call(
        kern,
        out_shape=jax.ShapeDtypeStruct((Mp, Np), jnp.float32),
        grid=(Mp // TM,),
        in_specs=in_specs,
        out_specs=pl.BlockSpec((TM, Np), lambda i: (i, 0)),
        compiler_params=pltpu.CompilerParams(dimension_semantics=("parallel",)),
    )(*args)
    return out[:M, :N]


# --------------------------- fused BiLSTM recurrence --------------------------

def _bilstm_kernel(gi_ref, whh_ref, bhh_ref, h_out_ref, h_scr, c_scr, *, H):
    # grid = (direction, time); h/c live in VMEM scratch across the time axis.
    t = pl.program_id(1)

    @pl.when(t == 0)
    def _():
        h_scr[...] = jnp.zeros_like(h_scr)
        c_scr[...] = jnp.zeros_like(c_scr)

    gh = jnp.dot(h_scr[...], whh_ref[0], preferred_element_type=jnp.float32) + bhh_ref[0]
    g = gi_ref[0, 0] + gh                      # (B, 4H), full 128-lane vreg
    sg = jax.nn.sigmoid(g)                     # full-width VPU/EUP, then slice
    tg = jnp.tanh(g)
    i_g = sg[:, 0:H]
    f_g = sg[:, H:2 * H]
    g_g = tg[:, 2 * H:3 * H]
    o_g = sg[:, 3 * H:4 * H]
    c_new = f_g * c_scr[...] + i_g * g_g
    c_scr[...] = c_new
    h_new = o_g * jnp.tanh(c_new)
    h_scr[...] = h_new
    h_out_ref[0, 0] = h_new


def bilstm_layer(x, lay):
    """One bidirectional nn.LSTM layer.  x: (B, T, Din) -> (B, T, 2H)."""
    B, T, Din = x.shape
    H = lay['fwd']['w_hhT'].shape[0]

    # One GEMM for both directions' input projections (lane-dense 8H output).
    w_ih_cat = jnp.concatenate([lay['fwd']['w_ihT'], lay['bwd']['w_ihT']], axis=1)
    b_ih_cat = jnp.concatenate([lay['fwd']['b_ih'], lay['bwd']['b_ih']], axis=0)
    gi = pallas_linear(x.reshape(B * T, Din), w_ih_cat, b_ih_cat).reshape(B, T, 8 * H)

    gi_f = jnp.transpose(gi[:, :, :4 * H], (1, 0, 2))       # (T, B, 4H)
    gi_b = jnp.transpose(gi[:, ::-1, 4 * H:], (1, 0, 2))     # reversed time
    gi_both = jnp.stack([gi_f, gi_b], axis=0)                 # (2, T, B, 4H)
    whh_both = jnp.stack([lay['fwd']['w_hhT'], lay['bwd']['w_hhT']], axis=0)
    bhh_both = jnp.stack([lay['fwd']['b_hh'], lay['bwd']['b_hh']],
                         axis=0).reshape(2, 1, 4 * H)

    hs = pl.pallas_call(
        functools.partial(_bilstm_kernel, H=H),
        out_shape=jax.ShapeDtypeStruct((2, T, B, H), jnp.float32),
        grid=(2, T),
        in_specs=[
            pl.BlockSpec((1, 1, B, 4 * H), lambda d, t: (d, t, 0, 0)),
            pl.BlockSpec((1, H, 4 * H), lambda d, t: (d, 0, 0)),
            pl.BlockSpec((1, 1, 4 * H), lambda d, t: (d, 0, 0)),
        ],
        out_specs=pl.BlockSpec((1, 1, B, H), lambda d, t: (d, t, 0, 0)),
        scratch_shapes=[pltpu.VMEM((B, H), jnp.float32),
                        pltpu.VMEM((B, H), jnp.float32)],
        compiler_params=pltpu.CompilerParams(
            dimension_semantics=("parallel", "arbitrary")),
    )(gi_both, whh_both, bhh_both)

    hs_f = jnp.transpose(hs[0], (1, 0, 2))          # (B, T, H)
    hs_b = jnp.transpose(hs[1][::-1], (1, 0, 2))    # undo time reversal
    return jnp.concatenate([hs_f, hs_b], axis=-1)


# --------------------------- conv / encoder glue ------------------------------

def _im2col(x, kh, kw, stride, pad):
    """x: (B, H, W, C) NHWC -> patches (B*oh*ow, kh*kw*C), ordering (i, j, c)."""
    sh, sw = stride
    ph, pw = pad
    if ph or pw:
        x = jnp.pad(x, ((0, 0), (ph, ph), (pw, pw), (0, 0)))
    B, Hp, Wp, C = x.shape
    oh = (Hp - kh) // sh + 1
    ow = (Wp - kw) // sw + 1
    cols = []
    for i in range(kh):
        for j in range(kw):
            cols.append(x[:, i:i + sh * (oh - 1) + 1:sh, j:j + sw * (ow - 1) + 1:sw, :])
    patches = jnp.concatenate(cols, axis=-1)
    return patches.reshape(B * oh * ow, kh * kw * C), oh, ow


def conv_bn(x, p, stride, pad, relu):
    """Conv2d(bias=False) + folded BatchNorm (+ optional ReLU), via Pallas GEMM."""
    B = x.shape[0]
    patches, oh, ow = _im2col(x, p['kh'], p['kw'], stride, pad)
    y = pallas_linear(patches, p['w'], p['b'], relu=relu)
    return y.reshape(B, oh, ow, -1)


def aster_block(x, bp, stride):
    out1 = conv_bn(x, bp['conv1'], stride=stride, pad=(0, 0), relu=True)   # 1x1+bn+relu
    if 'down' in bp:
        residual = conv_bn(x, bp['down'], stride=stride, pad=(0, 0), relu=False)
    else:
        residual = x
    # conv3x3 + BN + residual add + ReLU fused into one GEMM epilogue.
    B = out1.shape[0]
    patches, oh, ow = _im2col(out1, bp['conv2']['kh'], bp['conv2']['kw'], (1, 1), (1, 1))
    C = bp['conv2']['w'].shape[1]
    res2d = residual.reshape(B * oh * ow, C)
    y = pallas_linear(patches, bp['conv2']['w'], bp['conv2']['b'],
                      relu=True, residual=res2d)
    return y.reshape(B, oh, ow, C)


def encoder_forward(x_nchw, enc):
    """ResNet_ASTER-style encoder.  x: (B, 3, H, W) NCHW -> (B, W', out_planes)."""
    x = jnp.transpose(x_nchw, (0, 2, 3, 1)).astype(jnp.float32)  # NHWC
    x = conv_bn(x, enc['layer0'], stride=(1, 1), pad=(1, 1), relu=True)
    for l, blist in enumerate(enc['layers']):
        for bi, bp in enumerate(blist):
            st = enc['strides'][l] if bi == 0 else (1, 1)
            x = aster_block(x, bp, st)
    # After the stride schedule the feature height is 1: squeeze it (== squeeze(2) in NCHW)
    cnn_feat = x[:, 0, :, :]                                     # (B, W', C)
    if 'lstm' not in enc:
        return cnn_feat
    out = cnn_feat
    for lay in enc['lstm']:
        out = bilstm_layer(out, lay)
    return out


# --------------------------- fused decoder step kernel ------------------------

def _decoder_step_kernel(xproj_ref, x_ref, s_ref, yproj_ref,
                         sW_ref, sB_ref, attW_ref, attB_ref,
                         wiy_ref, wic_ref, bih_ref, whh_ref, bhh_ref,
                         fcW_ref, fcB_ref,
                         logits_ref, hout_ref, *, S):
    """AttentionUnit + context + GRUCell + fc, all VMEM-resident (one launch)."""
    s_prev = s_ref[...]                                                     # (N, S)
    # --- attention ---
    sproj = jnp.dot(s_prev, sW_ref[...], preferred_element_type=jnp.float32) + sB_ref[...]
    e = jnp.tanh(xproj_ref[...] + sproj[:, None, :])                        # (N, T, A)
    v = jnp.sum(e * attW_ref[...], axis=-1) + attB_ref[0, 0]                # (N, T)
    v = v - jnp.max(v, axis=-1, keepdims=True)
    ev = jnp.exp(v)
    alpha = ev / jnp.sum(ev, axis=-1, keepdims=True)                        # (N, T)
    ctx = jnp.sum(alpha[:, :, None] * x_ref[...], axis=1)                   # (N, D)
    # --- GRU cell (input = cat([yProj, context]), weights pre-split) ---
    gi = (jnp.dot(yproj_ref[...], wiy_ref[...], preferred_element_type=jnp.float32)
          + jnp.dot(ctx, wic_ref[...], preferred_element_type=jnp.float32)
          + bih_ref[...])
    gh = jnp.dot(s_prev, whh_ref[...], preferred_element_type=jnp.float32) + bhh_ref[...]
    r = jax.nn.sigmoid(gi[:, 0:S] + gh[:, 0:S])
    z = jax.nn.sigmoid(gi[:, S:2 * S] + gh[:, S:2 * S])
    n = jnp.tanh(gi[:, 2 * S:3 * S] + r * gh[:, 2 * S:3 * S])
    h_new = (1.0 - z) * n + z * s_prev
    hout_ref[...] = h_new
    # --- output projection (padded to 128 lanes; sliced outside) ---
    logits_ref[...] = (jnp.dot(h_new, fcW_ref[...], preferred_element_type=jnp.float32)
                       + fcB_ref[...])


def fused_decoder_step(dk, xproj, x_inf, s_prev, yproj, S, Cp):
    N = s_prev.shape[0]
    logits, h_new = pl.pallas_call(
        functools.partial(_decoder_step_kernel, S=S),
        out_shape=(jax.ShapeDtypeStruct((N, Cp), jnp.float32),
                   jax.ShapeDtypeStruct((N, S), jnp.float32)),
    )(xproj, x_inf, s_prev, yproj,
      dk['sEmbed_wT'], dk['sEmbed_b'], dk['att_w'], dk['att_b'],
      dk['w_ih_y'], dk['w_ih_c'], dk['b_ih'], dk['w_hh'], dk['b_hh'],
      dk['fc_w'], dk['fc_b'])
    return logits, h_new


# ------------------------ device-side beam search (scan) ----------------------

def beam_search_device(dk, feats, k, C, sDim, attDim, max_len, eos, Cp):
    """Runs the whole beam-search loop on device; returns stacked step records."""
    b, T, D = feats.shape
    N = b * k
    x_inf = jnp.repeat(feats, k, axis=0)                          # ABC -> AABBCC
    # Hoisted: xproj only depends on encoder features, not the decode step.
    xproj = pallas_linear(x_inf.reshape(N * T, D), dk['xEmbed_wT'],
                          dk['xEmbed_b']).reshape(N, T, attDim)

    pos_index = (jnp.arange(b, dtype=jnp.int32) * k).reshape(-1, 1)
    seq_scores0 = jnp.full((N, 1), -jnp.inf, jnp.float32)
    seq_scores0 = seq_scores0.at[jnp.arange(b) * k, 0].set(0.0)
    y0 = jnp.full((N,), C, dtype=jnp.int32)                       # <BOS> index = num_classes
    state0 = jnp.zeros((N, sDim), jnp.float32)

    def step(carry, _):
        state, seq_scores, y_prev = carry
        yproj = jnp.take(dk['emb'], y_prev, axis=0)               # (N, A) embedding gather
        logits_p, h_new = fused_decoder_step(dk, xproj, x_inf, state, yproj, sDim, Cp)
        logits = logits_p[:, :C]
        logp = jax.nn.log_softmax(logits, axis=1)
        scores_all = seq_scores + logp                            # (N, C)
        top_scores, candidates = lax.top_k(scores_all.reshape(b, k * C), k)
        y_new = (candidates % C).reshape(N).astype(jnp.int32)
        new_scores = top_scores.reshape(N, 1)
        predecessors = (candidates // C + pos_index).reshape(N, 1).astype(jnp.int32)
        state_new = h_new[predecessors[:, 0], :]
        eos_mask = (y_new == eos).reshape(N, 1)
        next_scores = jnp.where(eos_mask, -jnp.inf, new_scores)
        return (state_new, next_scores, y_new), (new_scores, predecessors, y_new)

    _, (scores_seq, pred_seq, sym_seq) = lax.scan(
        step, (state0, seq_scores0, y0), None, length=max_len)
    return scores_seq, pred_seq, sym_seq


# ------------------------------ parameter init --------------------------------

class _ParamGen:
    def __init__(self, key):
        self.key = key

    def normal(self, shape, scale):
        self.key, sub = jax.random.split(self.key)
        return scale * jax.random.normal(sub, shape, dtype=jnp.float32)


def _conv_bn_params(pg, cin, cout, kh, kw):
    w = pg.normal((cout, cin, kh, kw), 1.0 / np.sqrt(cin * kh * kw))
    gamma = 1.0 + 0.1 * pg.normal((cout,), 1.0)
    beta = 0.1 * pg.normal((cout,), 1.0)
    mean = 0.1 * pg.normal((cout,), 1.0)
    var = 1.0 + 0.1 * jnp.abs(pg.normal((cout,), 1.0))
    eps = 1e-5
    scale = gamma / jnp.sqrt(var + eps)
    # PyTorch weight (O,C,kh,kw) -> GEMM layout (kh*kw*C, O), BN folded in.
    w_mat = jnp.transpose(w, (2, 3, 1, 0)).reshape(kh * kw * cin, cout) * scale[None, :]
    b = beta - mean * scale
    return {'w': w_mat, 'b': b, 'kh': kh, 'kw': kw}


def build_encoder_params(pg, with_lstm=True, in_ch=3):
    # Scaled-down ResNet_ASTER: same structure/strides, smaller channels & 1 block/stage.
    layer_planes = [16, 32, 32, 64, 64]
    layer_strides = [(2, 2), (2, 2), (2, 1), (2, 1), (2, 1)]
    layer_blocks = [1, 1, 1, 1, 1]
    enc = {'layer0': _conv_bn_params(pg, in_ch, 16, 3, 3), 'strides': layer_strides}
    inplanes = 16
    layers = []
    for planes, nblocks, stride in zip(layer_planes, layer_blocks, layer_strides):
        blist = []
        for bi in range(nblocks):
            st = stride if bi == 0 else (1, 1)
            bp = {'conv1': _conv_bn_params(pg, inplanes, planes, 1, 1),
                  'conv2': _conv_bn_params(pg, planes, planes, 3, 3)}
            if bi == 0 and (st != (1, 1) or inplanes != planes):
                bp['down'] = _conv_bn_params(pg, inplanes, planes, 1, 1)
            blist.append(bp)
            inplanes = planes
        layers.append(blist)
    enc['layers'] = layers
    if with_lstm:
        H = 32
        lstm = []
        in_size = inplanes
        for _ in range(2):
            lay = {}
            for d in ('fwd', 'bwd'):
                sc = 1.0 / np.sqrt(H)
                lay[d] = {'w_ihT': pg.normal((in_size, 4 * H), sc),
                          'w_hhT': pg.normal((H, 4 * H), sc),
                          'b_ih': pg.normal((4 * H,), sc),
                          'b_hh': pg.normal((4 * H,), sc)}
            lstm.append(lay)
            in_size = 2 * H
        enc['lstm'] = lstm
        enc['out_planes'] = 2 * H
    else:
        enc['out_planes'] = inplanes
    return enc


def build_decoder_params(pg, num_classes, in_planes, sDim, attDim):
    D, A = in_planes, attDim
    gin = D + A
    return {
        'xEmbed_wT': pg.normal((D, A), 1.0 / np.sqrt(D)), 'xEmbed_b': pg.normal((A,), 0.05),
        'sEmbed_wT': pg.normal((sDim, A), 1.0 / np.sqrt(sDim)), 'sEmbed_b': pg.normal((A,), 0.05),
        'wEmbed_w': pg.normal((1, 1, A), 1.0 / np.sqrt(A)), 'wEmbed_b': pg.normal((1, 1), 0.05),
        'emb': pg.normal((num_classes + 1, A), 1.0),               # last row is <BOS>
        'gru_w_ihT': pg.normal((gin, 3 * sDim), 1.0 / np.sqrt(sDim)),
        'gru_w_hhT': pg.normal((sDim, 3 * sDim), 1.0 / np.sqrt(sDim)),
        'gru_b_ih': pg.normal((3 * sDim,), 0.05), 'gru_b_hh': pg.normal((3 * sDim,), 0.05),
        'fc_wT': pg.normal((sDim, num_classes), 1.0 / np.sqrt(sDim)), 'fc_b': pg.normal((num_classes,), 0.05),
    }


def _prep_decoder_kernel_params(dp, num_classes, sDim, attDim):
    """Pre-split / pre-pad decoder weights for the fused step kernel."""
    A, S, C = attDim, sDim, num_classes
    Cp = _round_up(C, 128)
    return {
        'xEmbed_wT': dp['xEmbed_wT'], 'xEmbed_b': dp['xEmbed_b'],
        'sEmbed_wT': dp['sEmbed_wT'], 'sEmbed_b': dp['sEmbed_b'].reshape(1, A),
        'att_w': dp['wEmbed_w'], 'att_b': dp['wEmbed_b'],
        'emb': dp['emb'],
        'w_ih_y': dp['gru_w_ihT'][:A, :],   # rows multiplying yProj
        'w_ih_c': dp['gru_w_ihT'][A:, :],   # rows multiplying the context
        'b_ih': dp['gru_b_ih'].reshape(1, 3 * S),
        'w_hh': dp['gru_w_hhT'],
        'b_hh': dp['gru_b_hh'].reshape(1, 3 * S),
        'fc_w': jnp.pad(dp['fc_wT'], ((0, 0), (0, Cp - C))),
        'fc_b': jnp.pad(dp['fc_b'], ((0, Cp - C),)).reshape(1, Cp),
    }, Cp


# ------------------------- beam-search backtracking ---------------------------

def _beam_backtrack(stored_scores, stored_pred, stored_sym, b, k, max_len, eos):
    # Host-side port of the backtracking in AttentionRecognitionHead.beam_search.
    # stored_scores: (L, N, 1), stored_pred: (L, N, 1), stored_sym: (L, N) numpy.
    pos_index = (np.arange(b) * k).reshape(-1, 1)
    p = []
    lens = [[max_len] * k for _ in range(b)]
    last = stored_scores[-1].reshape(b, k)
    sorted_idx = np.argsort(-last, axis=1, kind='stable')[:, :k]
    s = np.take_along_axis(last, sorted_idx, axis=1).copy()
    batch_eos_found = [0] * b
    t = max_len - 1
    t_pred = (sorted_idx + pos_index).reshape(b * k)
    while t >= 0:
        cur_sym = stored_sym[t][t_pred].copy()
        t_pred = stored_pred[t][t_pred, 0].copy()
        eos_idx = np.nonzero(stored_sym[t] == eos)[0]
        for i in range(len(eos_idx) - 1, -1, -1):
            idx = int(eos_idx[i])
            b_idx = idx // k
            res_k_idx = k - (batch_eos_found[b_idx] % k) - 1
            batch_eos_found[b_idx] += 1
            res_idx = b_idx * k + res_k_idx
            t_pred[res_idx] = stored_pred[t][idx, 0]
            cur_sym[res_idx] = stored_sym[t][idx]
            s[b_idx, res_k_idx] = stored_scores[t][idx, 0]
            lens[b_idx][res_k_idx] = t + 1
        p.append(cur_sym)
        t -= 1
    re_sorted_idx = np.argsort(-s, axis=1, kind='stable')
    s = np.take_along_axis(s, re_sorted_idx, axis=1)
    re_sorted_flat = (re_sorted_idx + pos_index).reshape(b * k)
    p = [step[re_sorted_flat].reshape(b, k, 1) for step in reversed(p)]
    p = np.concatenate(p, axis=-1)[:, 0, :]
    # aster.pytorch returns (pred, ones_like(pred)) as (rec_pred, rec_pred_scores)
    return p, np.ones_like(p)


# --------------------------------- model --------------------------------------

class ModelBuilderPallas:
    """JAX/Pallas port of ModelBuilder (encoder + attention beam-search decoder)."""

    def __init__(self, cfg, key):
        self.cfg = cfg
        self.arch = cfg['arch']
        self.rec_num_classes = cfg['len_voc']
        self.sDim = cfg['decoder_sdim']
        self.attDim = cfg['attDim']
        self.max_len_labels = cfg['max_len']
        self.eos = cfg['eos']
        if self.eos == -1:
            print('ERROR: eos must be greater than -1')
        self.STN_ON = cfg['STN_ON']
        self.tps_inputsize = cfg['tps_inputsize']
        # TODO(synk): STNHead + TPSSpatialTransformer (bilinear grid-sample) not ported; run with STN_ON=False.

        pg = _ParamGen(key)
        self.enc_params = build_encoder_params(pg, with_lstm=cfg['with_lstm'])
        self.dec_params = build_decoder_params(pg, self.rec_num_classes,
                                               self.enc_params['out_planes'],
                                               self.sDim, self.attDim)
        dec_k, Cp = _prep_decoder_kernel_params(self.dec_params, self.rec_num_classes,
                                                self.sDim, self.attDim)
        enc_p = self.enc_params
        k = cfg['beam_width']
        C, S, A = self.rec_num_classes, self.sDim, self.attDim
        L, eos = self.max_len_labels, self.eos

        self._encode = jax.jit(lambda x: encoder_forward(x, enc_p))
        self._decode = jax.jit(
            lambda feats: beam_search_device(dec_k, feats, k, C, S, A, L, eos, Cp))

    def _beam_search(self, feats):
        b = feats.shape[0]
        k = self.cfg['beam_width']
        scores_seq, pred_seq, sym_seq = self._decode(feats)
        # Single host readback (no per-step syncs), then host backtracking.
        scores_np = np.asarray(jax.device_get(scores_seq))
        pred_np = np.asarray(jax.device_get(pred_seq))
        sym_np = np.asarray(jax.device_get(sym_seq))
        rec_pred, rec_scores = _beam_backtrack(scores_np, pred_np, sym_np,
                                               b, k, self.max_len_labels, self.eos)
        return jnp.asarray(rec_pred, jnp.int32), jnp.asarray(rec_scores, jnp.int32)

    def __call__(self, x):
        if self.STN_ON:
            raise NotImplementedError("STN/TPS branch not implemented; set STN_ON=False.")
        encoder_feats = self._encode(x)
        rec_pred, rec_pred_scores = self._beam_search(encoder_feats)
        return rec_pred, rec_pred_scores


# ---------------------------------- main ---------------------------------------

if __name__ == "__main__":
    cfg = {
        'arch': 'ResNet_ASTER',
        'len_voc': 12,            # number of recognition classes (incl. EOS)
        'decoder_sdim': 32,
        'attDim': 32,
        'max_len': 6,
        'eos': 1,
        'STN_ON': False,
        'tps_inputsize': [8, 32],
        'tps_outputsize': [8, 32],
        'num_control_points': 20,
        'tps_margins': [0.05, 0.05],
        'stn_activation': 'none',
        'with_lstm': True,
        'n_group': 1,
        'beam_width': 2,
    }
    root = jax.random.PRNGKey(0)
    pkey, xkey = jax.random.split(root)
    model = ModelBuilderPallas(cfg, pkey)

    # NCHW input image batch (small OCR crops: height 32 so the conv stack reduces H -> 1)
    x = jax.random.normal(xkey, (2, 3, 32, 64), dtype=jnp.float32)

    rec_pred, rec_pred_scores = model(x)
    jax.block_until_ready((rec_pred, rec_pred_scores))
    assert rec_pred.shape == (2, cfg['max_len'])
    assert rec_pred_scores.shape == (2, cfg['max_len'])
    print("KERNEL_OK")
</pallas_src>

<mosaic_0001>
module attributes {stable_mosaic.version = 11 : i64} {
  func.func @_mm_kernel(%arg0: i32, %arg1: memref<512x27xbf16, #tpu.memory_space<vmem>>, %arg2: memref<27x128xbf16, #tpu.memory_space<vmem>>, %arg3: memref<1x128xf32, #tpu.memory_space<vmem>>, %arg4: memref<512x128xf32, #tpu.memory_space<vmem>>) attributes {dimension_semantics = [#tpu.dimension_semantics<parallel>], iteration_bounds = array<i64: 8>, scalar_prefetch = 0 : i64, scratch_operands = 0 : i64, tpu.core_type = #tpu.core_type<tc>, window_params = [{transform_indices = @transform_0, window_bounds = array<i64: 512, 27>}, {pipeline_mode = #tpu.pipeline_mode<synchronous>, transform_indices = @transform_1, window_bounds = array<i64: 27, 128>}, {pipeline_mode = #tpu.pipeline_mode<synchronous>, transform_indices = @transform_2, window_bounds = array<i64: 1, 128>}, {transform_indices = @transform_3, window_bounds = array<i64: 512, 128>}]} {
    %c0 = arith.constant 0 : index
    %c0_0 = arith.constant 0 : index
    %0 = vector.load %arg1[%c0, %c0_0] : memref<512x27xbf16, #tpu.memory_space<vmem>>, vector<512x27xbf16>
    %c0_1 = arith.constant 0 : index
    %c0_2 = arith.constant 0 : index
    %1 = vector.load %arg2[%c0_1, %c0_2] : memref<27x128xbf16, #tpu.memory_space<vmem>>, vector<27x128xbf16>
    %cst = arith.constant dense<0.000000e+00> : vector<512x128xf32>
    %2 = tpu.matmul %0, %1, %cst {dimension_numbers = #tpu.dot_dimension_numbers<[1], [0], [0], [1], [0, 0, 1, 1], [], []>} : vector<512x27xbf16>, vector<27x128xbf16>, vector<512x128xf32> -> vector<512x128xf32>
    %c0_3 = arith.constant 0 : index
    %c0_4 = arith.constant 0 : index
    %3 = vector.load %arg3[%c0_3, %c0_4] : memref<1x128xf32, #tpu.memory_space<vmem>>, vector<1x128xf32>
    %4 = vector.broadcast %3 : vector<1x128xf32> to vector<512x128xf32>
    %5 = arith.addf %2, %4 : vector<512x128xf32>
    %cst_5 = arith.constant 0.000000e+00 : f32
    %6 = vector.broadcast %cst_5 : f32 to vector<512x128xf32>
    %7 = arith.maximumf %5, %6 : vector<512x128xf32>
    %c0_6 = arith.constant 0 : index
    %c0_7 = arith.constant 0 : index
    %8 = vector.load %arg4[%c0_6, %c0_7] : memref<512x128xf32, #tpu.memory_space<vmem>>, vector<512x128xf32>
    tpu.vector_store %arg4[%c0_6, %c0_7], %7 {strides = array<i32>} : memref<512x128xf32, #tpu.memory_space<vmem>>, vector<512x128xf32>,
    return
  }
  func.func @transform_0(%arg0: i32) -> (i32, i32) {
    %c0_i32 = arith.constant 0 : i32
    %c0_i32_0 = arith.constant 0 : i32
    return %arg0, %c0_i32 : i32, i32
  }
  func.func @transform_1(%arg0: i32) -> (i32, i32) {
    %c0_i32 = arith.constant 0 : i32
    %c0_i32_0 = arith.constant 0 : i32
    %c0_i32_1 = arith.constant 0 : i32
    return %c0_i32, %c0_i32_0 : i32, i32
  }
  func.func @transform_2(%arg0: i32) -> (i32, i32) {
    %c0_i32 = arith.constant 0 : i32
    %c0_i32_0 = arith.constant 0 : i32
    %c0_i32_1 = arith.constant 0 : i32
    return %c0_i32, %c0_i32_0 : i32, i32
  }
  func.func @transform_3(%arg0: i32) -> (i32, i32) {
    %c0_i32 = arith.constant 0 : i32
    %c0_i32_0 = arith.constant 0 : i32
    return %arg0, %c0_i32 : i32, i32
  }
}

module attributes {stable_mosaic.version = 11 : i64} {
  func.func @_mm_kernel(%arg0: i32, %arg1: memref<512x16xbf16, #tpu.memory_space<vmem>>, %arg2: memref<16x128xbf16, #tpu.memory_space<vmem>>, %arg3: memref<1x128xf32, #tpu.memory_space<vmem>>, %arg4: memref<512x128xf32, #tpu.memory_space<vmem>>) attributes {dimension_semantics = [#tpu.dimension_semantics<parallel>], iteration_bounds = array<i64: 2>, scalar_prefetch = 0 : i64, scratch_operands = 0 : i64, tpu.core_type = #tpu.core_type<tc>, window_params = [{transform_indices = @transform_0, window_bounds = array<i64: 512, 16>}, {pipeline_mode = #tpu.pipeline_mode<synchronous>, transform_indices = @transform_1, window_bounds = array<i64: 16, 128>}, {pipeline_mode = #tpu.pipeline_mode<synchronous>, transform_indices = @transform_2, window_bounds = array<i64: 1, 128>}, {transform_indices = @transform_3, window_bounds = array<i64: 512, 128>}]} {
    %c0 = arith.constant 0 : index
    %c0_0 = arith.constant 0 : index
    %0 = vector.load %arg1[%c0, %c0_0] : memref<512x16xbf16, #tpu.memory_space<vmem>>, vector<512x16xbf16>
    %c0_1 = arith.constant 0 : index
    %c0_2 = arith.constant 0 : index
    %1 = vector.load %arg2[%c0_1, %c0_2] : memref<16x128xbf16, #tpu.memory_space<vmem>>, vector<16x128xbf16>
    %cst = arith.constant dense<0.000000e+00> : vector<512x128xf32>
    %2 = tpu.matmul %0, %1, %cst {dimension_numbers = #tpu.dot_dimension_numbers<[1], [0], [0], [1], [0, 0, 1, 1], [], []>} : vector<512x16xbf16>, vector<16x128xbf16>, vector<512x128xf32> -> vector<512x128xf32>
    %c0_3 = arith.constant 0 : index
    %c0_4 = arith.constant 0 : index
    %3 = vector.load %arg3[%c0_3, %c0_4] : memref<1x128xf32, #tpu.memory_space<vmem>>, vector<1x128xf32>
    %4 = vector.broadcast %3 : vector<1x128xf32> to vector<512x128xf32>
    %5 = arith.addf %2, %4 : vector<512x128xf32>
    %cst_5 = arith.constant 0.000000e+00 : f32
    %6 = vector.broadcast %cst_5 : f32 to vector<512x128xf32>
    %7 = arith.maximumf %5, %6 : vector<512x128xf32>
    %c0_6 = arith.constant 0 : index
    %c0_7 = arith.constant 0 : index
    %8 = vector.load %arg4[%c0_6, %c0_7] : memref<512x128xf32, #tpu.memory_space<vmem>>, vector<512x128xf32>
    tpu.vector_store %arg4[%c0_6, %c0_7], %7 {strides = array<i32>} : memref<512x128xf32, #tpu.memory_space<vmem>>, vector<512x128xf32>,
    return
  }
  func.func @transform_0(%arg0: i32) -> (i32, i32) {
    %c0_i32 = arith.constant 0 : i32
    %c0_i32_0 = arith.constant 0 : i32
    return %arg0, %c0_i32 : i32, i32
  }
  func.func @transform_1(%arg0: i32) -> (i32, i32) {
    %c0_i32 = arith.constant 0 : i32
    %c0_i32_0 = arith.constant 0 : i32
    %c0_i32_1 = arith.constant 0 : i32
    return %c0_i32, %c0_i32_0 : i32, i32
  }
  func.func @transform_2(%arg0: i32) -> (i32, i32) {
    %c0_i32 = arith.constant 0 : i32
    %c0_i32_0 = arith.constant 0 : i32
    %c0_i32_1 = arith.constant 0 : i32
    return %c0_i32, %c0_i32_0 : i32, i32
  }
  func.func @transform_3(%arg0: i32) -> (i32, i32) {
    %c0_i32 = arith.constant 0 : i32
    %c0_i32_0 = arith.constant 0 : i32
    return %arg0, %c0_i32 : i32, i32
  }
}

module attributes {stable_mosaic.version = 11 : i64} {
  func.func @_mm_kernel(%arg0: i32, %arg1: memref<512x16xbf16, #tpu.memory_space<vmem>>, %arg2: memref<16x128xbf16, #tpu.memory_space<vmem>>, %arg3: memref<1x128xf32, #tpu.memory_space<vmem>>, %arg4: memref<512x128xf32, #tpu.memory_space<vmem>>) attributes {dimension_semantics = [#tpu.dimension_semantics<parallel>], iteration_bounds = array<i64: 2>, scalar_prefetch = 0 : i64, scratch_operands = 0 : i64, tpu.core_type = #tpu.core_type<tc>, window_params = [{transform_indices = @transform_0, window_bounds = array<i64: 512, 16>}, {pipeline_mode = #tpu.pipeline_mode<synchronous>, transform_indices = @transform_1, window_bounds = array<i64: 16, 128>}, {pipeline_mode = #tpu.pipeline_mode<synchronous>, transform_indices = @transform_2, window_bounds = array<i64: 1, 128>}, {transform_indices = @transform_3, window_bounds = array<i64: 512, 128>}]} {
    %c0 = arith.constant 0 : index
    %c0_0 = arith.constant 0 : index
    %0 = vector.load %arg1[%c0, %c0_0] : memref<512x16xbf16, #tpu.memory_space<vmem>>, vector<512x16xbf16>
    %c0_1 = arith.constant 0 : index
    %c0_2 = arith.constant 0 : index
    %1 = vector.load %arg2[%c0_1, %c0_2] : memref<16x128xbf16, #tpu.memory_space<vmem>>, vector<16x128xbf16>
    %cst = arith.constant dense<0.000000e+00> : vector<512x128xf32>
    %2 = tpu.matmul %0, %1, %cst {dimension_numbers = #tpu.dot_dimension_numbers<[1], [0], [0], [1], [0, 0, 1, 1], [], []>} : vector<512x16xbf16>, vector<16x128xbf16>, vector<512x128xf32> -> vector<512x128xf32>
    %c0_3 = arith.constant 0 : index
    %c0_4 = arith.constant 0 : index
    %3 = vector.load %arg3[%c0_3, %c0_4] : memref<1x128xf32, #tpu.memory_space<vmem>>, vector<1x128xf32>
    %4 = vector.broadcast %3 : vector<1x128xf32> to vector<512x128xf32>
    %5 = arith.addf %2, %4 : vector<512x128xf32>
    %c0_5 = arith.constant 0 : index
    %c0_6 = arith.constant 0 : index
    %6 = vector.load %arg4[%c0_5, %c0_6] : memref<512x128xf32, #tpu.memory_space<vmem>>, vector<512x128xf32>
    tpu.vector_store %arg4[%c0_5, %c0_6], %5 {strides = array<i32>} : memref<512x128xf32, #tpu.memory_space<vmem>>, vector<512x128xf32>,
    return
  }
  func.func @transform_0(%arg0: i32) -> (i32, i32) {
    %c0_i32 = arith.constant 0 : i32
    %c0_i32_0 = arith.constant 0 : i32
    return %arg0, %c0_i32 : i32, i32
  }
  func.func @transform_1(%arg0: i32) -> (i32, i32) {
    %c0_i32 = arith.constant 0 : i32
    %c0_i32_0 = arith.constant 0 : i32
    %c0_i32_1 = arith.constant 0 : i32
    return %c0_i32, %c0_i32_0 : i32, i32
  }
  func.func @transform_2(%arg0: i32) -> (i32, i32) {
    %c0_i32 = arith.constant 0 : i32
    %c0_i32_0 = arith.constant 0 : i32
    %c0_i32_1 = arith.constant 0 : i32
    return %c0_i32, %c0_i32_0 : i32, i32
  }
  func.func @transform_3(%arg0: i32) -> (i32, i32) {
    %c0_i32 = arith.constant 0 : i32
    %c0_i32_0 = arith.constant 0 : i32
    return %arg0, %c0_i32 : i32, i32
  }
}

module attributes {stable_mosaic.version = 11 : i64} {
  func.func @_mm_res_kernel(%arg0: i32, %arg1: memref<512x144xbf16, #tpu.memory_space<vmem>>, %arg2: memref<144x128xbf16, #tpu.memory_space<vmem>>, %arg3: memref<1x128xf32, #tpu.memory_space<vmem>>, %arg4: memref<512x128xf32, #tpu.memory_space<vmem>>, %arg5: memref<512x128xf32, #tpu.memory_space<vmem>>) attributes {dimension_semantics = [#tpu.dimension_semantics<parallel>], iteration_bounds = array<i64: 2>, scalar_prefetch = 0 : i64, scratch_operands = 0 : i64, tpu.core_type = #tpu.core_type<tc>, window_params = [{transform_indices = @transform_0, window_bounds = array<i64: 512, 144>}, {pipeline_mode = #tpu.pipeline_mode<synchronous>, transform_indices = @transform_1, window_bounds = array<i64: 144, 128>}, {pipeline_mode = #tpu.pipeline_mode<synchronous>, transform_indices = @transform_2, window_bounds = array<i64: 1, 128>}, {transform_indices = @transform_3, window_bounds = array<i64: 512, 128>}, {transform_indices = @transform_4, window_bounds = array<i64: 512, 128>}]} {
    %c0 = arith.constant 0 : index
    %c0_0 = arith.constant 0 : index
    %0 = vector.load %arg1[%c0, %c0_0] : memref<512x144xbf16, #tpu.memory_space<vmem>>, vector<512x144xbf16>
    %c0_1 = arith.constant 0 : index
    %c0_2 = arith.constant 0 : index
    %1 = vector.load %arg2[%c0_1, %c0_2] : memref<144x128xbf16, #tpu.memory_space<vmem>>, vector<144x128xbf16>
    %cst = arith.constant dense<0.000000e+00> : vector<512x128xf32>
    %2 = tpu.matmul %0, %1, %cst {dimension_numbers = #tpu.dot_dimension_numbers<[1], [0], [0], [1], [0, 0, 1, 1], [], []>} : vector<512x144xbf16>, vector<144x128xbf16>, vector<512x128xf32> -> vector<512x128xf32>
    %c0_3 = arith.constant 0 : index
    %c0_4 = arith.constant 0 : index
    %3 = vector.load %arg3[%c0_3, %c0_4] : memref<1x128xf32, #tpu.memory_space<vmem>>, vector<1x128xf32>
    %4 = vector.broadcast %3 : vector<1x128xf32> to vector<512x128xf32>
    %5 = arith.addf %2, %4 : vector<512x128xf32>
    %c0_5 = arith.constant 0 : index
    %c0_6 = arith.constant 0 : index
    %6 = vector.load %arg4[%c0_5, %c0_6] : memref<512x128xf32, #tpu.memory_space<vmem>>, vector<512x128xf32>
    %7 = arith.addf %5, %6 : vector<512x128xf32>
    %cst_7 = arith.constant 0.000000e+00 : f32
    %8 = vector.broadcast %cst_7 : f32 to vector<512x128xf32>
    %9 = arith.maximumf %7, %8 : vector<512x128xf32>
    %c0_8 = arith.constant 0 : index
    %c0_9 = arith.constant 0 : index
    %10 = vector.load %arg5[%c0_8, %c0_9] : memref<512x128xf32, #tpu.memory_space<vmem>>, vector<512x128xf32>
    tpu.vector_store %arg5[%c0_8, %c0_9], %9 {strides = array<i32>} : memref<512x128xf32, #tpu.memory_space<vmem>>, vector<512x128xf32>,
    return
  }
  func.func @transform_0(%arg0: i32) -> (i32, i32) {
    %c0_i32 = arith.constant 0 : i32
    %c0_i32_0 = arith.constant 0 : i32
    return %arg0, %c0_i32 : i32, i32
  }
  func.func @transform_1(%arg0: i32) -> (i32, i32) {
    %c0_i32 = arith.constant 0 : i32
    %c0_i32_0 = arith.constant 0 : i32
    %c0_i32_1 = arith.constant 0 : i32
    return %c0_i32, %c0_i32_0 : i32, i32
  }
  func.func @transform_2(%arg0: i32) -> (i32, i32) {
    %c0_i32 = arith.constant 0 : i32
    %c0_i32_0 = arith.constant 0 : i32
    %c0_i32_1 = arith.constant 0 : i32
    return %c0_i32, %c0_i32_0 : i32, i32
  }
  func.func @transform_3(%arg0: i32) -> (i32, i32) {
    %c0_i32 = arith.constant 0 : i32
    %c0_i32_0 = arith.constant 0 : i32
    return %arg0, %c0_i32 : i32, i32
  }
  func.func @transform_4(%arg0: i32) -> (i32, i32) {
    %c0_i32 = arith.constant 0 : i32
    %c0_i32_0 = arith.constant 0 : i32
    return %arg0, %c0_i32 : i32, i32
  }
}

module attributes {stable_mosaic.version = 11 : i64} {
  func.func @_mm_kernel(%arg0: i32, %arg1: memref<256x16xbf16, #tpu.memory_space<vmem>>, %arg2: memref<16x128xbf16, #tpu.memory_space<vmem>>, %arg3: memref<1x128xf32, #tpu.memory_space<vmem>>, %arg4: memref<256x128xf32, #tpu.memory_space<vmem>>) attributes {dimension_semantics = [#tpu.dimension_semantics<parallel>], iteration_bounds = array<i64: 1>, scalar_prefetch = 0 : i64, scratch_operands = 0 : i64, tpu.core_type = #tpu.core_type<tc>, window_params = [{transform_indices = @transform_0, window_bounds = array<i64: 256, 16>}, {pipeline_mode = #tpu.pipeline_mode<synchronous>, transform_indices = @transform_1, window_bounds = array<i64: 16, 128>}, {pipeline_mode = #tpu.pipeline_mode<synchronous>, transform_indices = @transform_2, window_bounds = array<i64: 1, 128>}, {transform_indices = @transform_3, window_bounds = array<i64: 256, 128>}]} {
    %c0 = arith.constant 0 : index
    %c0_0 = arith.constant 0 : index
    %0 = vector.load %arg1[%c0, %c0_0] : memref<256x16xbf16, #tpu.memory_space<vmem>>, vector<256x16xbf16>
    %c0_1 = arith.constant 0 : index
    %c0_2 = arith.constant 0 : index
    %1 = vector.load %arg2[%c0_1, %c0_2] : memref<16x128xbf16, #tpu.memory_space<vmem>>, vector<16x128xbf16>
    %cst = arith.constant dense<0.000000e+00> : vector<256x128xf32>
    %2 = tpu.matmul %0, %1, %cst {dimension_numbers = #tpu.dot_dimension_numbers<[1], [0], [0], [1], [0, 0, 1, 1], [], []>} : vector<256x16xbf16>, vector<16x128xbf16>, vector<256x128xf32> -> vector<256x128xf32>
    %c0_3 = arith.constant 0 : index
    %c0_4 = arith.constant 0 : index
    %3 = vector.load %arg3[%c0_3, %c0_4] : memref<1x128xf32, #tpu.memory_space<vmem>>, vector<1x128xf32>
    %4 = vector.broadcast %3 : vector<1x128xf32> to vector<256x128xf32>
    %5 = arith.addf %2, %4 : vector<256x128xf32>
    %cst_5 = arith.constant 0.000000e+00 : f32
    %6 = vector.broadcast %cst_5 : f32 to vector<256x128xf32>
    %7 = arith.maximumf %5, %6 : vector<256x128xf32>
    %c0_6 = arith.constant 0 : index
    %c0_7 = arith.constant 0 : index
    %8 = vector.load %arg4[%c0_6, %c0_7] : memref<256x128xf32, #tpu.memory_space<vmem>>, vector<256x128xf32>
    tpu.vector_store %arg4[%c0_6, %c0_7], %7 {strides = array<i32>} : memref<256x128xf32, #tpu.memory_space<vmem>>, vector<256x128xf32>,
    return
  }
  func.func @transform_0(%arg0: i32) -> (i32, i32) {
    %c0_i32 = arith.constant 0 : i32
    %c0_i32_0 = arith.constant 0 : i32
    return %arg0, %c0_i32 : i32, i32
  }
  func.func @transform_1(%arg0: i32) -> (i32, i32) {
    %c0_i32 = arith.constant 0 : i32
    %c0_i32_0 = arith.constant 0 : i32
    %c0_i32_1 = arith.constant 0 : i32
    return %c0_i32, %c0_i32_0 : i32, i32
  }
  func.func @transform_2(%arg0: i32) -> (i32, i32) {
    %c0_i32 = arith.constant 0 : i32
    %c0_i32_0 = arith.constant 0 : i32
    %c0_i32_1 = arith.constant 0 : i32
    return %c0_i32, %c0_i32_0 : i32, i32
  }
  func.func @transform_3(%arg0: i32) -> (i32, i32) {
    %c0_i32 = arith.constant 0 : i32
    %c0_i32_0 = arith.constant 0 : i32
    return %arg0, %c0_i32 : i32, i32
  }
}

module attributes {stable_mosaic.version = 11 : i64} {
  func.func @_mm_kernel(%arg0: i32, %arg1: memref<256x16xbf16, #tpu.memory_space<vmem>>, %arg2: memref<16x128xbf16, #tpu.memory_space<vmem>>, %arg3: memref<1x128xf32, #tpu.memory_space<vmem>>, %arg4: memref<256x128xf32, #tpu.memory_space<vmem>>) attributes {dimension_semantics = [#tpu.dimension_semantics<parallel>], iteration_bounds = array<i64: 1>, scalar_prefetch = 0 : i64, scratch_operands = 0 : i64, tpu.core_type = #tpu.core_type<tc>, window_params = [{transform_indices = @transform_0, window_bounds = array<i64: 256, 16>}, {pipeline_mode = #tpu.pipeline_mode<synchronous>, transform_indices = @transform_1, window_bounds = array<i64: 16, 128>}, {pipeline_mode = #tpu.pipeline_mode<synchronous>, transform_indices = @transform_2, window_bounds = array<i64: 1, 128>}, {transform_indices = @transform_3, window_bounds = array<i64: 256, 128>}]} {
    %c0 = arith.constant 0 : index
    %c0_0 = arith.constant 0 : index
    %0 = vector.load %arg1[%c0, %c0_0] : memref<256x16xbf16, #tpu.memory_space<vmem>>, vector<256x16xbf16>
    %c0_1 = arith.constant 0 : index
    %c0_2 = arith.constant 0 : index
    %1 = vector.load %arg2[%c0_1, %c0_2] : memref<16x128xbf16, #tpu.memory_space<vmem>>, vector<16x128xbf16>
    %cst = arith.constant dense<0.000000e+00> : vector<256x128xf32>
    %2 = tpu.matmul %0, %1, %cst {dimension_numbers = #tpu.dot_dimension_numbers<[1], [0], [0], [1], [0, 0, 1, 1], [], []>} : vector<256x16xbf16>, vector<16x128xbf16>, vector<256x128xf32> -> vector<256x128xf32>
    %c0_3 = arith.constant 0 : index
    %c0_4 = arith.constant 0 : index
    %3 = vector.load %arg3[%c0_3, %c0_4] : memref<1x128xf32, #tpu.memory_space<vmem>>, vector<1x128xf32>
    %4 = vector.broadcast %3 : vector<1x128xf32> to vector<256x128xf32>
    %5 = arith.addf %2, %4 : vector<256x128xf32>
    %c0_5 = arith.constant 0 : index
    %c0_6 = arith.constant 0 : index
    %6 = vector.load %arg4[%c0_5, %c0_6] : memref<256x128xf32, #tpu.memory_space<vmem>>, vector<256x128xf32>
    tpu.vector_store %arg4[%c0_5, %c0_6], %5 {strides = array<i32>} : memref<256x128xf32, #tpu.memory_space<vmem>>, vector<256x128xf32>,
    return
  }
  func.func @transform_0(%arg0: i32) -> (i32, i32) {
    %c0_i32 = arith.constant 0 : i32
    %c0_i32_0 = arith.constant 0 : i32
    return %arg0, %c0_i32 : i32, i32
  }
  func.func @transform_1(%arg0: i32) -> (i32, i32) {
    %c0_i32 = arith.constant 0 : i32
    %c0_i32_0 = arith.constant 0 : i32
    %c0_i32_1 = arith.constant 0 : i32
    return %c0_i32, %c0_i32_0 : i32, i32
  }
  func.func @transform_2(%arg0: i32) -> (i32, i32) {
    %c0_i32 = arith.constant 0 : i32
    %c0_i32_0 = arith.constant 0 : i32
    %c0_i32_1 = arith.constant 0 : i32
    return %c0_i32, %c0_i32_0 : i32, i32
  }
  func.func @transform_3(%arg0: i32) -> (i32, i32) {
    %c0_i32 = arith.constant 0 : i32
    %c0_i32_0 = arith.constant 0 : i32
    return %arg0, %c0_i32 : i32, i32
  }
}

module attributes {stable_mosaic.version = 11 : i64} {
  func.func @_mm_kernel(%arg0: i32, %arg1: memref<128x32xbf16, #tpu.memory_space<vmem>>, %arg2: memref<32x128xbf16, #tpu.memory_space<vmem>>, %arg3: memref<1x128xf32, #tpu.memory_space<vmem>>, %arg4: memref<128x128xf32, #tpu.memory_space<vmem>>) attributes {dimension_semantics = [#tpu.dimension_semantics<parallel>], iteration_bounds = array<i64: 1>, scalar_prefetch = 0 : i64, scratch_operands = 0 : i64, tpu.core_type = #tpu.core_type<tc>, window_params = [{transform_indices = @transform_0, window_bounds = array<i64: 128, 32>}, {pipeline_mode = #tpu.pipeline_mode<synchronous>, transform_indices = @transform_1, window_bounds = array<i64: 32, 128>}, {pipeline_mode = #tpu.pipeline_mode<synchronous>, transform_indices = @transform_2, window_bounds = array<i64: 1, 128>}, {transform_indices = @transform_3, window_bounds = array<i64: 128, 128>}]} {
    %c0 = arith.constant 0 : index
    %c0_0 = arith.constant 0 : index
    %0 = vector.load %arg1[%c0, %c0_0] : memref<128x32xbf16, #tpu.memory_space<vmem>>, vector<128x32xbf16>
    %c0_1 = arith.constant 0 : index
    %c0_2 = arith.constant 0 : index
    %1 = vector.load %arg2[%c0_1, %c0_2] : memref<32x128xbf16, #tpu.memory_space<vmem>>, vector<32x128xbf16>
    %cst = arith.constant dense<0.000000e+00> : vector<128x128xf32>
    %2 = tpu.matmul %0, %1, %cst {dimension_numbers = #tpu.dot_dimension_numbers<[1], [0], [0], [1], [0, 0, 1, 1], [], []>} : vector<128x32xbf16>, vector<32x128xbf16>, vector<128x128xf32> -> vector<128x128xf32>
    %c0_3 = arith.constant 0 : index
    %c0_4 = arith.constant 0 : index
    %3 = vector.load %arg3[%c0_3, %c0_4] : memref<1x128xf32, #tpu.memory_space<vmem>>, vector<1x128xf32>
    %4 = vector.broadcast %3 : vector<1x128xf32> to vector<128x128xf32>
    %5 = arith.addf %2, %4 : vector<128x128xf32>
    %cst_5 = arith.constant 0.000000e+00 : f32
    %6 = vector.broadcast %cst_5 : f32 to vector<128x128xf32>
    %7 = arith.maximumf %5, %6 : vector<128x128xf32>
    %c0_6 = arith.constant 0 : index
    %c0_7 = arith.constant 0 : index
    %8 = vector.load %arg4[%c0_6, %c0_7] : memref<128x128xf32, #tpu.memory_space<vmem>>, vector<128x128xf32>
    tpu.vector_store %arg4[%c0_6, %c0_7], %7 {strides = array<i32>} : memref<128x128xf32, #tpu.memory_space<vmem>>, vector<128x128xf32>,
    return
  }
  func.func @transform_0(%arg0: i32) -> (i32, i32) {
    %c0_i32 = arith.constant 0 : i32
    %c0_i32_0 = arith.constant 0 : i32
    return %arg0, %c0_i32 : i32, i32
  }
  func.func @transform_1(%arg0: i32) -> (i32, i32) {
    %c0_i32 = arith.constant 0 : i32
    %c0_i32_0 = arith.constant 0 : i32
    %c0_i32_1 = arith.constant 0 : i32
    return %c0_i32, %c0_i32_0 : i32, i32
  }
  func.func @transform_2(%arg0: i32) -> (i32, i32) {
    %c0_i32 = arith.constant 0 : i32
    %c0_i32_0 = arith.constant 0 : i32
    %c0_i32_1 = arith.constant 0 : i32
    return %c0_i32, %c0_i32_0 : i32, i32
  }
  func.func @transform_3(%arg0: i32) -> (i32, i32) {
    %c0_i32 = arith.constant 0 : i32
    %c0_i32_0 = arith.constant 0 : i32
    return %arg0, %c0_i32 : i32, i32
  }
}

module attributes {stable_mosaic.version = 11 : i64} {
  func.func @_mm_res_kernel(%arg0: i32, %arg1: memref<256x288xbf16, #tpu.memory_space<vmem>>, %arg2: memref<288x128xbf16, #tpu.memory_space<vmem>>, %arg3: memref<1x128xf32, #tpu.memory_space<vmem>>, %arg4: memref<256x128xf32, #tpu.memory_space<vmem>>, %arg5: memref<256x128xf32, #tpu.memory_space<vmem>>) attributes {dimension_semantics = [#tpu.dimension_semantics<parallel>], iteration_bounds = array<i64: 1>, scalar_prefetch = 0 : i64, scratch_operands = 0 : i64, tpu.core_type = #tpu.core_type<tc>, window_params = [{transform_indices = @transform_0, window_bounds = array<i64: 256, 288>}, {pipeline_mode = #tpu.pipeline_mode<synchronous>, transform_indices = @transform_1, window_bounds = array<i64: 288, 128>}, {pipeline_mode = #tpu.pipeline_mode<synchronous>, transform_indices = @transform_2, window_bounds = array<i64: 1, 128>}, {transform_indices = @transform_3, window_bounds = array<i64: 256, 128>}, {transform_indices = @transform_4, window_bounds = array<i64: 256, 128>}]} {
    %c0 = arith.constant 0 : index
    %c0_0 = arith.constant 0 : index
    %0 = vector.load %arg1[%c0, %c0_0] : memref<256x288xbf16, #tpu.memory_space<vmem>>, vector<256x288xbf16>
    %c0_1 = arith.constant 0 : index
    %c0_2 = arith.constant 0 : index
    %1 = vector.load %arg2[%c0_1, %c0_2] : memref<288x128xbf16, #tpu.memory_space<vmem>>, vector<288x128xbf16>
    %cst = arith.constant dense<0.000000e+00> : vector<256x128xf32>
    %2 = tpu.matmul %0, %1, %cst {dimension_numbers = #tpu.dot_dimension_numbers<[1], [0], [0], [1], [0, 0, 1, 1], [], []>} : vector<256x288xbf16>, vector<288x128xbf16>, vector<256x128xf32> -> vector<256x128xf32>
    %c0_3 = arith.constant 0 : index
    %c0_4 = arith.constant 0 : index
    %3 = vector.load %arg3[%c0_3, %c0_4] : memref<1x128xf32, #tpu.memory_space<vmem>>, vector<1x128xf32>
    %4 = vector.broadcast %3 : vector<1x128xf32> to vector<256x128xf32>
    %5 = arith.addf %2, %4 : vector<256x128xf32>
    %c0_5 = arith.constant 0 : index
    %c0_6 = arith.constant 0 : index
    %6 = vector.load %arg4[%c0_5, %c0_6] : memref<256x128xf32, #tpu.memory_space<vmem>>, vector<256x128xf32>
    %7 = arith.addf %5, %6 : vector<256x128xf32>
    %cst_7 = arith.constant 0.000000e+00 : f32
    %8 = vector.broadcast %cst_7 : f32 to vector<256x128xf32>
    %9 = arith.maximumf %7, %8 : vector<256x128xf32>
    %c0_8 = arith.constant 0 : index
    %c0_9 = arith.constant 0 : index
    %10 = vector.load %arg5[%c0_8, %c0_9] : memref<256x128xf32, #tpu.memory_space<vmem>>, vector<256x128xf32>
    tpu.vector_store %arg5[%c0_8, %c0_9], %9 {strides = array<i32>} : memref<256x128xf32, #tpu.memory_space<vmem>>, vector<256x128xf32>,
    return
  }
  func.func @transform_0(%arg0: i32) -> (i32, i32) {
    %c0_i32 = arith.constant 0 : i32
    %c0_i32_0 = arith.constant 0 : i32
    return %arg0, %c0_i32 : i32, i32
  }
  func.func @transform_1(%arg0: i32) -> (i32, i32) {
    %c0_i32 = arith.constant 0 : i32
    %c0_i32_0 = arith.constant 0 : i32
    %c0_i32_1 = arith.constant 0 : i32
    return %c0_i32, %c0_i32_0 : i32, i32
  }
  func.func @transform_2(%arg0: i32) -> (i32, i32) {
    %c0_i32 = arith.constant 0 : i32
    %c0_i32_0 = arith.constant 0 : i32
    %c0_i32_1 = arith.constant 0 : i32
    return %c0_i32, %c0_i32_0 : i32, i32
  }
  func.func @transform_3(%arg0: i32) -> (i32, i32) {
    %c0_i32 = arith.constant 0 : i32
    %c0_i32_0 = arith.constant 0 : i32
    return %arg0, %c0_i32 : i32, i32
  }
  func.func @transform_4(%arg0: i32) -> (i32, i32) {
    %c0_i32 = arith.constant 0 : i32
    %c0_i32_0 = arith.constant 0 : i32
    return %arg0, %c0_i32 : i32, i32
  }
}

module attributes {stable_mosaic.version = 11 : i64} {
  func.func @_mm_res_kernel(%arg0: i32, %arg1: memref<128x288xbf16, #tpu.memory_space<vmem>>, %arg2: memref<288x128xbf16, #tpu.memory_space<vmem>>, %arg3: memref<1x128xf32, #tpu.memory_space<vmem>>, %arg4: memref<128x128xf32, #tpu.memory_space<vmem>>, %arg5: memref<128x128xf32, #tpu.memory_space<vmem>>) attributes {dimension_semantics = [#tpu.dimension_semantics<parallel>], iteration_bounds = array<i64: 1>, scalar_prefetch = 0 : i64, scratch_operands = 0 : i64, tpu.core_type = #tpu.core_type<tc>, window_params = [{transform_indices = @transform_0, window_bounds = array<i64: 128, 288>}, {pipeline_mode = #tpu.pipeline_mode<synchronous>, transform_indices = @transform_1, window_bounds = array<i64: 288, 128>}, {pipeline_mode = #tpu.pipeline_mode<synchronous>, transform_indices = @transform_2, window_bounds = array<i64: 1, 128>}, {transform_indices = @transform_3, window_bounds = array<i64: 128, 128>}, {transform_indices = @transform_4, window_bounds = array<i64: 128, 128>}]} {
    %c0 = arith.constant 0 : index
    %c0_0 = arith.constant 0 : index
    %0 = vector.load %arg1[%c0, %c0_0] : memref<128x288xbf16, #tpu.memory_space<vmem>>, vector<128x288xbf16>
    %c0_1 = arith.constant 0 : index
    %c0_2 = arith.constant 0 : index
    %1 = vector.load %arg2[%c0_1, %c0_2] : memref<288x128xbf16, #tpu.memory_space<vmem>>, vector<288x128xbf16>
    %cst = arith.constant dense<0.000000e+00> : vector<128x128xf32>
    %2 = tpu.matmul %0, %1, %cst {dimension_numbers = #tpu.dot_dimension_numbers<[1], [0], [0], [1], [0, 0, 1, 1], [], []>} : vector<128x288xbf16>, vector<288x128xbf16>, vector<128x128xf32> -> vector<128x128xf32>
    %c0_3 = arith.constant 0 : index
    %c0_4 = arith.constant 0 : index
    %3 = vector.load %arg3[%c0_3, %c0_4] : memref<1x128xf32, #tpu.memory_space<vmem>>, vector<1x128xf32>
    %4 = vector.broadcast %3 : vector<1x128xf32> to vector<128x128xf32>
    %5 = arith.addf %2, %4 : vector<128x128xf32>
    %c0_5 = arith.constant 0 : index
    %c0_6 = arith.constant 0 : index
    %6 = vector.load %arg4[%c0_5, %c0_6] : memref<128x128xf32, #tpu.memory_space<vmem>>, vector<128x128xf32>
    %7 = arith.addf %5, %6 : vector<128x128xf32>
    %cst_7 = arith.constant 0.000000e+00 : f32
    %8 = vector.broadcast %cst_7 : f32 to vector<128x128xf32>
    %9 = arith.maximumf %7, %8 : vector<128x128xf32>
    %c0_8 = arith.constant 0 : index
    %c0_9 = arith.constant 0 : index
    %10 = vector.load %arg5[%c0_8, %c0_9] : memref<128x128xf32, #tpu.memory_space<vmem>>, vector<128x128xf32>
    tpu.vector_store %arg5[%c0_8, %c0_9], %9 {strides = array<i32>} : memref<128x128xf32, #tpu.memory_space<vmem>>, vector<128x128xf32>,
    return
  }
  func.func @transform_0(%arg0: i32) -> (i32, i32) {
    %c0_i32 = arith.constant 0 : i32
    %c0_i32_0 = arith.constant 0 : i32
    return %arg0, %c0_i32 : i32, i32
  }
  func.func @transform_1(%arg0: i32) -> (i32, i32) {
    %c0_i32 = arith.constant 0 : i32
    %c0_i32_0 = arith.constant 0 : i32
    %c0_i32_1 = arith.constant 0 : i32
    return %c0_i32, %c0_i32_0 : i32, i32
  }
  func.func @transform_2(%arg0: i32) -> (i32, i32) {
    %c0_i32 = arith.constant 0 : i32
    %c0_i32_0 = arith.constant 0 : i32
    %c0_i32_1 = arith.constant 0 : i32
    return %c0_i32, %c0_i32_0 : i32, i32
  }
  func.func @transform_3(%arg0: i32) -> (i32, i32) {
    %c0_i32 = arith.constant 0 : i32
    %c0_i32_0 = arith.constant 0 : i32
    return %arg0, %c0_i32 : i32, i32
  }
  func.func @transform_4(%arg0: i32) -> (i32, i32) {
    %c0_i32 = arith.constant 0 : i32
    %c0_i32_0 = arith.constant 0 : i32
    return %arg0, %c0_i32 : i32, i32
  }
}

module attributes {stable_mosaic.version = 11 : i64} {
  func.func @_mm_kernel(%arg0: i32, %arg1: memref<64x32xbf16, #tpu.memory_space<vmem>>, %arg2: memref<32x128xbf16, #tpu.memory_space<vmem>>, %arg3: memref<1x128xf32, #tpu.memory_space<vmem>>, %arg4: memref<64x128xf32, #tpu.memory_space<vmem>>) attributes {dimension_semantics = [#tpu.dimension_semantics<parallel>], iteration_bounds = array<i64: 1>, scalar_prefetch = 0 : i64, scratch_operands = 0 : i64, tpu.core_type = #tpu.core_type<tc>, window_params = [{transform_indices = @transform_0, window_bounds = array<i64: 64, 32>}, {pipeline_mode = #tpu.pipeline_mode<synchronous>, transform_indices = @transform_1, window_bounds = array<i64: 32, 128>}, {pipeline_mode = #tpu.pipeline_mode<synchronous>, transform_indices = @transform_2, window_bounds = array<i64: 1, 128>}, {transform_indices = @transform_3, window_bounds = array<i64: 64, 128>}]} {
    %c0 = arith.constant 0 : index
    %c0_0 = arith.constant 0 : index
    %0 = vector.load %arg1[%c0, %c0_0] : memref<64x32xbf16, #tpu.memory_space<vmem>>, vector<64x32xbf16>
    %c0_1 = arith.constant 0 : index
    %c0_2 = arith.constant 0 : index
    %1 = vector.load %arg2[%c0_1, %c0_2] : memref<32x128xbf16, #tpu.memory_space<vmem>>, vector<32x128xbf16>
    %cst = arith.constant dense<0.000000e+00> : vector<64x128xf32>
    %2 = tpu.matmul %0, %1, %cst {dimension_numbers = #tpu.dot_dimension_numbers<[1], [0], [0], [1], [0, 0, 1, 1], [], []>} : vector<64x32xbf16>, vector<32x128xbf16>, vector<64x128xf32> -> vector<64x128xf32>
    %c0_3 = arith.constant 0 : index
    %c0_4 = arith.constant 0 : index
    %3 = vector.load %arg3[%c0_3, %c0_4] : memref<1x128xf32, #tpu.memory_space<vmem>>, vector<1x128xf32>
    %4 = vector.broadcast %3 : vector<1x128xf32> to vector<64x128xf32>
    %5 = arith.addf %2, %4 : vector<64x128xf32>
    %cst_5 = arith.constant 0.000000e+00 : f32
    %6 = vector.broadcast %cst_5 : f32 to vector<64x128xf32>
    %7 = arith.maximumf %5, %6 : vector<64x128xf32>
    %c0_6 = arith.constant 0 : index
    %c0_7 = arith.constant 0 : index
    %8 = vector.load %arg4[%c0_6, %c0_7] : memref<64x128xf32, #tpu.memory_space<vmem>>, vector<64x128xf32>
    tpu.vector_store %arg4[%c0_6, %c0_7], %7 {strides = array<i32>} : memref<64x128xf32, #tpu.memory_space<vmem>>, vector<64x128xf32>,
    return
  }
  func.func @transform_0(%arg0: i32) -> (i32, i32) {
    %c0_i32 = arith.constant 0 : i32
    %c0_i32_0 = arith.constant 0 : i32
    return %arg0, %c0_i32 : i32, i32
  }
  func.func @transform_1(%arg0: i32) -> (i32, i32) {
    %c0_i32 = arith.constant 0 : i32
    %c0_i32_0 = arith.constant 0 : i32
    %c0_i32_1 = arith.constant 0 : i32
    return %c0_i32, %c0_i32_0 : i32, i32
  }
  func.func @transform_2(%arg0: i32) -> (i32, i32) {
    %c0_i32 = arith.constant 0 : i32
    %c0_i32_0 = arith.constant 0 : i32
    %c0_i32_1 = arith.constant 0 : i32
    return %c0_i32, %c0_i32_0 : i32, i32
  }
  func.func @transform_3(%arg0: i32) -> (i32, i32) {
    %c0_i32 = arith.constant 0 : i32
    %c0_i32_0 = arith.constant 0 : i32
    return %arg0, %c0_i32 : i32, i32
  }
}

module attributes {stable_mosaic.version = 11 : i64} {
  func.func @_mm_kernel(%arg0: i32, %arg1: memref<128x32xbf16, #tpu.memory_space<vmem>>, %arg2: memref<32x128xbf16, #tpu.memory_space<vmem>>, %arg3: memref<1x128xf32, #tpu.memory_space<vmem>>, %arg4: memref<128x128xf32, #tpu.memory_space<vmem>>) attributes {dimension_semantics = [#tpu.dimension_semantics<parallel>], iteration_bounds = array<i64: 1>, scalar_prefetch = 0 : i64, scratch_operands = 0 : i64, tpu.core_type = #tpu.core_type<tc>, window_params = [{transform_indices = @transform_0, window_bounds = array<i64: 128, 32>}, {pipeline_mode = #tpu.pipeline_mode<synchronous>, transform_indices = @transform_1, window_bounds = array<i64: 32, 128>}, {pipeline_mode = #tpu.pipeline_mode<synchronous>, transform_indices = @transform_2, window_bounds = array<i64: 1, 128>}, {transform_indices = @transform_3, window_bounds = array<i64: 128, 128>}]} {
    %c0 = arith.constant 0 : index
    %c0_0 = arith.constant 0 : index
    %0 = vector.load %arg1[%c0, %c0_0] : memref<128x32xbf16, #tpu.memory_space<vmem>>, vector<128x32xbf16>
    %c0_1 = arith.constant 0 : index
    %c0_2 = arith.constant 0 : index
    %1 = vector.load %arg2[%c0_1, %c0_2] : memref<32x128xbf16, #tpu.memory_space<vmem>>, vector<32x128xbf16>
    %cst = arith.constant dense<0.000000e+00> : vector<128x128xf32>
    %2 = tpu.matmul %0, %1, %cst {dimension_numbers = #tpu.dot_dimension_numbers<[1], [0], [0], [1], [0, 0, 1, 1], [], []>} : vector<128x32xbf16>, vector<32x128xbf16>, vector<128x128xf32> -> vector<128x128xf32>
    %c0_3 = arith.constant 0 : index
    %c0_4 = arith.constant 0 : index
    %3 = vector.load %arg3[%c0_3, %c0_4] : memref<1x128xf32, #tpu.memory_space<vmem>>, vector<1x128xf32>
    %4 = vector.broadcast %3 : vector<1x128xf32> to vector<128x128xf32>
    %5 = arith.addf %2, %4 : vector<128x128xf32>
    %c0_5 = arith.constant 0 : index
    %c0_6 = arith.constant 0 : index
    %6 = vector.load %arg4[%c0_5, %c0_6] : memref<128x128xf32, #tpu.memory_space<vmem>>, vector<128x128xf32>
    tpu.vector_store %arg4[%c0_5, %c0_6], %5 {strides = array<i32>} : memref<128x128xf32, #tpu.memory_space<vmem>>, vector<128x128xf32>,
    return
  }
  func.func @transform_0(%arg0: i32) -> (i32, i32) {
    %c0_i32 = arith.constant 0 : i32
    %c0_i32_0 = arith.constant 0 : i32
    return %arg0, %c0_i32 : i32, i32
  }
  func.func @transform_1(%arg0: i32) -> (i32, i32) {
    %c0_i32 = arith.constant 0 : i32
    %c0_i32_0 = arith.constant 0 : i32
    %c0_i32_1 = arith.constant 0 : i32
    return %c0_i32, %c0_i32_0 : i32, i32
  }
  func.func @transform_2(%arg0: i32) -> (i32, i32) {
    %c0_i32 = arith.constant 0 : i32
    %c0_i32_0 = arith.constant 0 : i32
    %c0_i32_1 = arith.constant 0 : i32
    return %c0_i32, %c0_i32_0 : i32, i32
  }
  func.func @transform_3(%arg0: i32) -> (i32, i32) {
    %c0_i32 = arith.constant 0 : i32
    %c0_i32_0 = arith.constant 0 : i32
    return %arg0, %c0_i32 : i32, i32
  }
}

module attributes {stable_mosaic.version = 11 : i64} {
  func.func @_mm_kernel(%arg0: i32, %arg1: memref<64x32xbf16, #tpu.memory_space<vmem>>, %arg2: memref<32x128xbf16, #tpu.memory_space<vmem>>, %arg3: memref<1x128xf32, #tpu.memory_space<vmem>>, %arg4: memref<64x128xf32, #tpu.memory_space<vmem>>) attributes {dimension_semantics = [#tpu.dimension_semantics<parallel>], iteration_bounds = array<i64: 1>, scalar_prefetch = 0 : i64, scratch_operands = 0 : i64, tpu.core_type = #tpu.core_type<tc>, window_params = [{transform_indices = @transform_0, window_bounds = array<i64: 64, 32>}, {pipeline_mode = #tpu.pipeline_mode<synchronous>, transform_indices = @transform_1, window_bounds = array<i64: 32, 128>}, {pipeline_mode = #tpu.pipeline_mode<synchronous>, transform_indices = @transform_2, window_bounds = array<i64: 1, 128>}, {transform_indices = @transform_3, window_bounds = array<i64: 64, 128>}]} {
    %c0 = arith.constant 0 : index
    %c0_0 = arith.constant 0 : index
    %0 = vector.load %arg1[%c0, %c0_0] : memref<64x32xbf16, #tpu.memory_space<vmem>>, vector<64x32xbf16>
    %c0_1 = arith.constant 0 : index
    %c0_2 = arith.constant 0 : index
    %1 = vector.load %arg2[%c0_1, %c0_2] : memref<32x128xbf16, #tpu.memory_space<vmem>>, vector<32x128xbf16>
    %cst = arith.constant dense<0.000000e+00> : vector<64x128xf32>
    %2 = tpu.matmul %0, %1, %cst {dimension_numbers = #tpu.dot_dimension_numbers<[1], [0], [0], [1], [0, 0, 1, 1], [], []>} : vector<64x32xbf16>, vector<32x128xbf16>, vector<64x128xf32> -> vector<64x128xf32>
    %c0_3 = arith.constant 0 : index
    %c0_4 = arith.constant 0 : index
    %3 = vector.load %arg3[%c0_3, %c0_4] : memref<1x128xf32, #tpu.memory_space<vmem>>, vector<1x128xf32>
    %4 = vector.broadcast %3 : vector<1x128xf32> to vector<64x128xf32>
    %5 = arith.addf %2, %4 : vector<64x128xf32>
    %c0_5 = arith.constant 0 : index
    %c0_6 = arith.constant 0 : index
    %6 = vector.load %arg4[%c0_5, %c0_6] : memref<64x128xf32, #tpu.memory_space<vmem>>, vector<64x128xf32>
    tpu.vector_store %arg4[%c0_5, %c0_6], %5 {strides = array<i32>} : memref<64x128xf32, #tpu.memory_space<vmem>>, vector<64x128xf32>,
    return
  }
  func.func @transform_0(%arg0: i32) -> (i32, i32) {
    %c0_i32 = arith.constant 0 : i32
    %c0_i32_0 = arith.constant 0 : i32
    return %arg0, %c0_i32 : i32, i32
  }
  func.func @transform_1(%arg0: i32) -> (i32, i32) {
    %c0_i32 = arith.constant 0 : i32
    %c0_i32_0 = arith.constant 0 : i32
    %c0_i32_1 = arith.constant 0 : i32
    return %c0_i32, %c0_i32_0 : i32, i32
  }
  func.func @transform_2(%arg0: i32) -> (i32, i32) {
    %c0_i32 = arith.constant 0 : i32
    %c0_i32_0 = arith.constant 0 : i32
    %c0_i32_1 = arith.constant 0 : i32
    return %c0_i32, %c0_i32_0 : i32, i32
  }
  func.func @transform_3(%arg0: i32) -> (i32, i32) {
    %c0_i32 = arith.constant 0 : i32
    %c0_i32_0 = arith.constant 0 : i32
    return %arg0, %c0_i32 : i32, i32
  }
}

module attributes {stable_mosaic.version = 11 : i64} {
  func.func @_mm_kernel(%arg0: i32, %arg1: memref<32x64xbf16, #tpu.memory_space<vmem>>, %arg2: memref<64x128xbf16, #tpu.memory_space<vmem>>, %arg3: memref<1x128xf32, #tpu.memory_space<vmem>>, %arg4: memref<32x128xf32, #tpu.memory_space<vmem>>) attributes {dimension_semantics = [#tpu.dimension_semantics<parallel>], iteration_bounds = array<i64: 1>, scalar_prefetch = 0 : i64, scratch_operands = 0 : i64, tpu.core_type = #tpu.core_type<tc>, window_params = [{transform_indices = @transform_0, window_bounds = array<i64: 32, 64>}, {pipeline_mode = #tpu.pipeline_mode<synchronous>, transform_indices = @transform_1, window_bounds = array<i64: 64, 128>}, {pipeline_mode = #tpu.pipeline_mode<synchronous>, transform_indices = @transform_2, window_bounds = array<i64: 1, 128>}, {transform_indices = @transform_3, window_bounds = array<i64: 32, 128>}]} {
    %c0 = arith.constant 0 : index
    %c0_0 = arith.constant 0 : index
    %0 = vector.load %arg1[%c0, %c0_0] : memref<32x64xbf16, #tpu.memory_space<vmem>>, vector<32x64xbf16>
    %c0_1 = arith.constant 0 : index
    %c0_2 = arith.constant 0 : index
    %1 = vector.load %arg2[%c0_1, %c0_2] : memref<64x128xbf16, #tpu.memory_space<vmem>>, vector<64x128xbf16>
    %cst = arith.constant dense<0.000000e+00> : vector<32x128xf32>
    %2 = tpu.matmul %0, %1, %cst {dimension_numbers = #tpu.dot_dimension_numbers<[1], [0], [0], [1], [0, 0, 1, 1], [], []>} : vector<32x64xbf16>, vector<64x128xbf16>, vector<32x128xf32> -> vector<32x128xf32>
    %c0_3 = arith.constant 0 : index
    %c0_4 = arith.constant 0 : index
    %3 = vector.load %arg3[%c0_3, %c0_4] : memref<1x128xf32, #tpu.memory_space<vmem>>, vector<1x128xf32>
    %4 = vector.broadcast %3 : vector<1x128xf32> to vector<32x128xf32>
    %5 = arith.addf %2, %4 : vector<32x128xf32>
    %cst_5 = arith.constant 0.000000e+00 : f32
    %6 = vector.broadcast %cst_5 : f32 to vector<32x128xf32>
    %7 = arith.maximumf %5, %6 : vector<32x128xf32>
    %c0_6 = arith.constant 0 : index
    %c0_7 = arith.constant 0 : index
    %8 = vector.load %arg4[%c0_6, %c0_7] : memref<32x128xf32, #tpu.memory_space<vmem>>, vector<32x128xf32>
    tpu.vector_store %arg4[%c0_6, %c0_7], %7 {strides = array<i32>} : memref<32x128xf32, #tpu.memory_space<vmem>>, vector<32x128xf32>,
    return
  }
  func.func @transform_0(%arg0: i32) -> (i32, i32) {
    %c0_i32 = arith.constant 0 : i32
    %c0_i32_0 = arith.constant 0 : i32
    return %arg0, %c0_i32 : i32, i32
  }
  func.func @transform_1(%arg0: i32) -> (i32, i32) {
    %c0_i32 = arith.constant 0 : i32
    %c0_i32_0 = arith.constant 0 : i32
    %c0_i32_1 = arith.constant 0 : i32
    return %c0_i32, %c0_i32_0 : i32, i32
  }
  func.func @transform_2(%arg0: i32) -> (i32, i32) {
    %c0_i32 = arith.constant 0 : i32
    %c0_i32_0 = arith.constant 0 : i32
    %c0_i32_1 = arith.constant 0 : i32
    return %c0_i32, %c0_i32_0 : i32, i32
  }
  func.func @transform_3(%arg0: i32) -> (i32, i32) {
    %c0_i32 = arith.constant 0 : i32
    %c0_i32_0 = arith.constant 0 : i32
    return %arg0, %c0_i32 : i32, i32
  }
}

module attributes {stable_mosaic.version = 11 : i64} {
  func.func @_mm_res_kernel(%arg0: i32, %arg1: memref<64x576xbf16, #tpu.memory_space<vmem>>, %arg2: memref<576x128xbf16, #tpu.memory_space<vmem>>, %arg3: memref<1x128xf32, #tpu.memory_space<vmem>>, %arg4: memref<64x128xf32, #tpu.memory_space<vmem>>, %arg5: memref<64x128xf32, #tpu.memory_space<vmem>>) attributes {dimension_semantics = [#tpu.dimension_semantics<parallel>], iteration_bounds = array<i64: 1>, scalar_prefetch = 0 : i64, scratch_operands = 0 : i64, tpu.core_type = #tpu.core_type<tc>, window_params = [{transform_indices = @transform_0, window_bounds = array<i64: 64, 576>}, {pipeline_mode = #tpu.pipeline_mode<synchronous>, transform_indices = @transform_1, window_bounds = array<i64: 576, 128>}, {pipeline_mode = #tpu.pipeline_mode<synchronous>, transform_indices = @transform_2, window_bounds = array<i64: 1, 128>}, {transform_indices = @transform_3, window_bounds = array<i64: 64, 128>}, {transform_indices = @transform_4, window_bounds = array<i64: 64, 128>}]} {
    %c0 = arith.constant 0 : index
    %c0_0 = arith.constant 0 : index
    %0 = vector.load %arg1[%c0, %c0_0] : memref<64x576xbf16, #tpu.memory_space<vmem>>, vector<64x576xbf16>
    %c0_1 = arith.constant 0 : index
    %c0_2 = arith.constant 0 : index
    %1 = vector.load %arg2[%c0_1, %c0_2] : memref<576x128xbf16, #tpu.memory_space<vmem>>, vector<576x128xbf16>
    %cst = arith.constant dense<0.000000e+00> : vector<64x128xf32>
    %2 = tpu.matmul %0, %1, %cst {dimension_numbers = #tpu.dot_dimension_numbers<[1], [0], [0], [1], [0, 0, 1, 1], [], []>} : vector<64x576xbf16>, vector<576x128xbf16>, vector<64x128xf32> -> vector<64x128xf32>
    %c0_3 = arith.constant 0 : index
    %c0_4 = arith.constant 0 : index
    %3 = vector.load %arg3[%c0_3, %c0_4] : memref<1x128xf32, #tpu.memory_space<vmem>>, vector<1x128xf32>
    %4 = vector.broadcast %3 : vector<1x128xf32> to vector<64x128xf32>
    %5 = arith.addf %2, %4 : vector<64x128xf32>
    %c0_5 = arith.constant 0 : index
    %c0_6 = arith.constant 0 : index
    %6 = vector.load %arg4[%c0_5, %c0_6] : memref<64x128xf32, #tpu.memory_space<vmem>>, vector<64x128xf32>
    %7 = arith.addf %5, %6 : vector<64x128xf32>
    %cst_7 = arith.constant 0.000000e+00 : f32
    %8 = vector.broadcast %cst_7 : f32 to vector<64x128xf32>
    %9 = arith.maximumf %7, %8 : vector<64x128xf32>
    %c0_8 = arith.constant 0 : index
    %c0_9 = arith.constant 0 : index
    %10 = vector.load %arg5[%c0_8, %c0_9] : memref<64x128xf32, #tpu.memory_space<vmem>>, vector<64x128xf32>
    tpu.vector_store %arg5[%c0_8, %c0_9], %9 {strides = array<i32>} : memref<64x128xf32, #tpu.memory_space<vmem>>, vector<64x128xf32>,
    return
  }
  func.func @transform_0(%arg0: i32) -> (i32, i32) {
    %c0_i32 = arith.constant 0 : i32
    %c0_i32_0 = arith.constant 0 : i32
    return %arg0, %c0_i32 : i32, i32
  }
  func.func @transform_1(%arg0: i32) -> (i32, i32) {
    %c0_i32 = arith.constant 0 : i32
    %c0_i32_0 = arith.constant 0 : i32
    %c0_i32_1 = arith.constant 0 : i32
    return %c0_i32, %c0_i32_0 : i32, i32
  }
  func.func @transform_2(%arg0: i32) -> (i32, i32) {
    %c0_i32 = arith.constant 0 : i32
    %c0_i32_0 = arith.constant 0 : i32
    %c0_i32_1 = arith.constant 0 : i32
    return %c0_i32, %c0_i32_0 : i32, i32
  }
  func.func @transform_3(%arg0: i32) -> (i32, i32) {
    %c0_i32 = arith.constant 0 : i32
    %c0_i32_0 = arith.constant 0 : i32
    return %arg0, %c0_i32 : i32, i32
  }
  func.func @transform_4(%arg0: i32) -> (i32, i32) {
    %c0_i32 = arith.constant 0 : i32
    %c0_i32_0 = arith.constant 0 : i32
    return %arg0, %c0_i32 : i32, i32
  }
}

module attributes {stable_mosaic.version = 11 : i64} {
  func.func @_mm_kernel(%arg0: i32, %arg1: memref<32x64xbf16, #tpu.memory_space<vmem>>, %arg2: memref<64x128xbf16, #tpu.memory_space<vmem>>, %arg3: memref<1x128xf32, #tpu.memory_space<vmem>>, %arg4: memref<32x128xf32, #tpu.memory_space<vmem>>) attributes {dimension_semantics = [#tpu.dimension_semantics<parallel>], iteration_bounds = array<i64: 1>, scalar_prefetch = 0 : i64, scratch_operands = 0 : i64, tpu.core_type = #tpu.core_type<tc>, window_params = [{transform_indices = @transform_0, window_bounds = array<i64: 32, 64>}, {pipeline_mode = #tpu.pipeline_mode<synchronous>, transform_indices = @transform_1, window_bounds = array<i64: 64, 128>}, {pipeline_mode = #tpu.pipeline_mode<synchronous>, transform_indices = @transform_2, window_bounds = array<i64: 1, 128>}, {transform_indices = @transform_3, window_bounds = array<i64: 32, 128>}]} {
    %c0 = arith.constant 0 : index
    %c0_0 = arith.constant 0 : index
    %0 = vector.load %arg1[%c0, %c0_0] : memref<32x64xbf16, #tpu.memory_space<vmem>>, vector<32x64xbf16>
    %c0_1 = arith.constant 0 : index
    %c0_2 = arith.constant 0 : index
    %1 = vector.load %arg2[%c0_1, %c0_2] : memref<64x128xbf16, #tpu.memory_space<vmem>>, vector<64x128xbf16>
    %cst = arith.constant dense<0.000000e+00> : vector<32x128xf32>
    %2 = tpu.matmul %0, %1, %cst {dimension_numbers = #tpu.dot_dimension_numbers<[1], [0], [0], [1], [0, 0, 1, 1], [], []>} : vector<32x64xbf16>, vector<64x128xbf16>, vector<32x128xf32> -> vector<32x128xf32>
    %c0_3 = arith.constant 0 : index
    %c0_4 = arith.constant 0 : index
    %3 = vector.load %arg3[%c0_3, %c0_4] : memref<1x128xf32, #tpu.memory_space<vmem>>, vector<1x128xf32>
    %4 = vector.broadcast %3 : vector<1x128xf32> to vector<32x128xf32>
    %5 = arith.addf %2, %4 : vector<32x128xf32>
    %c0_5 = arith.constant 0 : index
    %c0_6 = arith.constant 0 : index
    %6 = vector.load %arg4[%c0_5, %c0_6] : memref<32x128xf32, #tpu.memory_space<vmem>>, vector<32x128xf32>
    tpu.vector_store %arg4[%c0_5, %c0_6], %5 {strides = array<i32>} : memref<32x128xf32, #tpu.memory_space<vmem>>, vector<32x128xf32>,
    return
  }
  func.func @transform_0(%arg0: i32) -> (i32, i32) {
    %c0_i32 = arith.constant 0 : i32
    %c0_i32_0 = arith.constant 0 : i32
    return %arg0, %c0_i32 : i32, i32
  }
  func.func @transform_1(%arg0: i32) -> (i32, i32) {
    %c0_i32 = arith.constant 0 : i32
    %c0_i32_0 = arith.constant 0 : i32
    %c0_i32_1 = arith.constant 0 : i32
    return %c0_i32, %c0_i32_0 : i32, i32
  }
  func.func @transform_2(%arg0: i32) -> (i32, i32) {
    %c0_i32 = arith.constant 0 : i32
    %c0_i32_0 = arith.constant 0 : i32
    %c0_i32_1 = arith.constant 0 : i32
    return %c0_i32, %c0_i32_0 : i32, i32
  }
  func.func @transform_3(%arg0: i32) -> (i32, i32) {
    %c0_i32 = arith.constant 0 : i32
    %c0_i32_0 = arith.constant 0 : i32
    return %arg0, %c0_i32 : i32, i32
  }
}

module attributes {stable_mosaic.version = 11 : i64} {
  func.func @_mm_kernel(%arg0: i32, %arg1: memref<32x64xbf16, #tpu.memory_space<vmem>>, %arg2: memref<64x256xbf16, #tpu.memory_space<vmem>>, %arg3: memref<1x256xf32, #tpu.memory_space<vmem>>, %arg4: memref<32x256xf32, #tpu.memory_space<vmem>>) attributes {dimension_semantics = [#tpu.dimension_semantics<parallel>], iteration_bounds = array<i64: 1>, scalar_prefetch = 0 : i64, scratch_operands = 0 : i64, tpu.core_type = #tpu.core_type<tc>, window_params = [{transform_indices = @transform_0, window_bounds = array<i64: 32, 64>}, {pipeline_mode = #tpu.pipeline_mode<synchronous>, transform_indices = @transform_1, window_bounds = array<i64: 64, 256>}, {pipeline_mode = #tpu.pipeline_mode<synchronous>, transform_indices = @transform_2, window_bounds = array<i64: 1, 256>}, {transform_indices = @transform_3, window_bounds = array<i64: 32, 256>}]} {
    %c0 = arith.constant 0 : index
    %c0_0 = arith.constant 0 : index
    %0 = vector.load %arg1[%c0, %c0_0] : memref<32x64xbf16, #tpu.memory_space<vmem>>, vector<32x64xbf16>
    %c0_1 = arith.constant 0 : index
    %c0_2 = arith.constant 0 : index
    %1 = vector.load %arg2[%c0_1, %c0_2] : memref<64x256xbf16, #tpu.memory_space<vmem>>, vector<64x256xbf16>
    %cst = arith.constant dense<0.000000e+00> : vector<32x256xf32>
    %2 = tpu.matmul %0, %1, %cst {dimension_numbers = #tpu.dot_dimension_numbers<[1], [0], [0], [1], [0, 0, 1, 1], [], []>} : vector<32x64xbf16>, vector<64x256xbf16>, vector<32x256xf32> -> vector<32x256xf32>
    %c0_3 = arith.constant 0 : index
    %c0_4 = arith.constant 0 : index
    %3 = vector.load %arg3[%c0_3, %c0_4] : memref<1x256xf32, #tpu.memory_space<vmem>>, vector<1x256xf32>
    %4 = vector.broadcast %3 : vector<1x256xf32> to vector<32x256xf32>
    %5 = arith.addf %2, %4 : vector<32x256xf32>
    %c0_5 = arith.constant 0 : index
    %c0_6 = arith.constant 0 : index
    %6 = vector.load %arg4[%c0_5, %c0_6] : memref<32x256xf32, #tpu.memory_space<vmem>>, vector<32x256xf32>
    tpu.vector_store %arg4[%c0_5, %c0_6], %5 {strides = array<i32>} : memref<32x256xf32, #tpu.memory_space<vmem>>, vector<32x256xf32>,
    return
  }
  func.func @transform_0(%arg0: i32) -> (i32, i32) {
    %c0_i32 = arith.constant 0 : i32
    %c0_i32_0 = arith.constant 0 : i32
    return %arg0, %c0_i32 : i32, i32
  }
  func.func @transform_1(%arg0: i32) -> (i32, i32) {
    %c0_i32 = arith.constant 0 : i32
    %c0_i32_0 = arith.constant 0 : i32
    %c0_i32_1 = arith.constant 0 : i32
    return %c0_i32, %c0_i32_0 : i32, i32
  }
  func.func @transform_2(%arg0: i32) -> (i32, i32) {
    %c0_i32 = arith.constant 0 : i32
    %c0_i32_0 = arith.constant 0 : i32
    %c0_i32_1 = arith.constant 0 : i32
    return %c0_i32, %c0_i32_0 : i32, i32
  }
  func.func @transform_3(%arg0: i32) -> (i32, i32) {
    %c0_i32 = arith.constant 0 : i32
    %c0_i32_0 = arith.constant 0 : i32
    return %arg0, %c0_i32 : i32, i32
  }
}

module attributes {stable_mosaic.version = 11 : i64} {
  func.func @_mm_res_kernel(%arg0: i32, %arg1: memref<32x576xbf16, #tpu.memory_space<vmem>>, %arg2: memref<576x128xbf16, #tpu.memory_space<vmem>>, %arg3: memref<1x128xf32, #tpu.memory_space<vmem>>, %arg4: memref<32x128xf32, #tpu.memory_space<vmem>>, %arg5: memref<32x128xf32, #tpu.memory_space<vmem>>) attributes {dimension_semantics = [#tpu.dimension_semantics<parallel>], iteration_bounds = array<i64: 1>, scalar_prefetch = 0 : i64, scratch_operands = 0 : i64, tpu.core_type = #tpu.core_type<tc>, window_params = [{transform_indices = @transform_0, window_bounds = array<i64: 32, 576>}, {pipeline_mode = #tpu.pipeline_mode<synchronous>, transform_indices = @transform_1, window_bounds = array<i64: 576, 128>}, {pipeline_mode = #tpu.pipeline_mode<synchronous>, transform_indices = @transform_2, window_bounds = array<i64: 1, 128>}, {transform_indices = @transform_3, window_bounds = array<i64: 32, 128>}, {transform_indices = @transform_4, window_bounds = array<i64: 32, 128>}]} {
    %c0 = arith.constant 0 : index
    %c0_0 = arith.constant 0 : index
    %0 = vector.load %arg1[%c0, %c0_0] : memref<32x576xbf16, #tpu.memory_space<vmem>>, vector<32x576xbf16>
    %c0_1 = arith.constant 0 : index
    %c0_2 = arith.constant 0 : index
    %1 = vector.load %arg2[%c0_1, %c0_2] : memref<576x128xbf16, #tpu.memory_space<vmem>>, vector<576x128xbf16>
    %cst = arith.constant dense<0.000000e+00> : vector<32x128xf32>
    %2 = tpu.matmul %0, %1, %cst {dimension_numbers = #tpu.dot_dimension_numbers<[1], [0], [0], [1], [0, 0, 1, 1], [], []>} : vector<32x576xbf16>, vector<576x128xbf16>, vector<32x128xf32> -> vector<32x128xf32>
    %c0_3 = arith.constant 0 : index
    %c0_4 = arith.constant 0 : index
    %3 = vector.load %arg3[%c0_3, %c0_4] : memref<1x128xf32, #tpu.memory_space<vmem>>, vector<1x128xf32>
    %4 = vector.broadcast %3 : vector<1x128xf32> to vector<32x128xf32>
    %5 = arith.addf %2, %4 : vector<32x128xf32>
    %c0_5 = arith.constant 0 : index
    %c0_6 = arith.constant 0 : index
    %6 = vector.load %arg4[%c0_5, %c0_6] : memref<32x128xf32, #tpu.memory_space<vmem>>, vector<32x128xf32>
    %7 = arith.addf %5, %6 : vector<32x128xf32>
    %cst_7 = arith.constant 0.000000e+00 : f32
    %8 = vector.broadcast %cst_7 : f32 to vector<32x128xf32>
    %9 = arith.maximumf %7, %8 : vector<32x128xf32>
    %c0_8 = arith.constant 0 : index
    %c0_9 = arith.constant 0 : index
    %10 = vector.load %arg5[%c0_8, %c0_9] : memref<32x128xf32, #tpu.memory_space<vmem>>, vector<32x128xf32>
    tpu.vector_store %arg5[%c0_8, %c0_9], %9 {strides = array<i32>} : memref<32x128xf32, #tpu.memory_space<vmem>>, vector<32x128xf32>,
    return
  }
  func.func @transform_0(%arg0: i32) -> (i32, i32) {
    %c0_i32 = arith.constant 0 : i32
    %c0_i32_0 = arith.constant 0 : i32
    return %arg0, %c0_i32 : i32, i32
  }
  func.func @transform_1(%arg0: i32) -> (i32, i32) {
    %c0_i32 = arith.constant 0 : i32
    %c0_i32_0 = arith.constant 0 : i32
    %c0_i32_1 = arith.constant 0 : i32
    return %c0_i32, %c0_i32_0 : i32, i32
  }
  func.func @transform_2(%arg0: i32) -> (i32, i32) {
    %c0_i32 = arith.constant 0 : i32
    %c0_i32_0 = arith.constant 0 : i32
    %c0_i32_1 = arith.constant 0 : i32
    return %c0_i32, %c0_i32_0 : i32, i32
  }
  func.func @transform_3(%arg0: i32) -> (i32, i32) {
    %c0_i32 = arith.constant 0 : i32
    %c0_i32_0 = arith.constant 0 : i32
    return %arg0, %c0_i32 : i32, i32
  }
  func.func @transform_4(%arg0: i32) -> (i32, i32) {
    %c0_i32 = arith.constant 0 : i32
    %c0_i32_0 = arith.constant 0 : i32
    return %arg0, %c0_i32 : i32, i32
  }
}

module attributes {stable_mosaic.version = 11 : i64} {
  func.func @_bilstm_kernel(%arg0: i32, %arg1: i32, %arg2: memref<1x1x2x128xf32, #tpu.memory_space<vmem>>, %arg3: memref<1x32x128xf32, #tpu.memory_space<vmem>>, %arg4: memref<1x1x128xf32, #tpu.memory_space<vmem>>, %arg5: memref<1x1x2x32xf32, #tpu.memory_space<vmem>>, %arg6: memref<2x32xf32, #tpu.memory_space<vmem>>, %arg7: memref<2x32xf32, #tpu.memory_space<vmem>>) attributes {dimension_semantics = [#tpu.dimension_semantics<parallel>, #tpu.dimension_semantics<arbitrary>], iteration_bounds = array<i64: 2, 16>, scalar_prefetch = 0 : i64, scratch_operands = 2 : i64, tpu.core_type = #tpu.core_type<tc>, window_params = [{transform_indices = @transform_0, window_bounds = array<i64: 1, 1, 2, 128>}, {transform_indices = @transform_1, window_bounds = array<i64: 1, 32, 128>}, {transform_indices = @transform_2, window_bounds = array<i64: 1, 1, 128>}, {transform_indices = @transform_3, window_bounds = array<i64: 1, 1, 2, 32>}]} {
    %c0_i32 = arith.constant 0 : i32
    %0 = arith.cmpi eq, %arg1, %c0_i32 : i32
    %1 = arith.extui %0 : i1 to i32
    %c0_i32_0 = arith.constant 0 : i32
    %2 = arith.cmpi ne, %1, %c0_i32_0 : i32
    scf.if %2 {
      %cst_23 = arith.constant 0.000000e+00 : f32
      %35 = vector.broadcast %cst_23 : f32 to vector<2x32xf32>
      %c0_24 = arith.constant 0 : index
      %c0_25 = arith.constant 0 : index
      %36 = vector.load %arg6[%c0_24, %c0_25] : memref<2x32xf32, #tpu.memory_space<vmem>>, vector<2x32xf32>
      tpu.vector_store %arg6[%c0_24, %c0_25], %35 {strides = array<i32>} : memref<2x32xf32, #tpu.memory_space<vmem>>, vector<2x32xf32>,
      %cst_26 = arith.constant 0.000000e+00 : f32
      %37 = vector.broadcast %cst_26 : f32 to vector<2x32xf32>
      %c0_27 = arith.constant 0 : index
      %c0_28 = arith.constant 0 : index
      %38 = vector.load %arg7[%c0_27, %c0_28] : memref<2x32xf32, #tpu.memory_space<vmem>>, vector<2x32xf32>
      tpu.vector_store %arg7[%c0_27, %c0_28], %37 {strides = array<i32>} : memref<2x32xf32, #tpu.memory_space<vmem>>, vector<2x32xf32>,
    } else {
    }
    %c0 = arith.constant 0 : index
    %c0_1 = arith.constant 0 : index
    %3 = vector.load %arg6[%c0, %c0_1] : memref<2x32xf32, #tpu.memory_space<vmem>>, vector<2x32xf32>
    %c0_2 = arith.constant 0 : index
    %c0_3 = arith.constant 0 : index
    %c0_4 = arith.constant 0 : index
    %4 = vector.load %arg3[%c0_2, %c0_3, %c0_4] : memref<1x32x128xf32, #tpu.memory_space<vmem>>, vector<1x32x128xf32>
    %5 = vector.shape_cast %4 : vector<1x32x128xf32> to vector<32x128xf32>
    %cst = arith.constant dense<0.000000e+00> : vector<2x128xf32>
    %6 = tpu.matmul %3, %5, %cst {dimension_numbers = #tpu.dot_dimension_numbers<[1], [0], [0], [1], [0, 0, 1, 1], [], []>} : vector<2x32xf32>, vector<32x128xf32>, vector<2x128xf32> -> vector<2x128xf32>
    %c0_5 = arith.constant 0 : index
    %c0_6 = arith.constant 0 : index
    %c0_7 = arith.constant 0 : index
    %7 = vector.load %arg4[%c0_5, %c0_6, %c0_7] : memref<1x1x128xf32, #tpu.memory_space<vmem>>, vector<1x1x128xf32>
    %8 = vector.shape_cast %7 : vector<1x1x128xf32> to vector<1x128xf32>
    %9 = vector.broadcast %8 : vector<1x128xf32> to vector<2x128xf32>
    %10 = arith.addf %6, %9 : vector<2x128xf32>
    %c0_8 = arith.constant 0 : index
    %c0_9 = arith.constant 0 : index
    %c0_10 = arith.constant 0 : index
    %c0_11 = arith.constant 0 : index
    %11 = vector.load %arg2[%c0_8, %c0_9, %c0_10, %c0_11] : memref<1x1x2x128xf32, #tpu.memory_space<vmem>>, vector<1x1x2x128xf32>
    %12 = vector.shape_cast %11 : vector<1x1x2x128xf32> to vector<2x128xf32>
    %13 = arith.addf %12, %10 : vector<2x128xf32>
    %14 = arith.negf %13 : vector<2x128xf32>
    %15 = math.exp %14 : vector<2x128xf32>
    %cst_12 = arith.constant 1.000000e+00 : f32
    %16 = vector.broadcast %cst_12 : f32 to vector<2x128xf32>
    %17 = arith.addf %16, %15 : vector<2x128xf32>
    %18 = arith.divf %16, %17 : vector<2x128xf32>
    %19 = math.tanh %13 : vector<2x128xf32>
    %20 = vector.extract_strided_slice %18 {offsets = [0, 0], sizes = [2, 32], strides = [1, 1]} : vector<2x128xf32> to vector<2x32xf32>
    %21 = vector.extract_strided_slice %18 {offsets = [0, 32], sizes = [2, 32], strides = [1, 1]} : vector<2x128xf32> to vector<2x32xf32>
    %22 = vector.extract_strided_slice %19 {offsets = [0, 64], sizes = [2, 32], strides = [1, 1]} : vector<2x128xf32> to vector<2x32xf32>
    %23 = vector.extract_strided_slice %18 {offsets = [0, 96], sizes = [2, 32], strides = [1, 1]} : vector<2x128xf32> to vector<2x32xf32>
    %c0_13 = arith.constant 0 : index
    %c0_14 = arith.constant 0 : index
    %24 = vector.load %arg7[%c0_13, %c0_14] : memref<2x32xf32, #tpu.memory_space<vmem>>, vector<2x32xf32>
    %25 = arith.mulf %21, %24 : vector<2x32xf32>
    %26 = arith.mulf %20, %22 : vector<2x32xf32>
    %27 = arith.addf %25, %26 : vector<2x32xf32>
    %c0_15 = arith.constant 0 : index
    %c0_16 = arith.constant 0 : index
    %28 = vector.load %arg7[%c0_15, %c0_16] : memref<2x32xf32, #tpu.memory_space<vmem>>, vector<2x32xf32>
    tpu.vector_store %arg7[%c0_15, %c0_16], %27 {strides = array<i32>} : memref<2x32xf32, #tpu.memory_space<vmem>>, vector<2x32xf32>,
    %29 = math.tanh %27 : vector<2x32xf32>
    %30 = arith.mulf %23, %29 : vector<2x32xf32>
    %c0_17 = arith.constant 0 : index
    %c0_18 = arith.constant 0 : index
    %31 = vector.load %arg6[%c0_17, %c0_18] : memref<2x32xf32, #tpu.memory_space<vmem>>, vector<2x32xf32>
    tpu.vector_store %arg6[%c0_17, %c0_18], %30 {strides = array<i32>} : memref<2x32xf32, #tpu.memory_space<vmem>>, vector<2x32xf32>,
    %c0_19 = arith.constant 0 : index
    %c0_20 = arith.constant 0 : index
    %c0_21 = arith.constant 0 : index
    %c0_22 = arith.constant 0 : index
    %32 = vector.load %arg5[%c0_19, %c0_20, %c0_21, %c0_22] : memref<1x1x2x32xf32, #tpu.memory_space<vmem>>, vector<1x1x2x32xf32>
    %33 = vector.shape_cast %32 : vector<1x1x2x32xf32> to vector<2x32xf32>
    %34 = vector.shape_cast %30 : vector<2x32xf32> to vector<1x1x2x32xf32>
    tpu.vector_store %arg5[%c0_19, %c0_20, %c0_21, %c0_22], %34 {strides = array<i32>} : memref<1x1x2x32xf32, #tpu.memory_space<vmem>>, vector<1x1x2x32xf32>,
    return
  }
  func.func @transform_0(%arg0: i32, %arg1: i32) -> (i32, i32, i32, i32) {
    %c0_i32 = arith.constant 0 : i32
    %c0_i32_0 = arith.constant 0 : i32
    %c0_i32_1 = arith.constant 0 : i32
    return %arg0, %arg1, %c0_i32, %c0_i32_0 : i32, i32, i32, i32
  }
  func.func @transform_1(%arg0: i32, %arg1: i32) -> (i32, i32, i32) {
    %c0_i32 = arith.constant 0 : i32
    %c0_i32_0 = arith.constant 0 : i32
    %c0_i32_1 = arith.constant 0 : i32
    return %arg0, %c0_i32, %c0_i32_0 : i32, i32, i32
  }
  func.func @transform_2(%arg0: i32, %arg1: i32) -> (i32, i32, i32) {
    %c0_i32 = arith.constant 0 : i32
    %c0_i32_0 = arith.constant 0 : i32
    %c0_i32_1 = arith.constant 0 : i32
    return %arg0, %c0_i32, %c0_i32_0 : i32, i32, i32
  }
  func.func @transform_3(%arg0: i32, %arg1: i32) -> (i32, i32, i32, i32) {
    %c0_i32 = arith.constant 0 : i32
    %c0_i32_0 = arith.constant 0 : i32
    %c0_i32_1 = arith.constant 0 : i32
    return %arg0, %arg1, %c0_i32, %c0_i32_0 : i32, i32, i32, i32
  }
}

</mosaic_0001>

<llo_original>
// kernel: _lambda_.20
$region0: #{_lambda_.20}
  #allocation0 [shape = 'u32[]', space=smem, size = 0x4, offset = 0x4, fixed_abs, tag = 'smem constant byte address 0x4 - core index']
  #allocation1 [shape = 'u32[72,128]{1,0:T(1,128)}', space=vmem, size = 0x9000, scoped, tag = 'internal scratch']
  %s0 = inlined_call_operand.vmem [shape: bf16[4096,27], index: 0, kind: input, shape index: {}]
  %s1 = inlined_call_operand.vmem [shape: bf16[27,128], index: 1, kind: input, shape index: {}]
  %s2 = inlined_call_operand.vmem [shape: f32[1,128], index: 2, kind: input, shape index: {}]
  %s3 = inlined_call_operand.vmem [shape: f32[4096,128], index: 3, kind: output, shape index: {}]
  %s4 = sld [smem:[#allocation0]]
  $region45: #{_lambda_.20} parent=0
    _
  %s6 = ssub.s32 1, %s4
  %s7 = scalar_select 0, %s6, %s4
  loop: start=0, step=1, limit=10
  $region2: #{_lambda_.20} parent=0 // loop_pre_header
    _
  $region3: #{_lambda_.20} parent=0 // loop_header
    %s9 = sphi 0, %s13
    %p10 = scmp.ge.s32.totalorder %s9, 10
    %s19 = sphi 0, %s21
    %s22 = sphi 0, %s19
    %s23 = sphi 0, %s22
    %s39 = sphi 0, %s23
    %s43 = sphi 0, %s43
    %s45 = sphi 0, %s43
    %s46 = sphi 0, %s45
    %s60 = sphi 0, %s46
    %s64 = sphi 0, %s64
    %s66 = sphi 0, %s64
    %s67 = sphi 0, %s66
    %s81 = sphi 0, %s67
    %s87 = sphi 0, %s89
    %s90 = sphi 0, %s87
    %s91 = sphi 0, %s90
    %s107 = sphi 0, %s91
  $region4: #{_lambda_.20} parent=0 // loop_header_branch
    %12 = sbr.rel (%p10) target = $region8
  $region5: #{_lambda_.20} parent=0 // loop_body
    %s14 = ssub.s32 %s9, 1
    %s15 = ssub.s32 %s9, 2
    %s16 = sadd.s32 %s9, 1
    %s17 = ssub.s32 %s9, %s16
    %p18 = scmp.eq.s32.totalorder %s17, 0
    %s20 = sadd.s32 %s19, 1
    %s21 = scalar_select %p18, %s19, %s20
    %p24 = pneg %p18
    %p25 = scmp.eq.s32.totalorder %s9, 7
    %p26 = por %p24, %p25
    %p27 = scmp.ne.s32.totalorder %s19, %s22
    %p28 = scmp.eq.s32.totalorder %s9, 0
    %p29 = por %p27, %p28
    %p30 = scmp.ne.s32.totalorder %s19, %s22
    %p31 = scmp.eq.s32.totalorder %s14, 7
    %p32 = por %p30, %p31
    %p33 = scmp.ne.s32.totalorder %s22, %s23
    %p34 = scmp.eq.s32.totalorder %s14, 0
    %p35 = por %p33, %p34
    %p36 = scmp.ne.s32.totalorder %s22, %s23
    %p37 = scmp.eq.s32.totalorder %s15, 7
    %p38 = por %p36, %p37
    %p40 = scmp.ne.s32.totalorder %s23, %s39
    %p41 = scmp.eq.s32.totalorder %s15, 0
    %p42 = por %p40, %p41
    %s44 = sadd.s32 %s43, 1
    %p47 = scmp.eq.s32.totalorder %s9, 7
    %p48 = scmp.ne.s32.totalorder %s43, %s45
    %p49 = scmp.eq.s32.totalorder %s9, 0
    %p50 = por %p48, %p49
    %p51 = scmp.ne.s32.totalorder %s43, %s45
    %p52 = scmp.eq.s32.totalorder %s14, 7
    %p53 = por %p51, %p52
    %p54 = scmp.ne.s32.totalorder %s45, %s46
    %p55 = scmp.eq.s32.totalorder %s14, 0
    %p56 = por %p54, %p55
    %p57 = scmp.ne.s32.totalorder %s45, %s46
    %p58 = scmp.eq.s32.totalorder %s15, 7
    %p59 = por %p57, %p58
    %p61 = scmp.ne.s32.totalorder %s46, %s60
    %p62 = scmp.eq.s32.totalorder %s15, 0
    %p63 = por %p61, %p62
    %s65 = sadd.s32 %s64, 1
    %p68 = scmp.eq.s32.totalorder %s9, 7
    %p69 = scmp.ne.s32.totalorder %s64, %s66
    %p70 = scmp.eq.s32.totalorder %s9, 0
    %p71 = por %p69, %p70
    %p72 = scmp.ne.s32.totalorder %s64, %s66
    %p73 = scmp.eq.s32.totalorder %s14, 7
    %p74 = por %p72, %p73
    %p75 = scmp.ne.s32.totalorder %s66, %s67
    %p76 = scmp.eq.s32.totalorder %s14, 0
    %p77 = por %p75, %p76
    %p78 = scmp.ne.s32.totalorder %s66, %s67
    %p79 = scmp.eq.s32.totalorder %s15, 7
    %p80 = por %p78, %p79
    %p82 = scmp.ne.s32.totalorder %s67, %s81
    %p83 = scmp.eq.s32.totalorder %s15, 0
    %p84 = por %p82, %p83
    %s85 = ssub.s32 %s9, %s16
    %p86 = scmp.eq.s32.totalorder %s85, 0
    %s88 = sadd.s32 %s87, 1
    %s89 = scalar_select %p86, %s87, %s88
    %p92 = pneg %p86
    %p93 = scmp.eq.s32.totalorder %s9, 7
    %p94 = por %p92, %p93
    %p95 = scmp.ne.s32.totalorder %s87, %s90
    %p96 = scmp.eq.s32.totalorder %s9, 0
    %p97 = por %p95, %p96
    %p98 = scmp.ne.s32.totalorder %s87, %s90
    %p99 = scmp.eq.s32.totalorder %s14, 7
    %p100 = por %p98, %p99
    %p101 = scmp.ne.s32.totalorder %s90, %s91
    %p102 = scmp.eq.s32.totalorder %s14, 0
    %p103 = por %p101, %p102
    %p104 = scmp.ne.s32.totalorder %s90, %s91
    %p105 = scmp.eq.s32.totalorder %s15, 7
    %p106 = por %p104, %p105
    %p108 = scmp.ne.s32.totalorder %s91, %s107
    %p109 = scmp.eq.s32.totalorder %s15, 0
    %p110 = por %p108, %p109
    %p111 = scmp.le.s32.totalorder 1, %s9
    %p112 = scmp.lt.s32.totalorder %s9, 9
    %p113 = pnand %p111, %p112
    %p114 = pneg %p113
    // Predicated region
    $region9: #{_lambda_.20} parent=5 // pred_check
      _
    $region10: #{_lambda_.20} parent=5 // pred_check_branch
      %116 = sbr.rel (%p113) target = $region12
    $region11: #{_lambda_.20} parent=5 // pred_region
      %s117 = ssub.s32 %s9, 1
      // Predicated region
      $region13: #{_lambda_.20} parent=11 // pred_check
        %p118 = pneg %p56
      $region14: #{_lambda_.20} parent=11 // pred_check_branch
        %120 = sbr.rel (%p118) target = $region16
      $region15: #{_lambda_.20} parent=11 // pred_region
        _
      $region16: #{_lambda_.20} parent=11 // pred_fallthru
        _
      // Predicated region
      $region17: #{_lambda_.20} parent=11 // pred_check
        %p121 = pneg %p77
      $region18: #{_lambda_.20} parent=11 // pred_check_branch
        %123 = sbr.rel (%p121) target = $region20
      $region19: #{_lambda_.20} parent=11 // pred_region
        _
      $region20: #{_lambda_.20} parent=11 // pred_fallthru
        _
    $region12: #{_lambda_.20} parent=5 // pred_fallthru
      _
    %p124 = scmp.lt.s32.totalorder %s9, 8
    // Predicated region
    $region21: #{_lambda_.20} parent=5 // pred_check
      %p125 = pneg %p124
    $region22: #{_lambda_.20} parent=5 // pred_check_branch
      %127 = sbr.rel (%p125) target = $region24
    $region23: #{_lambda_.20} parent=5 // pred_region
      // Predicated region
      $region25: #{_lambda_.20} parent=23 // pred_check
        %p128 = pneg %p29
      $region26: #{_lambda_.20} parent=23 // pred_check_branch
        %130 = sbr.rel (%p128) target = $region28
      $region27: #{_lambda_.20} parent=23 // pred_region
        %s131 = smul.u32 64, %s9
        %p132 = scmp.lt.s32.totalorder %s131, 511
        %s133 = scalar_select %p132, %s131, 511
        %s134 = smul.addr %s133, 4
        %s135 = scalar_lea.vmem %s0, %s134
        %s136 = smul.u32 64, %s9
      $region28: #{_lambda_.20} parent=23 // pred_fallthru
        _
    $region24: #{_lambda_.20} parent=5 // pred_fallthru
      _
    %p137 = scmp.le.s32.totalorder 1, %s9
    %p138 = scmp.lt.s32.totalorder %s9, 9
    %p139 = pnand %p137, %p138
    %p140 = pneg %p139
    // Predicated region
    $region29: #{_lambda_.20} parent=5 // pred_check
      _
    $region30: #{_lambda_.20} parent=5 // pred_check_branch
      %142 = sbr.rel (%p139) target = $region32
    $region31: #{_lambda_.20} parent=5 // pred_region
      %s143 = ssub.s32 %s9, 1
      %s144 = smul.u32 64, %s14
      %p145 = scmp.lt.s32.totalorder %s144, 511
      %s146 = scalar_select %p145, %s144, 511
      %s147 = smul.addr %s146, 4
      %s148 = scalar_lea.vmem %s0, %s147
      %p149 = pneg %p35
      %p150 = pneg %p32
      %p151 = pneg %p56
      %p152 = pneg %p53
      %p153 = pneg %p77
      %p154 = pneg %p74
      %p155 = pneg %p103
      %p156 = pneg %p100
      %s157 = smul.u32 64, %s14
      %p158 = scmp.lt.s32.totalorder %s157, 511
      %s159 = scalar_select %p158, %s157, 511
      %s160 = smul.addr %s159, 8
      %s161 = scalar_lea.vmem %s3, %s160
      %s162 = smul.u32 64, %s14
      %p163 = scmp.lt.s32.totalorder %s162, 511
      %s164 = scalar_select %p163, %s162, 511
      %s165 = smul.addr %s164, 4
      %s166 = scalar_lea.vmem %s0, %s165
      %s167 = smul.u32 64, %s14
      %s168 = smul.u32 64, %s14
      %p169 = scmp.lt.s32.totalorder %s168, 511
      %s170 = scalar_select %p169, %s168, 511
      %s171 = smul.addr %s170, 8
      %s172 = scalar_lea.vmem %s3, %s171
      %s173 = smul.u32 64, %s14
      %v175 = vld [vmem:[%s166] sm:$0xf]
      %v176 = vld [vmem:[%s166 + $0x4] sm:$0xf]
      %v177 = vld [vmem:[%s166 + $0x8] sm:$0xf]
      %v178 = vld [vmem:[%s166 + $0xc] sm:$0xf]
      %v179 = vld [vmem:[%s166 + $0x10] sm:$0xf]
      %v180 = vld [vmem:[%s166 + $0x14] sm:$0xf]
      %v181 = vld [vmem:[%s166 + $0x18] sm:$0xf]
      %v182 = vld [vmem:[%s166 + $0x1c] sm:$0xf]
      %v183 = vld [vmem:[%s166 + $0x20] sm:$0xf]
      %v184 = vld [vmem:[%s166 + $0x24] sm:$0xf]
      %v185 = vld [vmem:[%s166 + $0x28] sm:$0xf]
      %v186 = vld [vmem:[%s166 + $0x2c] sm:$0xf]
      %v187 = vld [vmem:[%s166 + $0x30] sm:$0xf]
      %v188 = vld [vmem:[%s166 + $0x34] sm:$0xf]
      %v189 = vld [vmem:[%s166 + $0x38] sm:$0xf]
      %v190 = vld [vmem:[%s166 + $0x3c] sm:$0xf]
      %v191 = vld [vmem:[%s166 + $0x40] sm:$0xf]
      %v192 = vld [vmem:[%s166 + $0x44] sm:$0xf]
      %v193 = vld [vmem:[%s166 + $0x48] sm:$0xf]
      %v194 = vld [vmem:[%s166 + $0x4c] sm:$0xf]
      %v195 = vld [vmem:[%s166 + $0x50] sm:$0xf]
      %v196 = vld [vmem:[%s166 + $0x54] sm:$0xf]
      %v197 = vld [vmem:[%s166 + $0x58] sm:$0xf]
      %v198 = vld [vmem:[%s166 + $0x5c] sm:$0xf]
      %v199 = vld [vmem:[%s166 + $0x60] sm:$0xf]
      %v200 = vld [vmem:[%s166 + $0x64] sm:$0xf]
      %v201 = vld [vmem:[%s166 + $0x68] sm:$0xf]
      %v202 = vld [vmem:[%s166 + $0x6c] sm:$0xf]
      %v203 = vld [vmem:[%s166 + $0x70] sm:$0xf]
      %v204 = vld [vmem:[%s166 + $0x74] sm:$0xf]
      %v205 = vld [vmem:[%s166 + $0x78] sm:$0xf]
      %v206 = vld [vmem:[%s166 + $0x7c] sm:$0xf]
      %v207 = vld [vmem:[%s166 + $0x80] sm:$0xf]
      %v208 = vld [vmem:[%s166 + $0x84] sm:$0xf]
      %v209 = vld [vmem:[%s166 + $0x88] sm:$0xf]
      %v210 = vld [vmem:[%s166 + $0x8c] sm:$0xf]
      %v211 = vld [vmem:[%s166 + $0x90] sm:$0xf]
      %v212 = vld [vmem:[%s166 + $0x94] sm:$0xf]
      %v213 = vld [vmem:[%s166 + $0x98] sm:$0xf]
      %v214 = vld [vmem:[%s166 + $0x9c] sm:$0xf]
      %v215 = vld [vmem:[%s166 + $0xa0] sm:$0xf]
      %v216 = vld [vmem:[%s166 + $0xa4] sm:$0xf]
      %v217 = vld [vmem:[%s166 + $0xa8] sm:$0xf]
      %v218 = vld [vmem:[%s166 + $0xac] sm:$0xf]
      %v219 = vld [vmem:[%s166 + $0xb0] sm:$0xf]
      %v220 = vld [vmem:[%s166 + $0xb4] sm:$0xf]
      %v221 = vld [vmem:[%s166 + $0xb8] sm:$0xf]
      %v222 = vld [vmem:[%s166 + $0xbc] sm:$0xf]
      %v223 = vld [vmem:[%s166 + $0xc0] sm:$0xf]
      %v224 = vld [vmem:[%s166 + $0xc4] sm:$0xf]
      %v225 = vld [vmem:[%s166 + $0xc8] sm:$0xf]
      %v226 = vld [vmem:[%s166 + $0xcc] sm:$0xf]
      %v227 = vld [vmem:[%s166 + $0xd0] sm:$0xf]
      %v228 = vld [vmem:[%s166 + $0xd4] sm:$0xf]
      %v229 = vld [vmem:[%s166 + $0xd8] sm:$0xf]
      %v230 = vld [vmem:[%s166 + $0xdc] sm:$0xf]
      %v231 = vld [vmem:[%s166 + $0xe0] sm:$0xf]
      %v232 = vld [vmem:[%s166 + $0xe4] sm:$0xf]
      %v233 = vld [vmem:[%s166 + $0xe8] sm:$0xf]
      %v234 = vld [vmem:[%s166 + $0xec] sm:$0xf]
      %v235 = vld [vmem:[%s166 + $0xf0] sm:$0xf]
      %v236 = vld [vmem:[%s166 + $0xf4] sm:$0xf]
      %v237 = vld [vmem:[%s166 + $0xf8] sm:$0xf]
      %v238 = vld [vmem:[%s166 + $0xfc] sm:$0xf]
      %v239 = vld [vmem:[%s1] sm:$0xf]
      %v240 = vld [vmem:[%s1 + $0x4] sm:$0xf]
      %v241 = vld [vmem:[%s1 + $0x8] sm:$0xf]
      %v242 = vld [vmem:[%s1 + $0xc] sm:$0x3]
      %v243 = vld [vmem:[%s2] sm:$0x1]
      %v245 = vperm.slane %v243, 0
      %v311 = vunpack.c.l.b16 %v175
      %v312 = vunpack.c.l.b16 %v176
      %v313 = vunpack.c.l.b16 %v177
      %v314 = vunpack.c.l.b16 %v178
      %v315 = vunpack.c.l.b16 %v179
      %v316 = vunpack.c.l.b16 %v180
      %v317 = vunpack.c.l.b16 %v181
      %v318 = vunpack.c.l.b16 %v182
      %v319 = vunpack.c.l.b16 %v183
      %v320 = vunpack.c.l.b16 %v184
      %v321 = vunpack.c.l.b16 %v185
      %v322 = vunpack.c.l.b16 %v186
      %v323 = vunpack.c.l.b16 %v187
      %v324 = vunpack.c.l.b16 %v188
      %v325 = vunpack.c.l.b16 %v189
      %v326 = vunpack.c.l.b16 %v190
      %v327 = vunpack.c.l.b16 %v191
      %v328 = vunpack.c.l.b16 %v192
      %v329 = vunpack.c.l.b16 %v193
      %v330 = vunpack.c.l.b16 %v194
      %v331 = vunpack.c.l.b16 %v195
      %v332 = vunpack.c.l.b16 %v196
      %v333 = vunpack.c.l.b16 %v197
      %v334 = vunpack.c.l.b16 %v198
      %v335 = vunpack.c.l.b16 %v199
      %v336 = vunpack.c.l.b16 %v200
      %v337 = vunpack.c.l.b16 %v201
      %v338 = vunpack.c.l.b16 %v202
      %v339 = vunpack.c.l.b16 %v203
      %v340 = vunpack.c.l.b16 %v204
      %v341 = vunpack.c.l.b16 %v205
      %v342 = vunpack.c.l.b16 %v206
      %v343 = vunpack.c.l.b16 %v207
      %v344 = vunpack.c.l.b16 %v208
      %v345 = vunpack.c.l.b16 %v209
      %v346 = vunpack.c.l.b16 %v210
      %v347 = vunpack.c.l.b16 %v211
      %v348 = vunpack.c.l.b16 %v212
      %v349 = vunpack.c.l.b16 %v213
      %v350 = vunpack.c.l.b16 %v214
      %v351 = vunpack.c.l.b16 %v215
      %v352 = vunpack.c.l.b16 %v216
      %v353 = vunpack.c.l.b16 %v217
      %v354 = vunpack.c.l.b16 %v218
      %v355 = vunpack.c.l.b16 %v219
      %v356 = vunpack.c.l.b16 %v220
      %v357 = vunpack.c.l.b16 %v221
      %v358 = vunpack.c.l.b16 %v222
      %v359 = vunpack.c.l.b16 %v223
      %v360 = vunpack.c.l.b16 %v224
      %v361 = vunpack.c.l.b16 %v225
      %v362 = vunpack.c.l.b16 %v226
      %v363 = vunpack.c.l.b16 %v227
      %v364 = vunpack.c.l.b16 %v228
      %v365 = vunpack.c.l.b16 %v229
      %v366 = vunpack.c.l.b16 %v230
      %v367 = vunpack.c.l.b16 %v231
      %v368 = vunpack.c.l.b16 %v232
      %v369 = vunpack.c.l.b16 %v233
      %v370 = vunpack.c.l.b16 %v234
      %v371 = vunpack.c.l.b16 %v235
      %v372 = vunpack.c.l.b16 %v236
      %v373 = vunpack.c.l.b16 %v237
      %v374 = vunpack.c.l.b16 %v238
      %v375 = vpack.c.b16 %v312, %v311
      %v376 = vpack.c.b16 %v314, %v313
      %v377 = vpack.c.b16 %v316, %v315
      %v378 = vpack.c.b16 %v318, %v317
      %v379 = vpack.c.b16 %v320, %v319
      %v380 = vpack.c.b16 %v322, %v321
      %v381 = vpack.c.b16 %v324, %v323
      %v382 = vpack.c.b16 %v326, %v325
      %v383 = vpack.c.b16 %v328, %v327
      %v384 = vpack.c.b16 %v330, %v329
      %v385 = vpack.c.b16 %v332, %v331
      %v386 = vpack.c.b16 %v334, %v333
      %v387 = vpack.c.b16 %v336, %v335
      %v388 = vpack.c.b16 %v338, %v337
      %v389 = vpack.c.b16 %v340, %v339
      %v390 = vpack.c.b16 %v342, %v341
      %v391 = vpack.c.b16 %v344, %v343
      %v392 = vpack.c.b16 %v346, %v345
      %v393 = vpack.c.b16 %v348, %v347
      %v394 = vpack.c.b16 %v350, %v349
      %v395 = vpack.c.b16 %v352, %v351
      %v396 = vpack.c.b16 %v354, %v353
      %v397 = vpack.c.b16 %v356, %v355
      %v398 = vpack.c.b16 %v358, %v357
      %v399 = vpack.c.b16 %v360, %v359
      %v400 = vpack.c.b16 %v362, %v361
      %v401 = vpack.c.b16 %v364, %v363
      %v402 = vpack.c.b16 %v366, %v365
      %v403 = vpack.c.b16 %v368, %v367
      %v404 = vpack.c.b16 %v370, %v369
      %v405 = vpack.c.b16 %v372, %v371
      %v406 = vpack.c.b16 %v374, %v373
      %v411 = vunpack.c.l.b16 %v239
      %v412 = vunpack.c.l.b16 %v240
      %v413 = vunpack.c.l.b16 %v241
      %v414 = vunpack.c.l.b16 %v242
      %v415 = vpack.c.b16 %v412, %v411
      %v416 = vpack.c.b16 %v414, %v413
      %vm418 = vcmask 220160
      %v420 = vsel %vm418, %v375, 0
      %v423 = vsel %vm418, %v376, 0
      %v426 = vsel %vm418, %v377, 0
      %v429 = vsel %vm418, %v378, 0
      %v432 = vsel %vm418, %v379, 0
      %v435 = vsel %vm418, %v380, 0
      %v438 = vsel %vm418, %v381, 0
      %v441 = vsel %vm418, %v382, 0
      %v444 = vsel %vm418, %v383, 0
      %v447 = vsel %vm418, %v384, 0
      %v450 = vsel %vm418, %v385, 0
      %v453 = vsel %vm418, %v386, 0
      %v456 = vsel %vm418, %v387, 0
      %v459 = vsel %vm418, %v388, 0
      %v462 = vsel %vm418, %v389, 0
      %v465 = vsel %vm418, %v390, 0
      %v468 = vsel %vm418, %v391, 0
      %v471 = vsel %vm418, %v392, 0
      %v474 = vsel %vm418, %v393, 0
      %v477 = vsel %vm418, %v394, 0
      %v480 = vsel %vm418, %v395, 0
      %v483 = vsel %vm418, %v396, 0
      %v486 = vsel %vm418, %v397, 0
      %v489 = vsel %vm418, %v398, 0
      %v492 = vsel %vm418, %v399, 0
      %v495 = vsel %vm418, %v400, 0
      %v498 = vsel %vm418, %v401, 0
      %v501 = vsel %vm418, %v402, 0
      %v504 = vsel %vm418, %v403, 0
      %v507 = vsel %vm418, %v404, 0
      %v510 = vsel %vm418, %v405, 0
      %v513 = vsel %vm418, %v406, 0
      %vm515 = vcmask 1044480
      %vm516 = vcmask 1045504
      %v517 = vsel %vm515, 4294967295, 65535
      %v518 = vsel %vm516, %v517, 0
      %v520 = vand.u32 %v416, %v518
      %522 = vmatpush.bf16.msra.mxu0 0
      %523 = vmatpush.bf16.msra.mxu0 0
      %524 = vmatpush.bf16.msra.mxu0 0
      %525 = vmatpush.bf16.msra.mxu0 0
      %526 = vmatpush.bf16.msra.mxu0 0
      %527 = vmatpush.bf16.msra.mxu0 0
      %528 = vmatpush.bf16.msra.mxu0 %v520
      %529 = vmatpush.bf16.msra.mxu0 %v415
      %530 = vmatmul.bf16.gmra.mxu0 %v420
      %v531 = vpop.f32.mrf.mxu0
      %v532 = vadd.f32 %v245, %v531
      %v533 = vpop.f32.mrf.mxu0
      %v534 = vadd.f32 %v245, %v533
      %535 = vmatmul.bf16.gmra.mxu0 %v423
      %v536 = vpop.f32.mrf.mxu0
      %v537 = vadd.f32 %v245, %v536
      %v538 = vpop.f32.mrf.mxu0
      %v539 = vadd.f32 %v245, %v538
      %540 = vmatmul.bf16.gmra.mxu0 %v426
      %v541 = vpop.f32.mrf.mxu0
      %v542 = vadd.f32 %v245, %v541
      %v543 = vpop.f32.mrf.mxu0
      %v544 = vadd.f32 %v245, %v543
      %545 = vmatmul.bf16.gmra.mxu0 %v429
      %v546 = vpop.f32.mrf.mxu0
      %v547 = vadd.f32 %v245, %v546
      %v548 = vpop.f32.mrf.mxu0
      %v549 = vadd.f32 %v245, %v548
      %550 = vmatmul.bf16.gmra.mxu0 %v432
      %v551 = vpop.f32.mrf.mxu0
      %v552 = vadd.f32 %v245, %v551
      %v553 = vpop.f32.mrf.mxu0
      %v554 = vadd.f32 %v245, %v553
      %555 = vmatmul.bf16.gmra.mxu0 %v435
      %v556 = vpop.f32.mrf.mxu0
      %v557 = vadd.f32 %v245, %v556
      %v558 = vpop.f32.mrf.mxu0
      %v559 = vadd.f32 %v245, %v558
      %560 = vmatmul.bf16.gmra.mxu0 %v438
      %v561 = vpop.f32.mrf.mxu0
      %v562 = vadd.f32 %v245, %v561
      %v563 = vpop.f32.mrf.mxu0
      %v564 = vadd.f32 %v245, %v563
      %565 = vmatmul.bf16.gmra.mxu0 %v441
      %v566 = vpop.f32.mrf.mxu0
      %v567 = vadd.f32 %v245, %v566
      %v568 = vpop.f32.mrf.mxu0
      %v569 = vadd.f32 %v245, %v568
      %570 = vmatmul.bf16.gmra.mxu0 %v444
      %v571 = vpop.f32.mrf.mxu0
      %v572 = vadd.f32 %v245, %v571
      %v573 = vpop.f32.mrf.mxu0
      %v574 = vadd.f32 %v245, %v573
      %575 = vmatmul.bf16.gmra.mxu0 %v447
      %v576 = vpop.f32.mrf.mxu0
      %v577 = vadd.f32 %v245, %v576
      %v578 = vpop.f32.mrf.mxu0
      %v579 = vadd.f32 %v245, %v578
      %580 = vmatmul.bf16.gmra.mxu0 %v450
      %v581 = vpop.f32.mrf.mxu0
      %v582 = vadd.f32 %v245, %v581
      %v583 = vpop.f32.mrf.mxu0
      %v584 = vadd.f32 %v245, %v583
      %585 = vmatmul.bf16.gmra.mxu0 %v453
      %v586 = vpop.f32.mrf.mxu0
      %v587 = vadd.f32 %v245, %v586
      %v588 = vpop.f32.mrf.mxu0
      %v589 = vadd.f32 %v245, %v588
      %590 = vmatmul.bf16.gmra.mxu0 %v456
      %v591 = vpop.f32.mrf.mxu0
      %v592 = vadd.f32 %v245, %v591
      %v593 = vpop.f32.mrf.mxu0
      %v594 = vadd.f32 %v245, %v593
      %595 = vmatmul.bf16.gmra.mxu0 %v459
      %v596 = vpop.f32.mrf.mxu0
      %v597 = vadd.f32 %v245, %v596
      %v598 = vpop.f32.mrf.mxu0
      %v599 = vadd.f32 %v245, %v598
      %600 = vmatmul.bf16.gmra.mxu0 %v462
      %v601 = vpop.f32.mrf.mxu0
      %v602 = vadd.f32 %v245, %v601
      %v603 = vpop.f32.mrf.mxu0
      %v604 = vadd.f32 %v245, %v603
      %605 = vmatmul.bf16.gmra.mxu0 %v465
      %v606 = vpop.f32.mrf.mxu0
      %v607 = vadd.f32 %v245, %v606
      %v608 = vpop.f32.mrf.mxu0
      %v609 = vadd.f32 %v245, %v608
      %610 = vmatmul.bf16.gmra.mxu0 %v468
      %v611 = vpop.f32.mrf.mxu0
      %v612 = vadd.f32 %v245, %v611
      %v613 = vpop.f32.mrf.mxu0
      %v614 = vadd.f32 %v245, %v613
      %615 = vmatmul.bf16.gmra.mxu0 %v471
      %v616 = vpop.f32.mrf.mxu0
      %v617 = vadd.f32 %v245, %v616
      %v618 = vpop.f32.mrf.mxu0
      %v619 = vadd.f32 %v245, %v618
      %620 = vmatmul.bf16.gmra.mxu0 %v474
      %v621 = vpop.f32.mrf.mxu0
      %v622 = vadd.f32 %v245, %v621
      %v623 = vpop.f32.mrf.mxu0
      %v624 = vadd.f32 %v245, %v623
      %625 = vmatmul.bf16.gmra.mxu0 %v477
      %v626 = vpop.f32.mrf.mxu0
      %v627 = vadd.f32 %v245, %v626
      %v628 = vpop.f32.mrf.mxu0
      %v629 = vadd.f32 %v245, %v628
      %630 = vmatmul.bf16.gmra.mxu0 %v480
      %v631 = vpop.f32.mrf.mxu0
      %v632 = vadd.f32 %v245, %v631
      %v633 = vpop.f32.mrf.mxu0
      %v634 = vadd.f32 %v245, %v633
      %635 = vmatmul.bf16.gmra.mxu0 %v483
      %v636 = vpop.f32.mrf.mxu0
      %v637 = vadd.f32 %v245, %v636
      %v638 = vpop.f32.mrf.mxu0
      %v639 = vadd.f32 %v245, %v638
      %640 = vmatmul.bf16.gmra.mxu0 %v486
      %v641 = vpop.f32.mrf.mxu0
      %v642 = vadd.f32 %v245, %v641
      %v643 = vpop.f32.mrf.mxu0
      %v644 = vadd.f32 %v245, %v643
      %645 = vmatmul.bf16.gmra.mxu0 %v489
      %v646 = vpop.f32.mrf.mxu0
      %v647 = vadd.f32 %v245, %v646
      %v648 = vpop.f32.mrf.mxu0
      %v649 = vadd.f32 %v245, %v648
      %650 = vmatmul.bf16.gmra.mxu0 %v492
      %v651 = vpop.f32.mrf.mxu0
      %v652 = vadd.f32 %v245, %v651
      %v653 = vpop.f32.mrf.mxu0
      %v654 = vadd.f32 %v245, %v653
      %655 = vmatmul.bf16.gmra.mxu0 %v495
      %v656 = vpop.f32.mrf.mxu0
      %v657 = vadd.f32 %v245, %v656
      %v658 = vpop.f32.mrf.mxu0
      %v659 = vadd.f32 %v245, %v658
      %660 = vmatmul.bf16.gmra.mxu0 %v498
      %v661 = vpop.f32.mrf.mxu0
      %v662 = vadd.f32 %v245, %v661
      %v663 = vpop.f32.mrf.mxu0
      %v664 = vadd.f32 %v245, %v663
      %665 = vmatmul.bf16.gmra.mxu0 %v501
      %v666 = vpop.f32.mrf.mxu0
      %v667 = vadd.f32 %v245, %v666
      %v668 = vpop.f32.mrf.mxu0
      %v669 = vadd.f32 %v245, %v668
      %670 = vmatmul.bf16.gmra.mxu0 %v504
      %v671 = vpop.f32.mrf.mxu0
      %v672 = vadd.f32 %v245, %v671
      %v673 = vpop.f32.mrf.mxu0
      %v674 = vadd.f32 %v245, %v673
      %675 = vmatmul.bf16.gmra.mxu0 %v507
      %v676 = vpop.f32.mrf.mxu0
      %v677 = vadd.f32 %v245, %v676
      %v678 = vpop.f32.mrf.mxu0
      %v679 = vadd.f32 %v245, %v678
      %680 = vmatmul.bf16.gmra.mxu0 %v510
      %v681 = vpop.f32.mrf.mxu0
      %v682 = vadd.f32 %v245, %v681
      %v683 = vpop.f32.mrf.mxu0
      %v684 = vadd.f32 %v245, %v683
      %685 = vmatmul.bf16.gmra.mxu0 %v513
      %v686 = vpop.f32.mrf.mxu0
      %v687 = vadd.f32 %v245, %v686
      %v688 = vpop.f32.mrf.mxu0
      %v689 = vadd.f32 %v245, %v688
      %690 = vdwg.mxu0
      %v691 = vmax.f32 %v532, 0.0
      %v692 = vmax.f32 %v534, 0.0
      %v693 = vmax.f32 %v537, 0.0
      %v694 = vmax.f32 %v539, 0.0
      %v695 = vmax.f32 %v542, 0.0
      %v696 = vmax.f32 %v544, 0.0
      %v697 = vmax.f32 %v547, 0.0
      %v698 = vmax.f32 %v549, 0.0
      %v699 = vmax.f32 %v552, 0.0
      %v700 = vmax.f32 %v554, 0.0
      %v701 = vmax.f32 %v557, 0.0
      %v702 = vmax.f32 %v559, 0.0
      %v703 = vmax.f32 %v562, 0.0
      %v704 = vmax.f32 %v564, 0.0
      %v705 = vmax.f32 %v567, 0.0
      %v706 = vmax.f32 %v569, 0.0
      %v707 = vmax.f32 %v572, 0.0
      %v708 = vmax.f32 %v574, 0.0
      %v709 = vmax.f32 %v577, 0.0
      %v710 = vmax.f32 %v579, 0.0
      %v711 = vmax.f32 %v582, 0.0
      %v712 = vmax.f32 %v584, 0.0
      %v713 = vmax.f32 %v587, 0.0
      %v714 = vmax.f32 %v589, 0.0
      %v715 = vmax.f32 %v592, 0.0
      %v716 = vmax.f32 %v594, 0.0
      %v717 = vmax.f32 %v597, 0.0
      %v718 = vmax.f32 %v599, 0.0
      %v719 = vmax.f32 %v602, 0.0
      %v720 = vmax.f32 %v604, 0.0
      %v721 = vmax.f32 %v607, 0.0
      %v722 = vmax.f32 %v609, 0.0
      %v723 = vmax.f32 %v612, 0.0
      %v724 = vmax.f32 %v614, 0.0
      %v725 = vmax.f32 %v617, 0.0
      %v726 = vmax.f32 %v619, 0.0
      %v727 = vmax.f32 %v622, 0.0
      %v728 = vmax.f32 %v624, 0.0
      %v729 = vmax.f32 %v627, 0.0
      %v730 = vmax.f32 %v629, 0.0
      %v731 = vmax.f32 %v632, 0.0
      %v732 = vmax.f32 %v634, 0.0
      %v733 = vmax.f32 %v637, 0.0
      %v734 = vmax.f32 %v639, 0.0
      %v735 = vmax.f32 %v642, 0.0
      %v736 = vmax.f32 %v644, 0.0
      %v737 = vmax.f32 %v647, 0.0
      %v738 = vmax.f32 %v649, 0.0
      %v739 = vmax.f32 %v652, 0.0
      %v740 = vmax.f32 %v654, 0.0
      %v741 = vmax.f32 %v657, 0.0
      %v742 = vmax.f32 %v659, 0.0
      %v743 = vmax.f32 %v662, 0.0
      %v744 = vmax.f32 %v664, 0.0
      %v745 = vmax.f32 %v667, 0.0
      %v746 = vmax.f32 %v669, 0.0
      %v747 = vmax.f32 %v672, 0.0
      %v748 = vmax.f32 %v674, 0.0
      %v749 = vmax.f32 %v677, 0.0
      %v750 = vmax.f32 %v679, 0.0
      %v751 = vmax.f32 %v682, 0.0
      %v752 = vmax.f32 %v684, 0.0
      %v753 = vmax.f32 %v687, 0.0
      %v754 = vmax.f32 %v689, 0.0
      %755 = vst [vmem:[%s172] sm:$0xff] %v691
      %756 = vst [vmem:[%s172 + $0x8] sm:$0xff] %v692
      %757 = vst [vmem:[%s172 + $0x10] sm:$0xff] %v693
      %758 = vst [vmem:[%s172 + $0x18] sm:$0xff] %v694
      %759 = vst [vmem:[%s172 + $0x20] sm:$0xff] %v695
      %760 = vst [vmem:[%s172 + $0x28] sm:$0xff] %v696
      %761 = vst [vmem:[%s172 + $0x30] sm:$0xff] %v697
      %762 = vst [vmem:[%s172 + $0x38] sm:$0xff] %v698
      %763 = vst [vmem:[%s172 + $0x40] sm:$0xff] %v699
      %764 = vst [vmem:[%s172 + $0x48] sm:$0xff] %v700
      %765 = vst [vmem:[%s172 + $0x50] sm:$0xff] %v701
      %766 = vst [vmem:[%s172 + $0x58] sm:$0xff] %v702
      %767 = vst [vmem:[%s172 + $0x60] sm:$0xff] %v703
      %768 = vst [vmem:[%s172 + $0x68] sm:$0xff] %v704
      %769 = vst [vmem:[%s172 + $0x70] sm:$0xff] %v705
      %770 = vst [vmem:[%s172 + $0x78] sm:$0xff] %v706
      %771 = vst [vmem:[%s172 + $0x80] sm:$0xff] %v707
      %772 = vst [vmem:[%s172 + $0x88] sm:$0xff] %v708
      %773 = vst [vmem:[%s172 + $0x90] sm:$0xff] %v709
      %774 = vst [vmem:[%s172 + $0x98] sm:$0xff] %v710
      %775 = vst [vmem:[%s172 + $0xa0] sm:$0xff] %v711
      %776 = vst [vmem:[%s172 + $0xa8] sm:$0xff] %v712
      %777 = vst [vmem:[%s172 + $0xb0] sm:$0xff] %v713
      %778 = vst [vmem:[%s172 + $0xb8] sm:$0xff] %v714
      %779 = vst [vmem:[%s172 + $0xc0] sm:$0xff] %v715
      %780 = vst [vmem:[%s172 + $0xc8] sm:$0xff] %v716
      %781 = vst [vmem:[%s172 + $0xd0] sm:$0xff] %v717
      %782 = vst [vmem:[%s172 + $0xd8] sm:$0xff] %v718
      %783 = vst [vmem:[%s172 + $0xe0] sm:$0xff] %v719
      %784 = vst [vmem:[%s172 + $0xe8] sm:$0xff] %v720
      %785 = vst [vmem:[%s172 + $0xf0] sm:$0xff] %v721
      %786 = vst [vmem:[%s172 + $0xf8] sm:$0xff] %v722
      %787 = vst [vmem:[%s172 + $0x100] sm:$0xff] %v723
      %788 = vst [vmem:[%s172 + $0x108] sm:$0xff] %v724
      %789 = vst [vmem:[%s172 + $0x110] sm:$0xff] %v725
      %790 = vst [vmem:[%s172 + $0x118] sm:$0xff] %v726
      %791 = vst [vmem:[%s172 + $0x120] sm:$0xff] %v727
      %792 = vst [vmem:[%s172 + $0x128] sm:$0xff] %v728
      %793 = vst [vmem:[%s172 + $0x130] sm:$0xff] %v729
      %794 = vst [vmem:[%s172 + $0x138] sm:$0xff] %v730
      %795 = vst [vmem:[%s172 + $0x140] sm:$0xff] %v731
      %796 = vst [vmem:[%s172 + $0x148] sm:$0xff] %v732
      %797 = vst [vmem:[%s172 + $0x150] sm:$0xff] %v733
      %798 = vst [vmem:[%s172 + $0x158] sm:$0xff] %v734
      %799 = vst [vmem:[%s172 + $0x160] sm:$0xff] %v735
      %800 = vst [vmem:[%s172 + $0x168] sm:$0xff] %v736
      %801 = vst [vmem:[%s172 + $0x170] sm:$0xff] %v737
      %802 = vst [vmem:[%s172 + $0x178] sm:$0xff] %v738
      %803 = vst [vmem:[%s172 + $0x180] sm:$0xff] %v739
      %804 = vst [vmem:[%s172 + $0x188] sm:$0xff] %v740
      %805 = vst [vmem:[%s172 + $0x190] sm:$0xff] %v741
      %806 = vst [vmem:[%s172 + $0x198] sm:$0xff] %v742
      %807 = vst [vmem:[%s172 + $0x1a0] sm:$0xff] %v743
      %808 = vst [vmem:[%s172 + $0x1a8] sm:$0xff] %v744
      %809 = vst [vmem:[%s172 + $0x1b0] sm:$0xff] %v745
      %810 = vst [vmem:[%s172 + $0x1b8] sm:$0xff] %v746
      %811 = vst [vmem:[%s172 + $0x1c0] sm:$0xff] %v747
      %812 = vst [vmem:[%s172 + $0x1c8] sm:$0xff] %v748
      %813 = vst [vmem:[%s172 + $0x1d0] sm:$0xff] %v749
      %814 = vst [vmem:[%s172 + $0x1d8] sm:$0xff] %v750
      %815 = vst [vmem:[%s172 + $0x1e0] sm:$0xff] %v751
      %816 = vst [vmem:[%s172 + $0x1e8] sm:$0xff] %v752
      %817 = vst [vmem:[%s172 + $0x1f0] sm:$0xff] %v753
      %818 = vst [vmem:[%s172 + $0x1f8] sm:$0xff] %v754
      %s819 = smul.u32 64, %s14
      %p820 = scmp.lt.s32.totalorder %s819, 511
      %s821 = scalar_select %p820, %s819, 511
      %s822 = smul.addr %s821, 8
      %s823 = scalar_lea.vmem %s3, %s822
      // Predicated region
      $region33: #{_lambda_.20} parent=31 // pred_check
        %p824 = pneg %p100
      $region34: #{_lambda_.20} parent=31 // pred_check_branch
        %826 = sbr.rel (%p824) target = $region36
      $region35: #{_lambda_.20} parent=31 // pred_region
        %s827 = smul.u32 64, %s14
      $region36: #{_lambda_.20} parent=31 // pred_fallthru
        _
    $region32: #{_lambda_.20} parent=5 // pred_fallthru
      _
    %p828 = scmp.le.s32.totalorder 2, %s9
    // Predicated region
    $region37: #{_lambda_.20} parent=5 // pred_check
      %p829 = pneg %p828
    $region38: #{_lambda_.20} parent=5 // pred_check_branch
      %831 = sbr.rel (%p829) target = $region40
    $region39: #{_lambda_.20} parent=5 // pred_region
      %s832 = ssub.s32 %s9, 2
      // Predicated region
      $region41: #{_lambda_.20} parent=39 // pred_check
        %p833 = pneg %p106
      $region42: #{_lambda_.20} parent=39 // pred_check_branch
        %835 = sbr.rel (%p833) target = $region44
      $region43: #{_lambda_.20} parent=39 // pred_region
        %s836 = smul.u32 64, %s15
        %p837 = scmp.lt.s32.totalorder %s836, 511
        %s838 = scalar_select %p837, %s836, 511
        %s839 = smul.addr %s838, 8
        %s840 = scalar_lea.vmem %s3, %s839
      $region44: #{_lambda_.20} parent=39 // pred_fallthru
        _
    $region40: #{_lambda_.20} parent=5 // pred_fallthru
      _
  $region6: #{_lambda_.20} parent=0 // loop_footer
    %s13 = sadd.s32 1, %s9
  $region7: #{_lambda_.20} parent=0 // loop_footer_branch
    %8 = sbr.rel target = $region3
  $region8: #{_lambda_.20} parent=0 // loop_exit
    _

// kernel: _lambda_.21
$region0: #{_lambda_.21}
  #allocation0 [shape = 'u32[]', space=smem, size = 0x4, offset = 0x4, fixed_abs, tag = 'smem constant byte address 0x4 - core index']
  #allocation1 [shape = 'u32[72,128]{1,0:T(1,128)}', space=vmem, size = 0x9000, scoped, tag = 'internal scratch']
  %s0 = inlined_call_operand.vmem [shape: bf16[1024,16], index: 0, kind: input, shape index: {}]
  %s1 = inlined_call_operand.vmem [shape: bf16[16,128], index: 1, kind: input, shape index: {}]
  %s2 = inlined_call_operand.vmem [shape: f32[1,128], index: 2, kind: input, shape index: {}]
  %s3 = inlined_call_operand.vmem [shape: f32[1024,128], index: 3, kind: output, shape index: {}]
  %s4 = sld [smem:[#allocation0]]
  $region45: #{_lambda_.21} parent=0
    _
  %s6 = ssub.s32 1, %s4
  %s7 = scalar_select 0, %s6, %s4
  loop: start=0, step=1, limit=4
  $region2: #{_lambda_.21} parent=0 // loop_pre_header
    _
  $region3: #{_lambda_.21} parent=0 // loop_header
    %s9 = sphi 0, %s13
    %p10 = scmp.ge.s32.totalorder %s9, 4
    %s19 = sphi 0, %s21
    %s22 = sphi 0, %s19
    %s23 = sphi 0, %s22
    %s39 = sphi 0, %s23
    %s43 = sphi 0, %s43
    %s45 = sphi 0, %s43
    %s46 = sphi 0, %s45
    %s60 = sphi 0, %s46
    %s64 = sphi 0, %s64
    %s66 = sphi 0, %s64
    %s67 = sphi 0, %s66
    %s81 = sphi 0, %s67
    %s87 = sphi 0, %s89
    %s90 = sphi 0, %s87
    %s91 = sphi 0, %s90
    %s107 = sphi 0, %s91
  $region4: #{_lambda_.21} parent=0 // loop_header_branch
    %12 = sbr.rel (%p10) target = $region8
  $region5: #{_lambda_.21} parent=0 // loop_body
    %s14 = ssub.s32 %s9, 1
    %s15 = ssub.s32 %s9, 2
    %s16 = sadd.s32 %s9, 1
    %s17 = ssub.s32 %s9, %s16
    %p18 = scmp.eq.s32.totalorder %s17, 0
    %s20 = sadd.s32 %s19, 1
    %s21 = scalar_select %p18, %s19, %s20
    %p24 = pneg %p18
    %p25 = scmp.eq.s32.totalorder %s9, 1
    %p26 = por %p24, %p25
    %p27 = scmp.ne.s32.totalorder %s19, %s22
    %p28 = scmp.eq.s32.totalorder %s9, 0
    %p29 = por %p27, %p28
    %p30 = scmp.ne.s32.totalorder %s19, %s22
    %p31 = scmp.eq.s32.totalorder %s14, 1
    %p32 = por %p30, %p31
    %p33 = scmp.ne.s32.totalorder %s22, %s23
    %p34 = scmp.eq.s32.totalorder %s14, 0
    %p35 = por %p33, %p34
    %p36 = scmp.ne.s32.totalorder %s22, %s23
    %p37 = scmp.eq.s32.totalorder %s15, 1
    %p38 = por %p36, %p37
    %p40 = scmp.ne.s32.totalorder %s23, %s39
    %p41 = scmp.eq.s32.totalorder %s15, 0
    %p42 = por %p40, %p41
    %s44 = sadd.s32 %s43, 1
    %p47 = scmp.eq.s32.totalorder %s9, 1
    %p48 = scmp.ne.s32.totalorder %s43, %s45
    %p49 = scmp.eq.s32.totalorder %s9, 0
    %p50 = por %p48, %p49
    %p51 = scmp.ne.s32.totalorder %s43, %s45
    %p52 = scmp.eq.s32.totalorder %s14, 1
    %p53 = por %p51, %p52
    %p54 = scmp.ne.s32.totalorder %s45, %s46
    %p55 = scmp.eq.s32.totalorder %s14, 0
    %p56 = por %p54, %p55
    %p57 = scmp.ne.s32.totalorder %s45, %s46
    %p58 = scmp.eq.s32.totalorder %s15, 1
    %p59 = por %p57, %p58
    %p61 = scmp.ne.s32.totalorder %s46, %s60
    %p62 = scmp.eq.s32.totalorder %s15, 0
    %p63 = por %p61, %p62
    %s65 = sadd.s32 %s64, 1
    %p68 = scmp.eq.s32.totalorder %s9, 1
    %p69 = scmp.ne.s32.totalorder %s64, %s66
    %p70 = scmp.eq.s32.totalorder %s9, 0
    %p71 = por %p69, %p70
    %p72 = scmp.ne.s32.totalorder %s64, %s66
    %p73 = scmp.eq.s32.totalorder %s14, 1
    %p74 = por %p72, %p73
    %p75 = scmp.ne.s32.totalorder %s66, %s67
    %p76 = scmp.eq.s32.totalorder %s14, 0
    %p77 = por %p75, %p76
    %p78 = scmp.ne.s32.totalorder %s66, %s67
    %p79 = scmp.eq.s32.totalorder %s15, 1
    %p80 = por %p78, %p79
    %p82 = scmp.ne.s32.totalorder %s67, %s81
    %p83 = scmp.eq.s32.totalorder %s15, 0
    %p84 = por %p82, %p83
    %s85 = ssub.s32 %s9, %s16
    %p86 = scmp.eq.s32.totalorder %s85, 0
    %s88 = sadd.s32 %s87, 1
    %s89 = scalar_select %p86, %s87, %s88
    %p92 = pneg %p86
    %p93 = scmp.eq.s32.totalorder %s9, 1
    %p94 = por %p92, %p93
    %p95 = scmp.ne.s32.totalorder %s87, %s90
    %p96 = scmp.eq.s32.totalorder %s9, 0
    %p97 = por %p95, %p96
    %p98 = scmp.ne.s32.totalorder %s87, %s90
    %p99 = scmp.eq.s32.totalorder %s14, 1
    %p100 = por %p98, %p99
    %p101 = scmp.ne.s32.totalorder %s90, %s91
    %p102 = scmp.eq.s32.totalorder %s14, 0
    %p103 = por %p101, %p102
    %p104 = scmp.ne.s32.totalorder %s90, %s91
    %p105 = scmp.eq.s32.totalorder %s15, 1
    %p106 = por %p104, %p105
    %p108 = scmp.ne.s32.totalorder %s91, %s107
    %p109 = scmp.eq.s32.totalorder %s15, 0
    %p110 = por %p108, %p109
    %p111 = scmp.le.s32.totalorder 1, %s9
    %p112 = scmp.lt.s32.totalorder %s9, 3
    %p113 = pnand %p111, %p112
    %p114 = pneg %p113
    // Predicated region
    $region9: #{_lambda_.21} parent=5 // pred_check
      _
    $region10: #{_lambda_.21} parent=5 // pred_check_branch
      %116 = sbr.rel (%p113) target = $region12
    $region11: #{_lambda_.21} parent=5 // pred_region
      %s117 = ssub.s32 %s9, 1
      // Predicated region
      $region13: #{_lambda_.21} parent=11 // pred_check
        %p118 = pneg %p56
      $region14: #{_lambda_.21} parent=11 // pred_check_branch
        %120 = sbr.rel (%p118) target = $region16
      $region15: #{_lambda_.21} parent=11 // pred_region
        _
      $region16: #{_lambda_.21} parent=11 // pred_fallthru
        _
      // Predicated region
      $region17: #{_lambda_.21} parent=11 // pred_check
        %p121 = pneg %p77
      $region18: #{_lambda_.21} parent=11 // pred_check_branch
        %123 = sbr.rel (%p121) target = $region20
      $region19: #{_lambda_.21} parent=11 // pred_region
        _
      $region20: #{_lambda_.21} parent=11 // pred_fallthru
        _
    $region12: #{_lambda_.21} parent=5 // pred_fallthru
      _
    %p124 = scmp.lt.s32.totalorder %s9, 2
    // Predicated region
    $region21: #{_lambda_.21} parent=5 // pred_check
      %p125 = pneg %p124
    $region22: #{_lambda_.21} parent=5 // pred_check_branch
      %127 = sbr.rel (%p125) target = $region24
    $region23: #{_lambda_.21} parent=5 // pred_region
      // Predicated region
      $region25: #{_lambda_.21} parent=23 // pred_check
        %p128 = pneg %p29
      $region26: #{_lambda_.21} parent=23 // pred_check_branch
        %130 = sbr.rel (%p128) target = $region28
      $region27: #{_lambda_.21} parent=23 // pred_region
        %s131 = smul.u32 64, %s9
        %p132 = scmp.lt.s32.totalorder %s131, 127
        %s133 = scalar_select %p132, %s131, 127
        %s134 = smul.addr %s133, 4
        %s135 = scalar_lea.vmem %s0, %s134
        %s136 = smul.u32 64, %s9
      $region28: #{_lambda_.21} parent=23 // pred_fallthru
        _
    $region24: #{_lambda_.21} parent=5 // pred_fallthru
      _
    %p137 = scmp.le.s32.totalorder 1, %s9
    %p138 = scmp.lt.s32.totalorder %s9, 3
    %p139 = pnand %p137, %p138
    %p140 = pneg %p139
    // Predicated region
    $region29: #{_lambda_.21} parent=5 // pred_check
      _
    $region30: #{_lambda_.21} parent=5 // pred_check_branch
      %142 = sbr.rel (%p139) target = $region32
    $region31: #{_lambda_.21} parent=5 // pred_region
      %s143 = ssub.s32 %s9, 1
      %s144 = smul.u32 64, %s14
      %p145 = scmp.lt.s32.totalorder %s144, 127
      %s146 = scalar_select %p145, %s144, 127
      %s147 = smul.addr %s146, 4
      %s148 = scalar_lea.vmem %s0, %s147
      %p149 = pneg %p35
      %p150 = pneg %p32
      %p151 = pneg %p56
      %p152 = pneg %p53
      %p153 = pneg %p77
      %p154 = pneg %p74
      %p155 = pneg %p103
      %p156 = pneg %p100
      %s157 = smul.u32 64, %s14
      %p158 = scmp.lt.s32.totalorder %s157, 127
      %s159 = scalar_select %p158, %s157, 127
      %s160 = smul.addr %s159, 8
      %s161 = scalar_lea.vmem %s3, %s160
      %s162 = smul.u32 64, %s14
      %p163 = scmp.lt.s32.totalorder %s162, 127
      %s164 = scalar_select %p163, %s162, 127
      %s165 = smul.addr %s164, 4
      %s166 = scalar_lea.vmem %s0, %s165
      %s167 = smul.u32 64, %s14
      %s168 = smul.u32 64, %s14
      %p169 = scmp.lt.s32.totalorder %s168, 127
      %s170 = scalar_select %p169, %s168, 127
      %s171 = smul.addr %s170, 8
      %s172 = scalar_lea.vmem %s3, %s171
      %s173 = smul.u32 64, %s14
      %v175 = vld [vmem:[%s166] sm:$0xf]
      %v176 = vld [vmem:[%s166 + $0x4] sm:$0xf]
      %v177 = vld [vmem:[%s166 + $0x8] sm:$0xf]
      %v178 = vld [vmem:[%s166 + $0xc] sm:$0xf]
      %v179 = vld [vmem:[%s166 + $0x10] sm:$0xf]
      %v180 = vld [vmem:[%s166 + $0x14] sm:$0xf]
      %v181 = vld [vmem:[%s166 + $0x18] sm:$0xf]
      %v182 = vld [vmem:[%s166 + $0x1c] sm:$0xf]
      %v183 = vld [vmem:[%s166 + $0x20] sm:$0xf]
      %v184 = vld [vmem:[%s166 + $0x24] sm:$0xf]
      %v185 = vld [vmem:[%s166 + $0x28] sm:$0xf]
      %v186 = vld [vmem:[%s166 + $0x2c] sm:$0xf]
      %v187 = vld [vmem:[%s166 + $0x30] sm:$0xf]
      %v188 = vld [vmem:[%s166 + $0x34] sm:$0xf]
      %v189 = vld [vmem:[%s166 + $0x38] sm:$0xf]
      %v190 = vld [vmem:[%s166 + $0x3c] sm:$0xf]
      %v191 = vld [vmem:[%s166 + $0x40] sm:$0xf]
      %v192 = vld [vmem:[%s166 + $0x44] sm:$0xf]
      %v193 = vld [vmem:[%s166 + $0x48] sm:$0xf]
      %v194 = vld [vmem:[%s166 + $0x4c] sm:$0xf]
      %v195 = vld [vmem:[%s166 + $0x50] sm:$0xf]
      %v196 = vld [vmem:[%s166 + $0x54] sm:$0xf]
      %v197 = vld [vmem:[%s166 + $0x58] sm:$0xf]
      %v198 = vld [vmem:[%s166 + $0x5c] sm:$0xf]
      %v199 = vld [vmem:[%s166 + $0x60] sm:$0xf]
      %v200 = vld [vmem:[%s166 + $0x64] sm:$0xf]
      %v201 = vld [vmem:[%s166 + $0x68] sm:$0xf]
      %v202 = vld [vmem:[%s166 + $0x6c] sm:$0xf]
      %v203 = vld [vmem:[%s166 + $0x70] sm:$0xf]
      %v204 = vld [vmem:[%s166 + $0x74] sm:$0xf]
      %v205 = vld [vmem:[%s166 + $0x78] sm:$0xf]
      %v206 = vld [vmem:[%s166 + $0x7c] sm:$0xf]
      %v207 = vld [vmem:[%s166 + $0x80] sm:$0xf]
      %v208 = vld [vmem:[%s166 + $0x84] sm:$0xf]
      %v209 = vld [vmem:[%s166 + $0x88] sm:$0xf]
      %v210 = vld [vmem:[%s166 + $0x8c] sm:$0xf]
      %v211 = vld [vmem:[%s166 + $0x90] sm:$0xf]
      %v212 = vld [vmem:[%s166 + $0x94] sm:$0xf]
      %v213 = vld [vmem:[%s166 + $0x98] sm:$0xf]
      %v214 = vld [vmem:[%s166 + $0x9c] sm:$0xf]
      %v215 = vld [vmem:[%s166 + $0xa0] sm:$0xf]
      %v216 = vld [vmem:[%s166 + $0xa4] sm:$0xf]
      %v217 = vld [vmem:[%s166 + $0xa8] sm:$0xf]
      %v218 = vld [vmem:[%s166 + $0xac] sm:$0xf]
      %v219 = vld [vmem:[%s166 + $0xb0] sm:$0xf]
      %v220 = vld [vmem:[%s166 + $0xb4] sm:$0xf]
      %v221 = vld [vmem:[%s166 + $0xb8] sm:$0xf]
      %v222 = vld [vmem:[%s166 + $0xbc] sm:$0xf]
      %v223 = vld [vmem:[%s166 + $0xc0] sm:$0xf]
      %v224 = vld [vmem:[%s166 + $0xc4] sm:$0xf]
      %v225 = vld [vmem:[%s166 + $0xc8] sm:$0xf]
      %v226 = vld [vmem:[%s166 + $0xcc] sm:$0xf]
      %v227 = vld [vmem:[%s166 + $0xd0] sm:$0xf]
      %v228 = vld [vmem:[%s166 + $0xd4] sm:$0xf]
      %v229 = vld [vmem:[%s166 + $0xd8] sm:$0xf]
      %v230 = vld [vmem:[%s166 + $0xdc] sm:$0xf]
      %v231 = vld [vmem:[%s166 + $0xe0] sm:$0xf]
      %v232 = vld [vmem:[%s166 + $0xe4] sm:$0xf]
      %v233 = vld [vmem:[%s166 + $0xe8] sm:$0xf]
      %v234 = vld [vmem:[%s166 + $0xec] sm:$0xf]
      %v235 = vld [vmem:[%s166 + $0xf0] sm:$0xf]
      %v236 = vld [vmem:[%s166 + $0xf4] sm:$0xf]
      %v237 = vld [vmem:[%s166 + $0xf8] sm:$0xf]
      %v238 = vld [vmem:[%s166 + $0xfc] sm:$0xf]
      %v239 = vld [vmem:[%s1] sm:$0xf]
      %v240 = vld [vmem:[%s1 + $0x4] sm:$0xf]
      %v241 = vld [vmem:[%s2] sm:$0x1]
      %v243 = vperm.slane %v241, 0
      %v309 = vunpack.c.l.b16 %v175
      %v310 = vunpack.c.l.b16 %v176
      %v311 = vunpack.c.l.b16 %v177
      %v312 = vunpack.c.l.b16 %v178
      %v313 = vunpack.c.l.b16 %v179
      %v314 = vunpack.c.l.b16 %v180
      %v315 = vunpack.c.l.b16 %v181
      %v316 = vunpack.c.l.b16 %v182
      %v317 = vunpack.c.l.b16 %v183
      %v318 = vunpack.c.l.b16 %v184
      %v319 = vunpack.c.l.b16 %v185
      %v320 = vunpack.c.l.b16 %v186
      %v321 = vunpack.c.l.b16 %v187
      %v322 = vunpack.c.l.b16 %v188
      %v323 = vunpack.c.l.b16 %v189
      %v324 = vunpack.c.l.b16 %v190
      %v325 = vunpack.c.l.b16 %v191
      %v326 = vunpack.c.l.b16 %v192
      %v327 = vunpack.c.l.b16 %v193
      %v328 = vunpack.c.l.b16 %v194
      %v329 = vunpack.c.l.b16 %v195
      %v330 = vunpack.c.l.b16 %v196
      %v331 = vunpack.c.l.b16 %v197
      %v332 = vunpack.c.l.b16 %v198
      %v333 = vunpack.c.l.b16 %v199
      %v334 = vunpack.c.l.b16 %v200
      %v335 = vunpack.c.l.b16 %v201
      %v336 = vunpack.c.l.b16 %v202
      %v337 = vunpack.c.l.b16 %v203
      %v338 = vunpack.c.l.b16 %v204
      %v339 = vunpack.c.l.b16 %v205
      %v340 = vunpack.c.l.b16 %v206
      %v341 = vunpack.c.l.b16 %v207
      %v342 = vunpack.c.l.b16 %v208
      %v343 = vunpack.c.l.b16 %v209
      %v344 = vunpack.c.l.b16 %v210
      %v345 = vunpack.c.l.b16 %v211
      %v346 = vunpack.c.l.b16 %v212
      %v347 = vunpack.c.l.b16 %v213
      %v348 = vunpack.c.l.b16 %v214
      %v349 = vunpack.c.l.b16 %v215
      %v350 = vunpack.c.l.b16 %v216
      %v351 = vunpack.c.l.b16 %v217
      %v352 = vunpack.c.l.b16 %v218
      %v353 = vunpack.c.l.b16 %v219
      %v354 = vunpack.c.l.b16 %v220
      %v355 = vunpack.c.l.b16 %v221
      %v356 = vunpack.c.l.b16 %v222
      %v357 = vunpack.c.l.b16 %v223
      %v358 = vunpack.c.l.b16 %v224
      %v359 = vunpack.c.l.b16 %v225
      %v360 = vunpack.c.l.b16 %v226
      %v361 = vunpack.c.l.b16 %v227
      %v362 = vunpack.c.l.b16 %v228
      %v363 = vunpack.c.l.b16 %v229
      %v364 = vunpack.c.l.b16 %v230
      %v365 = vunpack.c.l.b16 %v231
      %v366 = vunpack.c.l.b16 %v232
      %v367 = vunpack.c.l.b16 %v233
      %v368 = vunpack.c.l.b16 %v234
      %v369 = vunpack.c.l.b16 %v235
      %v370 = vunpack.c.l.b16 %v236
      %v371 = vunpack.c.l.b16 %v237
      %v372 = vunpack.c.l.b16 %v238
      %v373 = vpack.c.b16 %v310, %v309
      %v374 = vpack.c.b16 %v312, %v311
      %v375 = vpack.c.b16 %v314, %v313
      %v376 = vpack.c.b16 %v316, %v315
      %v377 = vpack.c.b16 %v318, %v317
      %v378 = vpack.c.b16 %v320, %v319
      %v379 = vpack.c.b16 %v322, %v321
      %v380 = vpack.c.b16 %v324, %v323
      %v381 = vpack.c.b16 %v326, %v325
      %v382 = vpack.c.b16 %v328, %v327
      %v383 = vpack.c.b16 %v330, %v329
      %v384 = vpack.c.b16 %v332, %v331
      %v385 = vpack.c.b16 %v334, %v333
      %v386 = vpack.c.b16 %v336, %v335
      %v387 = vpack.c.b16 %v338, %v337
      %v388 = vpack.c.b16 %v340, %v339
      %v389 = vpack.c.b16 %v342, %v341
      %v390 = vpack.c.b16 %v344, %v343
      %v391 = vpack.c.b16 %v346, %v345
      %v392 = vpack.c.b16 %v348, %v347
      %v393 = vpack.c.b16 %v350, %v349
      %v394 = vpack.c.b16 %v352, %v351
      %v395 = vpack.c.b16 %v354, %v353
      %v396 = vpack.c.b16 %v356, %v355
      %v397 = vpack.c.b16 %v358, %v357
      %v398 = vpack.c.b16 %v360, %v359
      %v399 = vpack.c.b16 %v362, %v361
      %v400 = vpack.c.b16 %v364, %v363
      %v401 = vpack.c.b16 %v366, %v365
      %v402 = vpack.c.b16 %v368, %v367
      %v403 = vpack.c.b16 %v370, %v369
      %v404 = vpack.c.b16 %v372, %v371
      %v407 = vunpack.c.l.b16 %v239
      %v408 = vunpack.c.l.b16 %v240
      %v409 = vpack.c.b16 %v408, %v407
      %vm411 = vcmask 130048
      %v413 = vsel %vm411, %v373, 0
      %v416 = vsel %vm411, %v374, 0
      %v419 = vsel %vm411, %v375, 0
      %v422 = vsel %vm411, %v376, 0
      %v425 = vsel %vm411, %v377, 0
      %v428 = vsel %vm411, %v378, 0
      %v431 = vsel %vm411, %v379, 0
      %v434 = vsel %vm411, %v380, 0
      %v437 = vsel %vm411, %v381, 0
      %v440 = vsel %vm411, %v382, 0
      %v443 = vsel %vm411, %v383, 0
      %v446 = vsel %vm411, %v384, 0
      %v449 = vsel %vm411, %v385, 0
      %v452 = vsel %vm411, %v386, 0
      %v455 = vsel %vm411, %v387, 0
      %v458 = vsel %vm411, %v388, 0
      %v461 = vsel %vm411, %v389, 0
      %v464 = vsel %vm411, %v390, 0
      %v467 = vsel %vm411, %v391, 0
      %v470 = vsel %vm411, %v392, 0
      %v473 = vsel %vm411, %v393, 0
      %v476 = vsel %vm411, %v394, 0
      %v479 = vsel %vm411, %v395, 0
      %v482 = vsel %vm411, %v396, 0
      %v485 = vsel %vm411, %v397, 0
      %v488 = vsel %vm411, %v398, 0
      %v491 = vsel %vm411, %v399, 0
      %v494 = vsel %vm411, %v400, 0
      %v497 = vsel %vm411, %v401, 0
      %v500 = vsel %vm411, %v402, 0
      %v503 = vsel %vm411, %v403, 0
      %v506 = vsel %vm411, %v404, 0
      %508 = vmatpush.bf16.msra.mxu0 0
      %509 = vmatpush.bf16.msra.mxu0 0
      %510 = vmatpush.bf16.msra.mxu0 0
      %511 = vmatpush.bf16.msra.mxu0 0
      %512 = vmatpush.bf16.msra.mxu0 0
      %513 = vmatpush.bf16.msra.mxu0 0
      %514 = vmatpush.bf16.msra.mxu0 0
      %515 = vmatpush.bf16.msra.mxu0 %v409
      %516 = vmatmul.bf16.gmra.mxu0 %v413
      %v517 = vpop.f32.mrf.mxu0
      %v518 = vadd.f32 %v243, %v517
      %v519 = vpop.f32.mrf.mxu0
      %v520 = vadd.f32 %v243, %v519
      %521 = vmatmul.bf16.gmra.mxu0 %v416
      %v522 = vpop.f32.mrf.mxu0
      %v523 = vadd.f32 %v243, %v522
      %v524 = vpop.f32.mrf.mxu0
      %v525 = vadd.f32 %v243, %v524
      %526 = vmatmul.bf16.gmra.mxu0 %v419
      %v527 = vpop.f32.mrf.mxu0
      %v528 = vadd.f32 %v243, %v527
      %v529 = vpop.f32.mrf.mxu0
      %v530 = vadd.f32 %v243, %v529
      %531 = vmatmul.bf16.gmra.mxu0 %v422
      %v532 = vpop.f32.mrf.mxu0
      %v533 = vadd.f32 %v243, %v532
      %v534 = vpop.f32.mrf.mxu0
      %v535 = vadd.f32 %v243, %v534
      %536 = vmatmul.bf16.gmra.mxu0 %v425
      %v537 = vpop.f32.mrf.mxu0
      %v538 = vadd.f32 %v243, %v537
      %v539 = vpop.f32.mrf.mxu0
      %v540 = vadd.f32 %v243, %v539
      %541 = vmatmul.bf16.gmra.mxu0 %v428
      %v542 = vpop.f32.mrf.mxu0
      %v543 = vadd.f32 %v243, %v542
      %v544 = vpop.f32.mrf.mxu0
      %v545 = vadd.f32 %v243, %v544
      %546 = vmatmul.bf16.gmra.mxu0 %v431
      %v547 = vpop.f32.mrf.mxu0
      %v548 = vadd.f32 %v243, %v547
      %v549 = vpop.f32.mrf.mxu0
      %v550 = vadd.f32 %v243, %v549
      %551 = vmatmul.bf16.gmra.mxu0 %v434
      %v552 = vpop.f32.mrf.mxu0
      %v553 = vadd.f32 %v243, %v552
      %v554 = vpop.f32.mrf.mxu0
      %v555 = vadd.f32 %v243, %v554
      %556 = vmatmul.bf16.gmra.mxu0 %v437
      %v557 = vpop.f32.mrf.mxu0
      %v558 = vadd.f32 %v243, %v557
      %v559 = vpop.f32.mrf.mxu0
      %v560 = vadd.f32 %v243, %v559
      %561 = vmatmul.bf16.gmra.mxu0 %v440
      %v562 = vpop.f32.mrf.mxu0
      %v563 = vadd.f32 %v243, %v562
      %v564 = vpop.f32.mrf.mxu0
      %v565 = vadd.f32 %v243, %v564
      %566 = vmatmul.bf16.gmra.mxu0 %v443
      %v567 = vpop.f32.mrf.mxu0
      %v568 = vadd.f32 %v243, %v567
      %v569 = vpop.f32.mrf.mxu0
      %v570 = vadd.f32 %v243, %v569
      %571 = vmatmul.bf16.gmra.mxu0 %v446
      %v572 = vpop.f32.mrf.mxu0
      %v573 = vadd.f32 %v243, %v572
      %v574 = vpop.f32.mrf.mxu0
      %v575 = vadd.f32 %v243, %v574
      %576 = vmatmul.bf16.gmra.mxu0 %v449
      %v577 = vpop.f32.mrf.mxu0
      %v578 = vadd.f32 %v243, %v577
      %v579 = vpop.f32.mrf.mxu0
      %v580 = vadd.f32 %v243, %v579
      %581 = vmatmul.bf16.gmra.mxu0 %v452
      %v582 = vpop.f32.mrf.mxu0
      %v583 = vadd.f32 %v243, %v582
      %v584 = vpop.f32.mrf.mxu0
      %v585 = vadd.f32 %v243, %v584
      %586 = vmatmul.bf16.gmra.mxu0 %v455
      %v587 = vpop.f32.mrf.mxu0
      %v588 = vadd.f32 %v243, %v587
      %v589 = vpop.f32.mrf.mxu0
      %v590 = vadd.f32 %v243, %v589
      %591 = vmatmul.bf16.gmra.mxu0 %v458
      %v592 = vpop.f32.mrf.mxu0
      %v593 = vadd.f32 %v243, %v592
      %v594 = vpop.f32.mrf.mxu0
      %v595 = vadd.f32 %v243, %v594
      %596 = vmatmul.bf16.gmra.mxu0 %v461
      %v597 = vpop.f32.mrf.mxu0
      %v598 = vadd.f32 %v243, %v597
      %v599 = vpop.f32.mrf.mxu0
      %v600 = vadd.f32 %v243, %v599
      %601 = vmatmul.bf16.gmra.mxu0 %v464
      %v602 = vpop.f32.mrf.mxu0
      %v603 = vadd.f32 %v243, %v602
      %v604 = vpop.f32.mrf.mxu0
      %v605 = vadd.f32 %v243, %v604
      %606 = vmatmul.bf16.gmra.mxu0 %v467
      %v607 = vpop.f32.mrf.mxu0
      %v608 = vadd.f32 %v243, %v607
      %v609 = vpop.f32.mrf.mxu0
      %v610 = vadd.f32 %v243, %v609
      %611 = vmatmul.bf16.gmra.mxu0 %v470
      %v612 = vpop.f32.mrf.mxu0
      %v613 = vadd.f32 %v243, %v612
      %v614 = vpop.f32.mrf.mxu0
      %v615 = vadd.f32 %v243, %v614
      %616 = vmatmul.bf16.gmra.mxu0 %v473
      %v617 = vpop.f32.mrf.mxu0
      %v618 = vadd.f32 %v243, %v617
      %v619 = vpop.f32.mrf.mxu0
      %v620 = vadd.f32 %v243, %v619
      %621 = vmatmul.bf16.gmra.mxu0 %v476
      %v622 = vpop.f32.mrf.mxu0
      %v623 = vadd.f32 %v243, %v622
      %v624 = vpop.f32.mrf.mxu0
      %v625 = vadd.f32 %v243, %v624
      %626 = vmatmul.bf16.gmra.mxu0 %v479
      %v627 = vpop.f32.mrf.mxu0
      %v628 = vadd.f32 %v243, %v627
      %v629 = vpop.f32.mrf.mxu0
      %v630 = vadd.f32 %v243, %v629
      %631 = vmatmul.bf16.gmra.mxu0 %v482
      %v632 = vpop.f32.mrf.mxu0
      %v633 = vadd.f32 %v243, %v632
      %v634 = vpop.f32.mrf.mxu0
      %v635 = vadd.f32 %v243, %v634
      %636 = vmatmul.bf16.gmra.mxu0 %v485
      %v637 = vpop.f32.mrf.mxu0
      %v638 = vadd.f32 %v243, %v637
      %v639 = vpop.f32.mrf.mxu0
      %v640 = vadd.f32 %v243, %v639
      %641 = vmatmul.bf16.gmra.mxu0 %v488
      %v642 = vpop.f32.mrf.mxu0
      %v643 = vadd.f32 %v243, %v642
      %v644 = vpop.f32.mrf.mxu0
      %v645 = vadd.f32 %v243, %v644
      %646 = vmatmul.bf16.gmra.mxu0 %v491
      %v647 = vpop.f32.mrf.mxu0
      %v648 = vadd.f32 %v243, %v647
      %v649 = vpop.f32.mrf.mxu0
      %v650 = vadd.f32 %v243, %v649
      %651 = vmatmul.bf16.gmra.mxu0 %v494
      %v652 = vpop.f32.mrf.mxu0
      %v653 = vadd.f32 %v243, %v652
      %v654 = vpop.f32.mrf.mxu0
      %v655 = vadd.f32 %v243, %v654
      %656 = vmatmul.bf16.gmra.mxu0 %v497
      %v657 = vpop.f32.mrf.mxu0
      %v658 = vadd.f32 %v243, %v657
      %v659 = vpop.f32.mrf.mxu0
      %v660 = vadd.f32 %v243, %v659
      %661 = vmatmul.bf16.gmra.mxu0 %v500
      %v662 = vpop.f32.mrf.mxu0
      %v663 = vadd.f32 %v243, %v662
      %v664 = vpop.f32.mrf.mxu0
      %v665 = vadd.f32 %v243, %v664
      %666 = vmatmul.bf16.gmra.mxu0 %v503
      %v667 = vpop.f32.mrf.mxu0
      %v668 = vadd.f32 %v243, %v667
      %v669 = vpop.f32.mrf.mxu0
      %v670 = vadd.f32 %v243, %v669
      %671 = vmatmul.bf16.gmra.mxu0 %v506
      %v672 = vpop.f32.mrf.mxu0
      %v673 = vadd.f32 %v243, %v672
      %v674 = vpop.f32.mrf.mxu0
      %v675 = vadd.f32 %v243, %v674
      %676 = vdwg.mxu0
      %v677 = vmax.f32 %v518, 0.0
      %v678 = vmax.f32 %v520, 0.0
      %v679 = vmax.f32 %v523, 0.0
      %v680 = vmax.f32 %v525, 0.0
      %v681 = vmax.f32 %v528, 0.0
      %v682 = vmax.f32 %v530, 0.0
      %v683 = vmax.f32 %v533, 0.0
      %v684 = vmax.f32 %v535, 0.0
      %v685 = vmax.f32 %v538, 0.0
      %v686 = vmax.f32 %v540, 0.0
      %v687 = vmax.f32 %v543, 0.0
      %v688 = vmax.f32 %v545, 0.0
      %v689 = vmax.f32 %v548, 0.0
      %v690 = vmax.f32 %v550, 0.0
      %v691 = vmax.f32 %v553, 0.0
      %v692 = vmax.f32 %v555, 0.0
      %v693 = vmax.f32 %v558, 0.0
      %v694 = vmax.f32 %v560, 0.0
      %v695 = vmax.f32 %v563, 0.0
      %v696 = vmax.f32 %v565, 0.0
      %v697 = vmax.f32 %v568, 0.0
      %v698 = vmax.f32 %v570, 0.0
      %v699 = vmax.f32 %v573, 0.0
      %v700 = vmax.f32 %v575, 0.0
      %v701 = vmax.f32 %v578, 0.0
      %v702 = vmax.f32 %v580, 0.0
      %v703 = vmax.f32 %v583, 0.0
      %v704 = vmax.f32 %v585, 0.0
      %v705 = vmax.f32 %v588, 0.0
      %v706 = vmax.f32 %v590, 0.0
      %v707 = vmax.f32 %v593, 0.0
      %v708 = vmax.f32 %v595, 0.0
      %v709 = vmax.f32 %v598, 0.0
      %v710 = vmax.f32 %v600, 0.0
      %v711 = vmax.f32 %v603, 0.0
      %v712 = vmax.f32 %v605, 0.0
      %v713 = vmax.f32 %v608, 0.0
      %v714 = vmax.f32 %v610, 0.0
      %v715 = vmax.f32 %v613, 0.0
      %v716 = vmax.f32 %v615, 0.0
      %v717 = vmax.f32 %v618, 0.0
      %v718 = vmax.f32 %v620, 0.0
      %v719 = vmax.f32 %v623, 0.0
      %v720 = vmax.f32 %v625, 0.0
      %v721 = vmax.f32 %v628, 0.0
      %v722 = vmax.f32 %v630, 0.0
      %v723 = vmax.f32 %v633, 0.0
      %v724 = vmax.f32 %v635, 0.0
      %v725 = vmax.f32 %v638, 0.0
      %v726 = vmax.f32 %v640, 0.0
      %v727 = vmax.f32 %v643, 0.0
      %v728 = vmax.f32 %v645, 0.0
      %v729 = vmax.f32 %v648, 0.0
      %v730 = vmax.f32 %v650, 0.0
      %v731 = vmax.f32 %v653, 0.0
      %v732 = vmax.f32 %v655, 0.0
      %v733 = vmax.f32 %v658, 0.0
      %v734 = vmax.f32 %v660, 0.0
      %v735 = vmax.f32 %v663, 0.0
      %v736 = vmax.f32 %v665, 0.0
      %v737 = vmax.f32 %v668, 0.0
      %v738 = vmax.f32 %v670, 0.0
      %v739 = vmax.f32 %v673, 0.0
      %v740 = vmax.f32 %v675, 0.0
      %741 = vst [vmem:[%s172] sm:$0xff] %v677
      %742 = vst [vmem:[%s172 + $0x8] sm:$0xff] %v678
      %743 = vst [vmem:[%s172 + $0x10] sm:$0xff] %v679
      %744 = vst [vmem:[%s172 + $0x18] sm:$0xff] %v680
      %745 = vst [vmem:[%s172 + $0x20] sm:$0xff] %v681
      %746 = vst [vmem:[%s172 + $0x28] sm:$0xff] %v682
      %747 = vst [vmem:[%s172 + $0x30] sm:$0xff] %v683
      %748 = vst [vmem:[%s172 + $0x38] sm:$0xff] %v684
      %749 = vst [vmem:[%s172 + $0x40] sm:$0xff] %v685
      %750 = vst [vmem:[%s172 + $0x48] sm:$0xff] %v686
      %751 = vst [vmem:[%s172 + $0x50] sm:$0xff] %v687
      %752 = vst [vmem:[%s172 + $0x58] sm:$0xff] %v688
      %753 = vst [vmem:[%s172 + $0x60] sm:$0xff] %v689
      %754 = vst [vmem:[%s172 + $0x68] sm:$0xff] %v690
      %755 = vst [vmem:[%s172 + $0x70] sm:$0xff] %v691
      %756 = vst [vmem:[%s172 + $0x78] sm:$0xff] %v692
      %757 = vst [vmem:[%s172 + $0x80] sm:$0xff] %v693
      %758 = vst [vmem:[%s172 + $0x88] sm:$0xff] %v694
      %759 = vst [vmem:[%s172 + $0x90] sm:$0xff] %v695
      %760 = vst [vmem:[%s172 + $0x98] sm:$0xff] %v696
      %761 = vst [vmem:[%s172 + $0xa0] sm:$0xff] %v697
      %762 = vst [vmem:[%s172 + $0xa8] sm:$0xff] %v698
      %763 = vst [vmem:[%s172 + $0xb0] sm:$0xff] %v699
      %764 = vst [vmem:[%s172 + $0xb8] sm:$0xff] %v700
      %765 = vst [vmem:[%s172 + $0xc0] sm:$0xff] %v701
      %766 = vst [vmem:[%s172 + $0xc8] sm:$0xff] %v702
      %767 = vst [vmem:[%s172 + $0xd0] sm:$0xff] %v703
      %768 = vst [vmem:[%s172 + $0xd8] sm:$0xff] %v704
      %769 = vst [vmem:[%s172 + $0xe0] sm:$0xff] %v705
      %770 = vst [vmem:[%s172 + $0xe8] sm:$0xff] %v706
      %771 = vst [vmem:[%s172 + $0xf0] sm:$0xff] %v707
      %772 = vst [vmem:[%s172 + $0xf8] sm:$0xff] %v708
      %773 = vst [vmem:[%s172 + $0x100] sm:$0xff] %v709
      %774 = vst [vmem:[%s172 + $0x108] sm:$0xff] %v710
      %775 = vst [vmem:[%s172 + $0x110] sm:$0xff] %v711
      %776 = vst [vmem:[%s172 + $0x118] sm:$0xff] %v712
      %777 = vst [vmem:[%s172 + $0x120] sm:$0xff] %v713
      %778 = vst [vmem:[%s172 + $0x128] sm:$0xff] %v714
      %779 = vst [vmem:[%s172 + $0x130] sm:$0xff] %v715
      %780 = vst [vmem:[%s172 + $0x138] sm:$0xff] %v716
      %781 = vst [vmem:[%s172 + $0x140] sm:$0xff] %v717
      %782 = vst [vmem:[%s172 + $0x148] sm:$0xff] %v718
      %783 = vst [vmem:[%s172 + $0x150] sm:$0xff] %v719
      %784 = vst [vmem:[%s172 + $0x158] sm:$0xff] %v720
      %785 = vst [vmem:[%s172 + $0x160] sm:$0xff] %v721
      %786 = vst [vmem:[%s172 + $0x168] sm:$0xff] %v722
      %787 = vst [vmem:[%s172 + $0x170] sm:$0xff] %v723
      %788 = vst [vmem:[%s172 + $0x178] sm:$0xff] %v724
      %789 = vst [vmem:[%s172 + $0x180] sm:$0xff] %v725
      %790 = vst [vmem:[%s172 + $0x188] sm:$0xff] %v726
      %791 = vst [vmem:[%s172 + $0x190] sm:$0xff] %v727
      %792 = vst [vmem:[%s172 + $0x198] sm:$0xff] %v728
      %793 = vst [vmem:[%s172 + $0x1a0] sm:$0xff] %v729
      %794 = vst [vmem:[%s172 + $0x1a8] sm:$0xff] %v730
      %795 = vst [vmem:[%s172 + $0x1b0] sm:$0xff] %v731
      %796 = vst [vmem:[%s172 + $0x1b8] sm:$0xff] %v732
      %797 = vst [vmem:[%s172 + $0x1c0] sm:$0xff] %v733
      %798 = vst [vmem:[%s172 + $0x1c8] sm:$0xff] %v734
      %799 = vst [vmem:[%s172 + $0x1d0] sm:$0xff] %v735
      %800 = vst [vmem:[%s172 + $0x1d8] sm:$0xff] %v736
      %801 = vst [vmem:[%s172 + $0x1e0] sm:$0xff] %v737
      %802 = vst [vmem:[%s172 + $0x1e8] sm:$0xff] %v738
      %803 = vst [vmem:[%s172 + $0x1f0] sm:$0xff] %v739
      %804 = vst [vmem:[%s172 + $0x1f8] sm:$0xff] %v740
      %s805 = smul.u32 64, %s14
      %p806 = scmp.lt.s32.totalorder %s805, 127
      %s807 = scalar_select %p806, %s805, 127
      %s808 = smul.addr %s807, 8
      %s809 = scalar_lea.vmem %s3, %s808
      // Predicated region
      $region33: #{_lambda_.21} parent=31 // pred_check
        %p810 = pneg %p100
      $region34: #{_lambda_.21} parent=31 // pred_check_branch
        %812 = sbr.rel (%p810) target = $region36
      $region35: #{_lambda_.21} parent=31 // pred_region
        %s813 = smul.u32 64, %s14
      $region36: #{_lambda_.21} parent=31 // pred_fallthru
        _
    $region32: #{_lambda_.21} parent=5 // pred_fallthru
      _
    %p814 = scmp.le.s32.totalorder 2, %s9
    // Predicated region
    $region37: #{_lambda_.21} parent=5 // pred_check
      %p815 = pneg %p814
    $region38: #{_lambda_.21} parent=5 // pred_check_branch
      %817 = sbr.rel (%p815) target = $region40
    $region39: #{_lambda_.21} parent=5 // pred_region
      %s818 = ssub.s32 %s9, 2
      // Predicated region
      $region41: #{_lambda_.21} parent=39 // pred_check
        %p819 = pneg %p106
      $region42: #{_lambda_.21} parent=39 // pred_check_branch
        %821 = sbr.rel (%p819) target = $region44
      $region43: #{_lambda_.21} parent=39 // pred_region
        %s822 = smul.u32 64, %s15
        %p823 = scmp.lt.s32.totalorder %s822, 127
        %s824 = scalar_select %p823, %s822, 127
        %s825 = smul.addr %s824, 8
        %s826 = scalar_lea.vmem %s3, %s825
      $region44: #{_lambda_.21} parent=39 // pred_fallthru
        _
    $region40: #{_lambda_.21} parent=5 // pred_fallthru
      _
  $region6: #{_lambda_.21} parent=0 // loop_footer
    %s13 = sadd.s32 1, %s9
  $region7: #{_lambda_.21} parent=0 // loop_footer_branch
    %8 = sbr.rel target = $region3
  $region8: #{_lambda_.21} parent=0 // loop_exit
    _

// kernel: _lambda_.22
$region0: #{_lambda_.22}
  #allocation0 [shape = 'u32[]', space=smem, size = 0x4, offset = 0x4, fixed_abs, tag = 'smem constant byte address 0x4 - core index']
  #allocation1 [shape = 'u32[72,128]{1,0:T(1,128)}', space=vmem, size = 0x9000, scoped, tag = 'internal scratch']
  %s0 = inlined_call_operand.vmem [shape: bf16[1024,16], index: 0, kind: input, shape index: {}]
  %s1 = inlined_call_operand.vmem [shape: bf16[16,128], index: 1, kind: input, shape index: {}]
  %s2 = inlined_call_operand.vmem [shape: f32[1,128], index: 2, kind: input, shape index: {}]
  %s3 = inlined_call_operand.vmem [shape: f32[1024,128], index: 3, kind: output, shape index: {}]
  %s4 = sld [smem:[#allocation0]]
  $region45: #{_lambda_.22} parent=0
    _
  %s6 = ssub.s32 1, %s4
  %s7 = scalar_select 0, %s6, %s4
  loop: start=0, step=1, limit=4
  $region2: #{_lambda_.22} parent=0 // loop_pre_header
    _
  $region3: #{_lambda_.22} parent=0 // loop_header
    %s9 = sphi 0, %s13
    %p10 = scmp.ge.s32.totalorder %s9, 4
    %s19 = sphi 0, %s21
    %s22 = sphi 0, %s19
    %s23 = sphi 0, %s22
    %s39 = sphi 0, %s23
    %s43 = sphi 0, %s43
    %s45 = sphi 0, %s43
    %s46 = sphi 0, %s45
    %s60 = sphi 0, %s46
    %s64 = sphi 0, %s64
    %s66 = sphi 0, %s64
    %s67 = sphi 0, %s66
    %s81 = sphi 0, %s67
    %s87 = sphi 0, %s89
    %s90 = sphi 0, %s87
    %s91 = sphi 0, %s90
    %s107 = sphi 0, %s91
  $region4: #{_lambda_.22} parent=0 // loop_header_branch
    %12 = sbr.rel (%p10) target = $region8
  $region5: #{_lambda_.22} parent=0 // loop_body
    %s14 = ssub.s32 %s9, 1
    %s15 = ssub.s32 %s9, 2
    %s16 = sadd.s32 %s9, 1
    %s17 = ssub.s32 %s9, %s16
    %p18 = scmp.eq.s32.totalorder %s17, 0
    %s20 = sadd.s32 %s19, 1
    %s21 = scalar_select %p18, %s19, %s20
    %p24 = pneg %p18
    %p25 = scmp.eq.s32.totalorder %s9, 1
    %p26 = por %p24, %p25
    %p27 = scmp.ne.s32.totalorder %s19, %s22
    %p28 = scmp.eq.s32.totalorder %s9, 0
    %p29 = por %p27, %p28
    %p30 = scmp.ne.s32.totalorder %s19, %s22
    %p31 = scmp.eq.s32.totalorder %s14, 1
    %p32 = por %p30, %p31
    %p33 = scmp.ne.s32.totalorder %s22, %s23
    %p34 = scmp.eq.s32.totalorder %s14, 0
    %p35 = por %p33, %p34
    %p36 = scmp.ne.s32.totalorder %s22, %s23
    %p37 = scmp.eq.s32.totalorder %s15, 1
    %p38 = por %p36, %p37
    %p40 = scmp.ne.s32.totalorder %s23, %s39
    %p41 = scmp.eq.s32.totalorder %s15, 0
    %p42 = por %p40, %p41
    %s44 = sadd.s32 %s43, 1
    %p47 = scmp.eq.s32.totalorder %s9, 1
    %p48 = scmp.ne.s32.totalorder %s43, %s45
    %p49 = scmp.eq.s32.totalorder %s9, 0
    %p50 = por %p48, %p49
    %p51 = scmp.ne.s32.totalorder %s43, %s45
    %p52 = scmp.eq.s32.totalorder %s14, 1
    %p53 = por %p51, %p52
    %p54 = scmp.ne.s32.totalorder %s45, %s46
    %p55 = scmp.eq.s32.totalorder %s14, 0
    %p56 = por %p54, %p55
    %p57 = scmp.ne.s32.totalorder %s45, %s46
    %p58 = scmp.eq.s32.totalorder %s15, 1
    %p59 = por %p57, %p58
    %p61 = scmp.ne.s32.totalorder %s46, %s60
    %p62 = scmp.eq.s32.totalorder %s15, 0
    %p63 = por %p61, %p62
    %s65 = sadd.s32 %s64, 1
    %p68 = scmp.eq.s32.totalorder %s9, 1
    %p69 = scmp.ne.s32.totalorder %s64, %s66
    %p70 = scmp.eq.s32.totalorder %s9, 0
    %p71 = por %p69, %p70
    %p72 = scmp.ne.s32.totalorder %s64, %s66
    %p73 = scmp.eq.s32.totalorder %s14, 1
    %p74 = por %p72, %p73
    %p75 = scmp.ne.s32.totalorder %s66, %s67
    %p76 = scmp.eq.s32.totalorder %s14, 0
    %p77 = por %p75, %p76
    %p78 = scmp.ne.s32.totalorder %s66, %s67
    %p79 = scmp.eq.s32.totalorder %s15, 1
    %p80 = por %p78, %p79
    %p82 = scmp.ne.s32.totalorder %s67, %s81
    %p83 = scmp.eq.s32.totalorder %s15, 0
    %p84 = por %p82, %p83
    %s85 = ssub.s32 %s9, %s16
    %p86 = scmp.eq.s32.totalorder %s85, 0
    %s88 = sadd.s32 %s87, 1
    %s89 = scalar_select %p86, %s87, %s88
    %p92 = pneg %p86
    %p93 = scmp.eq.s32.totalorder %s9, 1
    %p94 = por %p92, %p93
    %p95 = scmp.ne.s32.totalorder %s87, %s90
    %p96 = scmp.eq.s32.totalorder %s9, 0
    %p97 = por %p95, %p96
    %p98 = scmp.ne.s32.totalorder %s87, %s90
    %p99 = scmp.eq.s32.totalorder %s14, 1
    %p100 = por %p98, %p99
    %p101 = scmp.ne.s32.totalorder %s90, %s91
    %p102 = scmp.eq.s32.totalorder %s14, 0
    %p103 = por %p101, %p102
    %p104 = scmp.ne.s32.totalorder %s90, %s91
    %p105 = scmp.eq.s32.totalorder %s15, 1
    %p106 = por %p104, %p105
    %p108 = scmp.ne.s32.totalorder %s91, %s107
    %p109 = scmp.eq.s32.totalorder %s15, 0
    %p110 = por %p108, %p109
    %p111 = scmp.le.s32.totalorder 1, %s9
    %p112 = scmp.lt.s32.totalorder %s9, 3
    %p113 = pnand %p111, %p112
    %p114 = pneg %p113
    // Predicated region
    $region9: #{_lambda_.22} parent=5 // pred_check
      _
    $region10: #{_lambda_.22} parent=5 // pred_check_branch
      %116 = sbr.rel (%p113) target = $region12
    $region11: #{_lambda_.22} parent=5 // pred_region
      %s117 = ssub.s32 %s9, 1
      // Predicated region
      $region13: #{_lambda_.22} parent=11 // pred_check
        %p118 = pneg %p56
      $region14: #{_lambda_.22} parent=11 // pred_check_branch
        %120 = sbr.rel (%p118) target = $region16
      $region15: #{_lambda_.22} parent=11 // pred_region
        _
      $region16: #{_lambda_.22} parent=11 // pred_fallthru
        _
      // Predicated region
      $region17: #{_lambda_.22} parent=11 // pred_check
        %p121 = pneg %p77
      $region18: #{_lambda_.22} parent=11 // pred_check_branch
        %123 = sbr.rel (%p121) target = $region20
      $region19: #{_lambda_.22} parent=11 // pred_region
        _
      $region20: #{_lambda_.22} parent=11 // pred_fallthru
        _
    $region12: #{_lambda_.22} parent=5 // pred_fallthru
      _
    %p124 = scmp.lt.s32.totalorder %s9, 2
    // Predicated region
    $region21: #{_lambda_.22} parent=5 // pred_check
      %p125 = pneg %p124
    $region22: #{_lambda_.22} parent=5 // pred_check_branch
      %127 = sbr.rel (%p125) target = $region24
    $region23: #{_lambda_.22} parent=5 // pred_region
      // Predicated region
      $region25: #{_lambda_.22} parent=23 // pred_check
        %p128 = pneg %p29
      $region26: #{_lambda_.22} parent=23 // pred_check_branch
        %130 = sbr.rel (%p128) target = $region28
      $region27: #{_lambda_.22} parent=23 // pred_region
        %s131 = smul.u32 64, %s9
        %p132 = scmp.lt.s32.totalorder %s131, 127
        %s133 = scalar_select %p132, %s131, 127
        %s134 = smul.addr %s133, 4
        %s135 = scalar_lea.vmem %s0, %s134
        %s136 = smul.u32 64, %s9
      $region28: #{_lambda_.22} parent=23 // pred_fallthru
        _
    $region24: #{_lambda_.22} parent=5 // pred_fallthru
      _
    %p137 = scmp.le.s32.totalorder 1, %s9
    %p138 = scmp.lt.s32.totalorder %s9, 3
    %p139 = pnand %p137, %p138
    %p140 = pneg %p139
    // Predicated region
    $region29: #{_lambda_.22} parent=5 // pred_check
      _
    $region30: #{_lambda_.22} parent=5 // pred_check_branch
      %142 = sbr.rel (%p139) target = $region32
    $region31: #{_lambda_.22} parent=5 // pred_region
      %s143 = ssub.s32 %s9, 1
      %s144 = smul.u32 64, %s14
      %p145 = scmp.lt.s32.totalorder %s144, 127
      %s146 = scalar_select %p145, %s144, 127
      %s147 = smul.addr %s146, 4
      %s148 = scalar_lea.vmem %s0, %s147
      %p149 = pneg %p35
      %p150 = pneg %p32
      %p151 = pneg %p56
      %p152 = pneg %p53
      %p153 = pneg %p77
      %p154 = pneg %p74
      %p155 = pneg %p103
      %p156 = pneg %p100
      %s157 = smul.u32 64, %s14
      %p158 = scmp.lt.s32.totalorder %s157, 127
      %s159 = scalar_select %p158, %s157, 127
      %s160 = smul.addr %s159, 8
      %s161 = scalar_lea.vmem %s3, %s160
      %s162 = smul.u32 64, %s14
      %p163 = scmp.lt.s32.totalorder %s162, 127
      %s164 = scalar_select %p163, %s162, 127
      %s165 = smul.addr %s164, 4
      %s166 = scalar_lea.vmem %s0, %s165
      %s167 = smul.u32 64, %s14
      %s168 = smul.u32 64, %s14
      %p169 = scmp.lt.s32.totalorder %s168, 127
      %s170 = scalar_select %p169, %s168, 127
      %s171 = smul.addr %s170, 8
      %s172 = scalar_lea.vmem %s3, %s171
      %s173 = smul.u32 64, %s14
      %v175 = vld [vmem:[%s166] sm:$0xf]
      %v176 = vld [vmem:[%s166 + $0x4] sm:$0xf]
      %v177 = vld [vmem:[%s166 + $0x8] sm:$0xf]
      %v178 = vld [vmem:[%s166 + $0xc] sm:$0xf]
      %v179 = vld [vmem:[%s166 + $0x10] sm:$0xf]
      %v180 = vld [vmem:[%s166 + $0x14] sm:$0xf]
      %v181 = vld [vmem:[%s166 + $0x18] sm:$0xf]
      %v182 = vld [vmem:[%s166 + $0x1c] sm:$0xf]
      %v183 = vld [vmem:[%s166 + $0x20] sm:$0xf]
      %v184 = vld [vmem:[%s166 + $0x24] sm:$0xf]
      %v185 = vld [vmem:[%s166 + $0x28] sm:$0xf]
      %v186 = vld [vmem:[%s166 + $0x2c] sm:$0xf]
      %v187 = vld [vmem:[%s166 + $0x30] sm:$0xf]
      %v188 = vld [vmem:[%s166 + $0x34] sm:$0xf]
      %v189 = vld [vmem:[%s166 + $0x38] sm:$0xf]
      %v190 = vld [vmem:[%s166 + $0x3c] sm:$0xf]
      %v191 = vld [vmem:[%s166 + $0x40] sm:$0xf]
      %v192 = vld [vmem:[%s166 + $0x44] sm:$0xf]
      %v193 = vld [vmem:[%s166 + $0x48] sm:$0xf]
      %v194 = vld [vmem:[%s166 + $0x4c] sm:$0xf]
      %v195 = vld [vmem:[%s166 + $0x50] sm:$0xf]
      %v196 = vld [vmem:[%s166 + $0x54] sm:$0xf]
      %v197 = vld [vmem:[%s166 + $0x58] sm:$0xf]
      %v198 = vld [vmem:[%s166 + $0x5c] sm:$0xf]
      %v199 = vld [vmem:[%s166 + $0x60] sm:$0xf]
      %v200 = vld [vmem:[%s166 + $0x64] sm:$0xf]
      %v201 = vld [vmem:[%s166 + $0x68] sm:$0xf]
      %v202 = vld [vmem:[%s166 + $0x6c] sm:$0xf]
      %v203 = vld [vmem:[%s166 + $0x70] sm:$0xf]
      %v204 = vld [vmem:[%s166 + $0x74] sm:$0xf]
      %v205 = vld [vmem:[%s166 + $0x78] sm:$0xf]
      %v206 = vld [vmem:[%s166 + $0x7c] sm:$0xf]
      %v207 = vld [vmem:[%s166 + $0x80] sm:$0xf]
      %v208 = vld [vmem:[%s166 + $0x84] sm:$0xf]
      %v209 = vld [vmem:[%s166 + $0x88] sm:$0xf]
      %v210 = vld [vmem:[%s166 + $0x8c] sm:$0xf]
      %v211 = vld [vmem:[%s166 + $0x90] sm:$0xf]
      %v212 = vld [vmem:[%s166 + $0x94] sm:$0xf]
      %v213 = vld [vmem:[%s166 + $0x98] sm:$0xf]
      %v214 = vld [vmem:[%s166 + $0x9c] sm:$0xf]
      %v215 = vld [vmem:[%s166 + $0xa0] sm:$0xf]
      %v216 = vld [vmem:[%s166 + $0xa4] sm:$0xf]
      %v217 = vld [vmem:[%s166 + $0xa8] sm:$0xf]
      %v218 = vld [vmem:[%s166 + $0xac] sm:$0xf]
      %v219 = vld [vmem:[%s166 + $0xb0] sm:$0xf]
      %v220 = vld [vmem:[%s166 + $0xb4] sm:$0xf]
      %v221 = vld [vmem:[%s166 + $0xb8] sm:$0xf]
      %v222 = vld [vmem:[%s166 + $0xbc] sm:$0xf]
      %v223 = vld [vmem:[%s166 + $0xc0] sm:$0xf]
      %v224 = vld [vmem:[%s166 + $0xc4] sm:$0xf]
      %v225 = vld [vmem:[%s166 + $0xc8] sm:$0xf]
      %v226 = vld [vmem:[%s166 + $0xcc] sm:$0xf]
      %v227 = vld [vmem:[%s166 + $0xd0] sm:$0xf]
      %v228 = vld [vmem:[%s166 + $0xd4] sm:$0xf]
      %v229 = vld [vmem:[%s166 + $0xd8] sm:$0xf]
      %v230 = vld [vmem:[%s166 + $0xdc] sm:$0xf]
      %v231 = vld [vmem:[%s166 + $0xe0] sm:$0xf]
      %v232 = vld [vmem:[%s166 + $0xe4] sm:$0xf]
      %v233 = vld [vmem:[%s166 + $0xe8] sm:$0xf]
      %v234 = vld [vmem:[%s166 + $0xec] sm:$0xf]
      %v235 = vld [vmem:[%s166 + $0xf0] sm:$0xf]
      %v236 = vld [vmem:[%s166 + $0xf4] sm:$0xf]
      %v237 = vld [vmem:[%s166 + $0xf8] sm:$0xf]
      %v238 = vld [vmem:[%s166 + $0xfc] sm:$0xf]
      %v239 = vld [vmem:[%s1] sm:$0xf]
      %v240 = vld [vmem:[%s1 + $0x4] sm:$0xf]
      %v241 = vld [vmem:[%s2] sm:$0x1]
      %v243 = vperm.slane %v241, 0
      %v309 = vunpack.c.l.b16 %v175
      %v310 = vunpack.c.l.b16 %v176
      %v311 = vunpack.c.l.b16 %v177
      %v312 = vunpack.c.l.b16 %v178
      %v313 = vunpack.c.l.b16 %v179
      %v314 = vunpack.c.l.b16 %v180
      %v315 = vunpack.c.l.b16 %v181
      %v316 = vunpack.c.l.b16 %v182
      %v317 = vunpack.c.l.b16 %v183
      %v318 = vunpack.c.l.b16 %v184
      %v319 = vunpack.c.l.b16 %v185
      %v320 = vunpack.c.l.b16 %v186
      %v321 = vunpack.c.l.b16 %v187
      %v322 = vunpack.c.l.b16 %v188
      %v323 = vunpack.c.l.b16 %v189
      %v324 = vunpack.c.l.b16 %v190
      %v325 = vunpack.c.l.b16 %v191
      %v326 = vunpack.c.l.b16 %v192
      %v327 = vunpack.c.l.b16 %v193
      %v328 = vunpack.c.l.b16 %v194
      %v329 = vunpack.c.l.b16 %v195
      %v330 = vunpack.c.l.b16 %v196
      %v331 = vunpack.c.l.b16 %v197
      %v332 = vunpack.c.l.b16 %v198
      %v333 = vunpack.c.l.b16 %v199
      %v334 = vunpack.c.l.b16 %v200
      %v335 = vunpack.c.l.b16 %v201
      %v336 = vunpack.c.l.b16 %v202
      %v337 = vunpack.c.l.b16 %v203
      %v338 = vunpack.c.l.b16 %v204
      %v339 = vunpack.c.l.b16 %v205
      %v340 = vunpack.c.l.b16 %v206
      %v341 = vunpack.c.l.b16 %v207
      %v342 = vunpack.c.l.b16 %v208
      %v343 = vunpack.c.l.b16 %v209
      %v344 = vunpack.c.l.b16 %v210
      %v345 = vunpack.c.l.b16 %v211
      %v346 = vunpack.c.l.b16 %v212
      %v347 = vunpack.c.l.b16 %v213
      %v348 = vunpack.c.l.b16 %v214
      %v349 = vunpack.c.l.b16 %v215
      %v350 = vunpack.c.l.b16 %v216
      %v351 = vunpack.c.l.b16 %v217
      %v352 = vunpack.c.l.b16 %v218
      %v353 = vunpack.c.l.b16 %v219
      %v354 = vunpack.c.l.b16 %v220
      %v355 = vunpack.c.l.b16 %v221
      %v356 = vunpack.c.l.b16 %v222
      %v357 = vunpack.c.l.b16 %v223
      %v358 = vunpack.c.l.b16 %v224
      %v359 = vunpack.c.l.b16 %v225
      %v360 = vunpack.c.l.b16 %v226
      %v361 = vunpack.c.l.b16 %v227
      %v362 = vunpack.c.l.b16 %v228
      %v363 = vunpack.c.l.b16 %v229
      %v364 = vunpack.c.l.b16 %v230
      %v365 = vunpack.c.l.b16 %v231
      %v366 = vunpack.c.l.b16 %v232
      %v367 = vunpack.c.l.b16 %v233
      %v368 = vunpack.c.l.b16 %v234
      %v369 = vunpack.c.l.b16 %v235
      %v370 = vunpack.c.l.b16 %v236
      %v371 = vunpack.c.l.b16 %v237
      %v372 = vunpack.c.l.b16 %v238
      %v373 = vpack.c.b16 %v310, %v309
      %v374 = vpack.c.b16 %v312, %v311
      %v375 = vpack.c.b16 %v314, %v313
      %v376 = vpack.c.b16 %v316, %v315
      %v377 = vpack.c.b16 %v318, %v317
      %v378 = vpack.c.b16 %v320, %v319
      %v379 = vpack.c.b16 %v322, %v321
      %v380 = vpack.c.b16 %v324, %v323
      %v381 = vpack.c.b16 %v326, %v325
      %v382 = vpack.c.b16 %v328, %v327
      %v383 = vpack.c.b16 %v330, %v329
      %v384 = vpack.c.b16 %v332, %v331
      %v385 = vpack.c.b16 %v334, %v333
      %v386 = vpack.c.b16 %v336, %v335
      %v387 = vpack.c.b16 %v338, %v337
      %v388 = vpack.c.b16 %v340, %v339
      %v389 = vpack.c.b16 %v342, %v341
      %v390 = vpack.c.b16 %v344, %v343
      %v391 = vpack.c.b16 %v346, %v345
      %v392 = vpack.c.b16 %v348, %v347
      %v393 = vpack.c.b16 %v350, %v349
      %v394 = vpack.c.b16 %v352, %v351
      %v395 = vpack.c.b16 %v354, %v353
      %v396 = vpack.c.b16 %v356, %v355
      %v397 = vpack.c.b16 %v358, %v357
      %v398 = vpack.c.b16 %v360, %v359
      %v399 = vpack.c.b16 %v362, %v361
      %v400 = vpack.c.b16 %v364, %v363
      %v401 = vpack.c.b16 %v366, %v365
      %v402 = vpack.c.b16 %v368, %v367
      %v403 = vpack.c.b16 %v370, %v369
      %v404 = vpack.c.b16 %v372, %v371
      %v407 = vunpack.c.l.b16 %v239
      %v408 = vunpack.c.l.b16 %v240
      %v409 = vpack.c.b16 %v408, %v407
      %vm411 = vcmask 130048
      %v413 = vsel %vm411, %v373, 0
      %v416 = vsel %vm411, %v374, 0
      %v419 = vsel %vm411, %v375, 0
      %v422 = vsel %vm411, %v376, 0
      %v425 = vsel %vm411, %v377, 0
      %v428 = vsel %vm411, %v378, 0
      %v431 = vsel %vm411, %v379, 0
      %v434 = vsel %vm411, %v380, 0
      %v437 = vsel %vm411, %v381, 0
      %v440 = vsel %vm411, %v382, 0
      %v443 = vsel %vm411, %v383, 0
      %v446 = vsel %vm411, %v384, 0
      %v449 = vsel %vm411, %v385, 0
      %v452 = vsel %vm411, %v386, 0
      %v455 = vsel %vm411, %v387, 0
      %v458 = vsel %vm411, %v388, 0
      %v461 = vsel %vm411, %v389, 0
      %v464 = vsel %vm411, %v390, 0
      %v467 = vsel %vm411, %v391, 0
      %v470 = vsel %vm411, %v392, 0
      %v473 = vsel %vm411, %v393, 0
      %v476 = vsel %vm411, %v394, 0
      %v479 = vsel %vm411, %v395, 0
      %v482 = vsel %vm411, %v396, 0
      %v485 = vsel %vm411, %v397, 0
      %v488 = vsel %vm411, %v398, 0
      %v491 = vsel %vm411, %v399, 0
      %v494 = vsel %vm411, %v400, 0
      %v497 = vsel %vm411, %v401, 0
      %v500 = vsel %vm411, %v402, 0
      %v503 = vsel %vm411, %v403, 0
      %v506 = vsel %vm411, %v404, 0
      %508 = vmatpush.bf16.msra.mxu0 0
      %509 = vmatpush.bf16.msra.mxu0 0
      %510 = vmatpush.bf16.msra.mxu0 0
      %511 = vmatpush.bf16.msra.mxu0 0
      %512 = vmatpush.bf16.msra.mxu0 0
      %513 = vmatpush.bf16.msra.mxu0 0
      %514 = vmatpush.bf16.msra.mxu0 0
      %515 = vmatpush.bf16.msra.mxu0 %v409
      %516 = vmatmul.bf16.gmra.mxu0 %v413
      %v517 = vpop.f32.mrf.mxu0
      %v518 = vadd.f32 %v243, %v517
      %v519 = vpop.f32.mrf.mxu0
      %v520 = vadd.f32 %v243, %v519
      %521 = vmatmul.bf16.gmra.mxu0 %v416
      %v522 = vpop.f32.mrf.mxu0
      %v523 = vadd.f32 %v243, %v522
      %v524 = vpop.f32.mrf.mxu0
      %v525 = vadd.f32 %v243, %v524
      %526 = vmatmul.bf16.gmra.mxu0 %v419
      %v527 = vpop.f32.mrf.mxu0
      %v528 = vadd.f32 %v243, %v527
      %v529 = vpop.f32.mrf.mxu0
      %v530 = vadd.f32 %v243, %v529
      %531 = vmatmul.bf16.gmra.mxu0 %v422
      %v532 = vpop.f32.mrf.mxu0
      %v533 = vadd.f32 %v243, %v532
      %v534 = vpop.f32.mrf.mxu0
      %v535 = vadd.f32 %v243, %v534
      %536 = vmatmul.bf16.gmra.mxu0 %v425
      %v537 = vpop.f32.mrf.mxu0
      %v538 = vadd.f32 %v243, %v537
      %v539 = vpop.f32.mrf.mxu0
      %v540 = vadd.f32 %v243, %v539
      %541 = vmatmul.bf16.gmra.mxu0 %v428
      %v542 = vpop.f32.mrf.mxu0
      %v543 = vadd.f32 %v243, %v542
      %v544 = vpop.f32.mrf.mxu0
      %v545 = vadd.f32 %v243, %v544
      %546 = vmatmul.bf16.gmra.mxu0 %v431
      %v547 = vpop.f32.mrf.mxu0
      %v548 = vadd.f32 %v243, %v547
      %v549 = vpop.f32.mrf.mxu0
      %v550 = vadd.f32 %v243, %v549
      %551 = vmatmul.bf16.gmra.mxu0 %v434
      %v552 = vpop.f32.mrf.mxu0
      %v553 = vadd.f32 %v243, %v552
      %v554 = vpop.f32.mrf.mxu0
      %v555 = vadd.f32 %v243, %v554
      %556 = vmatmul.bf16.gmra.mxu0 %v437
      %v557 = vpop.f32.mrf.mxu0
      %v558 = vadd.f32 %v243, %v557
      %v559 = vpop.f32.mrf.mxu0
      %v560 = vadd.f32 %v243, %v559
      %561 = vmatmul.bf16.gmra.mxu0 %v440
      %v562 = vpop.f32.mrf.mxu0
      %v563 = vadd.f32 %v243, %v562
      %v564 = vpop.f32.mrf.mxu0
      %v565 = vadd.f32 %v243, %v564
      %566 = vmatmul.bf16.gmra.mxu0 %v443
      %v567 = vpop.f32.mrf.mxu0
      %v568 = vadd.f32 %v243, %v567
      %v569 = vpop.f32.mrf.mxu0
      %v570 = vadd.f32 %v243, %v569
      %571 = vmatmul.bf16.gmra.mxu0 %v446
      %v572 = vpop.f32.mrf.mxu0
      %v573 = vadd.f32 %v243, %v572
      %v574 = vpop.f32.mrf.mxu0
      %v575 = vadd.f32 %v243, %v574
      %576 = vmatmul.bf16.gmra.mxu0 %v449
      %v577 = vpop.f32.mrf.mxu0
      %v578 = vadd.f32 %v243, %v577
      %v579 = vpop.f32.mrf.mxu0
      %v580 = vadd.f32 %v243, %v579
      %581 = vmatmul.bf16.gmra.mxu0 %v452
      %v582 = vpop.f32.mrf.mxu0
      %v583 = vadd.f32 %v243, %v582
      %v584 = vpop.f32.mrf.mxu0
      %v585 = vadd.f32 %v243, %v584
      %586 = vmatmul.bf16.gmra.mxu0 %v455
      %v587 = vpop.f32.mrf.mxu0
      %v588 = vadd.f32 %v243, %v587
      %v589 = vpop.f32.mrf.mxu0
      %v590 = vadd.f32 %v243, %v589
      %591 = vmatmul.bf16.gmra.mxu0 %v458
      %v592 = vpop.f32.mrf.mxu0
      %v593 = vadd.f32 %v243, %v592
      %v594 = vpop.f32.mrf.mxu0
      %v595 = vadd.f32 %v243, %v594
      %596 = vmatmul.bf16.gmra.mxu0 %v461
      %v597 = vpop.f32.mrf.mxu0
      %v598 = vadd.f32 %v243, %v597
      %v599 = vpop.f32.mrf.mxu0
      %v600 = vadd.f32 %v243, %v599
      %601 = vmatmul.bf16.gmra.mxu0 %v464
      %v602 = vpop.f32.mrf.mxu0
      %v603 = vadd.f32 %v243, %v602
      %v604 = vpop.f32.mrf.mxu0
      %v605 = vadd.f32 %v243, %v604
      %606 = vmatmul.bf16.gmra.mxu0 %v467
      %v607 = vpop.f32.mrf.mxu0
      %v608 = vadd.f32 %v243, %v607
      %v609 = vpop.f32.mrf.mxu0
      %v610 = vadd.f32 %v243, %v609
      %611 = vmatmul.bf16.gmra.mxu0 %v470
      %v612 = vpop.f32.mrf.mxu0
      %v613 = vadd.f32 %v243, %v612
      %v614 = vpop.f32.mrf.mxu0
      %v615 = vadd.f32 %v243, %v614
      %616 = vmatmul.bf16.gmra.mxu0 %v473
      %v617 = vpop.f32.mrf.mxu0
      %v618 = vadd.f32 %v243, %v617
      %v619 = vpop.f32.mrf.mxu0
      %v620 = vadd.f32 %v243, %v619
      %621 = vmatmul.bf16.gmra.mxu0 %v476
      %v622 = vpop.f32.mrf.mxu0
      %v623 = vadd.f32 %v243, %v622
      %v624 = vpop.f32.mrf.mxu0
      %v625 = vadd.f32 %v243, %v624
      %626 = vmatmul.bf16.gmra.mxu0 %v479
      %v627 = vpop.f32.mrf.mxu0
      %v628 = vadd.f32 %v243, %v627
      %v629 = vpop.f32.mrf.mxu0
      %v630 = vadd.f32 %v243, %v629
      %631 = vmatmul.bf16.gmra.mxu0 %v482
      %v632 = vpop.f32.mrf.mxu0
      %v633 = vadd.f32 %v243, %v632
      %v634 = vpop.f32.mrf.mxu0
      %v635 = vadd.f32 %v243, %v634
      %636 = vmatmul.bf16.gmra.mxu0 %v485
      %v637 = vpop.f32.mrf.mxu0
      %v638 = vadd.f32 %v243, %v637
      %v639 = vpop.f32.mrf.mxu0
      %v640 = vadd.f32 %v243, %v639
      %641 = vmatmul.bf16.gmra.mxu0 %v488
      %v642 = vpop.f32.mrf.mxu0
      %v643 = vadd.f32 %v243, %v642
      %v644 = vpop.f32.mrf.mxu0
      %v645 = vadd.f32 %v243, %v644
      %646 = vmatmul.bf16.gmra.mxu0 %v491
      %v647 = vpop.f32.mrf.mxu0
      %v648 = vadd.f32 %v243, %v647
      %v649 = vpop.f32.mrf.mxu0
      %v650 = vadd.f32 %v243, %v649
      %651 = vmatmul.bf16.gmra.mxu0 %v494
      %v652 = vpop.f32.mrf.mxu0
      %v653 = vadd.f32 %v243, %v652
      %v654 = vpop.f32.mrf.mxu0
      %v655 = vadd.f32 %v243, %v654
      %656 = vmatmul.bf16.gmra.mxu0 %v497
      %v657 = vpop.f32.mrf.mxu0
      %v658 = vadd.f32 %v243, %v657
      %v659 = vpop.f32.mrf.mxu0
      %v660 = vadd.f32 %v243, %v659
      %661 = vmatmul.bf16.gmra.mxu0 %v500
      %v662 = vpop.f32.mrf.mxu0
      %v663 = vadd.f32 %v243, %v662
      %v664 = vpop.f32.mrf.mxu0
      %v665 = vadd.f32 %v243, %v664
      %666 = vmatmul.bf16.gmra.mxu0 %v503
      %v667 = vpop.f32.mrf.mxu0
      %v668 = vadd.f32 %v243, %v667
      %v669 = vpop.f32.mrf.mxu0
      %v670 = vadd.f32 %v243, %v669
      %671 = vmatmul.bf16.gmra.mxu0 %v506
      %v672 = vpop.f32.mrf.mxu0
      %v673 = vadd.f32 %v243, %v672
      %v674 = vpop.f32.mrf.mxu0
      %v675 = vadd.f32 %v243, %v674
      %676 = vdwg.mxu0
      %677 = vst [vmem:[%s172] sm:$0xff] %v518
      %678 = vst [vmem:[%s172 + $0x8] sm:$0xff] %v520
      %679 = vst [vmem:[%s172 + $0x10] sm:$0xff] %v523
      %680 = vst [vmem:[%s172 + $0x18] sm:$0xff] %v525
      %681 = vst [vmem:[%s172 + $0x20] sm:$0xff] %v528
      %682 = vst [vmem:[%s172 + $0x28] sm:$0xff] %v530
      %683 = vst [vmem:[%s172 + $0x30] sm:$0xff] %v533
      %684 = vst [vmem:[%s172 + $0x38] sm:$0xff] %v535
      %685 = vst [vmem:[%s172 + $0x40] sm:$0xff] %v538
      %686 = vst [vmem:[%s172 + $0x48] sm:$0xff] %v540
      %687 = vst [vmem:[%s172 + $0x50] sm:$0xff] %v543
      %688 = vst [vmem:[%s172 + $0x58] sm:$0xff] %v545
      %689 = vst [vmem:[%s172 + $0x60] sm:$0xff] %v548
      %690 = vst [vmem:[%s172 + $0x68] sm:$0xff] %v550
      %691 = vst [vmem:[%s172 + $0x70] sm:$0xff] %v553
      %692 = vst [vmem:[%s172 + $0x78] sm:$0xff] %v555
      %693 = vst [vmem:[%s172 + $0x80] sm:$0xff] %v558
      %694 = vst [vmem:[%s172 + $0x88] sm:$0xff] %v560
      %695 = vst [vmem:[%s172 + $0x90] sm:$0xff] %v563
      %696 = vst [vmem:[%s172 + $0x98] sm:$0xff] %v565
      %697 = vst [vmem:[%s172 + $0xa0] sm:$0xff] %v568
      %698 = vst [vmem:[%s172 + $0xa8] sm:$0xff] %v570
      %699 = vst [vmem:[%s172 + $0xb0] sm:$0xff] %v573
      %700 = vst [vmem:[%s172 + $0xb8] sm:$0xff] %v575
      %701 = vst [vmem:[%s172 + $0xc0] sm:$0xff] %v578
      %702 = vst [vmem:[%s172 + $0xc8] sm:$0xff] %v580
      %703 = vst [vmem:[%s172 + $0xd0] sm:$0xff] %v583
      %704 = vst [vmem:[%s172 + $0xd8] sm:$0xff] %v585
      %705 = vst [vmem:[%s172 + $0xe0] sm:$0xff] %v588
      %706 = vst [vmem:[%s172 + $0xe8] sm:$0xff] %v590
      %707 = vst [vmem:[%s172 + $0xf0] sm:$0xff] %v593
      %708 = vst [vmem:[%s172 + $0xf8] sm:$0xff] %v595
      %709 = vst [vmem:[%s172 + $0x100] sm:$0xff] %v598
      %710 = vst [vmem:[%s172 + $0x108] sm:$0xff] %v600
      %711 = vst [vmem:[%s172 + $0x110] sm:$0xff] %v603
      %712 = vst [vmem:[%s172 + $0x118] sm:$0xff] %v605
      %713 = vst [vmem:[%s172 + $0x120] sm:$0xff] %v608
      %714 = vst [vmem:[%s172 + $0x128] sm:$0xff] %v610
      %715 = vst [vmem:[%s172 + $0x130] sm:$0xff] %v613
      %716 = vst [vmem:[%s172 + $0x138] sm:$0xff] %v615
      %717 = vst [vmem:[%s172 + $0x140] sm:$0xff] %v618
      %718 = vst [vmem:[%s172 + $0x148] sm:$0xff] %v620
      %719 = vst [vmem:[%s172 + $0x150] sm:$0xff] %v623
      %720 = vst [vmem:[%s172 + $0x158] sm:$0xff] %v625
      %721 = vst [vmem:[%s172 + $0x160] sm:$0xff] %v628
      %722 = vst [vmem:[%s172 + $0x168] sm:$0xff] %v630
      %723 = vst [vmem:[%s172 + $0x170] sm:$0xff] %v633
      %724 = vst [vmem:[%s172 + $0x178] sm:$0xff] %v635
      %725 = vst [vmem:[%s172 + $0x180] sm:$0xff] %v638
      %726 = vst [vmem:[%s172 + $0x188] sm:$0xff] %v640
      %727 = vst [vmem:[%s172 + $0x190] sm:$0xff] %v643
      %728 = vst [vmem:[%s172 + $0x198] sm:$0xff] %v645
      %729 = vst [vmem:[%s172 + $0x1a0] sm:$0xff] %v648
      %730 = vst [vmem:[%s172 + $0x1a8] sm:$0xff] %v650
      %731 = vst [vmem:[%s172 + $0x1b0] sm:$0xff] %v653
      %732 = vst [vmem:[%s172 + $0x1b8] sm:$0xff] %v655
      %733 = vst [vmem:[%s172 + $0x1c0] sm:$0xff] %v658
      %734 = vst [vmem:[%s172 + $0x1c8] sm:$0xff] %v660
      %735 = vst [vmem:[%s172 + $0x1d0] sm:$0xff] %v663
      %736 = vst [vmem:[%s172 + $0x1d8] sm:$0xff] %v665
      %737 = vst [vmem:[%s172 + $0x1e0] sm:$0xff] %v668
      %738 = vst [vmem:[%s172 + $0x1e8] sm:$0xff] %v670
      %739 = vst [vmem:[%s172 + $0x1f0] sm:$0xff] %v673
      %740 = vst [vmem:[%s172 + $0x1f8] sm:$0xff] %v675
      %s741 = smul.u32 64, %s14
      %p742 = scmp.lt.s32.totalorder %s741, 127
      %s743 = scalar_select %p742, %s741, 127
      %s744 = smul.addr %s743, 8
      %s745 = scalar_lea.vmem %s3, %s744
      // Predicated region
      $region33: #{_lambda_.22} parent=31 // pred_check
        %p746 = pneg %p100
      $region34: #{_lambda_.22} parent=31 // pred_check_branch
        %748 = sbr.rel (%p746) target = $region36
      $region35: #{_lambda_.22} parent=31 // pred_region
        %s749 = smul.u32 64, %s14
      $region36: #{_lambda_.22} parent=31 // pred_fallthru
        _
    $region32: #{_lambda_.22} parent=5 // pred_fallthru
      _
    %p750 = scmp.le.s32.totalorder 2, %s9
    // Predicated region
    $region37: #{_lambda_.22} parent=5 // pred_check
      %p751 = pneg %p750
    $region38: #{_lambda_.22} parent=5 // pred_check_branch
      %753 = sbr.rel (%p751) target = $region40
    $region39: #{_lambda_.22} parent=5 // pred_region
      %s754 = ssub.s32 %s9, 2
      // Predicated region
      $region41: #{_lambda_.22} parent=39 // pred_check
        %p755 = pneg %p106
      $region42: #{_lambda_.22} parent=39 // pred_check_branch
        %757 = sbr.rel (%p755) target = $region44
      $region43: #{_lambda_.22} parent=39 // pred_region
        %s758 = smul.u32 64, %s15
        %p759 = scmp.lt.s32.totalorder %s758, 127
        %s760 = scalar_select %p759, %s758, 127
        %s761 = smul.addr %s760, 8
        %s762 = scalar_lea.vmem %s3, %s761
      $region44: #{_lambda_.22} parent=39 // pred_fallthru
        _
    $region40: #{_lambda_.22} parent=5 // pred_fallthru
      _
  $region6: #{_lambda_.22} parent=0 // loop_footer
    %s13 = sadd.s32 1, %s9
  $region7: #{_lambda_.22} parent=0 // loop_footer_branch
    %8 = sbr.rel target = $region3
  $region8: #{_lambda_.22} parent=0 // loop_exit
    _

// kernel: _lambda_.23
$region0: #{_lambda_.23}
  #allocation0 [shape = 'u32[]', space=smem, size = 0x4, offset = 0x4, fixed_abs, tag = 'smem constant byte address 0x4 - core index']
  #allocation1 [shape = 'u32[72,128]{1,0:T(1,128)}', space=vmem, size = 0x9000, scoped, tag = 'internal scratch']
  %s0 = inlined_call_operand.vmem [shape: bf16[1024,144], index: 0, kind: input, shape index: {}]
  %s1 = inlined_call_operand.vmem [shape: bf16[144,128], index: 1, kind: input, shape index: {}]
  %s2 = inlined_call_operand.vmem [shape: f32[1,128], index: 2, kind: input, shape index: {}]
  %s3 = inlined_call_operand.vmem [shape: f32[1024,128], index: 3, kind: input, shape index: {}]
  %s4 = inlined_call_operand.vmem [shape: f32[1024,128], index: 4, kind: output, shape index: {}]
  %s5 = sld [smem:[#allocation0]]
  $region49: #{_lambda_.23} parent=0
    _
  %s7 = ssub.s32 1, %s5
  %s8 = scalar_select 0, %s7, %s5
  loop: start=0, step=1, limit=4
  $region2: #{_lambda_.23} parent=0 // loop_pre_header
    _
  $region3: #{_lambda_.23} parent=0 // loop_header
    %s10 = sphi 0, %s14
    %p11 = scmp.ge.s32.totalorder %s10, 4
    %s20 = sphi 0, %s22
    %s23 = sphi 0, %s20
    %s24 = sphi 0, %s23
    %s40 = sphi 0, %s24
    %s44 = sphi 0, %s44
    %s46 = sphi 0, %s44
    %s47 = sphi 0, %s46
    %s61 = sphi 0, %s47
    %s65 = sphi 0, %s65
    %s67 = sphi 0, %s65
    %s68 = sphi 0, %s67
    %s82 = sphi 0, %s68
    %s88 = sphi 0, %s90
    %s91 = sphi 0, %s88
    %s92 = sphi 0, %s91
    %s108 = sphi 0, %s92
    %s114 = sphi 0, %s116
    %s117 = sphi 0, %s114
    %s118 = sphi 0, %s117
    %s134 = sphi 0, %s118
  $region4: #{_lambda_.23} parent=0 // loop_header_branch
    %13 = sbr.rel (%p11) target = $region8
  $region5: #{_lambda_.23} parent=0 // loop_body
    %s15 = ssub.s32 %s10, 1
    %s16 = ssub.s32 %s10, 2
    %s17 = sadd.s32 %s10, 1
    %s18 = ssub.s32 %s10, %s17
    %p19 = scmp.eq.s32.totalorder %s18, 0
    %s21 = sadd.s32 %s20, 1
    %s22 = scalar_select %p19, %s20, %s21
    %p25 = pneg %p19
    %p26 = scmp.eq.s32.totalorder %s10, 1
    %p27 = por %p25, %p26
    %p28 = scmp.ne.s32.totalorder %s20, %s23
    %p29 = scmp.eq.s32.totalorder %s10, 0
    %p30 = por %p28, %p29
    %p31 = scmp.ne.s32.totalorder %s20, %s23
    %p32 = scmp.eq.s32.totalorder %s15, 1
    %p33 = por %p31, %p32
    %p34 = scmp.ne.s32.totalorder %s23, %s24
    %p35 = scmp.eq.s32.totalorder %s15, 0
    %p36 = por %p34, %p35
    %p37 = scmp.ne.s32.totalorder %s23, %s24
    %p38 = scmp.eq.s32.totalorder %s16, 1
    %p39 = por %p37, %p38
    %p41 = scmp.ne.s32.totalorder %s24, %s40
    %p42 = scmp.eq.s32.totalorder %s16, 0
    %p43 = por %p41, %p42
    %s45 = sadd.s32 %s44, 1
    %p48 = scmp.eq.s32.totalorder %s10, 1
    %p49 = scmp.ne.s32.totalorder %s44, %s46
    %p50 = scmp.eq.s32.totalorder %s10, 0
    %p51 = por %p49, %p50
    %p52 = scmp.ne.s32.totalorder %s44, %s46
    %p53 = scmp.eq.s32.totalorder %s15, 1
    %p54 = por %p52, %p53
    %p55 = scmp.ne.s32.totalorder %s46, %s47
    %p56 = scmp.eq.s32.totalorder %s15, 0
    %p57 = por %p55, %p56
    %p58 = scmp.ne.s32.totalorder %s46, %s47
    %p59 = scmp.eq.s32.totalorder %s16, 1
    %p60 = por %p58, %p59
    %p62 = scmp.ne.s32.totalorder %s47, %s61
    %p63 = scmp.eq.s32.totalorder %s16, 0
    %p64 = por %p62, %p63
    %s66 = sadd.s32 %s65, 1
    %p69 = scmp.eq.s32.totalorder %s10, 1
    %p70 = scmp.ne.s32.totalorder %s65, %s67
    %p71 = scmp.eq.s32.totalorder %s10, 0
    %p72 = por %p70, %p71
    %p73 = scmp.ne.s32.totalorder %s65, %s67
    %p74 = scmp.eq.s32.totalorder %s15, 1
    %p75 = por %p73, %p74
    %p76 = scmp.ne.s32.totalorder %s67, %s68
    %p77 = scmp.eq.s32.totalorder %s15, 0
    %p78 = por %p76, %p77
    %p79 = scmp.ne.s32.totalorder %s67, %s68
    %p80 = scmp.eq.s32.totalorder %s16, 1
    %p81 = por %p79, %p80
    %p83 = scmp.ne.s32.totalorder %s68, %s82
    %p84 = scmp.eq.s32.totalorder %s16, 0
    %p85 = por %p83, %p84
    %s86 = ssub.s32 %s10, %s17
    %p87 = scmp.eq.s32.totalorder %s86, 0
    %s89 = sadd.s32 %s88, 1
    %s90 = scalar_select %p87, %s88, %s89
    %p93 = pneg %p87
    %p94 = scmp.eq.s32.totalorder %s10, 1
    %p95 = por %p93, %p94
    %p96 = scmp.ne.s32.totalorder %s88, %s91
    %p97 = scmp.eq.s32.totalorder %s10, 0
    %p98 = por %p96, %p97
    %p99 = scmp.ne.s32.totalorder %s88, %s91
    %p100 = scmp.eq.s32.totalorder %s15, 1
    %p101 = por %p99, %p100
    %p102 = scmp.ne.s32.totalorder %s91, %s92
    %p103 = scmp.eq.s32.totalorder %s15, 0
    %p104 = por %p102, %p103
    %p105 = scmp.ne.s32.totalorder %s91, %s92
    %p106 = scmp.eq.s32.totalorder %s16, 1
    %p107 = por %p105, %p106
    %p109 = scmp.ne.s32.totalorder %s92, %s108
    %p110 = scmp.eq.s32.totalorder %s16, 0
    %p111 = por %p109, %p110
    %s112 = ssub.s32 %s10, %s17
    %p113 = scmp.eq.s32.totalorder %s112, 0
    %s115 = sadd.s32 %s114, 1
    %s116 = scalar_select %p113, %s114, %s115
    %p119 = pneg %p113
    %p120 = scmp.eq.s32.totalorder %s10, 1
    %p121 = por %p119, %p120
    %p122 = scmp.ne.s32.totalorder %s114, %s117
    %p123 = scmp.eq.s32.totalorder %s10, 0
    %p124 = por %p122, %p123
    %p125 = scmp.ne.s32.totalorder %s114, %s117
    %p126 = scmp.eq.s32.totalorder %s15, 1
    %p127 = por %p125, %p126
    %p128 = scmp.ne.s32.totalorder %s117, %s118
    %p129 = scmp.eq.s32.totalorder %s15, 0
    %p130 = por %p128, %p129
    %p131 = scmp.ne.s32.totalorder %s117, %s118
    %p132 = scmp.eq.s32.totalorder %s16, 1
    %p133 = por %p131, %p132
    %p135 = scmp.ne.s32.totalorder %s118, %s134
    %p136 = scmp.eq.s32.totalorder %s16, 0
    %p137 = por %p135, %p136
    %p138 = scmp.le.s32.totalorder 1, %s10
    %p139 = scmp.lt.s32.totalorder %s10, 3
    %p140 = pnand %p138, %p139
    %p141 = pneg %p140
    // Predicated region
    $region9: #{_lambda_.23} parent=5 // pred_check
      _
    $region10: #{_lambda_.23} parent=5 // pred_check_branch
      %143 = sbr.rel (%p140) target = $region12
    $region11: #{_lambda_.23} parent=5 // pred_region
      %s144 = ssub.s32 %s10, 1
      // Predicated region
      $region13: #{_lambda_.23} parent=11 // pred_check
        %p145 = pneg %p57
      $region14: #{_lambda_.23} parent=11 // pred_check_branch
        %147 = sbr.rel (%p145) target = $region16
      $region15: #{_lambda_.23} parent=11 // pred_region
        _
      $region16: #{_lambda_.23} parent=11 // pred_fallthru
        _
      // Predicated region
      $region17: #{_lambda_.23} parent=11 // pred_check
        %p148 = pneg %p78
      $region18: #{_lambda_.23} parent=11 // pred_check_branch
        %150 = sbr.rel (%p148) target = $region20
      $region19: #{_lambda_.23} parent=11 // pred_region
        _
      $region20: #{_lambda_.23} parent=11 // pred_fallthru
        _
    $region12: #{_lambda_.23} parent=5 // pred_fallthru
      _
    %p151 = scmp.lt.s32.totalorder %s10, 2
    // Predicated region
    $region21: #{_lambda_.23} parent=5 // pred_check
      %p152 = pneg %p151
    $region22: #{_lambda_.23} parent=5 // pred_check_branch
      %154 = sbr.rel (%p152) target = $region24
    $region23: #{_lambda_.23} parent=5 // pred_region
      // Predicated region
      $region25: #{_lambda_.23} parent=23 // pred_check
        %p155 = pneg %p30
      $region26: #{_lambda_.23} parent=23 // pred_check_branch
        %157 = sbr.rel (%p155) target = $region28
      $region27: #{_lambda_.23} parent=23 // pred_region
        %s158 = smul.u32 64, %s10
        %p159 = scmp.lt.s32.totalorder %s158, 127
        %s160 = scalar_select %p159, %s158, 127
        %s161 = smul.addr %s160, 2
        %s162 = smul.addr %s161, 4
        %s163 = scalar_lea.vmem %s0, %s162
        %s164 = smul.u32 64, %s10
      $region28: #{_lambda_.23} parent=23 // pred_fallthru
        _
      // Predicated region
      $region29: #{_lambda_.23} parent=23 // pred_check
        %p165 = pneg %p98
      $region30: #{_lambda_.23} parent=23 // pred_check_branch
        %167 = sbr.rel (%p165) target = $region32
      $region31: #{_lambda_.23} parent=23 // pred_region
        %s168 = smul.u32 64, %s10
        %p169 = scmp.lt.s32.totalorder %s168, 127
        %s170 = scalar_select %p169, %s168, 127
        %s171 = smul.addr %s170, 8
        %s172 = scalar_lea.vmem %s3, %s171
        %s173 = smul.u32 64, %s10
      $region32: #{_lambda_.23} parent=23 // pred_fallthru
        _
    $region24: #{_lambda_.23} parent=5 // pred_fallthru
      _
    %p174 = scmp.le.s32.totalorder 1, %s10
    %p175 = scmp.lt.s32.totalorder %s10, 3
    %p176 = pnand %p174, %p175
    %p177 = pneg %p176
    // Predicated region
    $region33: #{_lambda_.23} parent=5 // pred_check
      _
    $region34: #{_lambda_.23} parent=5 // pred_check_branch
      %179 = sbr.rel (%p176) target = $region36
    $region35: #{_lambda_.23} parent=5 // pred_region
      %s180 = ssub.s32 %s10, 1
      %s181 = smul.u32 64, %s15
      %p182 = scmp.lt.s32.totalorder %s181, 127
      %s183 = scalar_select %p182, %s181, 127
      %s184 = smul.addr %s183, 2
      %s185 = smul.addr %s184, 4
      %s186 = scalar_lea.vmem %s0, %s185
      %p187 = pneg %p36
      %p188 = pneg %p33
      %p189 = pneg %p57
      %p190 = pneg %p54
      %p191 = pneg %p78
      %p192 = pneg %p75
      %s193 = smul.u32 64, %s15
      %p194 = scmp.lt.s32.totalorder %s193, 127
      %s195 = scalar_select %p194, %s193, 127
      %s196 = smul.addr %s195, 8
      %s197 = scalar_lea.vmem %s3, %s196
      %p198 = pneg %p104
      %p199 = pneg %p101
      %p200 = pneg %p130
      %p201 = pneg %p127
      %s202 = smul.u32 64, %s15
      %p203 = scmp.lt.s32.totalorder %s202, 127
      %s204 = scalar_select %p203, %s202, 127
      %s205 = smul.addr %s204, 8
      %s206 = scalar_lea.vmem %s4, %s205
      %s207 = smul.u32 64, %s15
      %p208 = scmp.lt.s32.totalorder %s207, 127
      %s209 = scalar_select %p208, %s207, 127
      %s210 = smul.addr %s209, 2
      %s211 = smul.addr %s210, 4
      %s212 = scalar_lea.vmem %s0, %s211
      %s213 = smul.u32 64, %s15
      %s214 = smul.u32 64, %s15
      %p215 = scmp.lt.s32.totalorder %s214, 127
      %s216 = scalar_select %p215, %s214, 127
      %s217 = smul.addr %s216, 8
      %s218 = scalar_lea.vmem %s3, %s217
      %s219 = smul.u32 64, %s15
      %s220 = smul.u32 64, %s15
      %p221 = scmp.lt.s32.totalorder %s220, 127
      %s222 = scalar_select %p221, %s220, 127
      %s223 = smul.addr %s222, 8
      %s224 = scalar_lea.vmem %s4, %s223
      %s225 = smul.u32 64, %s15
      %v227 = vld [vmem:[%s212] sm:$0xff]
      %v228 = vld [vmem:[%s212 + $0x8] sm:$0xff]
      %v229 = vld [vmem:[%s212 + $0x10] sm:$0xff]
      %v230 = vld [vmem:[%s212 + $0x18] sm:$0xff]
      %v231 = vld [vmem:[%s212 + $0x20] sm:$0xff]
      %v232 = vld [vmem:[%s212 + $0x28] sm:$0xff]
      %v233 = vld [vmem:[%s212 + $0x30] sm:$0xff]
      %v234 = vld [vmem:[%s212 + $0x38] sm:$0xff]
      %v235 = vld [vmem:[%s212 + $0x40] sm:$0xff]
      %v236 = vld [vmem:[%s212 + $0x48] sm:$0xff]
      %v237 = vld [vmem:[%s212 + $0x50] sm:$0xff]
      %v238 = vld [vmem:[%s212 + $0x58] sm:$0xff]
      %v239 = vld [vmem:[%s212 + $0x60] sm:$0xff]
      %v240 = vld [vmem:[%s212 + $0x68] sm:$0xff]
      %v241 = vld [vmem:[%s212 + $0x70] sm:$0xff]
      %v242 = vld [vmem:[%s212 + $0x78] sm:$0xff]
      %v243 = vld [vmem:[%s212 + $0x80] sm:$0xff]
      %v244 = vld [vmem:[%s212 + $0x88] sm:$0xff]
      %v245 = vld [vmem:[%s212 + $0x90] sm:$0xff]
      %v246 = vld [vmem:[%s212 + $0x98] sm:$0xff]
      %v247 = vld [vmem:[%s212 + $0xa0] sm:$0xff]
      %v248 = vld [vmem:[%s212 + $0xa8] sm:$0xff]
      %v249 = vld [vmem:[%s212 + $0xb0] sm:$0xff]
      %v250 = vld [vmem:[%s212 + $0xb8] sm:$0xff]
      %v251 = vld [vmem:[%s212 + $0xc0] sm:$0xff]
      %v252 = vld [vmem:[%s212 + $0xc8] sm:$0xff]
      %v253 = vld [vmem:[%s212 + $0xd0] sm:$0xff]
      %v254 = vld [vmem:[%s212 + $0xd8] sm:$0xff]
      %v255 = vld [vmem:[%s212 + $0xe0] sm:$0xff]
      %v256 = vld [vmem:[%s212 + $0xe8] sm:$0xff]
      %v257 = vld [vmem:[%s212 + $0xf0] sm:$0xff]
      %v258 = vld [vmem:[%s212 + $0xf8] sm:$0xff]
      %v259 = vld [vmem:[%s212 + $0x100] sm:$0xff]
      %v260 = vld [vmem:[%s212 + $0x108] sm:$0xff]
      %v261 = vld [vmem:[%s212 + $0x110] sm:$0xff]
      %v262 = vld [vmem:[%s212 + $0x118] sm:$0xff]
      %v263 = vld [vmem:[%s212 + $0x120] sm:$0xff]
      %v264 = vld [vmem:[%s212 + $0x128] sm:$0xff]
      %v265 = vld [vmem:[%s212 + $0x130] sm:$0xff]
      %v266 = vld [vmem:[%s212 + $0x138] sm:$0xff]
      %v267 = vld [vmem:[%s212 + $0x140] sm:$0xff]
      %v268 = vld [vmem:[%s212 + $0x148] sm:$0xff]
      %v269 = vld [vmem:[%s212 + $0x150] sm:$0xff]
      %v270 = vld [vmem:[%s212 + $0x158] sm:$0xff]
      %v271 = vld [vmem:[%s212 + $0x160] sm:$0xff]
      %v272 = vld [vmem:[%s212 + $0x168] sm:$0xff]
      %v273 = vld [vmem:[%s212 + $0x170] sm:$0xff]
      %v274 = vld [vmem:[%s212 + $0x178] sm:$0xff]
      %v275 = vld [vmem:[%s212 + $0x180] sm:$0xff]
      %v276 = vld [vmem:[%s212 + $0x188] sm:$0xff]
      %v277 = vld [vmem:[%s212 + $0x190] sm:$0xff]
      %v278 = vld [vmem:[%s212 + $0x198] sm:$0xff]
      %v279 = vld [vmem:[%s212 + $0x1a0] sm:$0xff]
      %v280 = vld [vmem:[%s212 + $0x1a8] sm:$0xff]
      %v281 = vld [vmem:[%s212 + $0x1b0] sm:$0xff]
      %v282 = vld [vmem:[%s212 + $0x1b8] sm:$0xff]
      %v283 = vld [vmem:[%s212 + $0x1c0] sm:$0xff]
      %v284 = vld [vmem:[%s212 + $0x1c8] sm:$0xff]
      %v285 = vld [vmem:[%s212 + $0x1d0] sm:$0xff]
      %v286 = vld [vmem:[%s212 + $0x1d8] sm:$0xff]
      %v287 = vld [vmem:[%s212 + $0x1e0] sm:$0xff]
      %v288 = vld [vmem:[%s212 + $0x1e8] sm:$0xff]
      %v289 = vld [vmem:[%s212 + $0x1f0] sm:$0xff]
      %v290 = vld [vmem:[%s212 + $0x1f8] sm:$0xff]
      %v291 = vld [vmem:[%s1] sm:$0xf]
      %v292 = vld [vmem:[%s1 + $0x4] sm:$0xf]
      %v293 = vld [vmem:[%s1 + $0x8] sm:$0xf]
      %v294 = vld [vmem:[%s1 + $0xc] sm:$0xf]
      %v295 = vld [vmem:[%s1 + $0x10] sm:$0xf]
      %v296 = vld [vmem:[%s1 + $0x14] sm:$0xf]
      %v297 = vld [vmem:[%s1 + $0x18] sm:$0xf]
      %v298 = vld [vmem:[%s1 + $0x1c] sm:$0xf]
      %v299 = vld [vmem:[%s1 + $0x20] sm:$0xf]
      %v300 = vld [vmem:[%s1 + $0x24] sm:$0xf]
      %v301 = vld [vmem:[%s1 + $0x28] sm:$0xf]
      %v302 = vld [vmem:[%s1 + $0x2c] sm:$0xf]
      %v303 = vld [vmem:[%s1 + $0x30] sm:$0xf]
      %v304 = vld [vmem:[%s1 + $0x34] sm:$0xf]
      %v305 = vld [vmem:[%s1 + $0x38] sm:$0xf]
      %v306 = vld [vmem:[%s1 + $0x3c] sm:$0xf]
      %v307 = vld [vmem:[%s1 + $0x40] sm:$0xf]
      %v308 = vld [vmem:[%s1 + $0x44] sm:$0xf]
      %v309 = vld [vmem:[%s2] sm:$0x1]
      %v311 = vperm.slane %v309, 0
      %v377 = vunpack.c.l.b16 %v227
      %v378 = vunpack.c.h.b16 %v227
      %v379 = vunpack.c.l.b16 %v228
      %v380 = vunpack.c.h.b16 %v228
      %v381 = vunpack.c.l.b16 %v229
      %v382 = vunpack.c.h.b16 %v229
      %v383 = vunpack.c.l.b16 %v230
      %v384 = vunpack.c.h.b16 %v230
      %v385 = vunpack.c.l.b16 %v231
      %v386 = vunpack.c.h.b16 %v231
      %v387 = vunpack.c.l.b16 %v232
      %v388 = vunpack.c.h.b16 %v232
      %v389 = vunpack.c.l.b16 %v233
      %v390 = vunpack.c.h.b16 %v233
      %v391 = vunpack.c.l.b16 %v234
      %v392 = vunpack.c.h.b16 %v234
      %v393 = vunpack.c.l.b16 %v235
      %v394 = vunpack.c.h.b16 %v235
      %v395 = vunpack.c.l.b16 %v236
      %v396 = vunpack.c.h.b16 %v236
      %v397 = vunpack.c.l.b16 %v237
      %v398 = vunpack.c.h.b16 %v237
      %v399 = vunpack.c.l.b16 %v238
      %v400 = vunpack.c.h.b16 %v238
      %v401 = vunpack.c.l.b16 %v239
      %v402 = vunpack.c.h.b16 %v239
      %v403 = vunpack.c.l.b16 %v240
      %v404 = vunpack.c.h.b16 %v240
      %v405 = vunpack.c.l.b16 %v241
      %v406 = vunpack.c.h.b16 %v241
      %v407 = vunpack.c.l.b16 %v242
      %v408 = vunpack.c.h.b16 %v242
      %v409 = vunpack.c.l.b16 %v243
      %v410 = vunpack.c.h.b16 %v243
      %v411 = vunpack.c.l.b16 %v244
      %v412 = vunpack.c.h.b16 %v244
      %v413 = vunpack.c.l.b16 %v245
      %v414 = vunpack.c.h.b16 %v245
      %v415 = vunpack.c.l.b16 %v246
      %v416 = vunpack.c.h.b16 %v246
      %v417 = vunpack.c.l.b16 %v247
      %v418 = vunpack.c.h.b16 %v247
      %v419 = vunpack.c.l.b16 %v248
      %v420 = vunpack.c.h.b16 %v248
      %v421 = vunpack.c.l.b16 %v249
      %v422 = vunpack.c.h.b16 %v249
      %v423 = vunpack.c.l.b16 %v250
      %v424 = vunpack.c.h.b16 %v250
      %v425 = vunpack.c.l.b16 %v251
      %v426 = vunpack.c.h.b16 %v251
      %v427 = vunpack.c.l.b16 %v252
      %v428 = vunpack.c.h.b16 %v252
      %v429 = vunpack.c.l.b16 %v253
      %v430 = vunpack.c.h.b16 %v253
      %v431 = vunpack.c.l.b16 %v254
      %v432 = vunpack.c.h.b16 %v254
      %v433 = vunpack.c.l.b16 %v255
      %v434 = vunpack.c.h.b16 %v255
      %v435 = vunpack.c.l.b16 %v256
      %v436 = vunpack.c.h.b16 %v256
      %v437 = vunpack.c.l.b16 %v257
      %v438 = vunpack.c.h.b16 %v257
      %v439 = vunpack.c.l.b16 %v258
      %v440 = vunpack.c.h.b16 %v258
      %v441 = vunpack.c.l.b16 %v259
      %v442 = vunpack.c.h.b16 %v259
      %v443 = vunpack.c.l.b16 %v260
      %v444 = vunpack.c.h.b16 %v260
      %v445 = vunpack.c.l.b16 %v261
      %v446 = vunpack.c.h.b16 %v261
      %v447 = vunpack.c.l.b16 %v262
      %v448 = vunpack.c.h.b16 %v262
      %v449 = vunpack.c.l.b16 %v263
      %v450 = vunpack.c.h.b16 %v263
      %v451 = vunpack.c.l.b16 %v264
      %v452 = vunpack.c.h.b16 %v264
      %v453 = vunpack.c.l.b16 %v265
      %v454 = vunpack.c.h.b16 %v265
      %v455 = vunpack.c.l.b16 %v266
      %v456 = vunpack.c.h.b16 %v266
      %v457 = vunpack.c.l.b16 %v267
      %v458 = vunpack.c.h.b16 %v267
      %v459 = vunpack.c.l.b16 %v268
      %v460 = vunpack.c.h.b16 %v268
      %v461 = vunpack.c.l.b16 %v269
      %v462 = vunpack.c.h.b16 %v269
      %v463 = vunpack.c.l.b16 %v270
      %v464 = vunpack.c.h.b16 %v270
      %v465 = vunpack.c.l.b16 %v271
      %v466 = vunpack.c.h.b16 %v271
      %v467 = vunpack.c.l.b16 %v272
      %v468 = vunpack.c.h.b16 %v272
      %v469 = vunpack.c.l.b16 %v273
      %v470 = vunpack.c.h.b16 %v273
      %v471 = vunpack.c.l.b16 %v274
      %v472 = vunpack.c.h.b16 %v274
      %v473 = vunpack.c.l.b16 %v275
      %v474 = vunpack.c.h.b16 %v275
      %v475 = vunpack.c.l.b16 %v276
      %v476 = vunpack.c.h.b16 %v276
      %v477 = vunpack.c.l.b16 %v277
      %v478 = vunpack.c.h.b16 %v277
      %v479 = vunpack.c.l.b16 %v278
      %v480 = vunpack.c.h.b16 %v278
      %v481 = vunpack.c.l.b16 %v279
      %v482 = vunpack.c.h.b16 %v279
      %v483 = vunpack.c.l.b16 %v280
      %v484 = vunpack.c.h.b16 %v280
      %v485 = vunpack.c.l.b16 %v281
      %v486 = vunpack.c.h.b16 %v281
      %v487 = vunpack.c.l.b16 %v282
      %v488 = vunpack.c.h.b16 %v282
      %v489 = vunpack.c.l.b16 %v283
      %v490 = vunpack.c.h.b16 %v283
      %v491 = vunpack.c.l.b16 %v284
      %v492 = vunpack.c.h.b16 %v284
      %v493 = vunpack.c.l.b16 %v285
      %v494 = vunpack.c.h.b16 %v285
      %v495 = vunpack.c.l.b16 %v286
      %v496 = vunpack.c.h.b16 %v286
      %v497 = vunpack.c.l.b16 %v287
      %v498 = vunpack.c.h.b16 %v287
      %v499 = vunpack.c.l.b16 %v288
      %v500 = vunpack.c.h.b16 %v288
      %v501 = vunpack.c.l.b16 %v289
      %v502 = vunpack.c.h.b16 %v289
      %v503 = vunpack.c.l.b16 %v290
      %v504 = vunpack.c.h.b16 %v290
      %v505 = vpack.c.b16 %v379, %v377
      %v506 = vpack.c.b16 %v380, %v378
      %v507 = vpack.c.b16 %v383, %v381
      %v508 = vpack.c.b16 %v384, %v382
      %v509 = vpack.c.b16 %v387, %v385
      %v510 = vpack.c.b16 %v388, %v386
      %v511 = vpack.c.b16 %v391, %v389
      %v512 = vpack.c.b16 %v392, %v390
      %v513 = vpack.c.b16 %v395, %v393
      %v514 = vpack.c.b16 %v396, %v394
      %v515 = vpack.c.b16 %v399, %v397
      %v516 = vpack.c.b16 %v400, %v398
      %v517 = vpack.c.b16 %v403, %v401
      %v518 = vpack.c.b16 %v404, %v402
      %v519 = vpack.c.b16 %v407, %v405
      %v520 = vpack.c.b16 %v408, %v406
      %v521 = vpack.c.b16 %v411, %v409
      %v522 = vpack.c.b16 %v412, %v410
      %v523 = vpack.c.b16 %v415, %v413
      %v524 = vpack.c.b16 %v416, %v414
      %v525 = vpack.c.b16 %v419, %v417
      %v526 = vpack.c.b16 %v420, %v418
      %v527 = vpack.c.b16 %v423, %v421
      %v528 = vpack.c.b16 %v424, %v422
      %v529 = vpack.c.b16 %v427, %v425
      %v530 = vpack.c.b16 %v428, %v426
      %v531 = vpack.c.b16 %v431, %v429
      %v532 = vpack.c.b16 %v432, %v430
      %v533 = vpack.c.b16 %v435, %v433
      %v534 = vpack.c.b16 %v436, %v434
      %v535 = vpack.c.b16 %v439, %v437
      %v536 = vpack.c.b16 %v440, %v438
      %v537 = vpack.c.b16 %v443, %v441
      %v538 = vpack.c.b16 %v444, %v442
      %v539 = vpack.c.b16 %v447, %v445
      %v540 = vpack.c.b16 %v448, %v446
      %v541 = vpack.c.b16 %v451, %v449
      %v542 = vpack.c.b16 %v452, %v450
      %v543 = vpack.c.b16 %v455, %v453
      %v544 = vpack.c.b16 %v456, %v454
      %v545 = vpack.c.b16 %v459, %v457
      %v546 = vpack.c.b16 %v460, %v458
      %v547 = vpack.c.b16 %v463, %v461
      %v548 = vpack.c.b16 %v464, %v462
      %v549 = vpack.c.b16 %v467, %v465
      %v550 = vpack.c.b16 %v468, %v466
      %v551 = vpack.c.b16 %v471, %v469
      %v552 = vpack.c.b16 %v472, %v470
      %v553 = vpack.c.b16 %v475, %v473
      %v554 = vpack.c.b16 %v476, %v474
      %v555 = vpack.c.b16 %v479, %v477
      %v556 = vpack.c.b16 %v480, %v478
      %v557 = vpack.c.b16 %v483, %v481
      %v558 = vpack.c.b16 %v484, %v482
      %v559 = vpack.c.b16 %v487, %v485
      %v560 = vpack.c.b16 %v488, %v486
      %v561 = vpack.c.b16 %v491, %v489
      %v562 = vpack.c.b16 %v492, %v490
      %v563 = vpack.c.b16 %v495, %v493
      %v564 = vpack.c.b16 %v496, %v494
      %v565 = vpack.c.b16 %v499, %v497
      %v566 = vpack.c.b16 %v500, %v498
      %v567 = vpack.c.b16 %v503, %v501
      %v568 = vpack.c.b16 %v504, %v502
      %v619 = vunpack.c.l.b16 %v291
      %v620 = vunpack.c.l.b16 %v292
      %v621 = vunpack.c.l.b16 %v293
      %v622 = vunpack.c.l.b16 %v294
      %v623 = vunpack.c.l.b16 %v295
      %v624 = vunpack.c.l.b16 %v296
      %v625 = vunpack.c.l.b16 %v297
      %v626 = vunpack.c.l.b16 %v298
      %v627 = vunpack.c.l.b16 %v299
      %v628 = vunpack.c.l.b16 %v300
      %v629 = vunpack.c.l.b16 %v301
      %v630 = vunpack.c.l.b16 %v302
      %v631 = vunpack.c.l.b16 %v303
      %v632 = vunpack.c.l.b16 %v304
      %v633 = vunpack.c.l.b16 %v305
      %v634 = vunpack.c.l.b16 %v306
      %v635 = vunpack.c.l.b16 %v307
      %v636 = vunpack.c.l.b16 %v308
      %v637 = vpack.c.b16 %v620, %v619
      %v638 = vpack.c.b16 %v622, %v621
      %v639 = vpack.c.b16 %v624, %v623
      %v640 = vpack.c.b16 %v626, %v625
      %v641 = vpack.c.b16 %v628, %v627
      %v642 = vpack.c.b16 %v630, %v629
      %v643 = vpack.c.b16 %v632, %v631
      %v644 = vpack.c.b16 %v634, %v633
      %v645 = vpack.c.b16 %v636, %v635
      %vm655 = vcmask 130048
      %v657 = vsel %vm655, %v506, 0
      %v660 = vsel %vm655, %v508, 0
      %v663 = vsel %vm655, %v510, 0
      %v666 = vsel %vm655, %v512, 0
      %v669 = vsel %vm655, %v514, 0
      %v672 = vsel %vm655, %v516, 0
      %v675 = vsel %vm655, %v518, 0
      %v678 = vsel %vm655, %v520, 0
      %v681 = vsel %vm655, %v522, 0
      %v684 = vsel %vm655, %v524, 0
      %v687 = vsel %vm655, %v526, 0
      %v690 = vsel %vm655, %v528, 0
      %v693 = vsel %vm655, %v530, 0
      %v696 = vsel %vm655, %v532, 0
      %v699 = vsel %vm655, %v534, 0
      %v702 = vsel %vm655, %v536, 0
      %v705 = vsel %vm655, %v538, 0
      %v708 = vsel %vm655, %v540, 0
      %v711 = vsel %vm655, %v542, 0
      %v714 = vsel %vm655, %v544, 0
      %v717 = vsel %vm655, %v546, 0
      %v720 = vsel %vm655, %v548, 0
      %v723 = vsel %vm655, %v550, 0
      %v726 = vsel %vm655, %v552, 0
      %v729 = vsel %vm655, %v554, 0
      %v732 = vsel %vm655, %v556, 0
      %v735 = vsel %vm655, %v558, 0
      %v738 = vsel %vm655, %v560, 0
      %v741 = vsel %vm655, %v562, 0
      %v744 = vsel %vm655, %v564, 0
      %v747 = vsel %vm655, %v566, 0
      %v750 = vsel %vm655, %v568, 0
      %752 = vmatpush.bf16.msra.mxu0 %v644
      %753 = vmatpush.bf16.msra.mxu0 %v643
      %754 = vmatpush.bf16.msra.mxu0 %v642
      %755 = vmatpush.bf16.msra.mxu0 %v641
      %756 = vmatpush.bf16.msra.mxu0 %v640
      %757 = vmatpush.bf16.msra.mxu0 %v639
      %758 = vmatpush.bf16.msra.mxu0 %v638
      %759 = vmatpush.bf16.msra.mxu0 %v637
      %760 = vmatmul.bf16.gmra.mxu0 %v505
      %v761 = vpop.f32.mrf.mxu0
      %v762 = vadd.f32 %v311, %v761
      %v763 = vpop.f32.mrf.mxu0
      %v764 = vadd.f32 %v311, %v763
      %765 = vmatmul.bf16.gmra.mxu0 %v507
      %v766 = vpop.f32.mrf.mxu0
      %v767 = vadd.f32 %v311, %v766
      %v768 = vpop.f32.mrf.mxu0
      %v769 = vadd.f32 %v311, %v768
      %770 = vmatmul.bf16.gmra.mxu0 %v509
      %v771 = vpop.f32.mrf.mxu0
      %v772 = vadd.f32 %v311, %v771
      %v773 = vpop.f32.mrf.mxu0
      %v774 = vadd.f32 %v311, %v773
      %775 = vmatmul.bf16.gmra.mxu0 %v511
      %v776 = vpop.f32.mrf.mxu0
      %v777 = vadd.f32 %v311, %v776
      %v778 = vpop.f32.mrf.mxu0
      %v779 = vadd.f32 %v311, %v778
      %780 = vmatmul.bf16.gmra.mxu0 %v513
      %v781 = vpop.f32.mrf.mxu0
      %v782 = vadd.f32 %v311, %v781
      %v783 = vpop.f32.mrf.mxu0
      %v784 = vadd.f32 %v311, %v783
      %785 = vmatmul.bf16.gmra.mxu0 %v515
      %v786 = vpop.f32.mrf.mxu0
      %v787 = vadd.f32 %v311, %v786
      %v788 = vpop.f32.mrf.mxu0
      %v789 = vadd.f32 %v311, %v788
      %790 = vmatmul.bf16.gmra.mxu0 %v517
      %v791 = vpop.f32.mrf.mxu0
      %v792 = vadd.f32 %v311, %v791
      %v793 = vpop.f32.mrf.mxu0
      %v794 = vadd.f32 %v311, %v793
      %795 = vmatmul.bf16.gmra.mxu0 %v519
      %v796 = vpop.f32.mrf.mxu0
      %v797 = vadd.f32 %v311, %v796
      %v798 = vpop.f32.mrf.mxu0
      %v799 = vadd.f32 %v311, %v798
      %800 = vmatmul.bf16.gmra.mxu0 %v521
      %v801 = vpop.f32.mrf.mxu0
      %v802 = vadd.f32 %v311, %v801
      %v803 = vpop.f32.mrf.mxu0
      %v804 = vadd.f32 %v311, %v803
      %805 = vmatmul.bf16.gmra.mxu0 %v523
      %v806 = vpop.f32.mrf.mxu0
      %v807 = vadd.f32 %v311, %v806
      %v808 = vpop.f32.mrf.mxu0
      %v809 = vadd.f32 %v311, %v808
      %810 = vmatmul.bf16.gmra.mxu0 %v525
      %v811 = vpop.f32.mrf.mxu0
      %v812 = vadd.f32 %v311, %v811
      %v813 = vpop.f32.mrf.mxu0
      %v814 = vadd.f32 %v311, %v813
      %815 = vmatmul.bf16.gmra.mxu0 %v527
      %v816 = vpop.f32.mrf.mxu0
      %v817 = vadd.f32 %v311, %v816
      %v818 = vpop.f32.mrf.mxu0
      %v819 = vadd.f32 %v311, %v818
      %820 = vmatmul.bf16.gmra.mxu0 %v529
      %v821 = vpop.f32.mrf.mxu0
      %v822 = vadd.f32 %v311, %v821
      %v823 = vpop.f32.mrf.mxu0
      %v824 = vadd.f32 %v311, %v823
      %825 = vmatmul.bf16.gmra.mxu0 %v531
      %v826 = vpop.f32.mrf.mxu0
      %v827 = vadd.f32 %v311, %v826
      %v828 = vpop.f32.mrf.mxu0
      %v829 = vadd.f32 %v311, %v828
      %830 = vmatmul.bf16.gmra.mxu0 %v533
      %v831 = vpop.f32.mrf.mxu0
      %v832 = vadd.f32 %v311, %v831
      %v833 = vpop.f32.mrf.mxu0
      %v834 = vadd.f32 %v311, %v833
      %835 = vmatmul.bf16.gmra.mxu0 %v535
      %v836 = vpop.f32.mrf.mxu0
      %v837 = vadd.f32 %v311, %v836
      %v838 = vpop.f32.mrf.mxu0
      %v839 = vadd.f32 %v311, %v838
      %840 = vmatmul.bf16.gmra.mxu0 %v537
      %v841 = vpop.f32.mrf.mxu0
      %v842 = vadd.f32 %v311, %v841
      %v843 = vpop.f32.mrf.mxu0
      %v844 = vadd.f32 %v311, %v843
      %845 = vmatmul.bf16.gmra.mxu0 %v539
      %v846 = vpop.f32.mrf.mxu0
      %v847 = vadd.f32 %v311, %v846
      %v848 = vpop.f32.mrf.mxu0
      %v849 = vadd.f32 %v311, %v848
      %850 = vmatmul.bf16.gmra.mxu0 %v541
      %v851 = vpop.f32.mrf.mxu0
      %v852 = vadd.f32 %v311, %v851
      %v853 = vpop.f32.mrf.mxu0
      %v854 = vadd.f32 %v311, %v853
      %855 = vmatmul.bf16.gmra.mxu0 %v543
      %v856 = vpop.f32.mrf.mxu0
      %v857 = vadd.f32 %v311, %v856
      %v858 = vpop.f32.mrf.mxu0
      %v859 = vadd.f32 %v311, %v858
      %860 = vmatmul.bf16.gmra.mxu0 %v545
      %v861 = vpop.f32.mrf.mxu0
      %v862 = vadd.f32 %v311, %v861
      %v863 = vpop.f32.mrf.mxu0
      %v864 = vadd.f32 %v311, %v863
      %865 = vmatmul.bf16.gmra.mxu0 %v547
      %v866 = vpop.f32.mrf.mxu0
      %v867 = vadd.f32 %v311, %v866
      %v868 = vpop.f32.mrf.mxu0
      %v869 = vadd.f32 %v311, %v868
      %870 = vmatmul.bf16.gmra.mxu0 %v549
      %v871 = vpop.f32.mrf.mxu0
      %v872 = vadd.f32 %v311, %v871
      %v873 = vpop.f32.mrf.mxu0
      %v874 = vadd.f32 %v311, %v873
      %875 = vmatmul.bf16.gmra.mxu0 %v551
      %v876 = vpop.f32.mrf.mxu0
      %v877 = vadd.f32 %v311, %v876
      %v878 = vpop.f32.mrf.mxu0
      %v879 = vadd.f32 %v311, %v878
      %880 = vmatmul.bf16.gmra.mxu0 %v553
      %v881 = vpop.f32.mrf.mxu0
      %v882 = vadd.f32 %v311, %v881
      %v883 = vpop.f32.mrf.mxu0
      %v884 = vadd.f32 %v311, %v883
      %885 = vmatmul.bf16.gmra.mxu0 %v555
      %v886 = vpop.f32.mrf.mxu0
      %v887 = vadd.f32 %v311, %v886
      %v888 = vpop.f32.mrf.mxu0
      %v889 = vadd.f32 %v311, %v888
      %890 = vmatmul.bf16.gmra.mxu0 %v557
      %v891 = vpop.f32.mrf.mxu0
      %v892 = vadd.f32 %v311, %v891
      %v893 = vpop.f32.mrf.mxu0
      %v894 = vadd.f32 %v311, %v893
      %895 = vmatmul.bf16.gmra.mxu0 %v559
      %v896 = vpop.f32.mrf.mxu0
      %v897 = vadd.f32 %v311, %v896
      %v898 = vpop.f32.mrf.mxu0
      %v899 = vadd.f32 %v311, %v898
      %900 = vmatmul.bf16.gmra.mxu0 %v561
      %v901 = vpop.f32.mrf.mxu0
      %v902 = vadd.f32 %v311, %v901
      %v903 = vpop.f32.mrf.mxu0
      %v904 = vadd.f32 %v311, %v903
      %905 = vmatmul.bf16.gmra.mxu0 %v563
      %v906 = vpop.f32.mrf.mxu0
      %v907 = vadd.f32 %v311, %v906
      %v908 = vpop.f32.mrf.mxu0
      %v909 = vadd.f32 %v311, %v908
      %910 = vmatmul.bf16.gmra.mxu0 %v565
      %v911 = vpop.f32.mrf.mxu0
      %v912 = vadd.f32 %v311, %v911
      %v913 = vpop.f32.mrf.mxu0
      %v914 = vadd.f32 %v311, %v913
      %915 = vmatmul.bf16.gmra.mxu0 %v567
      %v916 = vpop.f32.mrf.mxu0
      %v917 = vadd.f32 %v311, %v916
      %v918 = vpop.f32.mrf.mxu0
      %v919 = vadd.f32 %v311, %v918
      %920 = vdwg.mxu0
      %921 = vmatpush.bf16.msra.mxu0 0
      %922 = vmatpush.bf16.msra.mxu0 0
      %923 = vmatpush.bf16.msra.mxu0 0
      %924 = vmatpush.bf16.msra.mxu0 0
      %925 = vmatpush.bf16.msra.mxu0 0
      %926 = vmatpush.bf16.msra.mxu0 0
      %927 = vmatpush.bf16.msra.mxu0 0
      %928 = vmatpush.bf16.msra.mxu0 %v645
      %929 = vmatmul.bf16.gmra.mxu0 %v657
      %v930 = vpop.f32.mrf.mxu0
      %v931 = vadd.f32 %v762, %v930
      %v932 = vpop.f32.mrf.mxu0
      %v933 = vadd.f32 %v764, %v932
      %934 = vmatmul.bf16.gmra.mxu0 %v660
      %v935 = vpop.f32.mrf.mxu0
      %v936 = vadd.f32 %v767, %v935
      %v937 = vpop.f32.mrf.mxu0
      %v938 = vadd.f32 %v769, %v937
      %939 = vmatmul.bf16.gmra.mxu0 %v663
      %v940 = vpop.f32.mrf.mxu0
      %v941 = vadd.f32 %v772, %v940
      %v942 = vpop.f32.mrf.mxu0
      %v943 = vadd.f32 %v774, %v942
      %944 = vmatmul.bf16.gmra.mxu0 %v666
      %v945 = vpop.f32.mrf.mxu0
      %v946 = vadd.f32 %v777, %v945
      %v947 = vpop.f32.mrf.mxu0
      %v948 = vadd.f32 %v779, %v947
      %949 = vmatmul.bf16.gmra.mxu0 %v669
      %v950 = vpop.f32.mrf.mxu0
      %v951 = vadd.f32 %v782, %v950
      %v952 = vpop.f32.mrf.mxu0
      %v953 = vadd.f32 %v784, %v952
      %954 = vmatmul.bf16.gmra.mxu0 %v672
      %v955 = vpop.f32.mrf.mxu0
      %v956 = vadd.f32 %v787, %v955
      %v957 = vpop.f32.mrf.mxu0
      %v958 = vadd.f32 %v789, %v957
      %959 = vmatmul.bf16.gmra.mxu0 %v675
      %v960 = vpop.f32.mrf.mxu0
      %v961 = vadd.f32 %v792, %v960
      %v962 = vpop.f32.mrf.mxu0
      %v963 = vadd.f32 %v794, %v962
      %964 = vmatmul.bf16.gmra.mxu0 %v678
      %v965 = vpop.f32.mrf.mxu0
      %v966 = vadd.f32 %v797, %v965
      %v967 = vpop.f32.mrf.mxu0
      %v968 = vadd.f32 %v799, %v967
      %969 = vmatmul.bf16.gmra.mxu0 %v681
      %v970 = vpop.f32.mrf.mxu0
      %v971 = vadd.f32 %v802, %v970
      %v972 = vpop.f32.mrf.mxu0
      %v973 = vadd.f32 %v804, %v972
      %974 = vmatmul.bf16.gmra.mxu0 %v684
      %v975 = vpop.f32.mrf.mxu0
      %v976 = vadd.f32 %v807, %v975
      %v977 = vpop.f32.mrf.mxu0
      %v978 = vadd.f32 %v809, %v977
      %979 = vmatmul.bf16.gmra.mxu0 %v687
      %v980 = vpop.f32.mrf.mxu0
      %v981 = vadd.f32 %v812, %v980
      %v982 = vpop.f32.mrf.mxu0
      %v983 = vadd.f32 %v814, %v982
      %984 = vmatmul.bf16.gmra.mxu0 %v690
      %v985 = vpop.f32.mrf.mxu0
      %v986 = vadd.f32 %v817, %v985
      %v987 = vpop.f32.mrf.mxu0
      %v988 = vadd.f32 %v819, %v987
      %989 = vmatmul.bf16.gmra.mxu0 %v693
      %v990 = vpop.f32.mrf.mxu0
      %v991 = vadd.f32 %v822, %v990
      %v992 = vpop.f32.mrf.mxu0
      %v993 = vadd.f32 %v824, %v992
      %994 = vmatmul.bf16.gmra.mxu0 %v696
      %v995 = vpop.f32.mrf.mxu0
      %v996 = vadd.f32 %v827, %v995
      %v997 = vpop.f32.mrf.mxu0
      %v998 = vadd.f32 %v829, %v997
      %999 = vmatmul.bf16.gmra.mxu0 %v699
      %v1000 = vpop.f32.mrf.mxu0
      %v1001 = vadd.f32 %v832, %v1000
      %v1002 = vpop.f32.mrf.mxu0
      %v1003 = vadd.f32 %v834, %v1002
      %1004 = vmatmul.bf16.gmra.mxu0 %v702
      %v1005 = vpop.f32.mrf.mxu0
      %v1006 = vadd.f32 %v837, %v1005
      %v1007 = vpop.f32.mrf.mxu0
      %v1008 = vadd.f32 %v839, %v1007
      %1009 = vmatmul.bf16.gmra.mxu0 %v705
      %v1010 = vpop.f32.mrf.mxu0
      %v1011 = vadd.f32 %v842, %v1010
      %v1012 = vpop.f32.mrf.mxu0
      %v1013 = vadd.f32 %v844, %v1012
      %1014 = vmatmul.bf16.gmra.mxu0 %v708
      %v1015 = vpop.f32.mrf.mxu0
      %v1016 = vadd.f32 %v847, %v1015
      %v1017 = vpop.f32.mrf.mxu0
      %v1018 = vadd.f32 %v849, %v1017
      %1019 = vmatmul.bf16.gmra.mxu0 %v711
      %v1020 = vpop.f32.mrf.mxu0
      %v1021 = vadd.f32 %v852, %v1020
      %v1022 = vpop.f32.mrf.mxu0
      %v1023 = vadd.f32 %v854, %v1022
      %1024 = vmatmul.bf16.gmra.mxu0 %v714
      %v1025 = vpop.f32.mrf.mxu0
      %v1026 = vadd.f32 %v857, %v1025
      %v1027 = vpop.f32.mrf.mxu0
      %v1028 = vadd.f32 %v859, %v1027
      %1029 = vmatmul.bf16.gmra.mxu0 %v717
      %v1030 = vpop.f32.mrf.mxu0
      %v1031 = vadd.f32 %v862, %v1030
      %v1032 = vpop.f32.mrf.mxu0
      %v1033 = vadd.f32 %v864, %v1032
      %1034 = vmatmul.bf16.gmra.mxu0 %v720
      %v1035 = vpop.f32.mrf.mxu0
      %v1036 = vadd.f32 %v867, %v1035
      %v1037 = vpop.f32.mrf.mxu0
      %v1038 = vadd.f32 %v869, %v1037
      %1039 = vmatmul.bf16.gmra.mxu0 %v723
      %v1040 = vpop.f32.mrf.mxu0
      %v1041 = vadd.f32 %v872, %v1040
      %v1042 = vpop.f32.mrf.mxu0
      %v1043 = vadd.f32 %v874, %v1042
      %1044 = vmatmul.bf16.gmra.mxu0 %v726
      %v1045 = vpop.f32.mrf.mxu0
      %v1046 = vadd.f32 %v877, %v1045
      %v1047 = vpop.f32.mrf.mxu0
      %v1048 = vadd.f32 %v879, %v1047
      %1049 = vmatmul.bf16.gmra.mxu0 %v729
      %v1050 = vpop.f32.mrf.mxu0
      %v1051 = vadd.f32 %v882, %v1050
      %v1052 = vpop.f32.mrf.mxu0
      %v1053 = vadd.f32 %v884, %v1052
      %1054 = vmatmul.bf16.gmra.mxu0 %v732
      %v1055 = vpop.f32.mrf.mxu0
      %v1056 = vadd.f32 %v887, %v1055
      %v1057 = vpop.f32.mrf.mxu0
      %v1058 = vadd.f32 %v889, %v1057
      %1059 = vmatmul.bf16.gmra.mxu0 %v735
      %v1060 = vpop.f32.mrf.mxu0
      %v1061 = vadd.f32 %v892, %v1060
      %v1062 = vpop.f32.mrf.mxu0
      %v1063 = vadd.f32 %v894, %v1062
      %1064 = vmatmul.bf16.gmra.mxu0 %v738
      %v1065 = vpop.f32.mrf.mxu0
      %v1066 = vadd.f32 %v897, %v1065
      %v1067 = vpop.f32.mrf.mxu0
      %v1068 = vadd.f32 %v899, %v1067
      %1069 = vmatmul.bf16.gmra.mxu0 %v741
      %v1070 = vpop.f32.mrf.mxu0
      %v1071 = vadd.f32 %v902, %v1070
      %v1072 = vpop.f32.mrf.mxu0
      %v1073 = vadd.f32 %v904, %v1072
      %1074 = vmatmul.bf16.gmra.mxu0 %v744
      %v1075 = vpop.f32.mrf.mxu0
      %v1076 = vadd.f32 %v907, %v1075
      %v1077 = vpop.f32.mrf.mxu0
      %v1078 = vadd.f32 %v909, %v1077
      %1079 = vmatmul.bf16.gmra.mxu0 %v747
      %v1080 = vpop.f32.mrf.mxu0
      %v1081 = vadd.f32 %v912, %v1080
      %v1082 = vpop.f32.mrf.mxu0
      %v1083 = vadd.f32 %v914, %v1082
      %1084 = vmatmul.bf16.gmra.mxu0 %v750
      %v1085 = vpop.f32.mrf.mxu0
      %v1086 = vadd.f32 %v917, %v1085
      %v1087 = vpop.f32.mrf.mxu0
      %v1088 = vadd.f32 %v919, %v1087
      %1089 = vdwg.mxu0
      %v1090 = vld [vmem:[%s218] sm:$0xff]
      %v1091 = vld [vmem:[%s218 + $0x8] sm:$0xff]
      %v1092 = vld [vmem:[%s218 + $0x10] sm:$0xff]
      %v1093 = vld [vmem:[%s218 + $0x18] sm:$0xff]
      %v1094 = vld [vmem:[%s218 + $0x20] sm:$0xff]
      %v1095 = vld [vmem:[%s218 + $0x28] sm:$0xff]
      %v1096 = vld [vmem:[%s218 + $0x30] sm:$0xff]
      %v1097 = vld [vmem:[%s218 + $0x38] sm:$0xff]
      %v1098 = vld [vmem:[%s218 + $0x40] sm:$0xff]
      %v1099 = vld [vmem:[%s218 + $0x48] sm:$0xff]
      %v1100 = vld [vmem:[%s218 + $0x50] sm:$0xff]
      %v1101 = vld [vmem:[%s218 + $0x58] sm:$0xff]
      %v1102 = vld [vmem:[%s218 + $0x60] sm:$0xff]
      %v1103 = vld [vmem:[%s218 + $0x68] sm:$0xff]
      %v1104 = vld [vmem:[%s218 + $0x70] sm:$0xff]
      %v1105 = vld [vmem:[%s218 + $0x78] sm:$0xff]
      %v1106 = vld [vmem:[%s218 + $0x80] sm:$0xff]
      %v1107 = vld [vmem:[%s218 + $0x88] sm:$0xff]
      %v1108 = vld [vmem:[%s218 + $0x90] sm:$0xff]
      %v1109 = vld [vmem:[%s218 + $0x98] sm:$0xff]
      %v1110 = vld [vmem:[%s218 + $0xa0] sm:$0xff]
      %v1111 = vld [vmem:[%s218 + $0xa8] sm:$0xff]
      %v1112 = vld [vmem:[%s218 + $0xb0] sm:$0xff]
      %v1113 = vld [vmem:[%s218 + $0xb8] sm:$0xff]
      %v1114 = vld [vmem:[%s218 + $0xc0] sm:$0xff]
      %v1115 = vld [vmem:[%s218 + $0xc8] sm:$0xff]
      %v1116 = vld [vmem:[%s218 + $0xd0] sm:$0xff]
      %v1117 = vld [vmem:[%s218 + $0xd8] sm:$0xff]
      %v1118 = vld [vmem:[%s218 + $0xe0] sm:$0xff]
      %v1119 = vld [vmem:[%s218 + $0xe8] sm:$0xff]
      %v1120 = vld [vmem:[%s218 + $0xf0] sm:$0xff]
      %v1121 = vld [vmem:[%s218 + $0xf8] sm:$0xff]
      %v1122 = vld [vmem:[%s218 + $0x100] sm:$0xff]
      %v1123 = vld [vmem:[%s218 + $0x108] sm:$0xff]
      %v1124 = vld [vmem:[%s218 + $0x110] sm:$0xff]
      %v1125 = vld [vmem:[%s218 + $0x118] sm:$0xff]
      %v1126 = vld [vmem:[%s218 + $0x120] sm:$0xff]
      %v1127 = vld [vmem:[%s218 + $0x128] sm:$0xff]
      %v1128 = vld [vmem:[%s218 + $0x130] sm:$0xff]
      %v1129 = vld [vmem:[%s218 + $0x138] sm:$0xff]
      %v1130 = vld [vmem:[%s218 + $0x140] sm:$0xff]
      %v1131 = vld [vmem:[%s218 + $0x148] sm:$0xff]
      %v1132 = vld [vmem:[%s218 + $0x150] sm:$0xff]
      %v1133 = vld [vmem:[%s218 + $0x158] sm:$0xff]
      %v1134 = vld [vmem:[%s218 + $0x160] sm:$0xff]
      %v1135 = vld [vmem:[%s218 + $0x168] sm:$0xff]
      %v1136 = vld [vmem:[%s218 + $0x170] sm:$0xff]
      %v1137 = vld [vmem:[%s218 + $0x178] sm:$0xff]
      %v1138 = vld [vmem:[%s218 + $0x180] sm:$0xff]
      %v1139 = vld [vmem:[%s218 + $0x188] sm:$0xff]
      %v1140 = vld [vmem:[%s218 + $0x190] sm:$0xff]
      %v1141 = vld [vmem:[%s218 + $0x198] sm:$0xff]
      %v1142 = vld [vmem:[%s218 + $0x1a0] sm:$0xff]
      %v1143 = vld [vmem:[%s218 + $0x1a8] sm:$0xff]
      %v1144 = vld [vmem:[%s218 + $0x1b0] sm:$0xff]
      %v1145 = vld [vmem:[%s218 + $0x1b8] sm:$0xff]
      %v1146 = vld [vmem:[%s218 + $0x1c0] sm:$0xff]
      %v1147 = vld [vmem:[%s218 + $0x1c8] sm:$0xff]
      %v1148 = vld [vmem:[%s218 + $0x1d0] sm:$0xff]
      %v1149 = vld [vmem:[%s218 + $0x1d8] sm:$0xff]
      %v1150 = vld [vmem:[%s218 + $0x1e0] sm:$0xff]
      %v1151 = vld [vmem:[%s218 + $0x1e8] sm:$0xff]
      %v1152 = vld [vmem:[%s218 + $0x1f0] sm:$0xff]
      %v1153 = vld [vmem:[%s218 + $0x1f8] sm:$0xff]
      %v1154 = vadd.f32 %v931, %v1090
      %v1155 = vadd.f32 %v933, %v1091
      %v1156 = vadd.f32 %v936, %v1092
      %v1157 = vadd.f32 %v938, %v1093
      %v1158 = vadd.f32 %v941, %v1094
      %v1159 = vadd.f32 %v943, %v1095
      %v1160 = vadd.f32 %v946, %v1096
      %v1161 = vadd.f32 %v948, %v1097
      %v1162 = vadd.f32 %v951, %v1098
      %v1163 = vadd.f32 %v953, %v1099
      %v1164 = vadd.f32 %v956, %v1100
      %v1165 = vadd.f32 %v958, %v1101
      %v1166 = vadd.f32 %v961, %v1102
      %v1167 = vadd.f32 %v963, %v1103
      %v1168 = vadd.f32 %v966, %v1104
      %v1169 = vadd.f32 %v968, %v1105
      %v1170 = vadd.f32 %v971, %v1106
      %v1171 = vadd.f32 %v973, %v1107
      %v1172 = vadd.f32 %v976, %v1108
      %v1173 = vadd.f32 %v978, %v1109
      %v1174 = vadd.f32 %v981, %v1110
      %v1175 = vadd.f32 %v983, %v1111
      %v1176 = vadd.f32 %v986, %v1112
      %v1177 = vadd.f32 %v988, %v1113
      %v1178 = vadd.f32 %v991, %v1114
      %v1179 = vadd.f32 %v993, %v1115
      %v1180 = vadd.f32 %v996, %v1116
      %v1181 = vadd.f32 %v998, %v1117
      %v1182 = vadd.f32 %v1001, %v1118
      %v1183 = vadd.f32 %v1003, %v1119
      %v1184 = vadd.f32 %v1006, %v1120
      %v1185 = vadd.f32 %v1008, %v1121
      %v1186 = vadd.f32 %v1011, %v1122
      %v1187 = vadd.f32 %v1013, %v1123
      %v1188 = vadd.f32 %v1016, %v1124
      %v1189 = vadd.f32 %v1018, %v1125
      %v1190 = vadd.f32 %v1021, %v1126
      %v1191 = vadd.f32 %v1023, %v1127
      %v1192 = vadd.f32 %v1026, %v1128
      %v1193 = vadd.f32 %v1028, %v1129
      %v1194 = vadd.f32 %v1031, %v1130
      %v1195 = vadd.f32 %v1033, %v1131
      %v1196 = vadd.f32 %v1036, %v1132
      %v1197 = vadd.f32 %v1038, %v1133
      %v1198 = vadd.f32 %v1041, %v1134
      %v1199 = vadd.f32 %v1043, %v1135
      %v1200 = vadd.f32 %v1046, %v1136
      %v1201 = vadd.f32 %v1048, %v1137
      %v1202 = vadd.f32 %v1051, %v1138
      %v1203 = vadd.f32 %v1053, %v1139
      %v1204 = vadd.f32 %v1056, %v1140
      %v1205 = vadd.f32 %v1058, %v1141
      %v1206 = vadd.f32 %v1061, %v1142
      %v1207 = vadd.f32 %v1063, %v1143
      %v1208 = vadd.f32 %v1066, %v1144
      %v1209 = vadd.f32 %v1068, %v1145
      %v1210 = vadd.f32 %v1071, %v1146
      %v1211 = vadd.f32 %v1073, %v1147
      %v1212 = vadd.f32 %v1076, %v1148
      %v1213 = vadd.f32 %v1078, %v1149
      %v1214 = vadd.f32 %v1081, %v1150
      %v1215 = vadd.f32 %v1083, %v1151
      %v1216 = vadd.f32 %v1086, %v1152
      %v1217 = vadd.f32 %v1088, %v1153
      %v1218 = vmax.f32 %v1154, 0.0
      %v1219 = vmax.f32 %v1155, 0.0
      %v1220 = vmax.f32 %v1156, 0.0
      %v1221 = vmax.f32 %v1157, 0.0
      %v1222 = vmax.f32 %v1158, 0.0
      %v1223 = vmax.f32 %v1159, 0.0
      %v1224 = vmax.f32 %v1160, 0.0
      %v1225 = vmax.f32 %v1161, 0.0
      %v1226 = vmax.f32 %v1162, 0.0
      %v1227 = vmax.f32 %v1163, 0.0
      %v1228 = vmax.f32 %v1164, 0.0
      %v1229 = vmax.f32 %v1165, 0.0
      %v1230 = vmax.f32 %v1166, 0.0
      %v1231 = vmax.f32 %v1167, 0.0
      %v1232 = vmax.f32 %v1168, 0.0
      %v1233 = vmax.f32 %v1169, 0.0
      %v1234 = vmax.f32 %v1170, 0.0
      %v1235 = vmax.f32 %v1171, 0.0
      %v1236 = vmax.f32 %v1172, 0.0
      %v1237 = vmax.f32 %v1173, 0.0
      %v1238 = vmax.f32 %v1174, 0.0
      %v1239 = vmax.f32 %v1175, 0.0
      %v1240 = vmax.f32 %v1176, 0.0
      %v1241 = vmax.f32 %v1177, 0.0
      %v1242 = vmax.f32 %v1178, 0.0
      %v1243 = vmax.f32 %v1179, 0.0
      %v1244 = vmax.f32 %v1180, 0.0
      %v1245 = vmax.f32 %v1181, 0.0
      %v1246 = vmax.f32 %v1182, 0.0
      %v1247 = vmax.f32 %v1183, 0.0
      %v1248 = vmax.f32 %v1184, 0.0
      %v1249 = vmax.f32 %v1185, 0.0
      %v1250 = vmax.f32 %v1186, 0.0
      %v1251 = vmax.f32 %v1187, 0.0
      %v1252 = vmax.f32 %v1188, 0.0
      %v1253 = vmax.f32 %v1189, 0.0
      %v1254 = vmax.f32 %v1190, 0.0
      %v1255 = vmax.f32 %v1191, 0.0
      %v1256 = vmax.f32 %v1192, 0.0
      %v1257 = vmax.f32 %v1193, 0.0
      %v1258 = vmax.f32 %v1194, 0.0
      %v1259 = vmax.f32 %v1195, 0.0
      %v1260 = vmax.f32 %v1196, 0.0
      %v1261 = vmax.f32 %v1197, 0.0
      %v1262 = vmax.f32 %v1198, 0.0
      %v1263 = vmax.f32 %v1199, 0.0
      %v1264 = vmax.f32 %v1200, 0.0
      %v1265 = vmax.f32 %v1201, 0.0
      %v1266 = vmax.f32 %v1202, 0.0
      %v1267 = vmax.f32 %v1203, 0.0
      %v1268 = vmax.f32 %v1204, 0.0
      %v1269 = vmax.f32 %v1205, 0.0
      %v1270 = vmax.f32 %v1206, 0.0
      %v1271 = vmax.f32 %v1207, 0.0
      %v1272 = vmax.f32 %v1208, 0.0
      %v1273 = vmax.f32 %v1209, 0.0
      %v1274 = vmax.f32 %v1210, 0.0
      %v1275 = vmax.f32 %v1211, 0.0
      %v1276 = vmax.f32 %v1212, 0.0
      %v1277 = vmax.f32 %v1213, 0.0
      %v1278 = vmax.f32 %v1214, 0.0
      %v1279 = vmax.f32 %v1215, 0.0
      %v1280 = vmax.f32 %v1216, 0.0
      %v1281 = vmax.f32 %v1217, 0.0
      %1282 = vst [vmem:[%s224] sm:$0xff] %v1218
      %1283 = vst [vmem:[%s224 + $0x8] sm:$0xff] %v1219
      %1284 = vst [vmem:[%s224 + $0x10] sm:$0xff] %v1220
      %1285 = vst [vmem:[%s224 + $0x18] sm:$0xff] %v1221
      %1286 = vst [vmem:[%s224 + $0x20] sm:$0xff] %v1222
      %1287 = vst [vmem:[%s224 + $0x28] sm:$0xff] %v1223
      %1288 = vst [vmem:[%s224 + $0x30] sm:$0xff] %v1224
      %1289 = vst [vmem:[%s224 + $0x38] sm:$0xff] %v1225
      %1290 = vst [vmem:[%s224 + $0x40] sm:$0xff] %v1226
      %1291 = vst [vmem:[%s224 + $0x48] sm:$0xff] %v1227
      %1292 = vst [vmem:[%s224 + $0x50] sm:$0xff] %v1228
      %1293 = vst [vmem:[%s224 + $0x58] sm:$0xff] %v1229
      %1294 = vst [vmem:[%s224 + $0x60] sm:$0xff] %v1230
      %1295 = vst [vmem:[%s224 + $0x68] sm:$0xff] %v1231
      %1296 = vst [vmem:[%s224 + $0x70] sm:$0xff] %v1232
      %1297 = vst [vmem:[%s224 + $0x78] sm:$0xff] %v1233
      %1298 = vst [vmem:[%s224 + $0x80] sm:$0xff] %v1234
      %1299 = vst [vmem:[%s224 + $0x88] sm:$0xff] %v1235
      %1300 = vst [vmem:[%s224 + $0x90] sm:$0xff] %v1236
      %1301 = vst [vmem:[%s224 + $0x98] sm:$0xff] %v1237
      %1302 = vst [vmem:[%s224 + $0xa0] sm:$0xff] %v1238
      %1303 = vst [vmem:[%s224 + $0xa8] sm:$0xff] %v1239
      %1304 = vst [vmem:[%s224 + $0xb0] sm:$0xff] %v1240
      %1305 = vst [vmem:[%s224 + $0xb8] sm:$0xff] %v1241
      %1306 = vst [vmem:[%s224 + $0xc0] sm:$0xff] %v1242
      %1307 = vst [vmem:[%s224 + $0xc8] sm:$0xff] %v1243
      %1308 = vst [vmem:[%s224 + $0xd0] sm:$0xff] %v1244
      %1309 = vst [vmem:[%s224 + $0xd8] sm:$0xff] %v1245
      %1310 = vst [vmem:[%s224 + $0xe0] sm:$0xff] %v1246
      %1311 = vst [vmem:[%s224 + $0xe8] sm:$0xff] %v1247
      %1312 = vst [vmem:[%s224 + $0xf0] sm:$0xff] %v1248
      %1313 = vst [vmem:[%s224 + $0xf8] sm:$0xff] %v1249
      %1314 = vst [vmem:[%s224 + $0x100] sm:$0xff] %v1250
      %1315 = vst [vmem:[%s224 + $0x108] sm:$0xff] %v1251
      %1316 = vst [vmem:[%s224 + $0x110] sm:$0xff] %v1252
      %1317 = vst [vmem:[%s224 + $0x118] sm:$0xff] %v1253
      %1318 = vst [vmem:[%s224 + $0x120] sm:$0xff] %v1254
      %1319 = vst [vmem:[%s224 + $0x128] sm:$0xff] %v1255
      %1320 = vst [vmem:[%s224 + $0x130] sm:$0xff] %v1256
      %1321 = vst [vmem:[%s224 + $0x138] sm:$0xff] %v1257
      %1322 = vst [vmem:[%s224 + $0x140] sm:$0xff] %v1258
      %1323 = vst [vmem:[%s224 + $0x148] sm:$0xff] %v1259
      %1324 = vst [vmem:[%s224 + $0x150] sm:$0xff] %v1260
      %1325 = vst [vmem:[%s224 + $0x158] sm:$0xff] %v1261
      %1326 = vst [vmem:[%s224 + $0x160] sm:$0xff] %v1262
      %1327 = vst [vmem:[%s224 + $0x168] sm:$0xff] %v1263
      %1328 = vst [vmem:[%s224 + $0x170] sm:$0xff] %v1264
      %1329 = vst [vmem:[%s224 + $0x178] sm:$0xff] %v1265
      %1330 = vst [vmem:[%s224 + $0x180] sm:$0xff] %v1266
      %1331 = vst [vmem:[%s224 + $0x188] sm:$0xff] %v1267
      %1332 = vst [vmem:[%s224 + $0x190] sm:$0xff] %v1268
      %1333 = vst [vmem:[%s224 + $0x198] sm:$0xff] %v1269
      %1334 = vst [vmem:[%s224 + $0x1a0] sm:$0xff] %v1270
      %1335 = vst [vmem:[%s224 + $0x1a8] sm:$0xff] %v1271
      %1336 = vst [vmem:[%s224 + $0x1b0] sm:$0xff] %v1272
      %1337 = vst [vmem:[%s224 + $0x1b8] sm:$0xff] %v1273
      %1338 = vst [vmem:[%s224 + $0x1c0] sm:$0xff] %v1274
      %1339 = vst [vmem:[%s224 + $0x1c8] sm:$0xff] %v1275
      %1340 = vst [vmem:[%s224 + $0x1d0] sm:$0xff] %v1276
      %1341 = vst [vmem:[%s224 + $0x1d8] sm:$0xff] %v1277
      %1342 = vst [vmem:[%s224 + $0x1e0] sm:$0xff] %v1278
      %1343 = vst [vmem:[%s224 + $0x1e8] sm:$0xff] %v1279
      %1344 = vst [vmem:[%s224 + $0x1f0] sm:$0xff] %v1280
      %1345 = vst [vmem:[%s224 + $0x1f8] sm:$0xff] %v1281
      %s1346 = smul.u32 64, %s15
      %p1347 = scmp.lt.s32.totalorder %s1346, 127
      %s1348 = scalar_select %p1347, %s1346, 127
      %s1349 = smul.addr %s1348, 8
      %s1350 = scalar_lea.vmem %s4, %s1349
      // Predicated region
      $region37: #{_lambda_.23} parent=35 // pred_check
        %p1351 = pneg %p127
      $region38: #{_lambda_.23} parent=35 // pred_check_branch
        %1353 = sbr.rel (%p1351) target = $region40
      $region39: #{_lambda_.23} parent=35 // pred_region
        %s1354 = smul.u32 64, %s15
      $region40: #{_lambda_.23} parent=35 // pred_fallthru
        _
    $region36: #{_lambda_.23} parent=5 // pred_fallthru
      _
    %p1355 = scmp.le.s32.totalorder 2, %s10
    // Predicated region
    $region41: #{_lambda_.23} parent=5 // pred_check
      %p1356 = pneg %p1355
    $region42: #{_lambda_.23} parent=5 // pred_check_branch
      %1358 = sbr.rel (%p1356) target = $region44
    $region43: #{_lambda_.23} parent=5 // pred_region
      %s1359 = ssub.s32 %s10, 2
      // Predicated region
      $region45: #{_lambda_.23} parent=43 // pred_check
        %p1360 = pneg %p133
      $region46: #{_lambda_.23} parent=43 // pred_check_branch
        %1362 = sbr.rel (%p1360) target = $region48
      $region47: #{_lambda_.23} parent=43 // pred_region
        %s1363 = smul.u32 64, %s16
        %p1364 = scmp.lt.s32.totalorder %s1363, 127
        %s1365 = scalar_select %p1364, %s1363, 127
        %s1366 = smul.addr %s1365, 8
        %s1367 = scalar_lea.vmem %s4, %s1366
      $region48: #{_lambda_.23} parent=43 // pred_fallthru
        _
    $region44: #{_lambda_.23} parent=5 // pred_fallthru
      _
  $region6: #{_lambda_.23} parent=0 // loop_footer
    %s14 = sadd.s32 1, %s10
  $region7: #{_lambda_.23} parent=0 // loop_footer_branch
    %9 = sbr.rel target = $region3
  $region8: #{_lambda_.23} parent=0 // loop_exit
    _

// kernel: _lambda_.24
$region0: #{_lambda_.24}
  #allocation0 [shape = 'u32[]', space=smem, size = 0x4, offset = 0x4, fixed_abs, tag = 'smem constant byte address 0x4 - core index']
  #allocation1 [shape = 'u32[72,128]{1,0:T(1,128)}', space=vmem, size = 0x9000, scoped, tag = 'internal scratch']
  %s0 = inlined_call_operand.vmem [shape: bf16[256,16], index: 0, kind: input, shape index: {}]
  %s1 = inlined_call_operand.vmem [shape: bf16[16,128], index: 1, kind: input, shape index: {}]
  %s2 = inlined_call_operand.vmem [shape: f32[1,128], index: 2, kind: input, shape index: {}]
  %s3 = inlined_call_operand.vmem [shape: f32[256,128], index: 3, kind: output, shape index: {}]
  %s4 = sld [smem:[#allocation0]]
  $region22: #{_lambda_.24} parent=0
    _
  %s6 = ssub.s32 1, %s4
  %s7 = scalar_select 0, %s6, %s4
  // Predicated region
  $region2: #{_lambda_.24} parent=0 // pred_check
    _
  $region3: #{_lambda_.24} parent=0 // pred_check_branch
    %9 = sbr.rel (0) target = $region5
  $region4: #{_lambda_.24} parent=0 // pred_region
    _
  $region5: #{_lambda_.24} parent=0 // pred_fallthru
    _
  // Predicated region
  $region6: #{_lambda_.24} parent=0 // pred_check
    _
  $region7: #{_lambda_.24} parent=0 // pred_check_branch
    %11 = sbr.rel (0) target = $region9
  $region8: #{_lambda_.24} parent=0 // pred_region
    _
  $region9: #{_lambda_.24} parent=0 // pred_fallthru
    _
  // Predicated region
  $region10: #{_lambda_.24} parent=0 // pred_check
    _
  $region11: #{_lambda_.24} parent=0 // pred_check_branch
    %13 = sbr.rel (0) target = $region13
  $region12: #{_lambda_.24} parent=0 // pred_region
    _
  $region13: #{_lambda_.24} parent=0 // pred_fallthru
    _
  %v15 = vld [vmem:[%s0] sm:$0xf]
  %v16 = vld [vmem:[%s0 + $0x4] sm:$0xf]
  %v17 = vld [vmem:[%s0 + $0x8] sm:$0xf]
  %v18 = vld [vmem:[%s0 + $0xc] sm:$0xf]
  %v19 = vld [vmem:[%s0 + $0x10] sm:$0xf]
  %v20 = vld [vmem:[%s0 + $0x14] sm:$0xf]
  %v21 = vld [vmem:[%s0 + $0x18] sm:$0xf]
  %v22 = vld [vmem:[%s0 + $0x1c] sm:$0xf]
  %v23 = vld [vmem:[%s0 + $0x20] sm:$0xf]
  %v24 = vld [vmem:[%s0 + $0x24] sm:$0xf]
  %v25 = vld [vmem:[%s0 + $0x28] sm:$0xf]
  %v26 = vld [vmem:[%s0 + $0x2c] sm:$0xf]
  %v27 = vld [vmem:[%s0 + $0x30] sm:$0xf]
  %v28 = vld [vmem:[%s0 + $0x34] sm:$0xf]
  %v29 = vld [vmem:[%s0 + $0x38] sm:$0xf]
  %v30 = vld [vmem:[%s0 + $0x3c] sm:$0xf]
  %v31 = vld [vmem:[%s0 + $0x40] sm:$0xf]
  %v32 = vld [vmem:[%s0 + $0x44] sm:$0xf]
  %v33 = vld [vmem:[%s0 + $0x48] sm:$0xf]
  %v34 = vld [vmem:[%s0 + $0x4c] sm:$0xf]
  %v35 = vld [vmem:[%s0 + $0x50] sm:$0xf]
  %v36 = vld [vmem:[%s0 + $0x54] sm:$0xf]
  %v37 = vld [vmem:[%s0 + $0x58] sm:$0xf]
  %v38 = vld [vmem:[%s0 + $0x5c] sm:$0xf]
  %v39 = vld [vmem:[%s0 + $0x60] sm:$0xf]
  %v40 = vld [vmem:[%s0 + $0x64] sm:$0xf]
  %v41 = vld [vmem:[%s0 + $0x68] sm:$0xf]
  %v42 = vld [vmem:[%s0 + $0x6c] sm:$0xf]
  %v43 = vld [vmem:[%s0 + $0x70] sm:$0xf]
  %v44 = vld [vmem:[%s0 + $0x74] sm:$0xf]
  %v45 = vld [vmem:[%s0 + $0x78] sm:$0xf]
  %v46 = vld [vmem:[%s0 + $0x7c] sm:$0xf]
  %v47 = vld [vmem:[%s1] sm:$0xf]
  %v48 = vld [vmem:[%s1 + $0x4] sm:$0xf]
  %v49 = vld [vmem:[%s2] sm:$0x1]
  %v51 = vperm.slane %v49, 0
  %v85 = vunpack.c.l.b16 %v15
  %v86 = vunpack.c.l.b16 %v16
  %v87 = vunpack.c.l.b16 %v17
  %v88 = vunpack.c.l.b16 %v18
  %v89 = vunpack.c.l.b16 %v19
  %v90 = vunpack.c.l.b16 %v20
  %v91 = vunpack.c.l.b16 %v21
  %v92 = vunpack.c.l.b16 %v22
  %v93 = vunpack.c.l.b16 %v23
  %v94 = vunpack.c.l.b16 %v24
  %v95 = vunpack.c.l.b16 %v25
  %v96 = vunpack.c.l.b16 %v26
  %v97 = vunpack.c.l.b16 %v27
  %v98 = vunpack.c.l.b16 %v28
  %v99 = vunpack.c.l.b16 %v29
  %v100 = vunpack.c.l.b16 %v30
  %v101 = vunpack.c.l.b16 %v31
  %v102 = vunpack.c.l.b16 %v32
  %v103 = vunpack.c.l.b16 %v33
  %v104 = vunpack.c.l.b16 %v34
  %v105 = vunpack.c.l.b16 %v35
  %v106 = vunpack.c.l.b16 %v36
  %v107 = vunpack.c.l.b16 %v37
  %v108 = vunpack.c.l.b16 %v38
  %v109 = vunpack.c.l.b16 %v39
  %v110 = vunpack.c.l.b16 %v40
  %v111 = vunpack.c.l.b16 %v41
  %v112 = vunpack.c.l.b16 %v42
  %v113 = vunpack.c.l.b16 %v43
  %v114 = vunpack.c.l.b16 %v44
  %v115 = vunpack.c.l.b16 %v45
  %v116 = vunpack.c.l.b16 %v46
  %v117 = vpack.c.b16 %v86, %v85
  %v118 = vpack.c.b16 %v88, %v87
  %v119 = vpack.c.b16 %v90, %v89
  %v120 = vpack.c.b16 %v92, %v91
  %v121 = vpack.c.b16 %v94, %v93
  %v122 = vpack.c.b16 %v96, %v95
  %v123 = vpack.c.b16 %v98, %v97
  %v124 = vpack.c.b16 %v100, %v99
  %v125 = vpack.c.b16 %v102, %v101
  %v126 = vpack.c.b16 %v104, %v103
  %v127 = vpack.c.b16 %v106, %v105
  %v128 = vpack.c.b16 %v108, %v107
  %v129 = vpack.c.b16 %v110, %v109
  %v130 = vpack.c.b16 %v112, %v111
  %v131 = vpack.c.b16 %v114, %v113
  %v132 = vpack.c.b16 %v116, %v115
  %v135 = vunpack.c.l.b16 %v47
  %v136 = vunpack.c.l.b16 %v48
  %v137 = vpack.c.b16 %v136, %v135
  %vm139 = vcmask 130048
  %v141 = vsel %vm139, %v117, 0
  %v144 = vsel %vm139, %v118, 0
  %v147 = vsel %vm139, %v119, 0
  %v150 = vsel %vm139, %v120, 0
  %v153 = vsel %vm139, %v121, 0
  %v156 = vsel %vm139, %v122, 0
  %v159 = vsel %vm139, %v123, 0
  %v162 = vsel %vm139, %v124, 0
  %v165 = vsel %vm139, %v125, 0
  %v168 = vsel %vm139, %v126, 0
  %v171 = vsel %vm139, %v127, 0
  %v174 = vsel %vm139, %v128, 0
  %v177 = vsel %vm139, %v129, 0
  %v180 = vsel %vm139, %v130, 0
  %v183 = vsel %vm139, %v131, 0
  %v186 = vsel %vm139, %v132, 0
  %188 = vmatpush.bf16.msra.mxu0 0
  %189 = vmatpush.bf16.msra.mxu0 0
  %190 = vmatpush.bf16.msra.mxu0 0
  %191 = vmatpush.bf16.msra.mxu0 0
  %192 = vmatpush.bf16.msra.mxu0 0
  %193 = vmatpush.bf16.msra.mxu0 0
  %194 = vmatpush.bf16.msra.mxu0 0
  %195 = vmatpush.bf16.msra.mxu0 %v137
  %196 = vmatmul.bf16.gmra.mxu0 %v141
  %v197 = vpop.f32.mrf.mxu0
  %v198 = vadd.f32 %v51, %v197
  %v199 = vpop.f32.mrf.mxu0
  %v200 = vadd.f32 %v51, %v199
  %201 = vmatmul.bf16.gmra.mxu0 %v144
  %v202 = vpop.f32.mrf.mxu0
  %v203 = vadd.f32 %v51, %v202
  %v204 = vpop.f32.mrf.mxu0
  %v205 = vadd.f32 %v51, %v204
  %206 = vmatmul.bf16.gmra.mxu0 %v147
  %v207 = vpop.f32.mrf.mxu0
  %v208 = vadd.f32 %v51, %v207
  %v209 = vpop.f32.mrf.mxu0
  %v210 = vadd.f32 %v51, %v209
  %211 = vmatmul.bf16.gmra.mxu0 %v150
  %v212 = vpop.f32.mrf.mxu0
  %v213 = vadd.f32 %v51, %v212
  %v214 = vpop.f32.mrf.mxu0
  %v215 = vadd.f32 %v51, %v214
  %216 = vmatmul.bf16.gmra.mxu0 %v153
  %v217 = vpop.f32.mrf.mxu0
  %v218 = vadd.f32 %v51, %v217
  %v219 = vpop.f32.mrf.mxu0
  %v220 = vadd.f32 %v51, %v219
  %221 = vmatmul.bf16.gmra.mxu0 %v156
  %v222 = vpop.f32.mrf.mxu0
  %v223 = vadd.f32 %v51, %v222
  %v224 = vpop.f32.mrf.mxu0
  %v225 = vadd.f32 %v51, %v224
  %226 = vmatmul.bf16.gmra.mxu0 %v159
  %v227 = vpop.f32.mrf.mxu0
  %v228 = vadd.f32 %v51, %v227
  %v229 = vpop.f32.mrf.mxu0
  %v230 = vadd.f32 %v51, %v229
  %231 = vmatmul.bf16.gmra.mxu0 %v162
  %v232 = vpop.f32.mrf.mxu0
  %v233 = vadd.f32 %v51, %v232
  %v234 = vpop.f32.mrf.mxu0
  %v235 = vadd.f32 %v51, %v234
  %236 = vmatmul.bf16.gmra.mxu0 %v165
  %v237 = vpop.f32.mrf.mxu0
  %v238 = vadd.f32 %v51, %v237
  %v239 = vpop.f32.mrf.mxu0
  %v240 = vadd.f32 %v51, %v239
  %241 = vmatmul.bf16.gmra.mxu0 %v168
  %v242 = vpop.f32.mrf.mxu0
  %v243 = vadd.f32 %v51, %v242
  %v244 = vpop.f32.mrf.mxu0
  %v245 = vadd.f32 %v51, %v244
  %246 = vmatmul.bf16.gmra.mxu0 %v171
  %v247 = vpop.f32.mrf.mxu0
  %v248 = vadd.f32 %v51, %v247
  %v249 = vpop.f32.mrf.mxu0
  %v250 = vadd.f32 %v51, %v249
  %251 = vmatmul.bf16.gmra.mxu0 %v174
  %v252 = vpop.f32.mrf.mxu0
  %v253 = vadd.f32 %v51, %v252
  %v254 = vpop.f32.mrf.mxu0
  %v255 = vadd.f32 %v51, %v254
  %256 = vmatmul.bf16.gmra.mxu0 %v177
  %v257 = vpop.f32.mrf.mxu0
  %v258 = vadd.f32 %v51, %v257
  %v259 = vpop.f32.mrf.mxu0
  %v260 = vadd.f32 %v51, %v259
  %261 = vmatmul.bf16.gmra.mxu0 %v180
  %v262 = vpop.f32.mrf.mxu0
  %v263 = vadd.f32 %v51, %v262
  %v264 = vpop.f32.mrf.mxu0
  %v265 = vadd.f32 %v51, %v264
  %266 = vmatmul.bf16.gmra.mxu0 %v183
  %v267 = vpop.f32.mrf.mxu0
  %v268 = vadd.f32 %v51, %v267
  %v269 = vpop.f32.mrf.mxu0
  %v270 = vadd.f32 %v51, %v269
  %271 = vmatmul.bf16.gmra.mxu0 %v186
  %v272 = vpop.f32.mrf.mxu0
  %v273 = vadd.f32 %v51, %v272
  %v274 = vpop.f32.mrf.mxu0
  %v275 = vadd.f32 %v51, %v274
  %276 = vdwg.mxu0
  %v277 = vmax.f32 %v198, 0.0
  %v278 = vmax.f32 %v200, 0.0
  %v279 = vmax.f32 %v203, 0.0
  %v280 = vmax.f32 %v205, 0.0
  %v281 = vmax.f32 %v208, 0.0
  %v282 = vmax.f32 %v210, 0.0
  %v283 = vmax.f32 %v213, 0.0
  %v284 = vmax.f32 %v215, 0.0
  %v285 = vmax.f32 %v218, 0.0
  %v286 = vmax.f32 %v220, 0.0
  %v287 = vmax.f32 %v223, 0.0
  %v288 = vmax.f32 %v225, 0.0
  %v289 = vmax.f32 %v228, 0.0
  %v290 = vmax.f32 %v230, 0.0
  %v291 = vmax.f32 %v233, 0.0
  %v292 = vmax.f32 %v235, 0.0
  %v293 = vmax.f32 %v238, 0.0
  %v294 = vmax.f32 %v240, 0.0
  %v295 = vmax.f32 %v243, 0.0
  %v296 = vmax.f32 %v245, 0.0
  %v297 = vmax.f32 %v248, 0.0
  %v298 = vmax.f32 %v250, 0.0
  %v299 = vmax.f32 %v253, 0.0
  %v300 = vmax.f32 %v255, 0.0
  %v301 = vmax.f32 %v258, 0.0
  %v302 = vmax.f32 %v260, 0.0
  %v303 = vmax.f32 %v263, 0.0
  %v304 = vmax.f32 %v265, 0.0
  %v305 = vmax.f32 %v268, 0.0
  %v306 = vmax.f32 %v270, 0.0
  %v307 = vmax.f32 %v273, 0.0
  %v308 = vmax.f32 %v275, 0.0
  %309 = vst [vmem:[%s3] sm:$0xff] %v277
  %310 = vst [vmem:[%s3 + $0x8] sm:$0xff] %v278
  %311 = vst [vmem:[%s3 + $0x10] sm:$0xff] %v279
  %312 = vst [vmem:[%s3 + $0x18] sm:$0xff] %v280
  %313 = vst [vmem:[%s3 + $0x20] sm:$0xff] %v281
  %314 = vst [vmem:[%s3 + $0x28] sm:$0xff] %v282
  %315 = vst [vmem:[%s3 + $0x30] sm:$0xff] %v283
  %316 = vst [vmem:[%s3 + $0x38] sm:$0xff] %v284
  %317 = vst [vmem:[%s3 + $0x40] sm:$0xff] %v285
  %318 = vst [vmem:[%s3 + $0x48] sm:$0xff] %v286
  %319 = vst [vmem:[%s3 + $0x50] sm:$0xff] %v287
  %320 = vst [vmem:[%s3 + $0x58] sm:$0xff] %v288
  %321 = vst [vmem:[%s3 + $0x60] sm:$0xff] %v289
  %322 = vst [vmem:[%s3 + $0x68] sm:$0xff] %v290
  %323 = vst [vmem:[%s3 + $0x70] sm:$0xff] %v291
  %324 = vst [vmem:[%s3 + $0x78] sm:$0xff] %v292
  %325 = vst [vmem:[%s3 + $0x80] sm:$0xff] %v293
  %326 = vst [vmem:[%s3 + $0x88] sm:$0xff] %v294
  %327 = vst [vmem:[%s3 + $0x90] sm:$0xff] %v295
  %328 = vst [vmem:[%s3 + $0x98] sm:$0xff] %v296
  %329 = vst [vmem:[%s3 + $0xa0] sm:$0xff] %v297
  %330 = vst [vmem:[%s3 + $0xa8] sm:$0xff] %v298
  %331 = vst [vmem:[%s3 + $0xb0] sm:$0xff] %v299
  %332 = vst [vmem:[%s3 + $0xb8] sm:$0xff] %v300
  %333 = vst [vmem:[%s3 + $0xc0] sm:$0xff] %v301
  %334 = vst [vmem:[%s3 + $0xc8] sm:$0xff] %v302
  %335 = vst [vmem:[%s3 + $0xd0] sm:$0xff] %v303
  %336 = vst [vmem:[%s3 + $0xd8] sm:$0xff] %v304
  %337 = vst [vmem:[%s3 + $0xe0] sm:$0xff] %v305
  %338 = vst [vmem:[%s3 + $0xe8] sm:$0xff] %v306
  %339 = vst [vmem:[%s3 + $0xf0] sm:$0xff] %v307
  %340 = vst [vmem:[%s3 + $0xf8] sm:$0xff] %v308
  // Predicated region
  $region14: #{_lambda_.24} parent=0 // pred_check
    _
  $region15: #{_lambda_.24} parent=0 // pred_check_branch
    %342 = sbr.rel (0) target = $region17
  $region16: #{_lambda_.24} parent=0 // pred_region
    _
  $region17: #{_lambda_.24} parent=0 // pred_fallthru
    _
  // Predicated region
  $region18: #{_lambda_.24} parent=0 // pred_check
    _
  $region19: #{_lambda_.24} parent=0 // pred_check_branch
    %344 = sbr.rel (0) target = $region21
  $region20: #{_lambda_.24} parent=0 // pred_region
    _
  $region21: #{_lambda_.24} parent=0 // pred_fallthru
    _

// kernel: _lambda_.25
$region0: #{_lambda_.25}
  #allocation0 [shape = 'u32[]', space=smem, size = 0x4, offset = 0x4, fixed_abs, tag = 'smem constant byte address 0x4 - core index']
  #allocation1 [shape = 'u32[72,128]{1,0:T(1,128)}', space=vmem, size = 0x9000, scoped, tag = 'internal scratch']
  %s0 = inlined_call_operand.vmem [shape: bf16[256,16], index: 0, kind: input, shape index: {}]
  %s1 = inlined_call_operand.vmem [shape: bf16[16,128], index: 1, kind: input, shape index: {}]
  %s2 = inlined_call_operand.vmem [shape: f32[1,128], index: 2, kind: input, shape index: {}]
  %s3 = inlined_call_operand.vmem [shape: f32[256,128], index: 3, kind: output, shape index: {}]
  %s4 = sld [smem:[#allocation0]]
  $region22: #{_lambda_.25} parent=0
    _
  %s6 = ssub.s32 1, %s4
  %s7 = scalar_select 0, %s6, %s4
  // Predicated region
  $region2: #{_lambda_.25} parent=0 // pred_check
    _
  $region3: #{_lambda_.25} parent=0 // pred_check_branch
    %9 = sbr.rel (0) target = $region5
  $region4: #{_lambda_.25} parent=0 // pred_region
    _
  $region5: #{_lambda_.25} parent=0 // pred_fallthru
    _
  // Predicated region
  $region6: #{_lambda_.25} parent=0 // pred_check
    _
  $region7: #{_lambda_.25} parent=0 // pred_check_branch
    %11 = sbr.rel (0) target = $region9
  $region8: #{_lambda_.25} parent=0 // pred_region
    _
  $region9: #{_lambda_.25} parent=0 // pred_fallthru
    _
  // Predicated region
  $region10: #{_lambda_.25} parent=0 // pred_check
    _
  $region11: #{_lambda_.25} parent=0 // pred_check_branch
    %13 = sbr.rel (0) target = $region13
  $region12: #{_lambda_.25} parent=0 // pred_region
    _
  $region13: #{_lambda_.25} parent=0 // pred_fallthru
    _
  %v15 = vld [vmem:[%s0] sm:$0xf]
  %v16 = vld [vmem:[%s0 + $0x4] sm:$0xf]
  %v17 = vld [vmem:[%s0 + $0x8] sm:$0xf]
  %v18 = vld [vmem:[%s0 + $0xc] sm:$0xf]
  %v19 = vld [vmem:[%s0 + $0x10] sm:$0xf]
  %v20 = vld [vmem:[%s0 + $0x14] sm:$0xf]
  %v21 = vld [vmem:[%s0 + $0x18] sm:$0xf]
  %v22 = vld [vmem:[%s0 + $0x1c] sm:$0xf]
  %v23 = vld [vmem:[%s0 + $0x20] sm:$0xf]
  %v24 = vld [vmem:[%s0 + $0x24] sm:$0xf]
  %v25 = vld [vmem:[%s0 + $0x28] sm:$0xf]
  %v26 = vld [vmem:[%s0 + $0x2c] sm:$0xf]
  %v27 = vld [vmem:[%s0 + $0x30] sm:$0xf]
  %v28 = vld [vmem:[%s0 + $0x34] sm:$0xf]
  %v29 = vld [vmem:[%s0 + $0x38] sm:$0xf]
  %v30 = vld [vmem:[%s0 + $0x3c] sm:$0xf]
  %v31 = vld [vmem:[%s0 + $0x40] sm:$0xf]
  %v32 = vld [vmem:[%s0 + $0x44] sm:$0xf]
  %v33 = vld [vmem:[%s0 + $0x48] sm:$0xf]
  %v34 = vld [vmem:[%s0 + $0x4c] sm:$0xf]
  %v35 = vld [vmem:[%s0 + $0x50] sm:$0xf]
  %v36 = vld [vmem:[%s0 + $0x54] sm:$0xf]
  %v37 = vld [vmem:[%s0 + $0x58] sm:$0xf]
  %v38 = vld [vmem:[%s0 + $0x5c] sm:$0xf]
  %v39 = vld [vmem:[%s0 + $0x60] sm:$0xf]
  %v40 = vld [vmem:[%s0 + $0x64] sm:$0xf]
  %v41 = vld [vmem:[%s0 + $0x68] sm:$0xf]
  %v42 = vld [vmem:[%s0 + $0x6c] sm:$0xf]
  %v43 = vld [vmem:[%s0 + $0x70] sm:$0xf]
  %v44 = vld [vmem:[%s0 + $0x74] sm:$0xf]
  %v45 = vld [vmem:[%s0 + $0x78] sm:$0xf]
  %v46 = vld [vmem:[%s0 + $0x7c] sm:$0xf]
  %v47 = vld [vmem:[%s1] sm:$0xf]
  %v48 = vld [vmem:[%s1 + $0x4] sm:$0xf]
  %v49 = vld [vmem:[%s2] sm:$0x1]
  %v51 = vperm.slane %v49, 0
  %v85 = vunpack.c.l.b16 %v15
  %v86 = vunpack.c.l.b16 %v16
  %v87 = vunpack.c.l.b16 %v17
  %v88 = vunpack.c.l.b16 %v18
  %v89 = vunpack.c.l.b16 %v19
  %v90 = vunpack.c.l.b16 %v20
  %v91 = vunpack.c.l.b16 %v21
  %v92 = vunpack.c.l.b16 %v22
  %v93 = vunpack.c.l.b16 %v23
  %v94 = vunpack.c.l.b16 %v24
  %v95 = vunpack.c.l.b16 %v25
  %v96 = vunpack.c.l.b16 %v26
  %v97 = vunpack.c.l.b16 %v27
  %v98 = vunpack.c.l.b16 %v28
  %v99 = vunpack.c.l.b16 %v29
  %v100 = vunpack.c.l.b16 %v30
  %v101 = vunpack.c.l.b16 %v31
  %v102 = vunpack.c.l.b16 %v32
  %v103 = vunpack.c.l.b16 %v33
  %v104 = vunpack.c.l.b16 %v34
  %v105 = vunpack.c.l.b16 %v35
  %v106 = vunpack.c.l.b16 %v36
  %v107 = vunpack.c.l.b16 %v37
  %v108 = vunpack.c.l.b16 %v38
  %v109 = vunpack.c.l.b16 %v39
  %v110 = vunpack.c.l.b16 %v40
  %v111 = vunpack.c.l.b16 %v41
  %v112 = vunpack.c.l.b16 %v42
  %v113 = vunpack.c.l.b16 %v43
  %v114 = vunpack.c.l.b16 %v44
  %v115 = vunpack.c.l.b16 %v45
  %v116 = vunpack.c.l.b16 %v46
  %v117 = vpack.c.b16 %v86, %v85
  %v118 = vpack.c.b16 %v88, %v87
  %v119 = vpack.c.b16 %v90, %v89
  %v120 = vpack.c.b16 %v92, %v91
  %v121 = vpack.c.b16 %v94, %v93
  %v122 = vpack.c.b16 %v96, %v95
  %v123 = vpack.c.b16 %v98, %v97
  %v124 = vpack.c.b16 %v100, %v99
  %v125 = vpack.c.b16 %v102, %v101
  %v126 = vpack.c.b16 %v104, %v103
  %v127 = vpack.c.b16 %v106, %v105
  %v128 = vpack.c.b16 %v108, %v107
  %v129 = vpack.c.b16 %v110, %v109
  %v130 = vpack.c.b16 %v112, %v111
  %v131 = vpack.c.b16 %v114, %v113
  %v132 = vpack.c.b16 %v116, %v115
  %v135 = vunpack.c.l.b16 %v47
  %v136 = vunpack.c.l.b16 %v48
  %v137 = vpack.c.b16 %v136, %v135
  %vm139 = vcmask 130048
  %v141 = vsel %vm139, %v117, 0
  %v144 = vsel %vm139, %v118, 0
  %v147 = vsel %vm139, %v119, 0
  %v150 = vsel %vm139, %v120, 0
  %v153 = vsel %vm139, %v121, 0
  %v156 = vsel %vm139, %v122, 0
  %v159 = vsel %vm139, %v123, 0
  %v162 = vsel %vm139, %v124, 0
  %v165 = vsel %vm139, %v125, 0
  %v168 = vsel %vm139, %v126, 0
  %v171 = vsel %vm139, %v127, 0
  %v174 = vsel %vm139, %v128, 0
  %v177 = vsel %vm139, %v129, 0
  %v180 = vsel %vm139, %v130, 0
  %v183 = vsel %vm139, %v131, 0
  %v186 = vsel %vm139, %v132, 0
  %188 = vmatpush.bf16.msra.mxu0 0
  %189 = vmatpush.bf16.msra.mxu0 0
  %190 = vmatpush.bf16.msra.mxu0 0
  %191 = vmatpush.bf16.msra.mxu0 0
  %192 = vmatpush.bf16.msra.mxu0 0
  %193 = vmatpush.bf16.msra.mxu0 0
  %194 = vmatpush.bf16.msra.mxu0 0
  %195 = vmatpush.bf16.msra.mxu0 %v137
  %196 = vmatmul.bf16.gmra.mxu0 %v141
  %v197 = vpop.f32.mrf.mxu0
  %v198 = vadd.f32 %v51, %v197
  %v199 = vpop.f32.mrf.mxu0
  %v200 = vadd.f32 %v51, %v199
  %201 = vmatmul.bf16.gmra.mxu0 %v144
  %v202 = vpop.f32.mrf.mxu0
  %v203 = vadd.f32 %v51, %v202
  %v204 = vpop.f32.mrf.mxu0
  %v205 = vadd.f32 %v51, %v204
  %206 = vmatmul.bf16.gmra.mxu0 %v147
  %v207 = vpop.f32.mrf.mxu0
  %v208 = vadd.f32 %v51, %v207
  %v209 = vpop.f32.mrf.mxu0
  %v210 = vadd.f32 %v51, %v209
  %211 = vmatmul.bf16.gmra.mxu0 %v150
  %v212 = vpop.f32.mrf.mxu0
  %v213 = vadd.f32 %v51, %v212
  %v214 = vpop.f32.mrf.mxu0
  %v215 = vadd.f32 %v51, %v214
  %216 = vmatmul.bf16.gmra.mxu0 %v153
  %v217 = vpop.f32.mrf.mxu0
  %v218 = vadd.f32 %v51, %v217
  %v219 = vpop.f32.mrf.mxu0
  %v220 = vadd.f32 %v51, %v219
  %221 = vmatmul.bf16.gmra.mxu0 %v156
  %v222 = vpop.f32.mrf.mxu0
  %v223 = vadd.f32 %v51, %v222
  %v224 = vpop.f32.mrf.mxu0
  %v225 = vadd.f32 %v51, %v224
  %226 = vmatmul.bf16.gmra.mxu0 %v159
  %v227 = vpop.f32.mrf.mxu0
  %v228 = vadd.f32 %v51, %v227
  %v229 = vpop.f32.mrf.mxu0
  %v230 = vadd.f32 %v51, %v229
  %231 = vmatmul.bf16.gmra.mxu0 %v162
  %v232 = vpop.f32.mrf.mxu0
  %v233 = vadd.f32 %v51, %v232
  %v234 = vpop.f32.mrf.mxu0
  %v235 = vadd.f32 %v51, %v234
  %236 = vmatmul.bf16.gmra.mxu0 %v165
  %v237 = vpop.f32.mrf.mxu0
  %v238 = vadd.f32 %v51, %v237
  %v239 = vpop.f32.mrf.mxu0
  %v240 = vadd.f32 %v51, %v239
  %241 = vmatmul.bf16.gmra.mxu0 %v168
  %v242 = vpop.f32.mrf.mxu0
  %v243 = vadd.f32 %v51, %v242
  %v244 = vpop.f32.mrf.mxu0
  %v245 = vadd.f32 %v51, %v244
  %246 = vmatmul.bf16.gmra.mxu0 %v171
  %v247 = vpop.f32.mrf.mxu0
  %v248 = vadd.f32 %v51, %v247
  %v249 = vpop.f32.mrf.mxu0
  %v250 = vadd.f32 %v51, %v249
  %251 = vmatmul.bf16.gmra.mxu0 %v174
  %v252 = vpop.f32.mrf.mxu0
  %v253 = vadd.f32 %v51, %v252
  %v254 = vpop.f32.mrf.mxu0
  %v255 = vadd.f32 %v51, %v254
  %256 = vmatmul.bf16.gmra.mxu0 %v177
  %v257 = vpop.f32.mrf.mxu0
  %v258 = vadd.f32 %v51, %v257
  %v259 = vpop.f32.mrf.mxu0
  %v260 = vadd.f32 %v51, %v259
  %261 = vmatmul.bf16.gmra.mxu0 %v180
  %v262 = vpop.f32.mrf.mxu0
  %v263 = vadd.f32 %v51, %v262
  %v264 = vpop.f32.mrf.mxu0
  %v265 = vadd.f32 %v51, %v264
  %266 = vmatmul.bf16.gmra.mxu0 %v183
  %v267 = vpop.f32.mrf.mxu0
  %v268 = vadd.f32 %v51, %v267
  %v269 = vpop.f32.mrf.mxu0
  %v270 = vadd.f32 %v51, %v269
  %271 = vmatmul.bf16.gmra.mxu0 %v186
  %v272 = vpop.f32.mrf.mxu0
  %v273 = vadd.f32 %v51, %v272
  %v274 = vpop.f32.mrf.mxu0
  %v275 = vadd.f32 %v51, %v274
  %276 = vdwg.mxu0
  %277 = vst [vmem:[%s3] sm:$0xff] %v198
  %278 = vst [vmem:[%s3 + $0x8] sm:$0xff] %v200
  %279 = vst [vmem:[%s3 + $0x10] sm:$0xff] %v203
  %280 = vst [vmem:[%s3 + $0x18] sm:$0xff] %v205
  %281 = vst [vmem:[%s3 + $0x20] sm:$0xff] %v208
  %282 = vst [vmem:[%s3 + $0x28] sm:$0xff] %v210
  %283 = vst [vmem:[%s3 + $0x30] sm:$0xff] %v213
  %284 = vst [vmem:[%s3 + $0x38] sm:$0xff] %v215
  %285 = vst [vmem:[%s3 + $0x40] sm:$0xff] %v218
  %286 = vst [vmem:[%s3 + $0x48] sm:$0xff] %v220
  %287 = vst [vmem:[%s3 + $0x50] sm:$0xff] %v223
  %288 = vst [vmem:[%s3 + $0x58] sm:$0xff] %v225
  %289 = vst [vmem:[%s3 + $0x60] sm:$0xff] %v228
  %290 = vst [vmem:[%s3 + $0x68] sm:$0xff] %v230
  %291 = vst [vmem:[%s3 + $0x70] sm:$0xff] %v233
  %292 = vst [vmem:[%s3 + $0x78] sm:$0xff] %v235
  %293 = vst [vmem:[%s3 + $0x80] sm:$0xff] %v238
  %294 = vst [vmem:[%s3 + $0x88] sm:$0xff] %v240
  %295 = vst [vmem:[%s3 + $0x90] sm:$0xff] %v243
  %296 = vst [vmem:[%s3 + $0x98] sm:$0xff] %v245
  %297 = vst [vmem:[%s3 + $0xa0] sm:$0xff] %v248
  %298 = vst [vmem:[%s3 + $0xa8] sm:$0xff] %v250
  %299 = vst [vmem:[%s3 + $0xb0] sm:$0xff] %v253
  %300 = vst [vmem:[%s3 + $0xb8] sm:$0xff] %v255
  %301 = vst [vmem:[%s3 + $0xc0] sm:$0xff] %v258
  %302 = vst [vmem:[%s3 + $0xc8] sm:$0xff] %v260
  %303 = vst [vmem:[%s3 + $0xd0] sm:$0xff] %v263
  %304 = vst [vmem:[%s3 + $0xd8] sm:$0xff] %v265
  %305 = vst [vmem:[%s3 + $0xe0] sm:$0xff] %v268
  %306 = vst [vmem:[%s3 + $0xe8] sm:$0xff] %v270
  %307 = vst [vmem:[%s3 + $0xf0] sm:$0xff] %v273
  %308 = vst [vmem:[%s3 + $0xf8] sm:$0xff] %v275
  // Predicated region
  $region14: #{_lambda_.25} parent=0 // pred_check
    _
  $region15: #{_lambda_.25} parent=0 // pred_check_branch
    %310 = sbr.rel (0) target = $region17
  $region16: #{_lambda_.25} parent=0 // pred_region
    _
  $region17: #{_lambda_.25} parent=0 // pred_fallthru
    _
  // Predicated region
  $region18: #{_lambda_.25} parent=0 // pred_check
    _
  $region19: #{_lambda_.25} parent=0 // pred_check_branch
    %312 = sbr.rel (0) target = $region21
  $region20: #{_lambda_.25} parent=0 // pred_region
    _
  $region21: #{_lambda_.25} parent=0 // pred_fallthru
    _

// kernel: _lambda_.27
$region0: #{_lambda_.27}
  #allocation0 [shape = 'u32[]', space=smem, size = 0x4, offset = 0x4, fixed_abs, tag = 'smem constant byte address 0x4 - core index']
  #allocation1 [shape = 'u32[72,128]{1,0:T(1,128)}', space=vmem, size = 0x9000, scoped, tag = 'internal scratch']
  %s0 = inlined_call_operand.vmem [shape: bf16[128,32], index: 0, kind: input, shape index: {}]
  %s1 = inlined_call_operand.vmem [shape: bf16[32,128], index: 1, kind: input, shape index: {}]
  %s2 = inlined_call_operand.vmem [shape: f32[1,128], index: 2, kind: input, shape index: {}]
  %s3 = inlined_call_operand.vmem [shape: f32[128,128], index: 3, kind: output, shape index: {}]
  %s4 = sld [smem:[#allocation0]]
  $region22: #{_lambda_.27} parent=0
    _
  %s6 = ssub.s32 1, %s4
  %s7 = scalar_select 0, %s6, %s4
  // Predicated region
  $region2: #{_lambda_.27} parent=0 // pred_check
    _
  $region3: #{_lambda_.27} parent=0 // pred_check_branch
    %9 = sbr.rel (0) target = $region5
  $region4: #{_lambda_.27} parent=0 // pred_region
    _
  $region5: #{_lambda_.27} parent=0 // pred_fallthru
    _
  // Predicated region
  $region6: #{_lambda_.27} parent=0 // pred_check
    _
  $region7: #{_lambda_.27} parent=0 // pred_check_branch
    %11 = sbr.rel (0) target = $region9
  $region8: #{_lambda_.27} parent=0 // pred_region
    _
  $region9: #{_lambda_.27} parent=0 // pred_fallthru
    _
  // Predicated region
  $region10: #{_lambda_.27} parent=0 // pred_check
    _
  $region11: #{_lambda_.27} parent=0 // pred_check_branch
    %13 = sbr.rel (0) target = $region13
  $region12: #{_lambda_.27} parent=0 // pred_region
    _
  $region13: #{_lambda_.27} parent=0 // pred_fallthru
    _
  %v15 = vld [vmem:[%s0] sm:$0xf]
  %v16 = vld [vmem:[%s0 + $0x4] sm:$0xf]
  %v17 = vld [vmem:[%s0 + $0x8] sm:$0xf]
  %v18 = vld [vmem:[%s0 + $0xc] sm:$0xf]
  %v19 = vld [vmem:[%s0 + $0x10] sm:$0xf]
  %v20 = vld [vmem:[%s0 + $0x14] sm:$0xf]
  %v21 = vld [vmem:[%s0 + $0x18] sm:$0xf]
  %v22 = vld [vmem:[%s0 + $0x1c] sm:$0xf]
  %v23 = vld [vmem:[%s0 + $0x20] sm:$0xf]
  %v24 = vld [vmem:[%s0 + $0x24] sm:$0xf]
  %v25 = vld [vmem:[%s0 + $0x28] sm:$0xf]
  %v26 = vld [vmem:[%s0 + $0x2c] sm:$0xf]
  %v27 = vld [vmem:[%s0 + $0x30] sm:$0xf]
  %v28 = vld [vmem:[%s0 + $0x34] sm:$0xf]
  %v29 = vld [vmem:[%s0 + $0x38] sm:$0xf]
  %v30 = vld [vmem:[%s0 + $0x3c] sm:$0xf]
  %v31 = vld [vmem:[%s1] sm:$0xf]
  %v32 = vld [vmem:[%s1 + $0x4] sm:$0xf]
  %v33 = vld [vmem:[%s1 + $0x8] sm:$0xf]
  %v34 = vld [vmem:[%s1 + $0xc] sm:$0xf]
  %v35 = vld [vmem:[%s2] sm:$0x1]
  %v37 = vperm.slane %v35, 0
  %v55 = vunpack.c.l.b16 %v15
  %v56 = vunpack.c.l.b16 %v16
  %v57 = vunpack.c.l.b16 %v17
  %v58 = vunpack.c.l.b16 %v18
  %v59 = vunpack.c.l.b16 %v19
  %v60 = vunpack.c.l.b16 %v20
  %v61 = vunpack.c.l.b16 %v21
  %v62 = vunpack.c.l.b16 %v22
  %v63 = vunpack.c.l.b16 %v23
  %v64 = vunpack.c.l.b16 %v24
  %v65 = vunpack.c.l.b16 %v25
  %v66 = vunpack.c.l.b16 %v26
  %v67 = vunpack.c.l.b16 %v27
  %v68 = vunpack.c.l.b16 %v28
  %v69 = vunpack.c.l.b16 %v29
  %v70 = vunpack.c.l.b16 %v30
  %v71 = vpack.c.b16 %v56, %v55
  %v72 = vpack.c.b16 %v58, %v57
  %v73 = vpack.c.b16 %v60, %v59
  %v74 = vpack.c.b16 %v62, %v61
  %v75 = vpack.c.b16 %v64, %v63
  %v76 = vpack.c.b16 %v66, %v65
  %v77 = vpack.c.b16 %v68, %v67
  %v78 = vpack.c.b16 %v70, %v69
  %v83 = vunpack.c.l.b16 %v31
  %v84 = vunpack.c.l.b16 %v32
  %v85 = vunpack.c.l.b16 %v33
  %v86 = vunpack.c.l.b16 %v34
  %v87 = vpack.c.b16 %v84, %v83
  %v88 = vpack.c.b16 %v86, %v85
  %vm91 = vcmask 261120
  %v93 = vsel %vm91, %v71, 0
  %v96 = vsel %vm91, %v72, 0
  %v99 = vsel %vm91, %v73, 0
  %v102 = vsel %vm91, %v74, 0
  %v105 = vsel %vm91, %v75, 0
  %v108 = vsel %vm91, %v76, 0
  %v111 = vsel %vm91, %v77, 0
  %v114 = vsel %vm91, %v78, 0
  %116 = vmatpush.bf16.msra.mxu0 0
  %117 = vmatpush.bf16.msra.mxu0 0
  %118 = vmatpush.bf16.msra.mxu0 0
  %119 = vmatpush.bf16.msra.mxu0 0
  %120 = vmatpush.bf16.msra.mxu0 0
  %121 = vmatpush.bf16.msra.mxu0 0
  %122 = vmatpush.bf16.msra.mxu0 %v88
  %123 = vmatpush.bf16.msra.mxu0 %v87
  %124 = vmatmul.bf16.gmra.mxu0 %v93
  %v125 = vpop.f32.mrf.mxu0
  %v126 = vadd.f32 %v37, %v125
  %v127 = vpop.f32.mrf.mxu0
  %v128 = vadd.f32 %v37, %v127
  %129 = vmatmul.bf16.gmra.mxu0 %v96
  %v130 = vpop.f32.mrf.mxu0
  %v131 = vadd.f32 %v37, %v130
  %v132 = vpop.f32.mrf.mxu0
  %v133 = vadd.f32 %v37, %v132
  %134 = vmatmul.bf16.gmra.mxu0 %v99
  %v135 = vpop.f32.mrf.mxu0
  %v136 = vadd.f32 %v37, %v135
  %v137 = vpop.f32.mrf.mxu0
  %v138 = vadd.f32 %v37, %v137
  %139 = vmatmul.bf16.gmra.mxu0 %v102
  %v140 = vpop.f32.mrf.mxu0
  %v141 = vadd.f32 %v37, %v140
  %v142 = vpop.f32.mrf.mxu0
  %v143 = vadd.f32 %v37, %v142
  %144 = vmatmul.bf16.gmra.mxu0 %v105
  %v145 = vpop.f32.mrf.mxu0
  %v146 = vadd.f32 %v37, %v145
  %v147 = vpop.f32.mrf.mxu0
  %v148 = vadd.f32 %v37, %v147
  %149 = vmatmul.bf16.gmra.mxu0 %v108
  %v150 = vpop.f32.mrf.mxu0
  %v151 = vadd.f32 %v37, %v150
  %v152 = vpop.f32.mrf.mxu0
  %v153 = vadd.f32 %v37, %v152
  %154 = vmatmul.bf16.gmra.mxu0 %v111
  %v155 = vpop.f32.mrf.mxu0
  %v156 = vadd.f32 %v37, %v155
  %v157 = vpop.f32.mrf.mxu0
  %v158 = vadd.f32 %v37, %v157
  %159 = vmatmul.bf16.gmra.mxu0 %v114
  %v160 = vpop.f32.mrf.mxu0
  %v161 = vadd.f32 %v37, %v160
  %v162 = vpop.f32.mrf.mxu0
  %v163 = vadd.f32 %v37, %v162
  %164 = vdwg.mxu0
  %v165 = vmax.f32 %v126, 0.0
  %v166 = vmax.f32 %v128, 0.0
  %v167 = vmax.f32 %v131, 0.0
  %v168 = vmax.f32 %v133, 0.0
  %v169 = vmax.f32 %v136, 0.0
  %v170 = vmax.f32 %v138, 0.0
  %v171 = vmax.f32 %v141, 0.0
  %v172 = vmax.f32 %v143, 0.0
  %v173 = vmax.f32 %v146, 0.0
  %v174 = vmax.f32 %v148, 0.0
  %v175 = vmax.f32 %v151, 0.0
  %v176 = vmax.f32 %v153, 0.0
  %v177 = vmax.f32 %v156, 0.0
  %v178 = vmax.f32 %v158, 0.0
  %v179 = vmax.f32 %v161, 0.0
  %v180 = vmax.f32 %v163, 0.0
  %181 = vst [vmem:[%s3] sm:$0xff] %v165
  %182 = vst [vmem:[%s3 + $0x8] sm:$0xff] %v166
  %183 = vst [vmem:[%s3 + $0x10] sm:$0xff] %v167
  %184 = vst [vmem:[%s3 + $0x18] sm:$0xff] %v168
  %185 = vst [vmem:[%s3 + $0x20] sm:$0xff] %v169
  %186 = vst [vmem:[%s3 + $0x28] sm:$0xff] %v170
  %187 = vst [vmem:[%s3 + $0x30] sm:$0xff] %v171
  %188 = vst [vmem:[%s3 + $0x38] sm:$0xff] %v172
  %189 = vst [vmem:[%s3 + $0x40] sm:$0xff] %v173
  %190 = vst [vmem:[%s3 + $0x48] sm:$0xff] %v174
  %191 = vst [vmem:[%s3 + $0x50] sm:$0xff] %v175
  %192 = vst [vmem:[%s3 + $0x58] sm:$0xff] %v176
  %193 = vst [vmem:[%s3 + $0x60] sm:$0xff] %v177
  %194 = vst [vmem:[%s3 + $0x68] sm:$0xff] %v178
  %195 = vst [vmem:[%s3 + $0x70] sm:$0xff] %v179
  %196 = vst [vmem:[%s3 + $0x78] sm:$0xff] %v180
  // Predicated region
  $region14: #{_lambda_.27} parent=0 // pred_check
    _
  $region15: #{_lambda_.27} parent=0 // pred_check_branch
    %198 = sbr.rel (0) target = $region17
  $region16: #{_lambda_.27} parent=0 // pred_region
    _
  $region17: #{_lambda_.27} parent=0 // pred_fallthru
    _
  // Predicated region
  $region18: #{_lambda_.27} parent=0 // pred_check
    _
  $region19: #{_lambda_.27} parent=0 // pred_check_branch
    %200 = sbr.rel (0) target = $region21
  $region20: #{_lambda_.27} parent=0 // pred_region
    _
  $region21: #{_lambda_.27} parent=0 // pred_fallthru
    _

// kernel: _lambda_.26
$region0: #{_lambda_.26}
  #allocation0 [shape = 'u32[]', space=smem, size = 0x4, offset = 0x4, fixed_abs, tag = 'smem constant byte address 0x4 - core index']
  #allocation1 [shape = 'u32[72,128]{1,0:T(1,128)}', space=vmem, size = 0x9000, scoped, tag = 'internal scratch']
  %s0 = inlined_call_operand.vmem [shape: bf16[256,288], index: 0, kind: input, shape index: {}]
  %s1 = inlined_call_operand.vmem [shape: bf16[288,128], index: 1, kind: input, shape index: {}]
  %s2 = inlined_call_operand.vmem [shape: f32[1,128], index: 2, kind: input, shape index: {}]
  %s3 = inlined_call_operand.vmem [shape: f32[256,128], index: 3, kind: input, shape index: {}]
  %s4 = inlined_call_operand.vmem [shape: f32[256,128], index: 4, kind: output, shape index: {}]
  %s5 = sld [smem:[#allocation0]]
  $region26: #{_lambda_.26} parent=0
    _
  %s7 = ssub.s32 1, %s5
  %s8 = scalar_select 0, %s7, %s5
  // Predicated region
  $region2: #{_lambda_.26} parent=0 // pred_check
    _
  $region3: #{_lambda_.26} parent=0 // pred_check_branch
    %10 = sbr.rel (0) target = $region5
  $region4: #{_lambda_.26} parent=0 // pred_region
    _
  $region5: #{_lambda_.26} parent=0 // pred_fallthru
    _
  // Predicated region
  $region6: #{_lambda_.26} parent=0 // pred_check
    _
  $region7: #{_lambda_.26} parent=0 // pred_check_branch
    %12 = sbr.rel (0) target = $region9
  $region8: #{_lambda_.26} parent=0 // pred_region
    _
  $region9: #{_lambda_.26} parent=0 // pred_fallthru
    _
  // Predicated region
  $region10: #{_lambda_.26} parent=0 // pred_check
    _
  $region11: #{_lambda_.26} parent=0 // pred_check_branch
    %14 = sbr.rel (0) target = $region13
  $region12: #{_lambda_.26} parent=0 // pred_region
    _
  $region13: #{_lambda_.26} parent=0 // pred_fallthru
    _
  // Predicated region
  $region14: #{_lambda_.26} parent=0 // pred_check
    _
  $region15: #{_lambda_.26} parent=0 // pred_check_branch
    %16 = sbr.rel (0) target = $region17
  $region16: #{_lambda_.26} parent=0 // pred_region
    _
  $region17: #{_lambda_.26} parent=0 // pred_fallthru
    _
  %v18 = vld [vmem:[%s0] sm:$0xff]
  %v19 = vld [vmem:[%s0 + $0x8] sm:$0xf]
  %v20 = vld [vmem:[%s0 + $0xc] sm:$0xff]
  %v21 = vld [vmem:[%s0 + $0x14] sm:$0xf]
  %v22 = vld [vmem:[%s0 + $0x18] sm:$0xff]
  %v23 = vld [vmem:[%s0 + $0x20] sm:$0xf]
  %v24 = vld [vmem:[%s0 + $0x24] sm:$0xff]
  %v25 = vld [vmem:[%s0 + $0x2c] sm:$0xf]
  %v26 = vld [vmem:[%s0 + $0x30] sm:$0xff]
  %v27 = vld [vmem:[%s0 + $0x38] sm:$0xf]
  %v28 = vld [vmem:[%s0 + $0x3c] sm:$0xff]
  %v29 = vld [vmem:[%s0 + $0x44] sm:$0xf]
  %v30 = vld [vmem:[%s0 + $0x48] sm:$0xff]
  %v31 = vld [vmem:[%s0 + $0x50] sm:$0xf]
  %v32 = vld [vmem:[%s0 + $0x54] sm:$0xff]
  %v33 = vld [vmem:[%s0 + $0x5c] sm:$0xf]
  %v34 = vld [vmem:[%s0 + $0x60] sm:$0xff]
  %v35 = vld [vmem:[%s0 + $0x68] sm:$0xf]
  %v36 = vld [vmem:[%s0 + $0x6c] sm:$0xff]
  %v37 = vld [vmem:[%s0 + $0x74] sm:$0xf]
  %v38 = vld [vmem:[%s0 + $0x78] sm:$0xff]
  %v39 = vld [vmem:[%s0 + $0x80] sm:$0xf]
  %v40 = vld [vmem:[%s0 + $0x84] sm:$0xff]
  %v41 = vld [vmem:[%s0 + $0x8c] sm:$0xf]
  %v42 = vld [vmem:[%s0 + $0x90] sm:$0xff]
  %v43 = vld [vmem:[%s0 + $0x98] sm:$0xf]
  %v44 = vld [vmem:[%s0 + $0x9c] sm:$0xff]
  %v45 = vld [vmem:[%s0 + $0xa4] sm:$0xf]
  %v46 = vld [vmem:[%s0 + $0xa8] sm:$0xff]
  %v47 = vld [vmem:[%s0 + $0xb0] sm:$0xf]
  %v48 = vld [vmem:[%s0 + $0xb4] sm:$0xff]
  %v49 = vld [vmem:[%s0 + $0xbc] sm:$0xf]
  %v50 = vld [vmem:[%s0 + $0xc0] sm:$0xff]
  %v51 = vld [vmem:[%s0 + $0xc8] sm:$0xf]
  %v52 = vld [vmem:[%s0 + $0xcc] sm:$0xff]
  %v53 = vld [vmem:[%s0 + $0xd4] sm:$0xf]
  %v54 = vld [vmem:[%s0 + $0xd8] sm:$0xff]
  %v55 = vld [vmem:[%s0 + $0xe0] sm:$0xf]
  %v56 = vld [vmem:[%s0 + $0xe4] sm:$0xff]
  %v57 = vld [vmem:[%s0 + $0xec] sm:$0xf]
  %v58 = vld [vmem:[%s0 + $0xf0] sm:$0xff]
  %v59 = vld [vmem:[%s0 + $0xf8] sm:$0xf]
  %v60 = vld [vmem:[%s0 + $0xfc] sm:$0xff]
  %v61 = vld [vmem:[%s0 + $0x104] sm:$0xf]
  %v62 = vld [vmem:[%s0 + $0x108] sm:$0xff]
  %v63 = vld [vmem:[%s0 + $0x110] sm:$0xf]
  %v64 = vld [vmem:[%s0 + $0x114] sm:$0xff]
  %v65 = vld [vmem:[%s0 + $0x11c] sm:$0xf]
  %v66 = vld [vmem:[%s0 + $0x120] sm:$0xff]
  %v67 = vld [vmem:[%s0 + $0x128] sm:$0xf]
  %v68 = vld [vmem:[%s0 + $0x12c] sm:$0xff]
  %v69 = vld [vmem:[%s0 + $0x134] sm:$0xf]
  %v70 = vld [vmem:[%s0 + $0x138] sm:$0xff]
  %v71 = vld [vmem:[%s0 + $0x140] sm:$0xf]
  %v72 = vld [vmem:[%s0 + $0x144] sm:$0xff]
  %v73 = vld [vmem:[%s0 + $0x14c] sm:$0xf]
  %v74 = vld [vmem:[%s0 + $0x150] sm:$0xff]
  %v75 = vld [vmem:[%s0 + $0x158] sm:$0xf]
  %v76 = vld [vmem:[%s0 + $0x15c] sm:$0xff]
  %v77 = vld [vmem:[%s0 + $0x164] sm:$0xf]
  %v78 = vld [vmem:[%s0 + $0x168] sm:$0xff]
  %v79 = vld [vmem:[%s0 + $0x170] sm:$0xf]
  %v80 = vld [vmem:[%s0 + $0x174] sm:$0xff]
  %v81 = vld [vmem:[%s0 + $0x17c] sm:$0xf]
  %v82 = vld [vmem:[%s1] sm:$0xf]
  %v83 = vld [vmem:[%s1 + $0x4] sm:$0xf]
  %v84 = vld [vmem:[%s1 + $0x8] sm:$0xf]
  %v85 = vld [vmem:[%s1 + $0xc] sm:$0xf]
  %v86 = vld [vmem:[%s1 + $0x10] sm:$0xf]
  %v87 = vld [vmem:[%s1 + $0x14] sm:$0xf]
  %v88 = vld [vmem:[%s1 + $0x18] sm:$0xf]
  %v89 = vld [vmem:[%s1 + $0x1c] sm:$0xf]
  %v90 = vld [vmem:[%s1 + $0x20] sm:$0xf]
  %v91 = vld [vmem:[%s1 + $0x24] sm:$0xf]
  %v92 = vld [vmem:[%s1 + $0x28] sm:$0xf]
  %v93 = vld [vmem:[%s1 + $0x2c] sm:$0xf]
  %v94 = vld [vmem:[%s1 + $0x30] sm:$0xf]
  %v95 = vld [vmem:[%s1 + $0x34] sm:$0xf]
  %v96 = vld [vmem:[%s1 + $0x38] sm:$0xf]
  %v97 = vld [vmem:[%s1 + $0x3c] sm:$0xf]
  %v98 = vld [vmem:[%s1 + $0x40] sm:$0xf]
  %v99 = vld [vmem:[%s1 + $0x44] sm:$0xf]
  %v100 = vld [vmem:[%s1 + $0x48] sm:$0xf]
  %v101 = vld [vmem:[%s1 + $0x4c] sm:$0xf]
  %v102 = vld [vmem:[%s1 + $0x50] sm:$0xf]
  %v103 = vld [vmem:[%s1 + $0x54] sm:$0xf]
  %v104 = vld [vmem:[%s1 + $0x58] sm:$0xf]
  %v105 = vld [vmem:[%s1 + $0x5c] sm:$0xf]
  %v106 = vld [vmem:[%s1 + $0x60] sm:$0xf]
  %v107 = vld [vmem:[%s1 + $0x64] sm:$0xf]
  %v108 = vld [vmem:[%s1 + $0x68] sm:$0xf]
  %v109 = vld [vmem:[%s1 + $0x6c] sm:$0xf]
  %v110 = vld [vmem:[%s1 + $0x70] sm:$0xf]
  %v111 = vld [vmem:[%s1 + $0x74] sm:$0xf]
  %v112 = vld [vmem:[%s1 + $0x78] sm:$0xf]
  %v113 = vld [vmem:[%s1 + $0x7c] sm:$0xf]
  %v114 = vld [vmem:[%s1 + $0x80] sm:$0xf]
  %v115 = vld [vmem:[%s1 + $0x84] sm:$0xf]
  %v116 = vld [vmem:[%s1 + $0x88] sm:$0xf]
  %v117 = vld [vmem:[%s1 + $0x8c] sm:$0xf]
  %v118 = vld [vmem:[%s2] sm:$0x1]
  %v120 = vperm.slane %v118, 0
  %v186 = vunpack.c.l.b16 %v18
  %v187 = vunpack.c.h.b16 %v18
  %v188 = vunpack.c.l.b16 %v19
  %v189 = vunpack.c.l.b16 %v20
  %v190 = vunpack.c.h.b16 %v20
  %v191 = vunpack.c.l.b16 %v21
  %v192 = vunpack.c.l.b16 %v22
  %v193 = vunpack.c.h.b16 %v22
  %v194 = vunpack.c.l.b16 %v23
  %v195 = vunpack.c.l.b16 %v24
  %v196 = vunpack.c.h.b16 %v24
  %v197 = vunpack.c.l.b16 %v25
  %v198 = vunpack.c.l.b16 %v26
  %v199 = vunpack.c.h.b16 %v26
  %v200 = vunpack.c.l.b16 %v27
  %v201 = vunpack.c.l.b16 %v28
  %v202 = vunpack.c.h.b16 %v28
  %v203 = vunpack.c.l.b16 %v29
  %v204 = vunpack.c.l.b16 %v30
  %v205 = vunpack.c.h.b16 %v30
  %v206 = vunpack.c.l.b16 %v31
  %v207 = vunpack.c.l.b16 %v32
  %v208 = vunpack.c.h.b16 %v32
  %v209 = vunpack.c.l.b16 %v33
  %v210 = vunpack.c.l.b16 %v34
  %v211 = vunpack.c.h.b16 %v34
  %v212 = vunpack.c.l.b16 %v35
  %v213 = vunpack.c.l.b16 %v36
  %v214 = vunpack.c.h.b16 %v36
  %v215 = vunpack.c.l.b16 %v37
  %v216 = vunpack.c.l.b16 %v38
  %v217 = vunpack.c.h.b16 %v38
  %v218 = vunpack.c.l.b16 %v39
  %v219 = vunpack.c.l.b16 %v40
  %v220 = vunpack.c.h.b16 %v40
  %v221 = vunpack.c.l.b16 %v41
  %v222 = vunpack.c.l.b16 %v42
  %v223 = vunpack.c.h.b16 %v42
  %v224 = vunpack.c.l.b16 %v43
  %v225 = vunpack.c.l.b16 %v44
  %v226 = vunpack.c.h.b16 %v44
  %v227 = vunpack.c.l.b16 %v45
  %v228 = vunpack.c.l.b16 %v46
  %v229 = vunpack.c.h.b16 %v46
  %v230 = vunpack.c.l.b16 %v47
  %v231 = vunpack.c.l.b16 %v48
  %v232 = vunpack.c.h.b16 %v48
  %v233 = vunpack.c.l.b16 %v49
  %v234 = vunpack.c.l.b16 %v50
  %v235 = vunpack.c.h.b16 %v50
  %v236 = vunpack.c.l.b16 %v51
  %v237 = vunpack.c.l.b16 %v52
  %v238 = vunpack.c.h.b16 %v52
  %v239 = vunpack.c.l.b16 %v53
  %v240 = vunpack.c.l.b16 %v54
  %v241 = vunpack.c.h.b16 %v54
  %v242 = vunpack.c.l.b16 %v55
  %v243 = vunpack.c.l.b16 %v56
  %v244 = vunpack.c.h.b16 %v56
  %v245 = vunpack.c.l.b16 %v57
  %v246 = vunpack.c.l.b16 %v58
  %v247 = vunpack.c.h.b16 %v58
  %v248 = vunpack.c.l.b16 %v59
  %v249 = vunpack.c.l.b16 %v60
  %v250 = vunpack.c.h.b16 %v60
  %v251 = vunpack.c.l.b16 %v61
  %v252 = vunpack.c.l.b16 %v62
  %v253 = vunpack.c.h.b16 %v62
  %v254 = vunpack.c.l.b16 %v63
  %v255 = vunpack.c.l.b16 %v64
  %v256 = vunpack.c.h.b16 %v64
  %v257 = vunpack.c.l.b16 %v65
  %v258 = vunpack.c.l.b16 %v66
  %v259 = vunpack.c.h.b16 %v66
  %v260 = vunpack.c.l.b16 %v67
  %v261 = vunpack.c.l.b16 %v68
  %v262 = vunpack.c.h.b16 %v68
  %v263 = vunpack.c.l.b16 %v69
  %v264 = vunpack.c.l.b16 %v70
  %v265 = vunpack.c.h.b16 %v70
  %v266 = vunpack.c.l.b16 %v71
  %v267 = vunpack.c.l.b16 %v72
  %v268 = vunpack.c.h.b16 %v72
  %v269 = vunpack.c.l.b16 %v73
  %v270 = vunpack.c.l.b16 %v74
  %v271 = vunpack.c.h.b16 %v74
  %v272 = vunpack.c.l.b16 %v75
  %v273 = vunpack.c.l.b16 %v76
  %v274 = vunpack.c.h.b16 %v76
  %v275 = vunpack.c.l.b16 %v77
  %v276 = vunpack.c.l.b16 %v78
  %v277 = vunpack.c.h.b16 %v78
  %v278 = vunpack.c.l.b16 %v79
  %v279 = vunpack.c.l.b16 %v80
  %v280 = vunpack.c.h.b16 %v80
  %v281 = vunpack.c.l.b16 %v81
  %v282 = vpack.c.b16 %v189, %v186
  %v283 = vpack.c.b16 %v190, %v187
  %v284 = vpack.c.b16 %v191, %v188
  %v285 = vpack.c.b16 %v195, %v192
  %v286 = vpack.c.b16 %v196, %v193
  %v287 = vpack.c.b16 %v197, %v194
  %v288 = vpack.c.b16 %v201, %v198
  %v289 = vpack.c.b16 %v202, %v199
  %v290 = vpack.c.b16 %v203, %v200
  %v291 = vpack.c.b16 %v207, %v204
  %v292 = vpack.c.b16 %v208, %v205
  %v293 = vpack.c.b16 %v209, %v206
  %v294 = vpack.c.b16 %v213, %v210
  %v295 = vpack.c.b16 %v214, %v211
  %v296 = vpack.c.b16 %v215, %v212
  %v297 = vpack.c.b16 %v219, %v216
  %v298 = vpack.c.b16 %v220, %v217
  %v299 = vpack.c.b16 %v221, %v218
  %v300 = vpack.c.b16 %v225, %v222
  %v301 = vpack.c.b16 %v226, %v223
  %v302 = vpack.c.b16 %v227, %v224
  %v303 = vpack.c.b16 %v231, %v228
  %v304 = vpack.c.b16 %v232, %v229
  %v305 = vpack.c.b16 %v233, %v230
  %v306 = vpack.c.b16 %v237, %v234
  %v307 = vpack.c.b16 %v238, %v235
  %v308 = vpack.c.b16 %v239, %v236
  %v309 = vpack.c.b16 %v243, %v240
  %v310 = vpack.c.b16 %v244, %v241
  %v311 = vpack.c.b16 %v245, %v242
  %v312 = vpack.c.b16 %v249, %v246
  %v313 = vpack.c.b16 %v250, %v247
  %v314 = vpack.c.b16 %v251, %v248
  %v315 = vpack.c.b16 %v255, %v252
  %v316 = vpack.c.b16 %v256, %v253
  %v317 = vpack.c.b16 %v257, %v254
  %v318 = vpack.c.b16 %v261, %v258
  %v319 = vpack.c.b16 %v262, %v259
  %v320 = vpack.c.b16 %v263, %v260
  %v321 = vpack.c.b16 %v267, %v264
  %v322 = vpack.c.b16 %v268, %v265
  %v323 = vpack.c.b16 %v269, %v266
  %v324 = vpack.c.b16 %v273, %v270
  %v325 = vpack.c.b16 %v274, %v271
  %v326 = vpack.c.b16 %v275, %v272
  %v327 = vpack.c.b16 %v279, %v276
  %v328 = vpack.c.b16 %v280, %v277
  %v329 = vpack.c.b16 %v281, %v278
  %v398 = vunpack.c.l.b16 %v82
  %v399 = vunpack.c.l.b16 %v83
  %v400 = vunpack.c.l.b16 %v84
  %v401 = vunpack.c.l.b16 %v85
  %v402 = vunpack.c.l.b16 %v86
  %v403 = vunpack.c.l.b16 %v87
  %v404 = vunpack.c.l.b16 %v88
  %v405 = vunpack.c.l.b16 %v89
  %v406 = vunpack.c.l.b16 %v90
  %v407 = vunpack.c.l.b16 %v91
  %v408 = vunpack.c.l.b16 %v92
  %v409 = vunpack.c.l.b16 %v93
  %v410 = vunpack.c.l.b16 %v94
  %v411 = vunpack.c.l.b16 %v95
  %v412 = vunpack.c.l.b16 %v96
  %v413 = vunpack.c.l.b16 %v97
  %v414 = vunpack.c.l.b16 %v98
  %v415 = vunpack.c.l.b16 %v99
  %v416 = vunpack.c.l.b16 %v100
  %v417 = vunpack.c.l.b16 %v101
  %v418 = vunpack.c.l.b16 %v102
  %v419 = vunpack.c.l.b16 %v103
  %v420 = vunpack.c.l.b16 %v104
  %v421 = vunpack.c.l.b16 %v105
  %v422 = vunpack.c.l.b16 %v106
  %v423 = vunpack.c.l.b16 %v107
  %v424 = vunpack.c.l.b16 %v108
  %v425 = vunpack.c.l.b16 %v109
  %v426 = vunpack.c.l.b16 %v110
  %v427 = vunpack.c.l.b16 %v111
  %v428 = vunpack.c.l.b16 %v112
  %v429 = vunpack.c.l.b16 %v113
  %v430 = vunpack.c.l.b16 %v114
  %v431 = vunpack.c.l.b16 %v115
  %v432 = vunpack.c.l.b16 %v116
  %v433 = vunpack.c.l.b16 %v117
  %v434 = vpack.c.b16 %v399, %v398
  %v435 = vpack.c.b16 %v401, %v400
  %v436 = vpack.c.b16 %v403, %v402
  %v437 = vpack.c.b16 %v405, %v404
  %v438 = vpack.c.b16 %v407, %v406
  %v439 = vpack.c.b16 %v409, %v408
  %v440 = vpack.c.b16 %v411, %v410
  %v441 = vpack.c.b16 %v413, %v412
  %v442 = vpack.c.b16 %v415, %v414
  %v443 = vpack.c.b16 %v417, %v416
  %v444 = vpack.c.b16 %v419, %v418
  %v445 = vpack.c.b16 %v421, %v420
  %v446 = vpack.c.b16 %v423, %v422
  %v447 = vpack.c.b16 %v425, %v424
  %v448 = vpack.c.b16 %v427, %v426
  %v449 = vpack.c.b16 %v429, %v428
  %v450 = vpack.c.b16 %v431, %v430
  %v451 = vpack.c.b16 %v433, %v432
  %vm470 = vcmask 261120
  %v472 = vsel %vm470, %v284, 0
  %v475 = vsel %vm470, %v287, 0
  %v478 = vsel %vm470, %v290, 0
  %v481 = vsel %vm470, %v293, 0
  %v484 = vsel %vm470, %v296, 0
  %v487 = vsel %vm470, %v299, 0
  %v490 = vsel %vm470, %v302, 0
  %v493 = vsel %vm470, %v305, 0
  %v496 = vsel %vm470, %v308, 0
  %v499 = vsel %vm470, %v311, 0
  %v502 = vsel %vm470, %v314, 0
  %v505 = vsel %vm470, %v317, 0
  %v508 = vsel %vm470, %v320, 0
  %v511 = vsel %vm470, %v323, 0
  %v514 = vsel %vm470, %v326, 0
  %v517 = vsel %vm470, %v329, 0
  %519 = vmatpush.bf16.msra.mxu0 %v441
  %520 = vmatpush.bf16.msra.mxu0 %v440
  %521 = vmatpush.bf16.msra.mxu0 %v439
  %522 = vmatpush.bf16.msra.mxu0 %v438
  %523 = vmatpush.bf16.msra.mxu0 %v437
  %524 = vmatpush.bf16.msra.mxu0 %v436
  %525 = vmatpush.bf16.msra.mxu0 %v435
  %526 = vmatpush.bf16.msra.mxu0 %v434
  %527 = vmatmul.bf16.gmra.mxu0 %v282
  %v528 = vpop.f32.mrf.mxu0
  %v529 = vadd.f32 %v120, %v528
  %v530 = vpop.f32.mrf.mxu0
  %v531 = vadd.f32 %v120, %v530
  %532 = vmatmul.bf16.gmra.mxu0 %v285
  %v533 = vpop.f32.mrf.mxu0
  %v534 = vadd.f32 %v120, %v533
  %v535 = vpop.f32.mrf.mxu0
  %v536 = vadd.f32 %v120, %v535
  %537 = vmatmul.bf16.gmra.mxu0 %v288
  %v538 = vpop.f32.mrf.mxu0
  %v539 = vadd.f32 %v120, %v538
  %v540 = vpop.f32.mrf.mxu0
  %v541 = vadd.f32 %v120, %v540
  %542 = vmatmul.bf16.gmra.mxu0 %v291
  %v543 = vpop.f32.mrf.mxu0
  %v544 = vadd.f32 %v120, %v543
  %v545 = vpop.f32.mrf.mxu0
  %v546 = vadd.f32 %v120, %v545
  %547 = vmatmul.bf16.gmra.mxu0 %v294
  %v548 = vpop.f32.mrf.mxu0
  %v549 = vadd.f32 %v120, %v548
  %v550 = vpop.f32.mrf.mxu0
  %v551 = vadd.f32 %v120, %v550
  %552 = vmatmul.bf16.gmra.mxu0 %v297
  %v553 = vpop.f32.mrf.mxu0
  %v554 = vadd.f32 %v120, %v553
  %v555 = vpop.f32.mrf.mxu0
  %v556 = vadd.f32 %v120, %v555
  %557 = vmatmul.bf16.gmra.mxu0 %v300
  %v558 = vpop.f32.mrf.mxu0
  %v559 = vadd.f32 %v120, %v558
  %v560 = vpop.f32.mrf.mxu0
  %v561 = vadd.f32 %v120, %v560
  %562 = vmatmul.bf16.gmra.mxu0 %v303
  %v563 = vpop.f32.mrf.mxu0
  %v564 = vadd.f32 %v120, %v563
  %v565 = vpop.f32.mrf.mxu0
  %v566 = vadd.f32 %v120, %v565
  %567 = vmatmul.bf16.gmra.mxu0 %v306
  %v568 = vpop.f32.mrf.mxu0
  %v569 = vadd.f32 %v120, %v568
  %v570 = vpop.f32.mrf.mxu0
  %v571 = vadd.f32 %v120, %v570
  %572 = vmatmul.bf16.gmra.mxu0 %v309
  %v573 = vpop.f32.mrf.mxu0
  %v574 = vadd.f32 %v120, %v573
  %v575 = vpop.f32.mrf.mxu0
  %v576 = vadd.f32 %v120, %v575
  %577 = vmatmul.bf16.gmra.mxu0 %v312
  %v578 = vpop.f32.mrf.mxu0
  %v579 = vadd.f32 %v120, %v578
  %v580 = vpop.f32.mrf.mxu0
  %v581 = vadd.f32 %v120, %v580
  %582 = vmatmul.bf16.gmra.mxu0 %v315
  %v583 = vpop.f32.mrf.mxu0
  %v584 = vadd.f32 %v120, %v583
  %v585 = vpop.f32.mrf.mxu0
  %v586 = vadd.f32 %v120, %v585
  %587 = vmatmul.bf16.gmra.mxu0 %v318
  %v588 = vpop.f32.mrf.mxu0
  %v589 = vadd.f32 %v120, %v588
  %v590 = vpop.f32.mrf.mxu0
  %v591 = vadd.f32 %v120, %v590
  %592 = vmatmul.bf16.gmra.mxu0 %v321
  %v593 = vpop.f32.mrf.mxu0
  %v594 = vadd.f32 %v120, %v593
  %v595 = vpop.f32.mrf.mxu0
  %v596 = vadd.f32 %v120, %v595
  %597 = vmatmul.bf16.gmra.mxu0 %v324
  %v598 = vpop.f32.mrf.mxu0
  %v599 = vadd.f32 %v120, %v598
  %v600 = vpop.f32.mrf.mxu0
  %v601 = vadd.f32 %v120, %v600
  %602 = vmatmul.bf16.gmra.mxu0 %v327
  %v603 = vpop.f32.mrf.mxu0
  %v604 = vadd.f32 %v120, %v603
  %v605 = vpop.f32.mrf.mxu0
  %v606 = vadd.f32 %v120, %v605
  %607 = vdwg.mxu0
  %608 = vmatpush.bf16.msra.mxu0 %v449
  %609 = vmatpush.bf16.msra.mxu0 %v448
  %610 = vmatpush.bf16.msra.mxu0 %v447
  %611 = vmatpush.bf16.msra.mxu0 %v446
  %612 = vmatpush.bf16.msra.mxu0 %v445
  %613 = vmatpush.bf16.msra.mxu0 %v444
  %614 = vmatpush.bf16.msra.mxu0 %v443
  %615 = vmatpush.bf16.msra.mxu0 %v442
  %616 = vmatmul.bf16.gmra.mxu0 %v283
  %v617 = vpop.f32.mrf.mxu0
  %v618 = vadd.f32 %v529, %v617
  %v619 = vpop.f32.mrf.mxu0
  %v620 = vadd.f32 %v531, %v619
  %621 = vmatmul.bf16.gmra.mxu0 %v286
  %v622 = vpop.f32.mrf.mxu0
  %v623 = vadd.f32 %v534, %v622
  %v624 = vpop.f32.mrf.mxu0
  %v625 = vadd.f32 %v536, %v624
  %626 = vmatmul.bf16.gmra.mxu0 %v289
  %v627 = vpop.f32.mrf.mxu0
  %v628 = vadd.f32 %v539, %v627
  %v629 = vpop.f32.mrf.mxu0
  %v630 = vadd.f32 %v541, %v629
  %631 = vmatmul.bf16.gmra.mxu0 %v292
  %v632 = vpop.f32.mrf.mxu0
  %v633 = vadd.f32 %v544, %v632
  %v634 = vpop.f32.mrf.mxu0
  %v635 = vadd.f32 %v546, %v634
  %636 = vmatmul.bf16.gmra.mxu0 %v295
  %v637 = vpop.f32.mrf.mxu0
  %v638 = vadd.f32 %v549, %v637
  %v639 = vpop.f32.mrf.mxu0
  %v640 = vadd.f32 %v551, %v639
  %641 = vmatmul.bf16.gmra.mxu0 %v298
  %v642 = vpop.f32.mrf.mxu0
  %v643 = vadd.f32 %v554, %v642
  %v644 = vpop.f32.mrf.mxu0
  %v645 = vadd.f32 %v556, %v644
  %646 = vmatmul.bf16.gmra.mxu0 %v301
  %v647 = vpop.f32.mrf.mxu0
  %v648 = vadd.f32 %v559, %v647
  %v649 = vpop.f32.mrf.mxu0
  %v650 = vadd.f32 %v561, %v649
  %651 = vmatmul.bf16.gmra.mxu0 %v304
  %v652 = vpop.f32.mrf.mxu0
  %v653 = vadd.f32 %v564, %v652
  %v654 = vpop.f32.mrf.mxu0
  %v655 = vadd.f32 %v566, %v654
  %656 = vmatmul.bf16.gmra.mxu0 %v307
  %v657 = vpop.f32.mrf.mxu0
  %v658 = vadd.f32 %v569, %v657
  %v659 = vpop.f32.mrf.mxu0
  %v660 = vadd.f32 %v571, %v659
  %661 = vmatmul.bf16.gmra.mxu0 %v310
  %v662 = vpop.f32.mrf.mxu0
  %v663 = vadd.f32 %v574, %v662
  %v664 = vpop.f32.mrf.mxu0
  %v665 = vadd.f32 %v576, %v664
  %666 = vmatmul.bf16.gmra.mxu0 %v313
  %v667 = vpop.f32.mrf.mxu0
  %v668 = vadd.f32 %v579, %v667
  %v669 = vpop.f32.mrf.mxu0
  %v670 = vadd.f32 %v581, %v669
  %671 = vmatmul.bf16.gmra.mxu0 %v316
  %v672 = vpop.f32.mrf.mxu0
  %v673 = vadd.f32 %v584, %v672
  %v674 = vpop.f32.mrf.mxu0
  %v675 = vadd.f32 %v586, %v674
  %676 = vmatmul.bf16.gmra.mxu0 %v319
  %v677 = vpop.f32.mrf.mxu0
  %v678 = vadd.f32 %v589, %v677
  %v679 = vpop.f32.mrf.mxu0
  %v680 = vadd.f32 %v591, %v679
  %681 = vmatmul.bf16.gmra.mxu0 %v322
  %v682 = vpop.f32.mrf.mxu0
  %v683 = vadd.f32 %v594, %v682
  %v684 = vpop.f32.mrf.mxu0
  %v685 = vadd.f32 %v596, %v684
  %686 = vmatmul.bf16.gmra.mxu0 %v325
  %v687 = vpop.f32.mrf.mxu0
  %v688 = vadd.f32 %v599, %v687
  %v689 = vpop.f32.mrf.mxu0
  %v690 = vadd.f32 %v601, %v689
  %691 = vmatmul.bf16.gmra.mxu0 %v328
  %v692 = vpop.f32.mrf.mxu0
  %v693 = vadd.f32 %v604, %v692
  %v694 = vpop.f32.mrf.mxu0
  %v695 = vadd.f32 %v606, %v694
  %696 = vdwg.mxu0
  %697 = vmatpush.bf16.msra.mxu0 0
  %698 = vmatpush.bf16.msra.mxu0 0
  %699 = vmatpush.bf16.msra.mxu0 0
  %700 = vmatpush.bf16.msra.mxu0 0
  %701 = vmatpush.bf16.msra.mxu0 0
  %702 = vmatpush.bf16.msra.mxu0 0
  %703 = vmatpush.bf16.msra.mxu0 %v451
  %704 = vmatpush.bf16.msra.mxu0 %v450
  %705 = vmatmul.bf16.gmra.mxu0 %v472
  %v706 = vpop.f32.mrf.mxu0
  %v707 = vadd.f32 %v618, %v706
  %v708 = vpop.f32.mrf.mxu0
  %v709 = vadd.f32 %v620, %v708
  %710 = vmatmul.bf16.gmra.mxu0 %v475
  %v711 = vpop.f32.mrf.mxu0
  %v712 = vadd.f32 %v623, %v711
  %v713 = vpop.f32.mrf.mxu0
  %v714 = vadd.f32 %v625, %v713
  %715 = vmatmul.bf16.gmra.mxu0 %v478
  %v716 = vpop.f32.mrf.mxu0
  %v717 = vadd.f32 %v628, %v716
  %v718 = vpop.f32.mrf.mxu0
  %v719 = vadd.f32 %v630, %v718
  %720 = vmatmul.bf16.gmra.mxu0 %v481
  %v721 = vpop.f32.mrf.mxu0
  %v722 = vadd.f32 %v633, %v721
  %v723 = vpop.f32.mrf.mxu0
  %v724 = vadd.f32 %v635, %v723
  %725 = vmatmul.bf16.gmra.mxu0 %v484
  %v726 = vpop.f32.mrf.mxu0
  %v727 = vadd.f32 %v638, %v726
  %v728 = vpop.f32.mrf.mxu0
  %v729 = vadd.f32 %v640, %v728
  %730 = vmatmul.bf16.gmra.mxu0 %v487
  %v731 = vpop.f32.mrf.mxu0
  %v732 = vadd.f32 %v643, %v731
  %v733 = vpop.f32.mrf.mxu0
  %v734 = vadd.f32 %v645, %v733
  %735 = vmatmul.bf16.gmra.mxu0 %v490
  %v736 = vpop.f32.mrf.mxu0
  %v737 = vadd.f32 %v648, %v736
  %v738 = vpop.f32.mrf.mxu0
  %v739 = vadd.f32 %v650, %v738
  %740 = vmatmul.bf16.gmra.mxu0 %v493
  %v741 = vpop.f32.mrf.mxu0
  %v742 = vadd.f32 %v653, %v741
  %v743 = vpop.f32.mrf.mxu0
  %v744 = vadd.f32 %v655, %v743
  %745 = vmatmul.bf16.gmra.mxu0 %v496
  %v746 = vpop.f32.mrf.mxu0
  %v747 = vadd.f32 %v658, %v746
  %v748 = vpop.f32.mrf.mxu0
  %v749 = vadd.f32 %v660, %v748
  %750 = vmatmul.bf16.gmra.mxu0 %v499
  %v751 = vpop.f32.mrf.mxu0
  %v752 = vadd.f32 %v663, %v751
  %v753 = vpop.f32.mrf.mxu0
  %v754 = vadd.f32 %v665, %v753
  %755 = vmatmul.bf16.gmra.mxu0 %v502
  %v756 = vpop.f32.mrf.mxu0
  %v757 = vadd.f32 %v668, %v756
  %v758 = vpop.f32.mrf.mxu0
  %v759 = vadd.f32 %v670, %v758
  %760 = vmatmul.bf16.gmra.mxu0 %v505
  %v761 = vpop.f32.mrf.mxu0
  %v762 = vadd.f32 %v673, %v761
  %v763 = vpop.f32.mrf.mxu0
  %v764 = vadd.f32 %v675, %v763
  %765 = vmatmul.bf16.gmra.mxu0 %v508
  %v766 = vpop.f32.mrf.mxu0
  %v767 = vadd.f32 %v678, %v766
  %v768 = vpop.f32.mrf.mxu0
  %v769 = vadd.f32 %v680, %v768
  %770 = vmatmul.bf16.gmra.mxu0 %v511
  %v771 = vpop.f32.mrf.mxu0
  %v772 = vadd.f32 %v683, %v771
  %v773 = vpop.f32.mrf.mxu0
  %v774 = vadd.f32 %v685, %v773
  %775 = vmatmul.bf16.gmra.mxu0 %v514
  %v776 = vpop.f32.mrf.mxu0
  %v777 = vadd.f32 %v688, %v776
  %v778 = vpop.f32.mrf.mxu0
  %v779 = vadd.f32 %v690, %v778
  %780 = vmatmul.bf16.gmra.mxu0 %v517
  %v781 = vpop.f32.mrf.mxu0
  %v782 = vadd.f32 %v693, %v781
  %v783 = vpop.f32.mrf.mxu0
  %v784 = vadd.f32 %v695, %v783
  %785 = vdwg.mxu0
  %v786 = vld [vmem:[%s3] sm:$0xff]
  %v787 = vld [vmem:[%s3 + $0x8] sm:$0xff]
  %v788 = vld [vmem:[%s3 + $0x10] sm:$0xff]
  %v789 = vld [vmem:[%s3 + $0x18] sm:$0xff]
  %v790 = vld [vmem:[%s3 + $0x20] sm:$0xff]
  %v791 = vld [vmem:[%s3 + $0x28] sm:$0xff]
  %v792 = vld [vmem:[%s3 + $0x30] sm:$0xff]
  %v793 = vld [vmem:[%s3 + $0x38] sm:$0xff]
  %v794 = vld [vmem:[%s3 + $0x40] sm:$0xff]
  %v795 = vld [vmem:[%s3 + $0x48] sm:$0xff]
  %v796 = vld [vmem:[%s3 + $0x50] sm:$0xff]
  %v797 = vld [vmem:[%s3 + $0x58] sm:$0xff]
  %v798 = vld [vmem:[%s3 + $0x60] sm:$0xff]
  %v799 = vld [vmem:[%s3 + $0x68] sm:$0xff]
  %v800 = vld [vmem:[%s3 + $0x70] sm:$0xff]
  %v801 = vld [vmem:[%s3 + $0x78] sm:$0xff]
  %v802 = vld [vmem:[%s3 + $0x80] sm:$0xff]
  %v803 = vld [vmem:[%s3 + $0x88] sm:$0xff]
  %v804 = vld [vmem:[%s3 + $0x90] sm:$0xff]
  %v805 = vld [vmem:[%s3 + $0x98] sm:$0xff]
  %v806 = vld [vmem:[%s3 + $0xa0] sm:$0xff]
  %v807 = vld [vmem:[%s3 + $0xa8] sm:$0xff]
  %v808 = vld [vmem:[%s3 + $0xb0] sm:$0xff]
  %v809 = vld [vmem:[%s3 + $0xb8] sm:$0xff]
  %v810 = vld [vmem:[%s3 + $0xc0] sm:$0xff]
  %v811 = vld [vmem:[%s3 + $0xc8] sm:$0xff]
  %v812 = vld [vmem:[%s3 + $0xd0] sm:$0xff]
  %v813 = vld [vmem:[%s3 + $0xd8] sm:$0xff]
  %v814 = vld [vmem:[%s3 + $0xe0] sm:$0xff]
  %v815 = vld [vmem:[%s3 + $0xe8] sm:$0xff]
  %v816 = vld [vmem:[%s3 + $0xf0] sm:$0xff]
  %v817 = vld [vmem:[%s3 + $0xf8] sm:$0xff]
  %v818 = vadd.f32 %v707, %v786
  %v819 = vadd.f32 %v709, %v787
  %v820 = vadd.f32 %v712, %v788
  %v821 = vadd.f32 %v714, %v789
  %v822 = vadd.f32 %v717, %v790
  %v823 = vadd.f32 %v719, %v791
  %v824 = vadd.f32 %v722, %v792
  %v825 = vadd.f32 %v724, %v793
  %v826 = vadd.f32 %v727, %v794
  %v827 = vadd.f32 %v729, %v795
  %v828 = vadd.f32 %v732, %v796
  %v829 = vadd.f32 %v734, %v797
  %v830 = vadd.f32 %v737, %v798
  %v831 = vadd.f32 %v739, %v799
  %v832 = vadd.f32 %v742, %v800
  %v833 = vadd.f32 %v744, %v801
  %v834 = vadd.f32 %v747, %v802
  %v835 = vadd.f32 %v749, %v803
  %v836 = vadd.f32 %v752, %v804
  %v837 = vadd.f32 %v754, %v805
  %v838 = vadd.f32 %v757, %v806
  %v839 = vadd.f32 %v759, %v807
  %v840 = vadd.f32 %v762, %v808
  %v841 = vadd.f32 %v764, %v809
  %v842 = vadd.f32 %v767, %v810
  %v843 = vadd.f32 %v769, %v811
  %v844 = vadd.f32 %v772, %v812
  %v845 = vadd.f32 %v774, %v813
  %v846 = vadd.f32 %v777, %v814
  %v847 = vadd.f32 %v779, %v815
  %v848 = vadd.f32 %v782, %v816
  %v849 = vadd.f32 %v784, %v817
  %v850 = vmax.f32 %v818, 0.0
  %v851 = vmax.f32 %v819, 0.0
  %v852 = vmax.f32 %v820, 0.0
  %v853 = vmax.f32 %v821, 0.0
  %v854 = vmax.f32 %v822, 0.0
  %v855 = vmax.f32 %v823, 0.0
  %v856 = vmax.f32 %v824, 0.0
  %v857 = vmax.f32 %v825, 0.0
  %v858 = vmax.f32 %v826, 0.0
  %v859 = vmax.f32 %v827, 0.0
  %v860 = vmax.f32 %v828, 0.0
  %v861 = vmax.f32 %v829, 0.0
  %v862 = vmax.f32 %v830, 0.0
  %v863 = vmax.f32 %v831, 0.0
  %v864 = vmax.f32 %v832, 0.0
  %v865 = vmax.f32 %v833, 0.0
  %v866 = vmax.f32 %v834, 0.0
  %v867 = vmax.f32 %v835, 0.0
  %v868 = vmax.f32 %v836, 0.0
  %v869 = vmax.f32 %v837, 0.0
  %v870 = vmax.f32 %v838, 0.0
  %v871 = vmax.f32 %v839, 0.0
  %v872 = vmax.f32 %v840, 0.0
  %v873 = vmax.f32 %v841, 0.0
  %v874 = vmax.f32 %v842, 0.0
  %v875 = vmax.f32 %v843, 0.0
  %v876 = vmax.f32 %v844, 0.0
  %v877 = vmax.f32 %v845, 0.0
  %v878 = vmax.f32 %v846, 0.0
  %v879 = vmax.f32 %v847, 0.0
  %v880 = vmax.f32 %v848, 0.0
  %v881 = vmax.f32 %v849, 0.0
  %882 = vst [vmem:[%s4] sm:$0xff] %v850
  %883 = vst [vmem:[%s4 + $0x8] sm:$0xff] %v851
  %884 = vst [vmem:[%s4 + $0x10] sm:$0xff] %v852
  %885 = vst [vmem:[%s4 + $0x18] sm:$0xff] %v853
  %886 = vst [vmem:[%s4 + $0x20] sm:$0xff] %v854
  %887 = vst [vmem:[%s4 + $0x28] sm:$0xff] %v855
  %888 = vst [vmem:[%s4 + $0x30] sm:$0xff] %v856
  %889 = vst [vmem:[%s4 + $0x38] sm:$0xff] %v857
  %890 = vst [vmem:[%s4 + $0x40] sm:$0xff] %v858
  %891 = vst [vmem:[%s4 + $0x48] sm:$0xff] %v859
  %892 = vst [vmem:[%s4 + $0x50] sm:$0xff] %v860
  %893 = vst [vmem:[%s4 + $0x58] sm:$0xff] %v861
  %894 = vst [vmem:[%s4 + $0x60] sm:$0xff] %v862
  %895 = vst [vmem:[%s4 + $0x68] sm:$0xff] %v863
  %896 = vst [vmem:[%s4 + $0x70] sm:$0xff] %v864
  %897 = vst [vmem:[%s4 + $0x78] sm:$0xff] %v865
  %898 = vst [vmem:[%s4 + $0x80] sm:$0xff] %v866
  %899 = vst [vmem:[%s4 + $0x88] sm:$0xff] %v867
  %900 = vst [vmem:[%s4 + $0x90] sm:$0xff] %v868
  %901 = vst [vmem:[%s4 + $0x98] sm:$0xff] %v869
  %902 = vst [vmem:[%s4 + $0xa0] sm:$0xff] %v870
  %903 = vst [vmem:[%s4 + $0xa8] sm:$0xff] %v871
  %904 = vst [vmem:[%s4 + $0xb0] sm:$0xff] %v872
  %905 = vst [vmem:[%s4 + $0xb8] sm:$0xff] %v873
  %906 = vst [vmem:[%s4 + $0xc0] sm:$0xff] %v874
  %907 = vst [vmem:[%s4 + $0xc8] sm:$0xff] %v875
  %908 = vst [vmem:[%s4 + $0xd0] sm:$0xff] %v876
  %909 = vst [vmem:[%s4 + $0xd8] sm:$0xff] %v877
  %910 = vst [vmem:[%s4 + $0xe0] sm:$0xff] %v878
  %911 = vst [vmem:[%s4 + $0xe8] sm:$0xff] %v879
  %912 = vst [vmem:[%s4 + $0xf0] sm:$0xff] %v880
  %913 = vst [vmem:[%s4 + $0xf8] sm:$0xff] %v881
  // Predicated region
  $region18: #{_lambda_.26} parent=0 // pred_check
    _
  $region19: #{_lambda_.26} parent=0 // pred_check_branch
    %915 = sbr.rel (0) target = $region21
  $region20: #{_lambda_.26} parent=0 // pred_region
    _
  $region21: #{_lambda_.26} parent=0 // pred_fallthru
    _
  // Predicated region
  $region22: #{_lambda_.26} parent=0 // pred_check
    _
  $region23: #{_lambda_.26} parent=0 // pred_check_branch
    %917 = sbr.rel (0) target = $region25
  $region24: #{_lambda_.26} parent=0 // pred_region
    _
  $region25: #{_lambda_.26} parent=0 // pred_fallthru
    _

// kernel: _lambda_.30
$region0: #{_lambda_.30}
  #allocation0 [shape = 'u32[]', space=smem, size = 0x4, offset = 0x4, fixed_abs, tag = 'smem constant byte address 0x4 - core index']
  #allocation1 [shape = 'u32[72,128]{1,0:T(1,128)}', space=vmem, size = 0x9000, scoped, tag = 'internal scratch']
  %s0 = inlined_call_operand.vmem [shape: bf16[64,32], index: 0, kind: input, shape index: {}]
  %s1 = inlined_call_operand.vmem [shape: bf16[32,128], index: 1, kind: input, shape index: {}]
  %s2 = inlined_call_operand.vmem [shape: f32[1,128], index: 2, kind: input, shape index: {}]
  %s3 = inlined_call_operand.vmem [shape: f32[64,128], index: 3, kind: output, shape index: {}]
  %s4 = sld [smem:[#allocation0]]
  $region22: #{_lambda_.30} parent=0
    _
  %s6 = ssub.s32 1, %s4
  %s7 = scalar_select 0, %s6, %s4
  // Predicated region
  $region2: #{_lambda_.30} parent=0 // pred_check
    _
  $region3: #{_lambda_.30} parent=0 // pred_check_branch
    %9 = sbr.rel (0) target = $region5
  $region4: #{_lambda_.30} parent=0 // pred_region
    _
  $region5: #{_lambda_.30} parent=0 // pred_fallthru
    _
  // Predicated region
  $region6: #{_lambda_.30} parent=0 // pred_check
    _
  $region7: #{_lambda_.30} parent=0 // pred_check_branch
    %11 = sbr.rel (0) target = $region9
  $region8: #{_lambda_.30} parent=0 // pred_region
    _
  $region9: #{_lambda_.30} parent=0 // pred_fallthru
    _
  // Predicated region
  $region10: #{_lambda_.30} parent=0 // pred_check
    _
  $region11: #{_lambda_.30} parent=0 // pred_check_branch
    %13 = sbr.rel (0) target = $region13
  $region12: #{_lambda_.30} parent=0 // pred_region
    _
  $region13: #{_lambda_.30} parent=0 // pred_fallthru
    _
  %v15 = vld [vmem:[%s0] sm:$0xf]
  %v16 = vld [vmem:[%s0 + $0x4] sm:$0xf]
  %v17 = vld [vmem:[%s0 + $0x8] sm:$0xf]
  %v18 = vld [vmem:[%s0 + $0xc] sm:$0xf]
  %v19 = vld [vmem:[%s0 + $0x10] sm:$0xf]
  %v20 = vld [vmem:[%s0 + $0x14] sm:$0xf]
  %v21 = vld [vmem:[%s0 + $0x18] sm:$0xf]
  %v22 = vld [vmem:[%s0 + $0x1c] sm:$0xf]
  %v23 = vld [vmem:[%s1] sm:$0xf]
  %v24 = vld [vmem:[%s1 + $0x4] sm:$0xf]
  %v25 = vld [vmem:[%s1 + $0x8] sm:$0xf]
  %v26 = vld [vmem:[%s1 + $0xc] sm:$0xf]
  %v27 = vld [vmem:[%s2] sm:$0x1]
  %v29 = vperm.slane %v27, 0
  %v39 = vunpack.c.l.b16 %v15
  %v40 = vunpack.c.l.b16 %v16
  %v41 = vunpack.c.l.b16 %v17
  %v42 = vunpack.c.l.b16 %v18
  %v43 = vunpack.c.l.b16 %v19
  %v44 = vunpack.c.l.b16 %v20
  %v45 = vunpack.c.l.b16 %v21
  %v46 = vunpack.c.l.b16 %v22
  %v47 = vpack.c.b16 %v40, %v39
  %v48 = vpack.c.b16 %v42, %v41
  %v49 = vpack.c.b16 %v44, %v43
  %v50 = vpack.c.b16 %v46, %v45
  %v55 = vunpack.c.l.b16 %v23
  %v56 = vunpack.c.l.b16 %v24
  %v57 = vunpack.c.l.b16 %v25
  %v58 = vunpack.c.l.b16 %v26
  %v59 = vpack.c.b16 %v56, %v55
  %v60 = vpack.c.b16 %v58, %v57
  %vm63 = vcmask 261120
  %v65 = vsel %vm63, %v47, 0
  %v68 = vsel %vm63, %v48, 0
  %v71 = vsel %vm63, %v49, 0
  %v74 = vsel %vm63, %v50, 0
  %76 = vmatpush.bf16.msra.mxu0 0
  %77 = vmatpush.bf16.msra.mxu0 0
  %78 = vmatpush.bf16.msra.mxu0 0
  %79 = vmatpush.bf16.msra.mxu0 0
  %80 = vmatpush.bf16.msra.mxu0 0
  %81 = vmatpush.bf16.msra.mxu0 0
  %82 = vmatpush.bf16.msra.mxu0 %v60
  %83 = vmatpush.bf16.msra.mxu0 %v59
  %84 = vmatmul.bf16.gmra.mxu0 %v65
  %v85 = vpop.f32.mrf.mxu0
  %v86 = vadd.f32 %v29, %v85
  %v87 = vpop.f32.mrf.mxu0
  %v88 = vadd.f32 %v29, %v87
  %89 = vmatmul.bf16.gmra.mxu0 %v68
  %v90 = vpop.f32.mrf.mxu0
  %v91 = vadd.f32 %v29, %v90
  %v92 = vpop.f32.mrf.mxu0
  %v93 = vadd.f32 %v29, %v92
  %94 = vmatmul.bf16.gmra.mxu0 %v71
  %v95 = vpop.f32.mrf.mxu0
  %v96 = vadd.f32 %v29, %v95
  %v97 = vpop.f32.mrf.mxu0
  %v98 = vadd.f32 %v29, %v97
  %99 = vmatmul.bf16.gmra.mxu0 %v74
  %v100 = vpop.f32.mrf.mxu0
  %v101 = vadd.f32 %v29, %v100
  %v102 = vpop.f32.mrf.mxu0
  %v103 = vadd.f32 %v29, %v102
  %104 = vdwg.mxu0
  %v105 = vmax.f32 %v86, 0.0
  %v106 = vmax.f32 %v88, 0.0
  %v107 = vmax.f32 %v91, 0.0
  %v108 = vmax.f32 %v93, 0.0
  %v109 = vmax.f32 %v96, 0.0
  %v110 = vmax.f32 %v98, 0.0
  %v111 = vmax.f32 %v101, 0.0
  %v112 = vmax.f32 %v103, 0.0
  %113 = vst [vmem:[%s3] sm:$0xff] %v105
  %114 = vst [vmem:[%s3 + $0x8] sm:$0xff] %v106
  %115 = vst [vmem:[%s3 + $0x10] sm:$0xff] %v107
  %116 = vst [vmem:[%s3 + $0x18] sm:$0xff] %v108
  %117 = vst [vmem:[%s3 + $0x20] sm:$0xff] %v109
  %118 = vst [vmem:[%s3 + $0x28] sm:$0xff] %v110
  %119 = vst [vmem:[%s3 + $0x30] sm:$0xff] %v111
  %120 = vst [vmem:[%s3 + $0x38] sm:$0xff] %v112
  // Predicated region
  $region14: #{_lambda_.30} parent=0 // pred_check
    _
  $region15: #{_lambda_.30} parent=0 // pred_check_branch
    %122 = sbr.rel (0) target = $region17
  $region16: #{_lambda_.30} parent=0 // pred_region
    _
  $region17: #{_lambda_.30} parent=0 // pred_fallthru
    _
  // Predicated region
  $region18: #{_lambda_.30} parent=0 // pred_check
    _
  $region19: #{_lambda_.30} parent=0 // pred_check_branch
    %124 = sbr.rel (0) target = $region21
  $region20: #{_lambda_.30} parent=0 // pred_region
    _
  $region21: #{_lambda_.30} parent=0 // pred_fallthru
    _

// kernel: _lambda_.29
$region0: #{_lambda_.29}
  #allocation0 [shape = 'u32[]', space=smem, size = 0x4, offset = 0x4, fixed_abs, tag = 'smem constant byte address 0x4 - core index']
  #allocation1 [shape = 'u32[72,128]{1,0:T(1,128)}', space=vmem, size = 0x9000, scoped, tag = 'internal scratch']
  %s0 = inlined_call_operand.vmem [shape: bf16[128,288], index: 0, kind: input, shape index: {}]
  %s1 = inlined_call_operand.vmem [shape: bf16[288,128], index: 1, kind: input, shape index: {}]
  %s2 = inlined_call_operand.vmem [shape: f32[1,128], index: 2, kind: input, shape index: {}]
  %s3 = inlined_call_operand.vmem [shape: f32[128,128], index: 3, kind: input, shape index: {}]
  %s4 = inlined_call_operand.vmem [shape: f32[128,128], index: 4, kind: output, shape index: {}]
  %s5 = sld [smem:[#allocation0]]
  $region26: #{_lambda_.29} parent=0
    _
  %s7 = ssub.s32 1, %s5
  %s8 = scalar_select 0, %s7, %s5
  // Predicated region
  $region2: #{_lambda_.29} parent=0 // pred_check
    _
  $region3: #{_lambda_.29} parent=0 // pred_check_branch
    %10 = sbr.rel (0) target = $region5
  $region4: #{_lambda_.29} parent=0 // pred_region
    _
  $region5: #{_lambda_.29} parent=0 // pred_fallthru
    _
  // Predicated region
  $region6: #{_lambda_.29} parent=0 // pred_check
    _
  $region7: #{_lambda_.29} parent=0 // pred_check_branch
    %12 = sbr.rel (0) target = $region9
  $region8: #{_lambda_.29} parent=0 // pred_region
    _
  $region9: #{_lambda_.29} parent=0 // pred_fallthru
    _
  // Predicated region
  $region10: #{_lambda_.29} parent=0 // pred_check
    _
  $region11: #{_lambda_.29} parent=0 // pred_check_branch
    %14 = sbr.rel (0) target = $region13
  $region12: #{_lambda_.29} parent=0 // pred_region
    _
  $region13: #{_lambda_.29} parent=0 // pred_fallthru
    _
  // Predicated region
  $region14: #{_lambda_.29} parent=0 // pred_check
    _
  $region15: #{_lambda_.29} parent=0 // pred_check_branch
    %16 = sbr.rel (0) target = $region17
  $region16: #{_lambda_.29} parent=0 // pred_region
    _
  $region17: #{_lambda_.29} parent=0 // pred_fallthru
    _
  %v18 = vld [vmem:[%s0] sm:$0xff]
  %v19 = vld [vmem:[%s0 + $0x8] sm:$0xf]
  %v20 = vld [vmem:[%s0 + $0xc] sm:$0xff]
  %v21 = vld [vmem:[%s0 + $0x14] sm:$0xf]
  %v22 = vld [vmem:[%s0 + $0x18] sm:$0xff]
  %v23 = vld [vmem:[%s0 + $0x20] sm:$0xf]
  %v24 = vld [vmem:[%s0 + $0x24] sm:$0xff]
  %v25 = vld [vmem:[%s0 + $0x2c] sm:$0xf]
  %v26 = vld [vmem:[%s0 + $0x30] sm:$0xff]
  %v27 = vld [vmem:[%s0 + $0x38] sm:$0xf]
  %v28 = vld [vmem:[%s0 + $0x3c] sm:$0xff]
  %v29 = vld [vmem:[%s0 + $0x44] sm:$0xf]
  %v30 = vld [vmem:[%s0 + $0x48] sm:$0xff]
  %v31 = vld [vmem:[%s0 + $0x50] sm:$0xf]
  %v32 = vld [vmem:[%s0 + $0x54] sm:$0xff]
  %v33 = vld [vmem:[%s0 + $0x5c] sm:$0xf]
  %v34 = vld [vmem:[%s0 + $0x60] sm:$0xff]
  %v35 = vld [vmem:[%s0 + $0x68] sm:$0xf]
  %v36 = vld [vmem:[%s0 + $0x6c] sm:$0xff]
  %v37 = vld [vmem:[%s0 + $0x74] sm:$0xf]
  %v38 = vld [vmem:[%s0 + $0x78] sm:$0xff]
  %v39 = vld [vmem:[%s0 + $0x80] sm:$0xf]
  %v40 = vld [vmem:[%s0 + $0x84] sm:$0xff]
  %v41 = vld [vmem:[%s0 + $0x8c] sm:$0xf]
  %v42 = vld [vmem:[%s0 + $0x90] sm:$0xff]
  %v43 = vld [vmem:[%s0 + $0x98] sm:$0xf]
  %v44 = vld [vmem:[%s0 + $0x9c] sm:$0xff]
  %v45 = vld [vmem:[%s0 + $0xa4] sm:$0xf]
  %v46 = vld [vmem:[%s0 + $0xa8] sm:$0xff]
  %v47 = vld [vmem:[%s0 + $0xb0] sm:$0xf]
  %v48 = vld [vmem:[%s0 + $0xb4] sm:$0xff]
  %v49 = vld [vmem:[%s0 + $0xbc] sm:$0xf]
  %v50 = vld [vmem:[%s1] sm:$0xf]
  %v51 = vld [vmem:[%s1 + $0x4] sm:$0xf]
  %v52 = vld [vmem:[%s1 + $0x8] sm:$0xf]
  %v53 = vld [vmem:[%s1 + $0xc] sm:$0xf]
  %v54 = vld [vmem:[%s1 + $0x10] sm:$0xf]
  %v55 = vld [vmem:[%s1 + $0x14] sm:$0xf]
  %v56 = vld [vmem:[%s1 + $0x18] sm:$0xf]
  %v57 = vld [vmem:[%s1 + $0x1c] sm:$0xf]
  %v58 = vld [vmem:[%s1 + $0x20] sm:$0xf]
  %v59 = vld [vmem:[%s1 + $0x24] sm:$0xf]
  %v60 = vld [vmem:[%s1 + $0x28] sm:$0xf]
  %v61 = vld [vmem:[%s1 + $0x2c] sm:$0xf]
  %v62 = vld [vmem:[%s1 + $0x30] sm:$0xf]
  %v63 = vld [vmem:[%s1 + $0x34] sm:$0xf]
  %v64 = vld [vmem:[%s1 + $0x38] sm:$0xf]
  %v65 = vld [vmem:[%s1 + $0x3c] sm:$0xf]
  %v66 = vld [vmem:[%s1 + $0x40] sm:$0xf]
  %v67 = vld [vmem:[%s1 + $0x44] sm:$0xf]
  %v68 = vld [vmem:[%s1 + $0x48] sm:$0xf]
  %v69 = vld [vmem:[%s1 + $0x4c] sm:$0xf]
  %v70 = vld [vmem:[%s1 + $0x50] sm:$0xf]
  %v71 = vld [vmem:[%s1 + $0x54] sm:$0xf]
  %v72 = vld [vmem:[%s1 + $0x58] sm:$0xf]
  %v73 = vld [vmem:[%s1 + $0x5c] sm:$0xf]
  %v74 = vld [vmem:[%s1 + $0x60] sm:$0xf]
  %v75 = vld [vmem:[%s1 + $0x64] sm:$0xf]
  %v76 = vld [vmem:[%s1 + $0x68] sm:$0xf]
  %v77 = vld [vmem:[%s1 + $0x6c] sm:$0xf]
  %v78 = vld [vmem:[%s1 + $0x70] sm:$0xf]
  %v79 = vld [vmem:[%s1 + $0x74] sm:$0xf]
  %v80 = vld [vmem:[%s1 + $0x78] sm:$0xf]
  %v81 = vld [vmem:[%s1 + $0x7c] sm:$0xf]
  %v82 = vld [vmem:[%s1 + $0x80] sm:$0xf]
  %v83 = vld [vmem:[%s1 + $0x84] sm:$0xf]
  %v84 = vld [vmem:[%s1 + $0x88] sm:$0xf]
  %v85 = vld [vmem:[%s1 + $0x8c] sm:$0xf]
  %v86 = vld [vmem:[%s2] sm:$0x1]
  %v88 = vperm.slane %v86, 0
  %v122 = vunpack.c.l.b16 %v18
  %v123 = vunpack.c.h.b16 %v18
  %v124 = vunpack.c.l.b16 %v19
  %v125 = vunpack.c.l.b16 %v20
  %v126 = vunpack.c.h.b16 %v20
  %v127 = vunpack.c.l.b16 %v21
  %v128 = vunpack.c.l.b16 %v22
  %v129 = vunpack.c.h.b16 %v22
  %v130 = vunpack.c.l.b16 %v23
  %v131 = vunpack.c.l.b16 %v24
  %v132 = vunpack.c.h.b16 %v24
  %v133 = vunpack.c.l.b16 %v25
  %v134 = vunpack.c.l.b16 %v26
  %v135 = vunpack.c.h.b16 %v26
  %v136 = vunpack.c.l.b16 %v27
  %v137 = vunpack.c.l.b16 %v28
  %v138 = vunpack.c.h.b16 %v28
  %v139 = vunpack.c.l.b16 %v29
  %v140 = vunpack.c.l.b16 %v30
  %v141 = vunpack.c.h.b16 %v30
  %v142 = vunpack.c.l.b16 %v31
  %v143 = vunpack.c.l.b16 %v32
  %v144 = vunpack.c.h.b16 %v32
  %v145 = vunpack.c.l.b16 %v33
  %v146 = vunpack.c.l.b16 %v34
  %v147 = vunpack.c.h.b16 %v34
  %v148 = vunpack.c.l.b16 %v35
  %v149 = vunpack.c.l.b16 %v36
  %v150 = vunpack.c.h.b16 %v36
  %v151 = vunpack.c.l.b16 %v37
  %v152 = vunpack.c.l.b16 %v38
  %v153 = vunpack.c.h.b16 %v38
  %v154 = vunpack.c.l.b16 %v39
  %v155 = vunpack.c.l.b16 %v40
  %v156 = vunpack.c.h.b16 %v40
  %v157 = vunpack.c.l.b16 %v41
  %v158 = vunpack.c.l.b16 %v42
  %v159 = vunpack.c.h.b16 %v42
  %v160 = vunpack.c.l.b16 %v43
  %v161 = vunpack.c.l.b16 %v44
  %v162 = vunpack.c.h.b16 %v44
  %v163 = vunpack.c.l.b16 %v45
  %v164 = vunpack.c.l.b16 %v46
  %v165 = vunpack.c.h.b16 %v46
  %v166 = vunpack.c.l.b16 %v47
  %v167 = vunpack.c.l.b16 %v48
  %v168 = vunpack.c.h.b16 %v48
  %v169 = vunpack.c.l.b16 %v49
  %v170 = vpack.c.b16 %v125, %v122
  %v171 = vpack.c.b16 %v126, %v123
  %v172 = vpack.c.b16 %v127, %v124
  %v173 = vpack.c.b16 %v131, %v128
  %v174 = vpack.c.b16 %v132, %v129
  %v175 = vpack.c.b16 %v133, %v130
  %v176 = vpack.c.b16 %v137, %v134
  %v177 = vpack.c.b16 %v138, %v135
  %v178 = vpack.c.b16 %v139, %v136
  %v179 = vpack.c.b16 %v143, %v140
  %v180 = vpack.c.b16 %v144, %v141
  %v181 = vpack.c.b16 %v145, %v142
  %v182 = vpack.c.b16 %v149, %v146
  %v183 = vpack.c.b16 %v150, %v147
  %v184 = vpack.c.b16 %v151, %v148
  %v185 = vpack.c.b16 %v155, %v152
  %v186 = vpack.c.b16 %v156, %v153
  %v187 = vpack.c.b16 %v157, %v154
  %v188 = vpack.c.b16 %v161, %v158
  %v189 = vpack.c.b16 %v162, %v159
  %v190 = vpack.c.b16 %v163, %v160
  %v191 = vpack.c.b16 %v167, %v164
  %v192 = vpack.c.b16 %v168, %v165
  %v193 = vpack.c.b16 %v169, %v166
  %v246 = vunpack.c.l.b16 %v50
  %v247 = vunpack.c.l.b16 %v51
  %v248 = vunpack.c.l.b16 %v52
  %v249 = vunpack.c.l.b16 %v53
  %v250 = vunpack.c.l.b16 %v54
  %v251 = vunpack.c.l.b16 %v55
  %v252 = vunpack.c.l.b16 %v56
  %v253 = vunpack.c.l.b16 %v57
  %v254 = vunpack.c.l.b16 %v58
  %v255 = vunpack.c.l.b16 %v59
  %v256 = vunpack.c.l.b16 %v60
  %v257 = vunpack.c.l.b16 %v61
  %v258 = vunpack.c.l.b16 %v62
  %v259 = vunpack.c.l.b16 %v63
  %v260 = vunpack.c.l.b16 %v64
  %v261 = vunpack.c.l.b16 %v65
  %v262 = vunpack.c.l.b16 %v66
  %v263 = vunpack.c.l.b16 %v67
  %v264 = vunpack.c.l.b16 %v68
  %v265 = vunpack.c.l.b16 %v69
  %v266 = vunpack.c.l.b16 %v70
  %v267 = vunpack.c.l.b16 %v71
  %v268 = vunpack.c.l.b16 %v72
  %v269 = vunpack.c.l.b16 %v73
  %v270 = vunpack.c.l.b16 %v74
  %v271 = vunpack.c.l.b16 %v75
  %v272 = vunpack.c.l.b16 %v76
  %v273 = vunpack.c.l.b16 %v77
  %v274 = vunpack.c.l.b16 %v78
  %v275 = vunpack.c.l.b16 %v79
  %v276 = vunpack.c.l.b16 %v80
  %v277 = vunpack.c.l.b16 %v81
  %v278 = vunpack.c.l.b16 %v82
  %v279 = vunpack.c.l.b16 %v83
  %v280 = vunpack.c.l.b16 %v84
  %v281 = vunpack.c.l.b16 %v85
  %v282 = vpack.c.b16 %v247, %v246
  %v283 = vpack.c.b16 %v249, %v248
  %v284 = vpack.c.b16 %v251, %v250
  %v285 = vpack.c.b16 %v253, %v252
  %v286 = vpack.c.b16 %v255, %v254
  %v287 = vpack.c.b16 %v257, %v256
  %v288 = vpack.c.b16 %v259, %v258
  %v289 = vpack.c.b16 %v261, %v260
  %v290 = vpack.c.b16 %v263, %v262
  %v291 = vpack.c.b16 %v265, %v264
  %v292 = vpack.c.b16 %v267, %v266
  %v293 = vpack.c.b16 %v269, %v268
  %v294 = vpack.c.b16 %v271, %v270
  %v295 = vpack.c.b16 %v273, %v272
  %v296 = vpack.c.b16 %v275, %v274
  %v297 = vpack.c.b16 %v277, %v276
  %v298 = vpack.c.b16 %v279, %v278
  %v299 = vpack.c.b16 %v281, %v280
  %vm318 = vcmask 261120
  %v320 = vsel %vm318, %v172, 0
  %v323 = vsel %vm318, %v175, 0
  %v326 = vsel %vm318, %v178, 0
  %v329 = vsel %vm318, %v181, 0
  %v332 = vsel %vm318, %v184, 0
  %v335 = vsel %vm318, %v187, 0
  %v338 = vsel %vm318, %v190, 0
  %v341 = vsel %vm318, %v193, 0
  %343 = vmatpush.bf16.msra.mxu0 %v289
  %344 = vmatpush.bf16.msra.mxu0 %v288
  %345 = vmatpush.bf16.msra.mxu0 %v287
  %346 = vmatpush.bf16.msra.mxu0 %v286
  %347 = vmatpush.bf16.msra.mxu0 %v285
  %348 = vmatpush.bf16.msra.mxu0 %v284
  %349 = vmatpush.bf16.msra.mxu0 %v283
  %350 = vmatpush.bf16.msra.mxu0 %v282
  %351 = vmatmul.bf16.gmra.mxu0 %v170
  %v352 = vpop.f32.mrf.mxu0
  %v353 = vadd.f32 %v88, %v352
  %v354 = vpop.f32.mrf.mxu0
  %v355 = vadd.f32 %v88, %v354
  %356 = vmatmul.bf16.gmra.mxu0 %v173
  %v357 = vpop.f32.mrf.mxu0
  %v358 = vadd.f32 %v88, %v357
  %v359 = vpop.f32.mrf.mxu0
  %v360 = vadd.f32 %v88, %v359
  %361 = vmatmul.bf16.gmra.mxu0 %v176
  %v362 = vpop.f32.mrf.mxu0
  %v363 = vadd.f32 %v88, %v362
  %v364 = vpop.f32.mrf.mxu0
  %v365 = vadd.f32 %v88, %v364
  %366 = vmatmul.bf16.gmra.mxu0 %v179
  %v367 = vpop.f32.mrf.mxu0
  %v368 = vadd.f32 %v88, %v367
  %v369 = vpop.f32.mrf.mxu0
  %v370 = vadd.f32 %v88, %v369
  %371 = vmatmul.bf16.gmra.mxu0 %v182
  %v372 = vpop.f32.mrf.mxu0
  %v373 = vadd.f32 %v88, %v372
  %v374 = vpop.f32.mrf.mxu0
  %v375 = vadd.f32 %v88, %v374
  %376 = vmatmul.bf16.gmra.mxu0 %v185
  %v377 = vpop.f32.mrf.mxu0
  %v378 = vadd.f32 %v88, %v377
  %v379 = vpop.f32.mrf.mxu0
  %v380 = vadd.f32 %v88, %v379
  %381 = vmatmul.bf16.gmra.mxu0 %v188
  %v382 = vpop.f32.mrf.mxu0
  %v383 = vadd.f32 %v88, %v382
  %v384 = vpop.f32.mrf.mxu0
  %v385 = vadd.f32 %v88, %v384
  %386 = vmatmul.bf16.gmra.mxu0 %v191
  %v387 = vpop.f32.mrf.mxu0
  %v388 = vadd.f32 %v88, %v387
  %v389 = vpop.f32.mrf.mxu0
  %v390 = vadd.f32 %v88, %v389
  %391 = vdwg.mxu0
  %392 = vmatpush.bf16.msra.mxu0 %v297
  %393 = vmatpush.bf16.msra.mxu0 %v296
  %394 = vmatpush.bf16.msra.mxu0 %v295
  %395 = vmatpush.bf16.msra.mxu0 %v294
  %396 = vmatpush.bf16.msra.mxu0 %v293
  %397 = vmatpush.bf16.msra.mxu0 %v292
  %398 = vmatpush.bf16.msra.mxu0 %v291
  %399 = vmatpush.bf16.msra.mxu0 %v290
  %400 = vmatmul.bf16.gmra.mxu0 %v171
  %v401 = vpop.f32.mrf.mxu0
  %v402 = vadd.f32 %v353, %v401
  %v403 = vpop.f32.mrf.mxu0
  %v404 = vadd.f32 %v355, %v403
  %405 = vmatmul.bf16.gmra.mxu0 %v174
  %v406 = vpop.f32.mrf.mxu0
  %v407 = vadd.f32 %v358, %v406
  %v408 = vpop.f32.mrf.mxu0
  %v409 = vadd.f32 %v360, %v408
  %410 = vmatmul.bf16.gmra.mxu0 %v177
  %v411 = vpop.f32.mrf.mxu0
  %v412 = vadd.f32 %v363, %v411
  %v413 = vpop.f32.mrf.mxu0
  %v414 = vadd.f32 %v365, %v413
  %415 = vmatmul.bf16.gmra.mxu0 %v180
  %v416 = vpop.f32.mrf.mxu0
  %v417 = vadd.f32 %v368, %v416
  %v418 = vpop.f32.mrf.mxu0
  %v419 = vadd.f32 %v370, %v418
  %420 = vmatmul.bf16.gmra.mxu0 %v183
  %v421 = vpop.f32.mrf.mxu0
  %v422 = vadd.f32 %v373, %v421
  %v423 = vpop.f32.mrf.mxu0
  %v424 = vadd.f32 %v375, %v423
  %425 = vmatmul.bf16.gmra.mxu0 %v186
  %v426 = vpop.f32.mrf.mxu0
  %v427 = vadd.f32 %v378, %v426
  %v428 = vpop.f32.mrf.mxu0
  %v429 = vadd.f32 %v380, %v428
  %430 = vmatmul.bf16.gmra.mxu0 %v189
  %v431 = vpop.f32.mrf.mxu0
  %v432 = vadd.f32 %v383, %v431
  %v433 = vpop.f32.mrf.mxu0
  %v434 = vadd.f32 %v385, %v433
  %435 = vmatmul.bf16.gmra.mxu0 %v192
  %v436 = vpop.f32.mrf.mxu0
  %v437 = vadd.f32 %v388, %v436
  %v438 = vpop.f32.mrf.mxu0
  %v439 = vadd.f32 %v390, %v438
  %440 = vdwg.mxu0
  %441 = vmatpush.bf16.msra.mxu0 0
  %442 = vmatpush.bf16.msra.mxu0 0
  %443 = vmatpush.bf16.msra.mxu0 0
  %444 = vmatpush.bf16.msra.mxu0 0
  %445 = vmatpush.bf16.msra.mxu0 0
  %446 = vmatpush.bf16.msra.mxu0 0
  %447 = vmatpush.bf16.msra.mxu0 %v299
  %448 = vmatpush.bf16.msra.mxu0 %v298
  %449 = vmatmul.bf16.gmra.mxu0 %v320
  %v450 = vpop.f32.mrf.mxu0
  %v451 = vadd.f32 %v402, %v450
  %v452 = vpop.f32.mrf.mxu0
  %v453 = vadd.f32 %v404, %v452
  %454 = vmatmul.bf16.gmra.mxu0 %v323
  %v455 = vpop.f32.mrf.mxu0
  %v456 = vadd.f32 %v407, %v455
  %v457 = vpop.f32.mrf.mxu0
  %v458 = vadd.f32 %v409, %v457
  %459 = vmatmul.bf16.gmra.mxu0 %v326
  %v460 = vpop.f32.mrf.mxu0
  %v461 = vadd.f32 %v412, %v460
  %v462 = vpop.f32.mrf.mxu0
  %v463 = vadd.f32 %v414, %v462
  %464 = vmatmul.bf16.gmra.mxu0 %v329
  %v465 = vpop.f32.mrf.mxu0
  %v466 = vadd.f32 %v417, %v465
  %v467 = vpop.f32.mrf.mxu0
  %v468 = vadd.f32 %v419, %v467
  %469 = vmatmul.bf16.gmra.mxu0 %v332
  %v470 = vpop.f32.mrf.mxu0
  %v471 = vadd.f32 %v422, %v470
  %v472 = vpop.f32.mrf.mxu0
  %v473 = vadd.f32 %v424, %v472
  %474 = vmatmul.bf16.gmra.mxu0 %v335
  %v475 = vpop.f32.mrf.mxu0
  %v476 = vadd.f32 %v427, %v475
  %v477 = vpop.f32.mrf.mxu0
  %v478 = vadd.f32 %v429, %v477
  %479 = vmatmul.bf16.gmra.mxu0 %v338
  %v480 = vpop.f32.mrf.mxu0
  %v481 = vadd.f32 %v432, %v480
  %v482 = vpop.f32.mrf.mxu0
  %v483 = vadd.f32 %v434, %v482
  %484 = vmatmul.bf16.gmra.mxu0 %v341
  %v485 = vpop.f32.mrf.mxu0
  %v486 = vadd.f32 %v437, %v485
  %v487 = vpop.f32.mrf.mxu0
  %v488 = vadd.f32 %v439, %v487
  %489 = vdwg.mxu0
  %v490 = vld [vmem:[%s3] sm:$0xff]
  %v491 = vld [vmem:[%s3 + $0x8] sm:$0xff]
  %v492 = vld [vmem:[%s3 + $0x10] sm:$0xff]
  %v493 = vld [vmem:[%s3 + $0x18] sm:$0xff]
  %v494 = vld [vmem:[%s3 + $0x20] sm:$0xff]
  %v495 = vld [vmem:[%s3 + $0x28] sm:$0xff]
  %v496 = vld [vmem:[%s3 + $0x30] sm:$0xff]
  %v497 = vld [vmem:[%s3 + $0x38] sm:$0xff]
  %v498 = vld [vmem:[%s3 + $0x40] sm:$0xff]
  %v499 = vld [vmem:[%s3 + $0x48] sm:$0xff]
  %v500 = vld [vmem:[%s3 + $0x50] sm:$0xff]
  %v501 = vld [vmem:[%s3 + $0x58] sm:$0xff]
  %v502 = vld [vmem:[%s3 + $0x60] sm:$0xff]
  %v503 = vld [vmem:[%s3 + $0x68] sm:$0xff]
  %v504 = vld [vmem:[%s3 + $0x70] sm:$0xff]
  %v505 = vld [vmem:[%s3 + $0x78] sm:$0xff]
  %v506 = vadd.f32 %v451, %v490
  %v507 = vadd.f32 %v453, %v491
  %v508 = vadd.f32 %v456, %v492
  %v509 = vadd.f32 %v458, %v493
  %v510 = vadd.f32 %v461, %v494
  %v511 = vadd.f32 %v463, %v495
  %v512 = vadd.f32 %v466, %v496
  %v513 = vadd.f32 %v468, %v497
  %v514 = vadd.f32 %v471, %v498
  %v515 = vadd.f32 %v473, %v499
  %v516 = vadd.f32 %v476, %v500
  %v517 = vadd.f32 %v478, %v501
  %v518 = vadd.f32 %v481, %v502
  %v519 = vadd.f32 %v483, %v503
  %v520 = vadd.f32 %v486, %v504
  %v521 = vadd.f32 %v488, %v505
  %v522 = vmax.f32 %v506, 0.0
  %v523 = vmax.f32 %v507, 0.0
  %v524 = vmax.f32 %v508, 0.0
  %v525 = vmax.f32 %v509, 0.0
  %v526 = vmax.f32 %v510, 0.0
  %v527 = vmax.f32 %v511, 0.0
  %v528 = vmax.f32 %v512, 0.0
  %v529 = vmax.f32 %v513, 0.0
  %v530 = vmax.f32 %v514, 0.0
  %v531 = vmax.f32 %v515, 0.0
  %v532 = vmax.f32 %v516, 0.0
  %v533 = vmax.f32 %v517, 0.0
  %v534 = vmax.f32 %v518, 0.0
  %v535 = vmax.f32 %v519, 0.0
  %v536 = vmax.f32 %v520, 0.0
  %v537 = vmax.f32 %v521, 0.0
  %538 = vst [vmem:[%s4] sm:$0xff] %v522
  %539 = vst [vmem:[%s4 + $0x8] sm:$0xff] %v523
  %540 = vst [vmem:[%s4 + $0x10] sm:$0xff] %v524
  %541 = vst [vmem:[%s4 + $0x18] sm:$0xff] %v525
  %542 = vst [vmem:[%s4 + $0x20] sm:$0xff] %v526
  %543 = vst [vmem:[%s4 + $0x28] sm:$0xff] %v527
  %544 = vst [vmem:[%s4 + $0x30] sm:$0xff] %v528
  %545 = vst [vmem:[%s4 + $0x38] sm:$0xff] %v529
  %546 = vst [vmem:[%s4 + $0x40] sm:$0xff] %v530
  %547 = vst [vmem:[%s4 + $0x48] sm:$0xff] %v531
  %548 = vst [vmem:[%s4 + $0x50] sm:$0xff] %v532
  %549 = vst [vmem:[%s4 + $0x58] sm:$0xff] %v533
  %550 = vst [vmem:[%s4 + $0x60] sm:$0xff] %v534
  %551 = vst [vmem:[%s4 + $0x68] sm:$0xff] %v535
  %552 = vst [vmem:[%s4 + $0x70] sm:$0xff] %v536
  %553 = vst [vmem:[%s4 + $0x78] sm:$0xff] %v537
  // Predicated region
  $region18: #{_lambda_.29} parent=0 // pred_check
    _
  $region19: #{_lambda_.29} parent=0 // pred_check_branch
    %555 = sbr.rel (0) target = $region21
  $region20: #{_lambda_.29} parent=0 // pred_region
    _
  $region21: #{_lambda_.29} parent=0 // pred_fallthru
    _
  // Predicated region
  $region22: #{_lambda_.29} parent=0 // pred_check
    _
  $region23: #{_lambda_.29} parent=0 // pred_check_branch
    %557 = sbr.rel (0) target = $region25
  $region24: #{_lambda_.29} parent=0 // pred_region
    _
  $region25: #{_lambda_.29} parent=0 // pred_fallthru
    _

// kernel: _lambda_.28
$region0: #{_lambda_.28}
  #allocation0 [shape = 'u32[]', space=smem, size = 0x4, offset = 0x4, fixed_abs, tag = 'smem constant byte address 0x4 - core index']
  #allocation1 [shape = 'u32[72,128]{1,0:T(1,128)}', space=vmem, size = 0x9000, scoped, tag = 'internal scratch']
  %s0 = inlined_call_operand.vmem [shape: bf16[128,32], index: 0, kind: input, shape index: {}]
  %s1 = inlined_call_operand.vmem [shape: bf16[32,128], index: 1, kind: input, shape index: {}]
  %s2 = inlined_call_operand.vmem [shape: f32[1,128], index: 2, kind: input, shape index: {}]
  %s3 = inlined_call_operand.vmem [shape: f32[128,128], index: 3, kind: output, shape index: {}]
  %s4 = sld [smem:[#allocation0]]
  $region22: #{_lambda_.28} parent=0
    _
  %s6 = ssub.s32 1, %s4
  %s7 = scalar_select 0, %s6, %s4
  // Predicated region
  $region2: #{_lambda_.28} parent=0 // pred_check
    _
  $region3: #{_lambda_.28} parent=0 // pred_check_branch
    %9 = sbr.rel (0) target = $region5
  $region4: #{_lambda_.28} parent=0 // pred_region
    _
  $region5: #{_lambda_.28} parent=0 // pred_fallthru
    _
  // Predicated region
  $region6: #{_lambda_.28} parent=0 // pred_check
    _
  $region7: #{_lambda_.28} parent=0 // pred_check_branch
    %11 = sbr.rel (0) target = $region9
  $region8: #{_lambda_.28} parent=0 // pred_region
    _
  $region9: #{_lambda_.28} parent=0 // pred_fallthru
    _
  // Predicated region
  $region10: #{_lambda_.28} parent=0 // pred_check
    _
  $region11: #{_lambda_.28} parent=0 // pred_check_branch
    %13 = sbr.rel (0) target = $region13
  $region12: #{_lambda_.28} parent=0 // pred_region
    _
  $region13: #{_lambda_.28} parent=0 // pred_fallthru
    _
  %v15 = vld [vmem:[%s0] sm:$0xf]
  %v16 = vld [vmem:[%s0 + $0x4] sm:$0xf]
  %v17 = vld [vmem:[%s0 + $0x8] sm:$0xf]
  %v18 = vld [vmem:[%s0 + $0xc] sm:$0xf]
  %v19 = vld [vmem:[%s0 + $0x10] sm:$0xf]
  %v20 = vld [vmem:[%s0 + $0x14] sm:$0xf]
  %v21 = vld [vmem:[%s0 + $0x18] sm:$0xf]
  %v22 = vld [vmem:[%s0 + $0x1c] sm:$0xf]
  %v23 = vld [vmem:[%s0 + $0x20] sm:$0xf]
  %v24 = vld [vmem:[%s0 + $0x24] sm:$0xf]
  %v25 = vld [vmem:[%s0 + $0x28] sm:$0xf]
  %v26 = vld [vmem:[%s0 + $0x2c] sm:$0xf]
  %v27 = vld [vmem:[%s0 + $0x30] sm:$0xf]
  %v28 = vld [vmem:[%s0 + $0x34] sm:$0xf]
  %v29 = vld [vmem:[%s0 + $0x38] sm:$0xf]
  %v30 = vld [vmem:[%s0 + $0x3c] sm:$0xf]
  %v31 = vld [vmem:[%s1] sm:$0xf]
  %v32 = vld [vmem:[%s1 + $0x4] sm:$0xf]
  %v33 = vld [vmem:[%s1 + $0x8] sm:$0xf]
  %v34 = vld [vmem:[%s1 + $0xc] sm:$0xf]
  %v35 = vld [vmem:[%s2] sm:$0x1]
  %v37 = vperm.slane %v35, 0
  %v55 = vunpack.c.l.b16 %v15
  %v56 = vunpack.c.l.b16 %v16
  %v57 = vunpack.c.l.b16 %v17
  %v58 = vunpack.c.l.b16 %v18
  %v59 = vunpack.c.l.b16 %v19
  %v60 = vunpack.c.l.b16 %v20
  %v61 = vunpack.c.l.b16 %v21
  %v62 = vunpack.c.l.b16 %v22
  %v63 = vunpack.c.l.b16 %v23
  %v64 = vunpack.c.l.b16 %v24
  %v65 = vunpack.c.l.b16 %v25
  %v66 = vunpack.c.l.b16 %v26
  %v67 = vunpack.c.l.b16 %v27
  %v68 = vunpack.c.l.b16 %v28
  %v69 = vunpack.c.l.b16 %v29
  %v70 = vunpack.c.l.b16 %v30
  %v71 = vpack.c.b16 %v56, %v55
  %v72 = vpack.c.b16 %v58, %v57
  %v73 = vpack.c.b16 %v60, %v59
  %v74 = vpack.c.b16 %v62, %v61
  %v75 = vpack.c.b16 %v64, %v63
  %v76 = vpack.c.b16 %v66, %v65
  %v77 = vpack.c.b16 %v68, %v67
  %v78 = vpack.c.b16 %v70, %v69
  %v83 = vunpack.c.l.b16 %v31
  %v84 = vunpack.c.l.b16 %v32
  %v85 = vunpack.c.l.b16 %v33
  %v86 = vunpack.c.l.b16 %v34
  %v87 = vpack.c.b16 %v84, %v83
  %v88 = vpack.c.b16 %v86, %v85
  %vm91 = vcmask 261120
  %v93 = vsel %vm91, %v71, 0
  %v96 = vsel %vm91, %v72, 0
  %v99 = vsel %vm91, %v73, 0
  %v102 = vsel %vm91, %v74, 0
  %v105 = vsel %vm91, %v75, 0
  %v108 = vsel %vm91, %v76, 0
  %v111 = vsel %vm91, %v77, 0
  %v114 = vsel %vm91, %v78, 0
  %116 = vmatpush.bf16.msra.mxu0 0
  %117 = vmatpush.bf16.msra.mxu0 0
  %118 = vmatpush.bf16.msra.mxu0 0
  %119 = vmatpush.bf16.msra.mxu0 0
  %120 = vmatpush.bf16.msra.mxu0 0
  %121 = vmatpush.bf16.msra.mxu0 0
  %122 = vmatpush.bf16.msra.mxu0 %v88
  %123 = vmatpush.bf16.msra.mxu0 %v87
  %124 = vmatmul.bf16.gmra.mxu0 %v93
  %v125 = vpop.f32.mrf.mxu0
  %v126 = vadd.f32 %v37, %v125
  %v127 = vpop.f32.mrf.mxu0
  %v128 = vadd.f32 %v37, %v127
  %129 = vmatmul.bf16.gmra.mxu0 %v96
  %v130 = vpop.f32.mrf.mxu0
  %v131 = vadd.f32 %v37, %v130
  %v132 = vpop.f32.mrf.mxu0
  %v133 = vadd.f32 %v37, %v132
  %134 = vmatmul.bf16.gmra.mxu0 %v99
  %v135 = vpop.f32.mrf.mxu0
  %v136 = vadd.f32 %v37, %v135
  %v137 = vpop.f32.mrf.mxu0
  %v138 = vadd.f32 %v37, %v137
  %139 = vmatmul.bf16.gmra.mxu0 %v102
  %v140 = vpop.f32.mrf.mxu0
  %v141 = vadd.f32 %v37, %v140
  %v142 = vpop.f32.mrf.mxu0
  %v143 = vadd.f32 %v37, %v142
  %144 = vmatmul.bf16.gmra.mxu0 %v105
  %v145 = vpop.f32.mrf.mxu0
  %v146 = vadd.f32 %v37, %v145
  %v147 = vpop.f32.mrf.mxu0
  %v148 = vadd.f32 %v37, %v147
  %149 = vmatmul.bf16.gmra.mxu0 %v108
  %v150 = vpop.f32.mrf.mxu0
  %v151 = vadd.f32 %v37, %v150
  %v152 = vpop.f32.mrf.mxu0
  %v153 = vadd.f32 %v37, %v152
  %154 = vmatmul.bf16.gmra.mxu0 %v111
  %v155 = vpop.f32.mrf.mxu0
  %v156 = vadd.f32 %v37, %v155
  %v157 = vpop.f32.mrf.mxu0
  %v158 = vadd.f32 %v37, %v157
  %159 = vmatmul.bf16.gmra.mxu0 %v114
  %v160 = vpop.f32.mrf.mxu0
  %v161 = vadd.f32 %v37, %v160
  %v162 = vpop.f32.mrf.mxu0
  %v163 = vadd.f32 %v37, %v162
  %164 = vdwg.mxu0
  %165 = vst [vmem:[%s3] sm:$0xff] %v126
  %166 = vst [vmem:[%s3 + $0x8] sm:$0xff] %v128
  %167 = vst [vmem:[%s3 + $0x10] sm:$0xff] %v131
  %168 = vst [vmem:[%s3 + $0x18] sm:$0xff] %v133
  %169 = vst [vmem:[%s3 + $0x20] sm:$0xff] %v136
  %170 = vst [vmem:[%s3 + $0x28] sm:$0xff] %v138
  %171 = vst [vmem:[%s3 + $0x30] sm:$0xff] %v141
  %172 = vst [vmem:[%s3 + $0x38] sm:$0xff] %v143
  %173 = vst [vmem:[%s3 + $0x40] sm:$0xff] %v146
  %174 = vst [vmem:[%s3 + $0x48] sm:$0xff] %v148
  %175 = vst [vmem:[%s3 + $0x50] sm:$0xff] %v151
  %176 = vst [vmem:[%s3 + $0x58] sm:$0xff] %v153
  %177 = vst [vmem:[%s3 + $0x60] sm:$0xff] %v156
  %178 = vst [vmem:[%s3 + $0x68] sm:$0xff] %v158
  %179 = vst [vmem:[%s3 + $0x70] sm:$0xff] %v161
  %180 = vst [vmem:[%s3 + $0x78] sm:$0xff] %v163
  // Predicated region
  $region14: #{_lambda_.28} parent=0 // pred_check
    _
  $region15: #{_lambda_.28} parent=0 // pred_check_branch
    %182 = sbr.rel (0) target = $region17
  $region16: #{_lambda_.28} parent=0 // pred_region
    _
  $region17: #{_lambda_.28} parent=0 // pred_fallthru
    _
  // Predicated region
  $region18: #{_lambda_.28} parent=0 // pred_check
    _
  $region19: #{_lambda_.28} parent=0 // pred_check_branch
    %184 = sbr.rel (0) target = $region21
  $region20: #{_lambda_.28} parent=0 // pred_region
    _
  $region21: #{_lambda_.28} parent=0 // pred_fallthru
    _

// kernel: _lambda_.31
$region0: #{_lambda_.31}
  #allocation0 [shape = 'u32[]', space=smem, size = 0x4, offset = 0x4, fixed_abs, tag = 'smem constant byte address 0x4 - core index']
  #allocation1 [shape = 'u32[72,128]{1,0:T(1,128)}', space=vmem, size = 0x9000, scoped, tag = 'internal scratch']
  %s0 = inlined_call_operand.vmem [shape: bf16[64,32], index: 0, kind: input, shape index: {}]
  %s1 = inlined_call_operand.vmem [shape: bf16[32,128], index: 1, kind: input, shape index: {}]
  %s2 = inlined_call_operand.vmem [shape: f32[1,128], index: 2, kind: input, shape index: {}]
  %s3 = inlined_call_operand.vmem [shape: f32[64,128], index: 3, kind: output, shape index: {}]
  %s4 = sld [smem:[#allocation0]]
  $region22: #{_lambda_.31} parent=0
    _
  %s6 = ssub.s32 1, %s4
  %s7 = scalar_select 0, %s6, %s4
  // Predicated region
  $region2: #{_lambda_.31} parent=0 // pred_check
    _
  $region3: #{_lambda_.31} parent=0 // pred_check_branch
    %9 = sbr.rel (0) target = $region5
  $region4: #{_lambda_.31} parent=0 // pred_region
    _
  $region5: #{_lambda_.31} parent=0 // pred_fallthru
    _
  // Predicated region
  $region6: #{_lambda_.31} parent=0 // pred_check
    _
  $region7: #{_lambda_.31} parent=0 // pred_check_branch
    %11 = sbr.rel (0) target = $region9
  $region8: #{_lambda_.31} parent=0 // pred_region
    _
  $region9: #{_lambda_.31} parent=0 // pred_fallthru
    _
  // Predicated region
  $region10: #{_lambda_.31} parent=0 // pred_check
    _
  $region11: #{_lambda_.31} parent=0 // pred_check_branch
    %13 = sbr.rel (0) target = $region13
  $region12: #{_lambda_.31} parent=0 // pred_region
    _
  $region13: #{_lambda_.31} parent=0 // pred_fallthru
    _
  %v15 = vld [vmem:[%s0] sm:$0xf]
  %v16 = vld [vmem:[%s0 + $0x4] sm:$0xf]
  %v17 = vld [vmem:[%s0 + $0x8] sm:$0xf]
  %v18 = vld [vmem:[%s0 + $0xc] sm:$0xf]
  %v19 = vld [vmem:[%s0 + $0x10] sm:$0xf]
  %v20 = vld [vmem:[%s0 + $0x14] sm:$0xf]
  %v21 = vld [vmem:[%s0 + $0x18] sm:$0xf]
  %v22 = vld [vmem:[%s0 + $0x1c] sm:$0xf]
  %v23 = vld [vmem:[%s1] sm:$0xf]
  %v24 = vld [vmem:[%s1 + $0x4] sm:$0xf]
  %v25 = vld [vmem:[%s1 + $0x8] sm:$0xf]
  %v26 = vld [vmem:[%s1 + $0xc] sm:$0xf]
  %v27 = vld [vmem:[%s2] sm:$0x1]
  %v29 = vperm.slane %v27, 0
  %v39 = vunpack.c.l.b16 %v15
  %v40 = vunpack.c.l.b16 %v16
  %v41 = vunpack.c.l.b16 %v17
  %v42 = vunpack.c.l.b16 %v18
  %v43 = vunpack.c.l.b16 %v19
  %v44 = vunpack.c.l.b16 %v20
  %v45 = vunpack.c.l.b16 %v21
  %v46 = vunpack.c.l.b16 %v22
  %v47 = vpack.c.b16 %v40, %v39
  %v48 = vpack.c.b16 %v42, %v41
  %v49 = vpack.c.b16 %v44, %v43
  %v50 = vpack.c.b16 %v46, %v45
  %v55 = vunpack.c.l.b16 %v23
  %v56 = vunpack.c.l.b16 %v24
  %v57 = vunpack.c.l.b16 %v25
  %v58 = vunpack.c.l.b16 %v26
  %v59 = vpack.c.b16 %v56, %v55
  %v60 = vpack.c.b16 %v58, %v57
  %vm63 = vcmask 261120
  %v65 = vsel %vm63, %v47, 0
  %v68 = vsel %vm63, %v48, 0
  %v71 = vsel %vm63, %v49, 0
  %v74 = vsel %vm63, %v50, 0
  %76 = vmatpush.bf16.msra.mxu0 0
  %77 = vmatpush.bf16.msra.mxu0 0
  %78 = vmatpush.bf16.msra.mxu0 0
  %79 = vmatpush.bf16.msra.mxu0 0
  %80 = vmatpush.bf16.msra.mxu0 0
  %81 = vmatpush.bf16.msra.mxu0 0
  %82 = vmatpush.bf16.msra.mxu0 %v60
  %83 = vmatpush.bf16.msra.mxu0 %v59
  %84 = vmatmul.bf16.gmra.mxu0 %v65
  %v85 = vpop.f32.mrf.mxu0
  %v86 = vadd.f32 %v29, %v85
  %v87 = vpop.f32.mrf.mxu0
  %v88 = vadd.f32 %v29, %v87
  %89 = vmatmul.bf16.gmra.mxu0 %v68
  %v90 = vpop.f32.mrf.mxu0
  %v91 = vadd.f32 %v29, %v90
  %v92 = vpop.f32.mrf.mxu0
  %v93 = vadd.f32 %v29, %v92
  %94 = vmatmul.bf16.gmra.mxu0 %v71
  %v95 = vpop.f32.mrf.mxu0
  %v96 = vadd.f32 %v29, %v95
  %v97 = vpop.f32.mrf.mxu0
  %v98 = vadd.f32 %v29, %v97
  %99 = vmatmul.bf16.gmra.mxu0 %v74
  %v100 = vpop.f32.mrf.mxu0
  %v101 = vadd.f32 %v29, %v100
  %v102 = vpop.f32.mrf.mxu0
  %v103 = vadd.f32 %v29, %v102
  %104 = vdwg.mxu0
  %105 = vst [vmem:[%s3] sm:$0xff] %v86
  %106 = vst [vmem:[%s3 + $0x8] sm:$0xff] %v88
  %107 = vst [vmem:[%s3 + $0x10] sm:$0xff] %v91
  %108 = vst [vmem:[%s3 + $0x18] sm:$0xff] %v93
  %109 = vst [vmem:[%s3 + $0x20] sm:$0xff] %v96
  %110 = vst [vmem:[%s3 + $0x28] sm:$0xff] %v98
  %111 = vst [vmem:[%s3 + $0x30] sm:$0xff] %v101
  %112 = vst [vmem:[%s3 + $0x38] sm:$0xff] %v103
  // Predicated region
  $region14: #{_lambda_.31} parent=0 // pred_check
    _
  $region15: #{_lambda_.31} parent=0 // pred_check_branch
    %114 = sbr.rel (0) target = $region17
  $region16: #{_lambda_.31} parent=0 // pred_region
    _
  $region17: #{_lambda_.31} parent=0 // pred_fallthru
    _
  // Predicated region
  $region18: #{_lambda_.31} parent=0 // pred_check
    _
  $region19: #{_lambda_.31} parent=0 // pred_check_branch
    %116 = sbr.rel (0) target = $region21
  $region20: #{_lambda_.31} parent=0 // pred_region
    _
  $region21: #{_lambda_.31} parent=0 // pred_fallthru
    _

// kernel: _lambda_.33
$region0: #{_lambda_.33}
  #allocation0 [shape = 'u32[]', space=smem, size = 0x4, offset = 0x4, fixed_abs, tag = 'smem constant byte address 0x4 - core index']
  #allocation1 [shape = 'u32[72,128]{1,0:T(1,128)}', space=vmem, size = 0x9000, scoped, tag = 'internal scratch']
  %s0 = inlined_call_operand.vmem [shape: bf16[32,64], index: 0, kind: input, shape index: {}]
  %s1 = inlined_call_operand.vmem [shape: bf16[64,128], index: 1, kind: input, shape index: {}]
  %s2 = inlined_call_operand.vmem [shape: f32[1,128], index: 2, kind: input, shape index: {}]
  %s3 = inlined_call_operand.vmem [shape: f32[32,128], index: 3, kind: output, shape index: {}]
  %s4 = sld [smem:[#allocation0]]
  $region22: #{_lambda_.33} parent=0
    _
  %s6 = ssub.s32 1, %s4
  %s7 = scalar_select 0, %s6, %s4
  // Predicated region
  $region2: #{_lambda_.33} parent=0 // pred_check
    _
  $region3: #{_lambda_.33} parent=0 // pred_check_branch
    %9 = sbr.rel (0) target = $region5
  $region4: #{_lambda_.33} parent=0 // pred_region
    _
  $region5: #{_lambda_.33} parent=0 // pred_fallthru
    _
  // Predicated region
  $region6: #{_lambda_.33} parent=0 // pred_check
    _
  $region7: #{_lambda_.33} parent=0 // pred_check_branch
    %11 = sbr.rel (0) target = $region9
  $region8: #{_lambda_.33} parent=0 // pred_region
    _
  $region9: #{_lambda_.33} parent=0 // pred_fallthru
    _
  // Predicated region
  $region10: #{_lambda_.33} parent=0 // pred_check
    _
  $region11: #{_lambda_.33} parent=0 // pred_check_branch
    %13 = sbr.rel (0) target = $region13
  $region12: #{_lambda_.33} parent=0 // pred_region
    _
  $region13: #{_lambda_.33} parent=0 // pred_fallthru
    _
  %v15 = vld [vmem:[%s0] sm:$0xf]
  %v16 = vld [vmem:[%s0 + $0x4] sm:$0xf]
  %v17 = vld [vmem:[%s0 + $0x8] sm:$0xf]
  %v18 = vld [vmem:[%s0 + $0xc] sm:$0xf]
  %v19 = vld [vmem:[%s1] sm:$0xf]
  %v20 = vld [vmem:[%s1 + $0x4] sm:$0xf]
  %v21 = vld [vmem:[%s1 + $0x8] sm:$0xf]
  %v22 = vld [vmem:[%s1 + $0xc] sm:$0xf]
  %v23 = vld [vmem:[%s1 + $0x10] sm:$0xf]
  %v24 = vld [vmem:[%s1 + $0x14] sm:$0xf]
  %v25 = vld [vmem:[%s1 + $0x18] sm:$0xf]
  %v26 = vld [vmem:[%s1 + $0x1c] sm:$0xf]
  %v27 = vld [vmem:[%s2] sm:$0x1]
  %v29 = vperm.slane %v27, 0
  %v35 = vunpack.c.l.b16 %v15
  %v36 = vunpack.c.l.b16 %v16
  %v37 = vunpack.c.l.b16 %v17
  %v38 = vunpack.c.l.b16 %v18
  %v39 = vpack.c.b16 %v36, %v35
  %v40 = vpack.c.b16 %v38, %v37
  %v49 = vunpack.c.l.b16 %v19
  %v50 = vunpack.c.l.b16 %v20
  %v51 = vunpack.c.l.b16 %v21
  %v52 = vunpack.c.l.b16 %v22
  %v53 = vunpack.c.l.b16 %v23
  %v54 = vunpack.c.l.b16 %v24
  %v55 = vunpack.c.l.b16 %v25
  %v56 = vunpack.c.l.b16 %v26
  %v57 = vpack.c.b16 %v50, %v49
  %v58 = vpack.c.b16 %v52, %v51
  %v59 = vpack.c.b16 %v54, %v53
  %v60 = vpack.c.b16 %v56, %v55
  %vm65 = vcmask 523264
  %v67 = vsel %vm65, %v39, 0
  %v70 = vsel %vm65, %v40, 0
  %72 = vmatpush.bf16.msra.mxu0 0
  %73 = vmatpush.bf16.msra.mxu0 0
  %74 = vmatpush.bf16.msra.mxu0 0
  %75 = vmatpush.bf16.msra.mxu0 0
  %76 = vmatpush.bf16.msra.mxu0 %v60
  %77 = vmatpush.bf16.msra.mxu0 %v59
  %78 = vmatpush.bf16.msra.mxu0 %v58
  %79 = vmatpush.bf16.msra.mxu0 %v57
  %80 = vmatmul.bf16.gmra.mxu0 %v67
  %v81 = vpop.f32.mrf.mxu0
  %v82 = vadd.f32 %v29, %v81
  %v83 = vpop.f32.mrf.mxu0
  %v84 = vadd.f32 %v29, %v83
  %85 = vmatmul.bf16.gmra.mxu0 %v70
  %v86 = vpop.f32.mrf.mxu0
  %v87 = vadd.f32 %v29, %v86
  %v88 = vpop.f32.mrf.mxu0
  %v89 = vadd.f32 %v29, %v88
  %90 = vdwg.mxu0
  %v91 = vmax.f32 %v82, 0.0
  %v92 = vmax.f32 %v84, 0.0
  %v93 = vmax.f32 %v87, 0.0
  %v94 = vmax.f32 %v89, 0.0
  %95 = vst [vmem:[%s3] sm:$0xff] %v91
  %96 = vst [vmem:[%s3 + $0x8] sm:$0xff] %v92
  %97 = vst [vmem:[%s3 + $0x10] sm:$0xff] %v93
  %98 = vst [vmem:[%s3 + $0x18] sm:$0xff] %v94
  // Predicated region
  $region14: #{_lambda_.33} parent=0 // pred_check
    _
  $region15: #{_lambda_.33} parent=0 // pred_check_branch
    %100 = sbr.rel (0) target = $region17
  $region16: #{_lambda_.33} parent=0 // pred_region
    _
  $region17: #{_lambda_.33} parent=0 // pred_fallthru
    _
  // Predicated region
  $region18: #{_lambda_.33} parent=0 // pred_check
    _
  $region19: #{_lambda_.33} parent=0 // pred_check_branch
    %102 = sbr.rel (0) target = $region21
  $region20: #{_lambda_.33} parent=0 // pred_region
    _
  $region21: #{_lambda_.33} parent=0 // pred_fallthru
    _

// kernel: _lambda_.32
$region0: #{_lambda_.32}
  #allocation0 [shape = 'u32[]', space=smem, size = 0x4, offset = 0x4, fixed_abs, tag = 'smem constant byte address 0x4 - core index']
  #allocation1 [shape = 'u32[72,128]{1,0:T(1,128)}', space=vmem, size = 0x9000, scoped, tag = 'internal scratch']
  %s0 = inlined_call_operand.vmem [shape: bf16[64,576], index: 0, kind: input, shape index: {}]
  %s1 = inlined_call_operand.vmem [shape: bf16[576,128], index: 1, kind: input, shape index: {}]
  %s2 = inlined_call_operand.vmem [shape: f32[1,128], index: 2, kind: input, shape index: {}]
  %s3 = inlined_call_operand.vmem [shape: f32[64,128], index: 3, kind: input, shape index: {}]
  %s4 = inlined_call_operand.vmem [shape: f32[64,128], index: 4, kind: output, shape index: {}]
  %s5 = sld [smem:[#allocation0]]
  $region26: #{_lambda_.32} parent=0
    _
  %s7 = ssub.s32 1, %s5
  %s8 = scalar_select 0, %s7, %s5
  // Predicated region
  $region2: #{_lambda_.32} parent=0 // pred_check
    _
  $region3: #{_lambda_.32} parent=0 // pred_check_branch
    %10 = sbr.rel (0) target = $region5
  $region4: #{_lambda_.32} parent=0 // pred_region
    _
  $region5: #{_lambda_.32} parent=0 // pred_fallthru
    _
  // Predicated region
  $region6: #{_lambda_.32} parent=0 // pred_check
    _
  $region7: #{_lambda_.32} parent=0 // pred_check_branch
    %12 = sbr.rel (0) target = $region9
  $region8: #{_lambda_.32} parent=0 // pred_region
    _
  $region9: #{_lambda_.32} parent=0 // pred_fallthru
    _
  // Predicated region
  $region10: #{_lambda_.32} parent=0 // pred_check
    _
  $region11: #{_lambda_.32} parent=0 // pred_check_branch
    %14 = sbr.rel (0) target = $region13
  $region12: #{_lambda_.32} parent=0 // pred_region
    _
  $region13: #{_lambda_.32} parent=0 // pred_fallthru
    _
  // Predicated region
  $region14: #{_lambda_.32} parent=0 // pred_check
    _
  $region15: #{_lambda_.32} parent=0 // pred_check_branch
    %16 = sbr.rel (0) target = $region17
  $region16: #{_lambda_.32} parent=0 // pred_region
    _
  $region17: #{_lambda_.32} parent=0 // pred_fallthru
    _
  %v18 = vld [vmem:[%s0] sm:$0xff]
  %v19 = vld [vmem:[%s0 + $0x8] sm:$0xff]
  %v20 = vld [vmem:[%s0 + $0x10] sm:$0xf]
  %v21 = vld [vmem:[%s0 + $0x14] sm:$0xff]
  %v22 = vld [vmem:[%s0 + $0x1c] sm:$0xff]
  %v23 = vld [vmem:[%s0 + $0x24] sm:$0xf]
  %v24 = vld [vmem:[%s0 + $0x28] sm:$0xff]
  %v25 = vld [vmem:[%s0 + $0x30] sm:$0xff]
  %v26 = vld [vmem:[%s0 + $0x38] sm:$0xf]
  %v27 = vld [vmem:[%s0 + $0x3c] sm:$0xff]
  %v28 = vld [vmem:[%s0 + $0x44] sm:$0xff]
  %v29 = vld [vmem:[%s0 + $0x4c] sm:$0xf]
  %v30 = vld [vmem:[%s0 + $0x50] sm:$0xff]
  %v31 = vld [vmem:[%s0 + $0x58] sm:$0xff]
  %v32 = vld [vmem:[%s0 + $0x60] sm:$0xf]
  %v33 = vld [vmem:[%s0 + $0x64] sm:$0xff]
  %v34 = vld [vmem:[%s0 + $0x6c] sm:$0xff]
  %v35 = vld [vmem:[%s0 + $0x74] sm:$0xf]
  %v36 = vld [vmem:[%s0 + $0x78] sm:$0xff]
  %v37 = vld [vmem:[%s0 + $0x80] sm:$0xff]
  %v38 = vld [vmem:[%s0 + $0x88] sm:$0xf]
  %v39 = vld [vmem:[%s0 + $0x8c] sm:$0xff]
  %v40 = vld [vmem:[%s0 + $0x94] sm:$0xff]
  %v41 = vld [vmem:[%s0 + $0x9c] sm:$0xf]
  %v42 = vld [vmem:[%s1] sm:$0xf]
  %v43 = vld [vmem:[%s1 + $0x4] sm:$0xf]
  %v44 = vld [vmem:[%s1 + $0x8] sm:$0xf]
  %v45 = vld [vmem:[%s1 + $0xc] sm:$0xf]
  %v46 = vld [vmem:[%s1 + $0x10] sm:$0xf]
  %v47 = vld [vmem:[%s1 + $0x14] sm:$0xf]
  %v48 = vld [vmem:[%s1 + $0x18] sm:$0xf]
  %v49 = vld [vmem:[%s1 + $0x1c] sm:$0xf]
  %v50 = vld [vmem:[%s1 + $0x20] sm:$0xf]
  %v51 = vld [vmem:[%s1 + $0x24] sm:$0xf]
  %v52 = vld [vmem:[%s1 + $0x28] sm:$0xf]
  %v53 = vld [vmem:[%s1 + $0x2c] sm:$0xf]
  %v54 = vld [vmem:[%s1 + $0x30] sm:$0xf]
  %v55 = vld [vmem:[%s1 + $0x34] sm:$0xf]
  %v56 = vld [vmem:[%s1 + $0x38] sm:$0xf]
  %v57 = vld [vmem:[%s1 + $0x3c] sm:$0xf]
  %v58 = vld [vmem:[%s1 + $0x40] sm:$0xf]
  %v59 = vld [vmem:[%s1 + $0x44] sm:$0xf]
  %v60 = vld [vmem:[%s1 + $0x48] sm:$0xf]
  %v61 = vld [vmem:[%s1 + $0x4c] sm:$0xf]
  %v62 = vld [vmem:[%s1 + $0x50] sm:$0xf]
  %v63 = vld [vmem:[%s1 + $0x54] sm:$0xf]
  %v64 = vld [vmem:[%s1 + $0x58] sm:$0xf]
  %v65 = vld [vmem:[%s1 + $0x5c] sm:$0xf]
  %v66 = vld [vmem:[%s1 + $0x60] sm:$0xf]
  %v67 = vld [vmem:[%s1 + $0x64] sm:$0xf]
  %v68 = vld [vmem:[%s1 + $0x68] sm:$0xf]
  %v69 = vld [vmem:[%s1 + $0x6c] sm:$0xf]
  %v70 = vld [vmem:[%s1 + $0x70] sm:$0xf]
  %v71 = vld [vmem:[%s1 + $0x74] sm:$0xf]
  %v72 = vld [vmem:[%s1 + $0x78] sm:$0xf]
  %v73 = vld [vmem:[%s1 + $0x7c] sm:$0xf]
  %v74 = vld [vmem:[%s1 + $0x80] sm:$0xf]
  %v75 = vld [vmem:[%s1 + $0x84] sm:$0xf]
  %v76 = vld [vmem:[%s1 + $0x88] sm:$0xf]
  %v77 = vld [vmem:[%s1 + $0x8c] sm:$0xf]
  %v78 = vld [vmem:[%s1 + $0x90] sm:$0xf]
  %v79 = vld [vmem:[%s1 + $0x94] sm:$0xf]
  %v80 = vld [vmem:[%s1 + $0x98] sm:$0xf]
  %v81 = vld [vmem:[%s1 + $0x9c] sm:$0xf]
  %v82 = vld [vmem:[%s1 + $0xa0] sm:$0xf]
  %v83 = vld [vmem:[%s1 + $0xa4] sm:$0xf]
  %v84 = vld [vmem:[%s1 + $0xa8] sm:$0xf]
  %v85 = vld [vmem:[%s1 + $0xac] sm:$0xf]
  %v86 = vld [vmem:[%s1 + $0xb0] sm:$0xf]
  %v87 = vld [vmem:[%s1 + $0xb4] sm:$0xf]
  %v88 = vld [vmem:[%s1 + $0xb8] sm:$0xf]
  %v89 = vld [vmem:[%s1 + $0xbc] sm:$0xf]
  %v90 = vld [vmem:[%s1 + $0xc0] sm:$0xf]
  %v91 = vld [vmem:[%s1 + $0xc4] sm:$0xf]
  %v92 = vld [vmem:[%s1 + $0xc8] sm:$0xf]
  %v93 = vld [vmem:[%s1 + $0xcc] sm:$0xf]
  %v94 = vld [vmem:[%s1 + $0xd0] sm:$0xf]
  %v95 = vld [vmem:[%s1 + $0xd4] sm:$0xf]
  %v96 = vld [vmem:[%s1 + $0xd8] sm:$0xf]
  %v97 = vld [vmem:[%s1 + $0xdc] sm:$0xf]
  %v98 = vld [vmem:[%s1 + $0xe0] sm:$0xf]
  %v99 = vld [vmem:[%s1 + $0xe4] sm:$0xf]
  %v100 = vld [vmem:[%s1 + $0xe8] sm:$0xf]
  %v101 = vld [vmem:[%s1 + $0xec] sm:$0xf]
  %v102 = vld [vmem:[%s1 + $0xf0] sm:$0xf]
  %v103 = vld [vmem:[%s1 + $0xf4] sm:$0xf]
  %v104 = vld [vmem:[%s1 + $0xf8] sm:$0xf]
  %v105 = vld [vmem:[%s1 + $0xfc] sm:$0xf]
  %v106 = vld [vmem:[%s1 + $0x100] sm:$0xf]
  %v107 = vld [vmem:[%s1 + $0x104] sm:$0xf]
  %v108 = vld [vmem:[%s1 + $0x108] sm:$0xf]
  %v109 = vld [vmem:[%s1 + $0x10c] sm:$0xf]
  %v110 = vld [vmem:[%s1 + $0x110] sm:$0xf]
  %v111 = vld [vmem:[%s1 + $0x114] sm:$0xf]
  %v112 = vld [vmem:[%s1 + $0x118] sm:$0xf]
  %v113 = vld [vmem:[%s1 + $0x11c] sm:$0xf]
  %v114 = vld [vmem:[%s2] sm:$0x1]
  %v116 = vperm.slane %v114, 0
  %v142 = vunpack.c.l.b16 %v18
  %v143 = vunpack.c.h.b16 %v18
  %v144 = vunpack.c.l.b16 %v19
  %v145 = vunpack.c.h.b16 %v19
  %v146 = vunpack.c.l.b16 %v20
  %v147 = vunpack.c.l.b16 %v21
  %v148 = vunpack.c.h.b16 %v21
  %v149 = vunpack.c.l.b16 %v22
  %v150 = vunpack.c.h.b16 %v22
  %v151 = vunpack.c.l.b16 %v23
  %v152 = vunpack.c.l.b16 %v24
  %v153 = vunpack.c.h.b16 %v24
  %v154 = vunpack.c.l.b16 %v25
  %v155 = vunpack.c.h.b16 %v25
  %v156 = vunpack.c.l.b16 %v26
  %v157 = vunpack.c.l.b16 %v27
  %v158 = vunpack.c.h.b16 %v27
  %v159 = vunpack.c.l.b16 %v28
  %v160 = vunpack.c.h.b16 %v28
  %v161 = vunpack.c.l.b16 %v29
  %v162 = vunpack.c.l.b16 %v30
  %v163 = vunpack.c.h.b16 %v30
  %v164 = vunpack.c.l.b16 %v31
  %v165 = vunpack.c.h.b16 %v31
  %v166 = vunpack.c.l.b16 %v32
  %v167 = vunpack.c.l.b16 %v33
  %v168 = vunpack.c.h.b16 %v33
  %v169 = vunpack.c.l.b16 %v34
  %v170 = vunpack.c.h.b16 %v34
  %v171 = vunpack.c.l.b16 %v35
  %v172 = vunpack.c.l.b16 %v36
  %v173 = vunpack.c.h.b16 %v36
  %v174 = vunpack.c.l.b16 %v37
  %v175 = vunpack.c.h.b16 %v37
  %v176 = vunpack.c.l.b16 %v38
  %v177 = vunpack.c.l.b16 %v39
  %v178 = vunpack.c.h.b16 %v39
  %v179 = vunpack.c.l.b16 %v40
  %v180 = vunpack.c.h.b16 %v40
  %v181 = vunpack.c.l.b16 %v41
  %v182 = vpack.c.b16 %v147, %v142
  %v183 = vpack.c.b16 %v148, %v143
  %v184 = vpack.c.b16 %v149, %v144
  %v185 = vpack.c.b16 %v150, %v145
  %v186 = vpack.c.b16 %v151, %v146
  %v187 = vpack.c.b16 %v157, %v152
  %v188 = vpack.c.b16 %v158, %v153
  %v189 = vpack.c.b16 %v159, %v154
  %v190 = vpack.c.b16 %v160, %v155
  %v191 = vpack.c.b16 %v161, %v156
  %v192 = vpack.c.b16 %v167, %v162
  %v193 = vpack.c.b16 %v168, %v163
  %v194 = vpack.c.b16 %v169, %v164
  %v195 = vpack.c.b16 %v170, %v165
  %v196 = vpack.c.b16 %v171, %v166
  %v197 = vpack.c.b16 %v177, %v172
  %v198 = vpack.c.b16 %v178, %v173
  %v199 = vpack.c.b16 %v179, %v174
  %v200 = vpack.c.b16 %v180, %v175
  %v201 = vpack.c.b16 %v181, %v176
  %v290 = vunpack.c.l.b16 %v42
  %v291 = vunpack.c.l.b16 %v43
  %v292 = vunpack.c.l.b16 %v44
  %v293 = vunpack.c.l.b16 %v45
  %v294 = vunpack.c.l.b16 %v46
  %v295 = vunpack.c.l.b16 %v47
  %v296 = vunpack.c.l.b16 %v48
  %v297 = vunpack.c.l.b16 %v49
  %v298 = vunpack.c.l.b16 %v50
  %v299 = vunpack.c.l.b16 %v51
  %v300 = vunpack.c.l.b16 %v52
  %v301 = vunpack.c.l.b16 %v53
  %v302 = vunpack.c.l.b16 %v54
  %v303 = vunpack.c.l.b16 %v55
  %v304 = vunpack.c.l.b16 %v56
  %v305 = vunpack.c.l.b16 %v57
  %v306 = vunpack.c.l.b16 %v58
  %v307 = vunpack.c.l.b16 %v59
  %v308 = vunpack.c.l.b16 %v60
  %v309 = vunpack.c.l.b16 %v61
  %v310 = vunpack.c.l.b16 %v62
  %v311 = vunpack.c.l.b16 %v63
  %v312 = vunpack.c.l.b16 %v64
  %v313 = vunpack.c.l.b16 %v65
  %v314 = vunpack.c.l.b16 %v66
  %v315 = vunpack.c.l.b16 %v67
  %v316 = vunpack.c.l.b16 %v68
  %v317 = vunpack.c.l.b16 %v69
  %v318 = vunpack.c.l.b16 %v70
  %v319 = vunpack.c.l.b16 %v71
  %v320 = vunpack.c.l.b16 %v72
  %v321 = vunpack.c.l.b16 %v73
  %v322 = vunpack.c.l.b16 %v74
  %v323 = vunpack.c.l.b16 %v75
  %v324 = vunpack.c.l.b16 %v76
  %v325 = vunpack.c.l.b16 %v77
  %v326 = vunpack.c.l.b16 %v78
  %v327 = vunpack.c.l.b16 %v79
  %v328 = vunpack.c.l.b16 %v80
  %v329 = vunpack.c.l.b16 %v81
  %v330 = vunpack.c.l.b16 %v82
  %v331 = vunpack.c.l.b16 %v83
  %v332 = vunpack.c.l.b16 %v84
  %v333 = vunpack.c.l.b16 %v85
  %v334 = vunpack.c.l.b16 %v86
  %v335 = vunpack.c.l.b16 %v87
  %v336 = vunpack.c.l.b16 %v88
  %v337 = vunpack.c.l.b16 %v89
  %v338 = vunpack.c.l.b16 %v90
  %v339 = vunpack.c.l.b16 %v91
  %v340 = vunpack.c.l.b16 %v92
  %v341 = vunpack.c.l.b16 %v93
  %v342 = vunpack.c.l.b16 %v94
  %v343 = vunpack.c.l.b16 %v95
  %v344 = vunpack.c.l.b16 %v96
  %v345 = vunpack.c.l.b16 %v97
  %v346 = vunpack.c.l.b16 %v98
  %v347 = vunpack.c.l.b16 %v99
  %v348 = vunpack.c.l.b16 %v100
  %v349 = vunpack.c.l.b16 %v101
  %v350 = vunpack.c.l.b16 %v102
  %v351 = vunpack.c.l.b16 %v103
  %v352 = vunpack.c.l.b16 %v104
  %v353 = vunpack.c.l.b16 %v105
  %v354 = vunpack.c.l.b16 %v106
  %v355 = vunpack.c.l.b16 %v107
  %v356 = vunpack.c.l.b16 %v108
  %v357 = vunpack.c.l.b16 %v109
  %v358 = vunpack.c.l.b16 %v110
  %v359 = vunpack.c.l.b16 %v111
  %v360 = vunpack.c.l.b16 %v112
  %v361 = vunpack.c.l.b16 %v113
  %v362 = vpack.c.b16 %v291, %v290
  %v363 = vpack.c.b16 %v293, %v292
  %v364 = vpack.c.b16 %v295, %v294
  %v365 = vpack.c.b16 %v297, %v296
  %v366 = vpack.c.b16 %v299, %v298
  %v367 = vpack.c.b16 %v301, %v300
  %v368 = vpack.c.b16 %v303, %v302
  %v369 = vpack.c.b16 %v305, %v304
  %v370 = vpack.c.b16 %v307, %v306
  %v371 = vpack.c.b16 %v309, %v308
  %v372 = vpack.c.b16 %v311, %v310
  %v373 = vpack.c.b16 %v313, %v312
  %v374 = vpack.c.b16 %v315, %v314
  %v375 = vpack.c.b16 %v317, %v316
  %v376 = vpack.c.b16 %v319, %v318
  %v377 = vpack.c.b16 %v321, %v320
  %v378 = vpack.c.b16 %v323, %v322
  %v379 = vpack.c.b16 %v325, %v324
  %v380 = vpack.c.b16 %v327, %v326
  %v381 = vpack.c.b16 %v329, %v328
  %v382 = vpack.c.b16 %v331, %v330
  %v383 = vpack.c.b16 %v333, %v332
  %v384 = vpack.c.b16 %v335, %v334
  %v385 = vpack.c.b16 %v337, %v336
  %v386 = vpack.c.b16 %v339, %v338
  %v387 = vpack.c.b16 %v341, %v340
  %v388 = vpack.c.b16 %v343, %v342
  %v389 = vpack.c.b16 %v345, %v344
  %v390 = vpack.c.b16 %v347, %v346
  %v391 = vpack.c.b16 %v349, %v348
  %v392 = vpack.c.b16 %v351, %v350
  %v393 = vpack.c.b16 %v353, %v352
  %v394 = vpack.c.b16 %v355, %v354
  %v395 = vpack.c.b16 %v357, %v356
  %v396 = vpack.c.b16 %v359, %v358
  %v397 = vpack.c.b16 %v361, %v360
  %vm434 = vcmask 523264
  %v436 = vsel %vm434, %v186, 0
  %v439 = vsel %vm434, %v191, 0
  %v442 = vsel %vm434, %v196, 0
  %v445 = vsel %vm434, %v201, 0
  %447 = vmatpush.bf16.msra.mxu0 %v369
  %448 = vmatpush.bf16.msra.mxu0 %v368
  %449 = vmatpush.bf16.msra.mxu0 %v367
  %450 = vmatpush.bf16.msra.mxu0 %v366
  %451 = vmatpush.bf16.msra.mxu0 %v365
  %452 = vmatpush.bf16.msra.mxu0 %v364
  %453 = vmatpush.bf16.msra.mxu0 %v363
  %454 = vmatpush.bf16.msra.mxu0 %v362
  %455 = vmatmul.bf16.gmra.mxu0 %v182
  %v456 = vpop.f32.mrf.mxu0
  %v457 = vadd.f32 %v116, %v456
  %v458 = vpop.f32.mrf.mxu0
  %v459 = vadd.f32 %v116, %v458
  %460 = vmatmul.bf16.gmra.mxu0 %v187
  %v461 = vpop.f32.mrf.mxu0
  %v462 = vadd.f32 %v116, %v461
  %v463 = vpop.f32.mrf.mxu0
  %v464 = vadd.f32 %v116, %v463
  %465 = vmatmul.bf16.gmra.mxu0 %v192
  %v466 = vpop.f32.mrf.mxu0
  %v467 = vadd.f32 %v116, %v466
  %v468 = vpop.f32.mrf.mxu0
  %v469 = vadd.f32 %v116, %v468
  %470 = vmatmul.bf16.gmra.mxu0 %v197
  %v471 = vpop.f32.mrf.mxu0
  %v472 = vadd.f32 %v116, %v471
  %v473 = vpop.f32.mrf.mxu0
  %v474 = vadd.f32 %v116, %v473
  %475 = vdwg.mxu0
  %476 = vmatpush.bf16.msra.mxu0 %v377
  %477 = vmatpush.bf16.msra.mxu0 %v376
  %478 = vmatpush.bf16.msra.mxu0 %v375
  %479 = vmatpush.bf16.msra.mxu0 %v374
  %480 = vmatpush.bf16.msra.mxu0 %v373
  %481 = vmatpush.bf16.msra.mxu0 %v372
  %482 = vmatpush.bf16.msra.mxu0 %v371
  %483 = vmatpush.bf16.msra.mxu0 %v370
  %484 = vmatmul.bf16.gmra.mxu0 %v183
  %v485 = vpop.f32.mrf.mxu0
  %v486 = vadd.f32 %v457, %v485
  %v487 = vpop.f32.mrf.mxu0
  %v488 = vadd.f32 %v459, %v487
  %489 = vmatmul.bf16.gmra.mxu0 %v188
  %v490 = vpop.f32.mrf.mxu0
  %v491 = vadd.f32 %v462, %v490
  %v492 = vpop.f32.mrf.mxu0
  %v493 = vadd.f32 %v464, %v492
  %494 = vmatmul.bf16.gmra.mxu0 %v193
  %v495 = vpop.f32.mrf.mxu0
  %v496 = vadd.f32 %v467, %v495
  %v497 = vpop.f32.mrf.mxu0
  %v498 = vadd.f32 %v469, %v497
  %499 = vmatmul.bf16.gmra.mxu0 %v198
  %v500 = vpop.f32.mrf.mxu0
  %v501 = vadd.f32 %v472, %v500
  %v502 = vpop.f32.mrf.mxu0
  %v503 = vadd.f32 %v474, %v502
  %504 = vdwg.mxu0
  %505 = vmatpush.bf16.msra.mxu0 %v385
  %506 = vmatpush.bf16.msra.mxu0 %v384
  %507 = vmatpush.bf16.msra.mxu0 %v383
  %508 = vmatpush.bf16.msra.mxu0 %v382
  %509 = vmatpush.bf16.msra.mxu0 %v381
  %510 = vmatpush.bf16.msra.mxu0 %v380
  %511 = vmatpush.bf16.msra.mxu0 %v379
  %512 = vmatpush.bf16.msra.mxu0 %v378
  %513 = vmatmul.bf16.gmra.mxu0 %v184
  %v514 = vpop.f32.mrf.mxu0
  %v515 = vadd.f32 %v486, %v514
  %v516 = vpop.f32.mrf.mxu0
  %v517 = vadd.f32 %v488, %v516
  %518 = vmatmul.bf16.gmra.mxu0 %v189
  %v519 = vpop.f32.mrf.mxu0
  %v520 = vadd.f32 %v491, %v519
  %v521 = vpop.f32.mrf.mxu0
  %v522 = vadd.f32 %v493, %v521
  %523 = vmatmul.bf16.gmra.mxu0 %v194
  %v524 = vpop.f32.mrf.mxu0
  %v525 = vadd.f32 %v496, %v524
  %v526 = vpop.f32.mrf.mxu0
  %v527 = vadd.f32 %v498, %v526
  %528 = vmatmul.bf16.gmra.mxu0 %v199
  %v529 = vpop.f32.mrf.mxu0
  %v530 = vadd.f32 %v501, %v529
  %v531 = vpop.f32.mrf.mxu0
  %v532 = vadd.f32 %v503, %v531
  %533 = vdwg.mxu0
  %534 = vmatpush.bf16.msra.mxu0 %v393
  %535 = vmatpush.bf16.msra.mxu0 %v392
  %536 = vmatpush.bf16.msra.mxu0 %v391
  %537 = vmatpush.bf16.msra.mxu0 %v390
  %538 = vmatpush.bf16.msra.mxu0 %v389
  %539 = vmatpush.bf16.msra.mxu0 %v388
  %540 = vmatpush.bf16.msra.mxu0 %v387
  %541 = vmatpush.bf16.msra.mxu0 %v386
  %542 = vmatmul.bf16.gmra.mxu0 %v185
  %v543 = vpop.f32.mrf.mxu0
  %v544 = vadd.f32 %v515, %v543
  %v545 = vpop.f32.mrf.mxu0
  %v546 = vadd.f32 %v517, %v545
  %547 = vmatmul.bf16.gmra.mxu0 %v190
  %v548 = vpop.f32.mrf.mxu0
  %v549 = vadd.f32 %v520, %v548
  %v550 = vpop.f32.mrf.mxu0
  %v551 = vadd.f32 %v522, %v550
  %552 = vmatmul.bf16.gmra.mxu0 %v195
  %v553 = vpop.f32.mrf.mxu0
  %v554 = vadd.f32 %v525, %v553
  %v555 = vpop.f32.mrf.mxu0
  %v556 = vadd.f32 %v527, %v555
  %557 = vmatmul.bf16.gmra.mxu0 %v200
  %v558 = vpop.f32.mrf.mxu0
  %v559 = vadd.f32 %v530, %v558
  %v560 = vpop.f32.mrf.mxu0
  %v561 = vadd.f32 %v532, %v560
  %562 = vdwg.mxu0
  %563 = vmatpush.bf16.msra.mxu0 0
  %564 = vmatpush.bf16.msra.mxu0 0
  %565 = vmatpush.bf16.msra.mxu0 0
  %566 = vmatpush.bf16.msra.mxu0 0
  %567 = vmatpush.bf16.msra.mxu0 %v397
  %568 = vmatpush.bf16.msra.mxu0 %v396
  %569 = vmatpush.bf16.msra.mxu0 %v395
  %570 = vmatpush.bf16.msra.mxu0 %v394
  %571 = vmatmul.bf16.gmra.mxu0 %v436
  %v572 = vpop.f32.mrf.mxu0
  %v573 = vadd.f32 %v544, %v572
  %v574 = vpop.f32.mrf.mxu0
  %v575 = vadd.f32 %v546, %v574
  %576 = vmatmul.bf16.gmra.mxu0 %v439
  %v577 = vpop.f32.mrf.mxu0
  %v578 = vadd.f32 %v549, %v577
  %v579 = vpop.f32.mrf.mxu0
  %v580 = vadd.f32 %v551, %v579
  %581 = vmatmul.bf16.gmra.mxu0 %v442
  %v582 = vpop.f32.mrf.mxu0
  %v583 = vadd.f32 %v554, %v582
  %v584 = vpop.f32.mrf.mxu0
  %v585 = vadd.f32 %v556, %v584
  %586 = vmatmul.bf16.gmra.mxu0 %v445
  %v587 = vpop.f32.mrf.mxu0
  %v588 = vadd.f32 %v559, %v587
  %v589 = vpop.f32.mrf.mxu0
  %v590 = vadd.f32 %v561, %v589
  %591 = vdwg.mxu0
  %v592 = vld [vmem:[%s3] sm:$0xff]
  %v593 = vld [vmem:[%s3 + $0x8] sm:$0xff]
  %v594 = vld [vmem:[%s3 + $0x10] sm:$0xff]
  %v595 = vld [vmem:[%s3 + $0x18] sm:$0xff]
  %v596 = vld [vmem:[%s3 + $0x20] sm:$0xff]
  %v597 = vld [vmem:[%s3 + $0x28] sm:$0xff]
  %v598 = vld [vmem:[%s3 + $0x30] sm:$0xff]
  %v599 = vld [vmem:[%s3 + $0x38] sm:$0xff]
  %v600 = vadd.f32 %v573, %v592
  %v601 = vadd.f32 %v575, %v593
  %v602 = vadd.f32 %v578, %v594
  %v603 = vadd.f32 %v580, %v595
  %v604 = vadd.f32 %v583, %v596
  %v605 = vadd.f32 %v585, %v597
  %v606 = vadd.f32 %v588, %v598
  %v607 = vadd.f32 %v590, %v599
  %v608 = vmax.f32 %v600, 0.0
  %v609 = vmax.f32 %v601, 0.0
  %v610 = vmax.f32 %v602, 0.0
  %v611 = vmax.f32 %v603, 0.0
  %v612 = vmax.f32 %v604, 0.0
  %v613 = vmax.f32 %v605, 0.0
  %v614 = vmax.f32 %v606, 0.0
  %v615 = vmax.f32 %v607, 0.0
  %616 = vst [vmem:[%s4] sm:$0xff] %v608
  %617 = vst [vmem:[%s4 + $0x8] sm:$0xff] %v609
  %618 = vst [vmem:[%s4 + $0x10] sm:$0xff] %v610
  %619 = vst [vmem:[%s4 + $0x18] sm:$0xff] %v611
  %620 = vst [vmem:[%s4 + $0x20] sm:$0xff] %v612
  %621 = vst [vmem:[%s4 + $0x28] sm:$0xff] %v613
  %622 = vst [vmem:[%s4 + $0x30] sm:$0xff] %v614
  %623 = vst [vmem:[%s4 + $0x38] sm:$0xff] %v615
  // Predicated region
  $region18: #{_lambda_.32} parent=0 // pred_check
    _
  $region19: #{_lambda_.32} parent=0 // pred_check_branch
    %625 = sbr.rel (0) target = $region21
  $region20: #{_lambda_.32} parent=0 // pred_region
    _
  $region21: #{_lambda_.32} parent=0 // pred_fallthru
    _
  // Predicated region
  $region22: #{_lambda_.32} parent=0 // pred_check
    _
  $region23: #{_lambda_.32} parent=0 // pred_check_branch
    %627 = sbr.rel (0) target = $region25
  $region24: #{_lambda_.32} parent=0 // pred_region
    _
  $region25: #{_lambda_.32} parent=0 // pred_fallthru
    _

// kernel: _lambda_.34
$region0: #{_lambda_.34}
  #allocation0 [shape = 'u32[]', space=smem, size = 0x4, offset = 0x4, fixed_abs, tag = 'smem constant byte address 0x4 - core index']
  #allocation1 [shape = 'u32[72,128]{1,0:T(1,128)}', space=vmem, size = 0x9000, scoped, tag = 'internal scratch']
  %s0 = inlined_call_operand.vmem [shape: bf16[32,64], index: 0, kind: input, shape index: {}]
  %s1 = inlined_call_operand.vmem [shape: bf16[64,128], index: 1, kind: input, shape index: {}]
  %s2 = inlined_call_operand.vmem [shape: f32[1,128], index: 2, kind: input, shape index: {}]
  %s3 = inlined_call_operand.vmem [shape: f32[32,128], index: 3, kind: output, shape index: {}]
  %s4 = sld [smem:[#allocation0]]
  $region22: #{_lambda_.34} parent=0
    _
  %s6 = ssub.s32 1, %s4
  %s7 = scalar_select 0, %s6, %s4
  // Predicated region
  $region2: #{_lambda_.34} parent=0 // pred_check
    _
  $region3: #{_lambda_.34} parent=0 // pred_check_branch
    %9 = sbr.rel (0) target = $region5
  $region4: #{_lambda_.34} parent=0 // pred_region
    _
  $region5: #{_lambda_.34} parent=0 // pred_fallthru
    _
  // Predicated region
  $region6: #{_lambda_.34} parent=0 // pred_check
    _
  $region7: #{_lambda_.34} parent=0 // pred_check_branch
    %11 = sbr.rel (0) target = $region9
  $region8: #{_lambda_.34} parent=0 // pred_region
    _
  $region9: #{_lambda_.34} parent=0 // pred_fallthru
    _
  // Predicated region
  $region10: #{_lambda_.34} parent=0 // pred_check
    _
  $region11: #{_lambda_.34} parent=0 // pred_check_branch
    %13 = sbr.rel (0) target = $region13
  $region12: #{_lambda_.34} parent=0 // pred_region
    _
  $region13: #{_lambda_.34} parent=0 // pred_fallthru
    _
  %v15 = vld [vmem:[%s0] sm:$0xf]
  %v16 = vld [vmem:[%s0 + $0x4] sm:$0xf]
  %v17 = vld [vmem:[%s0 + $0x8] sm:$0xf]
  %v18 = vld [vmem:[%s0 + $0xc] sm:$0xf]
  %v19 = vld [vmem:[%s1] sm:$0xf]
  %v20 = vld [vmem:[%s1 + $0x4] sm:$0xf]
  %v21 = vld [vmem:[%s1 + $0x8] sm:$0xf]
  %v22 = vld [vmem:[%s1 + $0xc] sm:$0xf]
  %v23 = vld [vmem:[%s1 + $0x10] sm:$0xf]
  %v24 = vld [vmem:[%s1 + $0x14] sm:$0xf]
  %v25 = vld [vmem:[%s1 + $0x18] sm:$0xf]
  %v26 = vld [vmem:[%s1 + $0x1c] sm:$0xf]
  %v27 = vld [vmem:[%s2] sm:$0x1]
  %v29 = vperm.slane %v27, 0
  %v35 = vunpack.c.l.b16 %v15
  %v36 = vunpack.c.l.b16 %v16
  %v37 = vunpack.c.l.b16 %v17
  %v38 = vunpack.c.l.b16 %v18
  %v39 = vpack.c.b16 %v36, %v35
  %v40 = vpack.c.b16 %v38, %v37
  %v49 = vunpack.c.l.b16 %v19
  %v50 = vunpack.c.l.b16 %v20
  %v51 = vunpack.c.l.b16 %v21
  %v52 = vunpack.c.l.b16 %v22
  %v53 = vunpack.c.l.b16 %v23
  %v54 = vunpack.c.l.b16 %v24
  %v55 = vunpack.c.l.b16 %v25
  %v56 = vunpack.c.l.b16 %v26
  %v57 = vpack.c.b16 %v50, %v49
  %v58 = vpack.c.b16 %v52, %v51
  %v59 = vpack.c.b16 %v54, %v53
  %v60 = vpack.c.b16 %v56, %v55
  %vm65 = vcmask 523264
  %v67 = vsel %vm65, %v39, 0
  %v70 = vsel %vm65, %v40, 0
  %72 = vmatpush.bf16.msra.mxu0 0
  %73 = vmatpush.bf16.msra.mxu0 0
  %74 = vmatpush.bf16.msra.mxu0 0
  %75 = vmatpush.bf16.msra.mxu0 0
  %76 = vmatpush.bf16.msra.mxu0 %v60
  %77 = vmatpush.bf16.msra.mxu0 %v59
  %78 = vmatpush.bf16.msra.mxu0 %v58
  %79 = vmatpush.bf16.msra.mxu0 %v57
  %80 = vmatmul.bf16.gmra.mxu0 %v67
  %v81 = vpop.f32.mrf.mxu0
  %v82 = vadd.f32 %v29, %v81
  %v83 = vpop.f32.mrf.mxu0
  %v84 = vadd.f32 %v29, %v83
  %85 = vmatmul.bf16.gmra.mxu0 %v70
  %v86 = vpop.f32.mrf.mxu0
  %v87 = vadd.f32 %v29, %v86
  %v88 = vpop.f32.mrf.mxu0
  %v89 = vadd.f32 %v29, %v88
  %90 = vdwg.mxu0
  %91 = vst [vmem:[%s3] sm:$0xff] %v82
  %92 = vst [vmem:[%s3 + $0x8] sm:$0xff] %v84
  %93 = vst [vmem:[%s3 + $0x10] sm:$0xff] %v87
  %94 = vst [vmem:[%s3 + $0x18] sm:$0xff] %v89
  // Predicated region
  $region14: #{_lambda_.34} parent=0 // pred_check
    _
  $region15: #{_lambda_.34} parent=0 // pred_check_branch
    %96 = sbr.rel (0) target = $region17
  $region16: #{_lambda_.34} parent=0 // pred_region
    _
  $region17: #{_lambda_.34} parent=0 // pred_fallthru
    _
  // Predicated region
  $region18: #{_lambda_.34} parent=0 // pred_check
    _
  $region19: #{_lambda_.34} parent=0 // pred_check_branch
    %98 = sbr.rel (0) target = $region21
  $region20: #{_lambda_.34} parent=0 // pred_region
    _
  $region21: #{_lambda_.34} parent=0 // pred_fallthru
    _

// kernel: _lambda_.36
$region0: #{_lambda_.36}
  #allocation0 [shape = 'u32[]', space=smem, size = 0x4, offset = 0x4, fixed_abs, tag = 'smem constant byte address 0x4 - core index']
  #allocation1 [shape = 'u32[72,128]{1,0:T(1,128)}', space=vmem, size = 0x9000, scoped, tag = 'internal scratch']
  %s0 = inlined_call_operand.vmem [shape: bf16[32,64], index: 0, kind: input, shape index: {}]
  %s1 = inlined_call_operand.vmem [shape: bf16[64,256], index: 1, kind: input, shape index: {}]
  %s2 = inlined_call_operand.vmem [shape: f32[1,256], index: 2, kind: input, shape index: {}]
  %s3 = inlined_call_operand.vmem [shape: f32[32,256], index: 3, kind: output, shape index: {}]
  %s4 = sld [smem:[#allocation0]]
  $region22: #{_lambda_.36} parent=0
    _
  %s6 = ssub.s32 1, %s4
  %s7 = scalar_select 0, %s6, %s4
  // Predicated region
  $region2: #{_lambda_.36} parent=0 // pred_check
    _
  $region3: #{_lambda_.36} parent=0 // pred_check_branch
    %9 = sbr.rel (0) target = $region5
  $region4: #{_lambda_.36} parent=0 // pred_region
    _
  $region5: #{_lambda_.36} parent=0 // pred_fallthru
    _
  // Predicated region
  $region6: #{_lambda_.36} parent=0 // pred_check
    _
  $region7: #{_lambda_.36} parent=0 // pred_check_branch
    %11 = sbr.rel (0) target = $region9
  $region8: #{_lambda_.36} parent=0 // pred_region
    _
  $region9: #{_lambda_.36} parent=0 // pred_fallthru
    _
  // Predicated region
  $region10: #{_lambda_.36} parent=0 // pred_check
    _
  $region11: #{_lambda_.36} parent=0 // pred_check_branch
    %13 = sbr.rel (0) target = $region13
  $region12: #{_lambda_.36} parent=0 // pred_region
    _
  $region13: #{_lambda_.36} parent=0 // pred_fallthru
    _
  %v15 = vld [vmem:[%s0] sm:$0xf]
  %v16 = vld [vmem:[%s0 + $0x4] sm:$0xf]
  %v17 = vld [vmem:[%s0 + $0x8] sm:$0xf]
  %v18 = vld [vmem:[%s0 + $0xc] sm:$0xf]
  %v19 = vld [vmem:[%s1] sm:$0xff]
  %v20 = vld [vmem:[%s1 + $0x8] sm:$0xff]
  %v21 = vld [vmem:[%s1 + $0x10] sm:$0xff]
  %v22 = vld [vmem:[%s1 + $0x18] sm:$0xff]
  %v23 = vld [vmem:[%s1 + $0x20] sm:$0xff]
  %v24 = vld [vmem:[%s1 + $0x28] sm:$0xff]
  %v25 = vld [vmem:[%s1 + $0x30] sm:$0xff]
  %v26 = vld [vmem:[%s1 + $0x38] sm:$0xff]
  %v27 = vld [vmem:[%s2] sm:$0x3]
  %v29 = vperm.slane %v27, 0
  %v30 = vperm.slane %v27, 1
  %v37 = vunpack.c.l.b16 %v15
  %v38 = vunpack.c.l.b16 %v16
  %v39 = vunpack.c.l.b16 %v17
  %v40 = vunpack.c.l.b16 %v18
  %v41 = vpack.c.b16 %v38, %v37
  %v42 = vpack.c.b16 %v40, %v39
  %v51 = vunpack.c.l.b16 %v19
  %v52 = vunpack.c.h.b16 %v19
  %v53 = vunpack.c.l.b16 %v20
  %v54 = vunpack.c.h.b16 %v20
  %v55 = vunpack.c.l.b16 %v21
  %v56 = vunpack.c.h.b16 %v21
  %v57 = vunpack.c.l.b16 %v22
  %v58 = vunpack.c.h.b16 %v22
  %v59 = vunpack.c.l.b16 %v23
  %v60 = vunpack.c.h.b16 %v23
  %v61 = vunpack.c.l.b16 %v24
  %v62 = vunpack.c.h.b16 %v24
  %v63 = vunpack.c.l.b16 %v25
  %v64 = vunpack.c.h.b16 %v25
  %v65 = vunpack.c.l.b16 %v26
  %v66 = vunpack.c.h.b16 %v26
  %v67 = vpack.c.b16 %v53, %v51
  %v68 = vpack.c.b16 %v54, %v52
  %v69 = vpack.c.b16 %v57, %v55
  %v70 = vpack.c.b16 %v58, %v56
  %v71 = vpack.c.b16 %v61, %v59
  %v72 = vpack.c.b16 %v62, %v60
  %v73 = vpack.c.b16 %v65, %v63
  %v74 = vpack.c.b16 %v66, %v64
  %vm83 = vcmask 523264
  %v85 = vsel %vm83, %v41, 0
  %v88 = vsel %vm83, %v42, 0
  %90 = vmatpush.bf16.msra.mxu0 0
  %91 = vmatpush.bf16.msra.mxu0 0
  %92 = vmatpush.bf16.msra.mxu0 0
  %93 = vmatpush.bf16.msra.mxu0 0
  %94 = vmatpush.bf16.msra.mxu0 %v73
  %95 = vmatpush.bf16.msra.mxu0 %v71
  %96 = vmatpush.bf16.msra.mxu0 %v69
  %97 = vmatpush.bf16.msra.mxu0 %v67
  %98 = vmatmul.bf16.gmra.mxu0 %v85
  %v99 = vpop.f32.mrf.mxu0
  %v100 = vadd.f32 %v29, %v99
  %v101 = vpop.f32.mrf.mxu0
  %v102 = vadd.f32 %v29, %v101
  %103 = vmatmul.bf16.gmra.mxu0 %v88
  %v104 = vpop.f32.mrf.mxu0
  %v105 = vadd.f32 %v29, %v104
  %v106 = vpop.f32.mrf.mxu0
  %v107 = vadd.f32 %v29, %v106
  %108 = vdwg.mxu0
  %109 = vmatpush.bf16.msra.mxu0 0
  %110 = vmatpush.bf16.msra.mxu0 0
  %111 = vmatpush.bf16.msra.mxu0 0
  %112 = vmatpush.bf16.msra.mxu0 0
  %113 = vmatpush.bf16.msra.mxu0 %v74
  %114 = vmatpush.bf16.msra.mxu0 %v72
  %115 = vmatpush.bf16.msra.mxu0 %v70
  %116 = vmatpush.bf16.msra.mxu0 %v68
  %117 = vmatmul.bf16.gmra.mxu0 %v85
  %v118 = vpop.f32.mrf.mxu0
  %v119 = vadd.f32 %v30, %v118
  %v120 = vpop.f32.mrf.mxu0
  %v121 = vadd.f32 %v30, %v120
  %122 = vmatmul.bf16.gmra.mxu0 %v88
  %v123 = vpop.f32.mrf.mxu0
  %v124 = vadd.f32 %v30, %v123
  %v125 = vpop.f32.mrf.mxu0
  %v126 = vadd.f32 %v30, %v125
  %127 = vdwg.mxu0
  %128 = vst [vmem:[%s3] sm:$0xff] %v100
  %129 = vst [vmem:[%s3 + $0x8] sm:$0xff] %v119
  %130 = vst [vmem:[%s3 + $0x10] sm:$0xff] %v102
  %131 = vst [vmem:[%s3 + $0x18] sm:$0xff] %v121
  %132 = vst [vmem:[%s3 + $0x20] sm:$0xff] %v105
  %133 = vst [vmem:[%s3 + $0x28] sm:$0xff] %v124
  %134 = vst [vmem:[%s3 + $0x30] sm:$0xff] %v107
  %135 = vst [vmem:[%s3 + $0x38] sm:$0xff] %v126
  // Predicated region
  $region14: #{_lambda_.36} parent=0 // pred_check
    _
  $region15: #{_lambda_.36} parent=0 // pred_check_branch
    %137 = sbr.rel (0) target = $region17
  $region16: #{_lambda_.36} parent=0 // pred_region
    _
  $region17: #{_lambda_.36} parent=0 // pred_fallthru
    _
  // Predicated region
  $region18: #{_lambda_.36} parent=0 // pred_check
    _
  $region19: #{_lambda_.36} parent=0 // pred_check_branch
    %139 = sbr.rel (0) target = $region21
  $region20: #{_lambda_.36} parent=0 // pred_region
    _
  $region21: #{_lambda_.36} parent=0 // pred_fallthru
    _

// kernel: _lambda_.35
$region0: #{_lambda_.35}
  #allocation0 [shape = 'u32[]', space=smem, size = 0x4, offset = 0x4, fixed_abs, tag = 'smem constant byte address 0x4 - core index']
  #allocation1 [shape = 'u32[72,128]{1,0:T(1,128)}', space=vmem, size = 0x9000, scoped, tag = 'internal scratch']
  %s0 = inlined_call_operand.vmem [shape: bf16[32,576], index: 0, kind: input, shape index: {}]
  %s1 = inlined_call_operand.vmem [shape: bf16[576,128], index: 1, kind: input, shape index: {}]
  %s2 = inlined_call_operand.vmem [shape: f32[1,128], index: 2, kind: input, shape index: {}]
  %s3 = inlined_call_operand.vmem [shape: f32[32,128], index: 3, kind: input, shape index: {}]
  %s4 = inlined_call_operand.vmem [shape: f32[32,128], index: 4, kind: output, shape index: {}]
  %s5 = sld [smem:[#allocation0]]
  $region26: #{_lambda_.35} parent=0
    _
  %s7 = ssub.s32 1, %s5
  %s8 = scalar_select 0, %s7, %s5
  // Predicated region
  $region2: #{_lambda_.35} parent=0 // pred_check
    _
  $region3: #{_lambda_.35} parent=0 // pred_check_branch
    %10 = sbr.rel (0) target = $region5
  $region4: #{_lambda_.35} parent=0 // pred_region
    _
  $region5: #{_lambda_.35} parent=0 // pred_fallthru
    _
  // Predicated region
  $region6: #{_lambda_.35} parent=0 // pred_check
    _
  $region7: #{_lambda_.35} parent=0 // pred_check_branch
    %12 = sbr.rel (0) target = $region9
  $region8: #{_lambda_.35} parent=0 // pred_region
    _
  $region9: #{_lambda_.35} parent=0 // pred_fallthru
    _
  // Predicated region
  $region10: #{_lambda_.35} parent=0 // pred_check
    _
  $region11: #{_lambda_.35} parent=0 // pred_check_branch
    %14 = sbr.rel (0) target = $region13
  $region12: #{_lambda_.35} parent=0 // pred_region
    _
  $region13: #{_lambda_.35} parent=0 // pred_fallthru
    _
  // Predicated region
  $region14: #{_lambda_.35} parent=0 // pred_check
    _
  $region15: #{_lambda_.35} parent=0 // pred_check_branch
    %16 = sbr.rel (0) target = $region17
  $region16: #{_lambda_.35} parent=0 // pred_region
    _
  $region17: #{_lambda_.35} parent=0 // pred_fallthru
    _
  %v18 = vld [vmem:[%s0] sm:$0xff]
  %v19 = vld [vmem:[%s0 + $0x8] sm:$0xff]
  %v20 = vld [vmem:[%s0 + $0x10] sm:$0xf]
  %v21 = vld [vmem:[%s0 + $0x14] sm:$0xff]
  %v22 = vld [vmem:[%s0 + $0x1c] sm:$0xff]
  %v23 = vld [vmem:[%s0 + $0x24] sm:$0xf]
  %v24 = vld [vmem:[%s0 + $0x28] sm:$0xff]
  %v25 = vld [vmem:[%s0 + $0x30] sm:$0xff]
  %v26 = vld [vmem:[%s0 + $0x38] sm:$0xf]
  %v27 = vld [vmem:[%s0 + $0x3c] sm:$0xff]
  %v28 = vld [vmem:[%s0 + $0x44] sm:$0xff]
  %v29 = vld [vmem:[%s0 + $0x4c] sm:$0xf]
  %v30 = vld [vmem:[%s1] sm:$0xf]
  %v31 = vld [vmem:[%s1 + $0x4] sm:$0xf]
  %v32 = vld [vmem:[%s1 + $0x8] sm:$0xf]
  %v33 = vld [vmem:[%s1 + $0xc] sm:$0xf]
  %v34 = vld [vmem:[%s1 + $0x10] sm:$0xf]
  %v35 = vld [vmem:[%s1 + $0x14] sm:$0xf]
  %v36 = vld [vmem:[%s1 + $0x18] sm:$0xf]
  %v37 = vld [vmem:[%s1 + $0x1c] sm:$0xf]
  %v38 = vld [vmem:[%s1 + $0x20] sm:$0xf]
  %v39 = vld [vmem:[%s1 + $0x24] sm:$0xf]
  %v40 = vld [vmem:[%s1 + $0x28] sm:$0xf]
  %v41 = vld [vmem:[%s1 + $0x2c] sm:$0xf]
  %v42 = vld [vmem:[%s1 + $0x30] sm:$0xf]
  %v43 = vld [vmem:[%s1 + $0x34] sm:$0xf]
  %v44 = vld [vmem:[%s1 + $0x38] sm:$0xf]
  %v45 = vld [vmem:[%s1 + $0x3c] sm:$0xf]
  %v46 = vld [vmem:[%s1 + $0x40] sm:$0xf]
  %v47 = vld [vmem:[%s1 + $0x44] sm:$0xf]
  %v48 = vld [vmem:[%s1 + $0x48] sm:$0xf]
  %v49 = vld [vmem:[%s1 + $0x4c] sm:$0xf]
  %v50 = vld [vmem:[%s1 + $0x50] sm:$0xf]
  %v51 = vld [vmem:[%s1 + $0x54] sm:$0xf]
  %v52 = vld [vmem:[%s1 + $0x58] sm:$0xf]
  %v53 = vld [vmem:[%s1 + $0x5c] sm:$0xf]
  %v54 = vld [vmem:[%s1 + $0x60] sm:$0xf]
  %v55 = vld [vmem:[%s1 + $0x64] sm:$0xf]
  %v56 = vld [vmem:[%s1 + $0x68] sm:$0xf]
  %v57 = vld [vmem:[%s1 + $0x6c] sm:$0xf]
  %v58 = vld [vmem:[%s1 + $0x70] sm:$0xf]
  %v59 = vld [vmem:[%s1 + $0x74] sm:$0xf]
  %v60 = vld [vmem:[%s1 + $0x78] sm:$0xf]
  %v61 = vld [vmem:[%s1 + $0x7c] sm:$0xf]
  %v62 = vld [vmem:[%s1 + $0x80] sm:$0xf]
  %v63 = vld [vmem:[%s1 + $0x84] sm:$0xf]
  %v64 = vld [vmem:[%s1 + $0x88] sm:$0xf]
  %v65 = vld [vmem:[%s1 + $0x8c] sm:$0xf]
  %v66 = vld [vmem:[%s1 + $0x90] sm:$0xf]
  %v67 = vld [vmem:[%s1 + $0x94] sm:$0xf]
  %v68 = vld [vmem:[%s1 + $0x98] sm:$0xf]
  %v69 = vld [vmem:[%s1 + $0x9c] sm:$0xf]
  %v70 = vld [vmem:[%s1 + $0xa0] sm:$0xf]
  %v71 = vld [vmem:[%s1 + $0xa4] sm:$0xf]
  %v72 = vld [vmem:[%s1 + $0xa8] sm:$0xf]
  %v73 = vld [vmem:[%s1 + $0xac] sm:$0xf]
  %v74 = vld [vmem:[%s1 + $0xb0] sm:$0xf]
  %v75 = vld [vmem:[%s1 + $0xb4] sm:$0xf]
  %v76 = vld [vmem:[%s1 + $0xb8] sm:$0xf]
  %v77 = vld [vmem:[%s1 + $0xbc] sm:$0xf]
  %v78 = vld [vmem:[%s1 + $0xc0] sm:$0xf]
  %v79 = vld [vmem:[%s1 + $0xc4] sm:$0xf]
  %v80 = vld [vmem:[%s1 + $0xc8] sm:$0xf]
  %v81 = vld [vmem:[%s1 + $0xcc] sm:$0xf]
  %v82 = vld [vmem:[%s1 + $0xd0] sm:$0xf]
  %v83 = vld [vmem:[%s1 + $0xd4] sm:$0xf]
  %v84 = vld [vmem:[%s1 + $0xd8] sm:$0xf]
  %v85 = vld [vmem:[%s1 + $0xdc] sm:$0xf]
  %v86 = vld [vmem:[%s1 + $0xe0] sm:$0xf]
  %v87 = vld [vmem:[%s1 + $0xe4] sm:$0xf]
  %v88 = vld [vmem:[%s1 + $0xe8] sm:$0xf]
  %v89 = vld [vmem:[%s1 + $0xec] sm:$0xf]
  %v90 = vld [vmem:[%s1 + $0xf0] sm:$0xf]
  %v91 = vld [vmem:[%s1 + $0xf4] sm:$0xf]
  %v92 = vld [vmem:[%s1 + $0xf8] sm:$0xf]
  %v93 = vld [vmem:[%s1 + $0xfc] sm:$0xf]
  %v94 = vld [vmem:[%s1 + $0x100] sm:$0xf]
  %v95 = vld [vmem:[%s1 + $0x104] sm:$0xf]
  %v96 = vld [vmem:[%s1 + $0x108] sm:$0xf]
  %v97 = vld [vmem:[%s1 + $0x10c] sm:$0xf]
  %v98 = vld [vmem:[%s1 + $0x110] sm:$0xf]
  %v99 = vld [vmem:[%s1 + $0x114] sm:$0xf]
  %v100 = vld [vmem:[%s1 + $0x118] sm:$0xf]
  %v101 = vld [vmem:[%s1 + $0x11c] sm:$0xf]
  %v102 = vld [vmem:[%s2] sm:$0x1]
  %v104 = vperm.slane %v102, 0
  %v118 = vunpack.c.l.b16 %v18
  %v119 = vunpack.c.h.b16 %v18
  %v120 = vunpack.c.l.b16 %v19
  %v121 = vunpack.c.h.b16 %v19
  %v122 = vunpack.c.l.b16 %v20
  %v123 = vunpack.c.l.b16 %v21
  %v124 = vunpack.c.h.b16 %v21
  %v125 = vunpack.c.l.b16 %v22
  %v126 = vunpack.c.h.b16 %v22
  %v127 = vunpack.c.l.b16 %v23
  %v128 = vunpack.c.l.b16 %v24
  %v129 = vunpack.c.h.b16 %v24
  %v130 = vunpack.c.l.b16 %v25
  %v131 = vunpack.c.h.b16 %v25
  %v132 = vunpack.c.l.b16 %v26
  %v133 = vunpack.c.l.b16 %v27
  %v134 = vunpack.c.h.b16 %v27
  %v135 = vunpack.c.l.b16 %v28
  %v136 = vunpack.c.h.b16 %v28
  %v137 = vunpack.c.l.b16 %v29
  %v138 = vpack.c.b16 %v123, %v118
  %v139 = vpack.c.b16 %v124, %v119
  %v140 = vpack.c.b16 %v125, %v120
  %v141 = vpack.c.b16 %v126, %v121
  %v142 = vpack.c.b16 %v127, %v122
  %v143 = vpack.c.b16 %v133, %v128
  %v144 = vpack.c.b16 %v134, %v129
  %v145 = vpack.c.b16 %v135, %v130
  %v146 = vpack.c.b16 %v136, %v131
  %v147 = vpack.c.b16 %v137, %v132
  %v228 = vunpack.c.l.b16 %v30
  %v229 = vunpack.c.l.b16 %v31
  %v230 = vunpack.c.l.b16 %v32
  %v231 = vunpack.c.l.b16 %v33
  %v232 = vunpack.c.l.b16 %v34
  %v233 = vunpack.c.l.b16 %v35
  %v234 = vunpack.c.l.b16 %v36
  %v235 = vunpack.c.l.b16 %v37
  %v236 = vunpack.c.l.b16 %v38
  %v237 = vunpack.c.l.b16 %v39
  %v238 = vunpack.c.l.b16 %v40
  %v239 = vunpack.c.l.b16 %v41
  %v240 = vunpack.c.l.b16 %v42
  %v241 = vunpack.c.l.b16 %v43
  %v242 = vunpack.c.l.b16 %v44
  %v243 = vunpack.c.l.b16 %v45
  %v244 = vunpack.c.l.b16 %v46
  %v245 = vunpack.c.l.b16 %v47
  %v246 = vunpack.c.l.b16 %v48
  %v247 = vunpack.c.l.b16 %v49
  %v248 = vunpack.c.l.b16 %v50
  %v249 = vunpack.c.l.b16 %v51
  %v250 = vunpack.c.l.b16 %v52
  %v251 = vunpack.c.l.b16 %v53
  %v252 = vunpack.c.l.b16 %v54
  %v253 = vunpack.c.l.b16 %v55
  %v254 = vunpack.c.l.b16 %v56
  %v255 = vunpack.c.l.b16 %v57
  %v256 = vunpack.c.l.b16 %v58
  %v257 = vunpack.c.l.b16 %v59
  %v258 = vunpack.c.l.b16 %v60
  %v259 = vunpack.c.l.b16 %v61
  %v260 = vunpack.c.l.b16 %v62
  %v261 = vunpack.c.l.b16 %v63
  %v262 = vunpack.c.l.b16 %v64
  %v263 = vunpack.c.l.b16 %v65
  %v264 = vunpack.c.l.b16 %v66
  %v265 = vunpack.c.l.b16 %v67
  %v266 = vunpack.c.l.b16 %v68
  %v267 = vunpack.c.l.b16 %v69
  %v268 = vunpack.c.l.b16 %v70
  %v269 = vunpack.c.l.b16 %v71
  %v270 = vunpack.c.l.b16 %v72
  %v271 = vunpack.c.l.b16 %v73
  %v272 = vunpack.c.l.b16 %v74
  %v273 = vunpack.c.l.b16 %v75
  %v274 = vunpack.c.l.b16 %v76
  %v275 = vunpack.c.l.b16 %v77
  %v276 = vunpack.c.l.b16 %v78
  %v277 = vunpack.c.l.b16 %v79
  %v278 = vunpack.c.l.b16 %v80
  %v279 = vunpack.c.l.b16 %v81
  %v280 = vunpack.c.l.b16 %v82
  %v281 = vunpack.c.l.b16 %v83
  %v282 = vunpack.c.l.b16 %v84
  %v283 = vunpack.c.l.b16 %v85
  %v284 = vunpack.c.l.b16 %v86
  %v285 = vunpack.c.l.b16 %v87
  %v286 = vunpack.c.l.b16 %v88
  %v287 = vunpack.c.l.b16 %v89
  %v288 = vunpack.c.l.b16 %v90
  %v289 = vunpack.c.l.b16 %v91
  %v290 = vunpack.c.l.b16 %v92
  %v291 = vunpack.c.l.b16 %v93
  %v292 = vunpack.c.l.b16 %v94
  %v293 = vunpack.c.l.b16 %v95
  %v294 = vunpack.c.l.b16 %v96
  %v295 = vunpack.c.l.b16 %v97
  %v296 = vunpack.c.l.b16 %v98
  %v297 = vunpack.c.l.b16 %v99
  %v298 = vunpack.c.l.b16 %v100
  %v299 = vunpack.c.l.b16 %v101
  %v300 = vpack.c.b16 %v229, %v228
  %v301 = vpack.c.b16 %v231, %v230
  %v302 = vpack.c.b16 %v233, %v232
  %v303 = vpack.c.b16 %v235, %v234
  %v304 = vpack.c.b16 %v237, %v236
  %v305 = vpack.c.b16 %v239, %v238
  %v306 = vpack.c.b16 %v241, %v240
  %v307 = vpack.c.b16 %v243, %v242
  %v308 = vpack.c.b16 %v245, %v244
  %v309 = vpack.c.b16 %v247, %v246
  %v310 = vpack.c.b16 %v249, %v248
  %v311 = vpack.c.b16 %v251, %v250
  %v312 = vpack.c.b16 %v253, %v252
  %v313 = vpack.c.b16 %v255, %v254
  %v314 = vpack.c.b16 %v257, %v256
  %v315 = vpack.c.b16 %v259, %v258
  %v316 = vpack.c.b16 %v261, %v260
  %v317 = vpack.c.b16 %v263, %v262
  %v318 = vpack.c.b16 %v265, %v264
  %v319 = vpack.c.b16 %v267, %v266
  %v320 = vpack.c.b16 %v269, %v268
  %v321 = vpack.c.b16 %v271, %v270
  %v322 = vpack.c.b16 %v273, %v272
  %v323 = vpack.c.b16 %v275, %v274
  %v324 = vpack.c.b16 %v277, %v276
  %v325 = vpack.c.b16 %v279, %v278
  %v326 = vpack.c.b16 %v281, %v280
  %v327 = vpack.c.b16 %v283, %v282
  %v328 = vpack.c.b16 %v285, %v284
  %v329 = vpack.c.b16 %v287, %v286
  %v330 = vpack.c.b16 %v289, %v288
  %v331 = vpack.c.b16 %v291, %v290
  %v332 = vpack.c.b16 %v293, %v292
  %v333 = vpack.c.b16 %v295, %v294
  %v334 = vpack.c.b16 %v297, %v296
  %v335 = vpack.c.b16 %v299, %v298
  %vm372 = vcmask 523264
  %v374 = vsel %vm372, %v142, 0
  %v377 = vsel %vm372, %v147, 0
  %379 = vmatpush.bf16.msra.mxu0 %v307
  %380 = vmatpush.bf16.msra.mxu0 %v306
  %381 = vmatpush.bf16.msra.mxu0 %v305
  %382 = vmatpush.bf16.msra.mxu0 %v304
  %383 = vmatpush.bf16.msra.mxu0 %v303
  %384 = vmatpush.bf16.msra.mxu0 %v302
  %385 = vmatpush.bf16.msra.mxu0 %v301
  %386 = vmatpush.bf16.msra.mxu0 %v300
  %387 = vmatmul.bf16.gmra.mxu0 %v138
  %v388 = vpop.f32.mrf.mxu0
  %v389 = vadd.f32 %v104, %v388
  %v390 = vpop.f32.mrf.mxu0
  %v391 = vadd.f32 %v104, %v390
  %392 = vmatmul.bf16.gmra.mxu0 %v143
  %v393 = vpop.f32.mrf.mxu0
  %v394 = vadd.f32 %v104, %v393
  %v395 = vpop.f32.mrf.mxu0
  %v396 = vadd.f32 %v104, %v395
  %397 = vdwg.mxu0
  %398 = vmatpush.bf16.msra.mxu0 %v315
  %399 = vmatpush.bf16.msra.mxu0 %v314
  %400 = vmatpush.bf16.msra.mxu0 %v313
  %401 = vmatpush.bf16.msra.mxu0 %v312
  %402 = vmatpush.bf16.msra.mxu0 %v311
  %403 = vmatpush.bf16.msra.mxu0 %v310
  %404 = vmatpush.bf16.msra.mxu0 %v309
  %405 = vmatpush.bf16.msra.mxu0 %v308
  %406 = vmatmul.bf16.gmra.mxu0 %v139
  %v407 = vpop.f32.mrf.mxu0
  %v408 = vadd.f32 %v389, %v407
  %v409 = vpop.f32.mrf.mxu0
  %v410 = vadd.f32 %v391, %v409
  %411 = vmatmul.bf16.gmra.mxu0 %v144
  %v412 = vpop.f32.mrf.mxu0
  %v413 = vadd.f32 %v394, %v412
  %v414 = vpop.f32.mrf.mxu0
  %v415 = vadd.f32 %v396, %v414
  %416 = vdwg.mxu0
  %417 = vmatpush.bf16.msra.mxu0 %v323
  %418 = vmatpush.bf16.msra.mxu0 %v322
  %419 = vmatpush.bf16.msra.mxu0 %v321
  %420 = vmatpush.bf16.msra.mxu0 %v320
  %421 = vmatpush.bf16.msra.mxu0 %v319
  %422 = vmatpush.bf16.msra.mxu0 %v318
  %423 = vmatpush.bf16.msra.mxu0 %v317
  %424 = vmatpush.bf16.msra.mxu0 %v316
  %425 = vmatmul.bf16.gmra.mxu0 %v140
  %v426 = vpop.f32.mrf.mxu0
  %v427 = vadd.f32 %v408, %v426
  %v428 = vpop.f32.mrf.mxu0
  %v429 = vadd.f32 %v410, %v428
  %430 = vmatmul.bf16.gmra.mxu0 %v145
  %v431 = vpop.f32.mrf.mxu0
  %v432 = vadd.f32 %v413, %v431
  %v433 = vpop.f32.mrf.mxu0
  %v434 = vadd.f32 %v415, %v433
  %435 = vdwg.mxu0
  %436 = vmatpush.bf16.msra.mxu0 %v331
  %437 = vmatpush.bf16.msra.mxu0 %v330
  %438 = vmatpush.bf16.msra.mxu0 %v329
  %439 = vmatpush.bf16.msra.mxu0 %v328
  %440 = vmatpush.bf16.msra.mxu0 %v327
  %441 = vmatpush.bf16.msra.mxu0 %v326
  %442 = vmatpush.bf16.msra.mxu0 %v325
  %443 = vmatpush.bf16.msra.mxu0 %v324
  %444 = vmatmul.bf16.gmra.mxu0 %v141
  %v445 = vpop.f32.mrf.mxu0
  %v446 = vadd.f32 %v427, %v445
  %v447 = vpop.f32.mrf.mxu0
  %v448 = vadd.f32 %v429, %v447
  %449 = vmatmul.bf16.gmra.mxu0 %v146
  %v450 = vpop.f32.mrf.mxu0
  %v451 = vadd.f32 %v432, %v450
  %v452 = vpop.f32.mrf.mxu0
  %v453 = vadd.f32 %v434, %v452
  %454 = vdwg.mxu0
  %455 = vmatpush.bf16.msra.mxu0 0
  %456 = vmatpush.bf16.msra.mxu0 0
  %457 = vmatpush.bf16.msra.mxu0 0
  %458 = vmatpush.bf16.msra.mxu0 0
  %459 = vmatpush.bf16.msra.mxu0 %v335
  %460 = vmatpush.bf16.msra.mxu0 %v334
  %461 = vmatpush.bf16.msra.mxu0 %v333
  %462 = vmatpush.bf16.msra.mxu0 %v332
  %463 = vmatmul.bf16.gmra.mxu0 %v374
  %v464 = vpop.f32.mrf.mxu0
  %v465 = vadd.f32 %v446, %v464
  %v466 = vpop.f32.mrf.mxu0
  %v467 = vadd.f32 %v448, %v466
  %468 = vmatmul.bf16.gmra.mxu0 %v377
  %v469 = vpop.f32.mrf.mxu0
  %v470 = vadd.f32 %v451, %v469
  %v471 = vpop.f32.mrf.mxu0
  %v472 = vadd.f32 %v453, %v471
  %473 = vdwg.mxu0
  %v474 = vld [vmem:[%s3] sm:$0xff]
  %v475 = vld [vmem:[%s3 + $0x8] sm:$0xff]
  %v476 = vld [vmem:[%s3 + $0x10] sm:$0xff]
  %v477 = vld [vmem:[%s3 + $0x18] sm:$0xff]
  %v478 = vadd.f32 %v465, %v474
  %v479 = vadd.f32 %v467, %v475
  %v480 = vadd.f32 %v470, %v476
  %v481 = vadd.f32 %v472, %v477
  %v482 = vmax.f32 %v478, 0.0
  %v483 = vmax.f32 %v479, 0.0
  %v484 = vmax.f32 %v480, 0.0
  %v485 = vmax.f32 %v481, 0.0
  %486 = vst [vmem:[%s4] sm:$0xff] %v482
  %487 = vst [vmem:[%s4 + $0x8] sm:$0xff] %v483
  %488 = vst [vmem:[%s4 + $0x10] sm:$0xff] %v484
  %489 = vst [vmem:[%s4 + $0x18] sm:$0xff] %v485
  // Predicated region
  $region18: #{_lambda_.35} parent=0 // pred_check
    _
  $region19: #{_lambda_.35} parent=0 // pred_check_branch
    %491 = sbr.rel (0) target = $region21
  $region20: #{_lambda_.35} parent=0 // pred_region
    _
  $region21: #{_lambda_.35} parent=0 // pred_fallthru
    _
  // Predicated region
  $region22: #{_lambda_.35} parent=0 // pred_check
    _
  $region23: #{_lambda_.35} parent=0 // pred_check_branch
    %493 = sbr.rel (0) target = $region25
  $region24: #{_lambda_.35} parent=0 // pred_region
    _
  $region25: #{_lambda_.35} parent=0 // pred_fallthru
    _

// kernel: _lambda_.37
$region0: #{_lambda_.37}
  #allocation0 [shape = 'u32[]', space=smem, size = 0x4, offset = 0x4, fixed_abs, tag = 'smem constant byte address 0x4 - core index']
  #allocation1 [shape = 'u32[72,128]{1,0:T(1,128)}', space=vmem, size = 0x9000, scoped, tag = 'internal scratch']
  #allocation2 [shape = 'f32[2,32]{1,0:T(2,128)}', space=vmem, size = 0x400, scoped, tag = 'scratch operand']
  #allocation3 [shape = 'f32[2,32]{1,0:T(2,128)}', space=vmem, size = 0x400, scoped, tag = 'scratch operand']
  %s0 = inlined_call_operand.vmem [shape: f32[2,16,2,128], index: 0, kind: input, shape index: {}]
  %s1 = inlined_call_operand.vmem [shape: f32[2,32,128], index: 1, kind: input, shape index: {}]
  %s2 = inlined_call_operand.vmem [shape: f32[2,1,128], index: 2, kind: input, shape index: {}]
  %s3 = inlined_call_operand.vmem [shape: f32[2,16,2,32], index: 3, kind: output, shape index: {}]
  %s4 = sld [smem:[#allocation0]]
  $region49: #{_lambda_.37} parent=0
    _
  %s6 = ssub.s32 1, %s4
  %s7 = scalar_select 0, %s6, %s4
  loop: start=0, step=1, limit=34
  $region2: #{_lambda_.37} parent=0 // loop_pre_header
    _
  $region3: #{_lambda_.37} parent=0 // loop_header
    %s9 = sphi 0, %s13
    %p10 = scmp.ge.s32.totalorder %s9, 34
    %s16 = sphi 0, %s28
    %s17 = sphi 0, %s24
    %s18 = sphi 0, %s16
    %s19 = sphi 0, %s17
    %s20 = sphi 0, %s18
    %s21 = sphi 0, %s19
    %s33 = sphi 0, %s35
    %s36 = sphi 0, %s33
    %s37 = sphi 0, %s36
    %s53 = sphi 0, %s37
    %s59 = sphi 0, %s61
    %s62 = sphi 0, %s59
    %s63 = sphi 0, %s62
    %s79 = sphi 0, %s63
    %s85 = sphi 0, %s87
    %s88 = sphi 0, %s85
    %s89 = sphi 0, %s88
    %s105 = sphi 0, %s89
    %s113 = sphi 0, %s115
    %s116 = sphi 0, %s113
    %s117 = sphi 0, %s116
    %s133 = sphi 0, %s117
  $region4: #{_lambda_.37} parent=0 // loop_header_branch
    %12 = sbr.rel (%p10) target = $region8
  $region5: #{_lambda_.37} parent=0 // loop_body
    %s14 = ssub.s32 %s9, 1
    %s15 = ssub.s32 %s9, 2
    %s22 = sadd.s32 1, %s17
    %p23 = scmp.ge.s32.totalorder %s22, 16
    %s24 = scalar_select %p23, 0, %s22
    %s25 = sadd.s32 1, %s16
    %s26 = scalar_select %p23, %s25, %s16
    %p27 = scmp.ge.s32.totalorder %s26, 2
    %s28 = scalar_select %p27, 0, %s26
    %s29 = ssub.s32 %s16, %s28
    %s30 = ssub.s32 %s17, %s24
    %s31 = sor.u32 %s29, %s30
    %p32 = scmp.eq.s32.totalorder %s31, 0
    %s34 = sadd.s32 %s33, 1
    %s35 = scalar_select %p32, %s33, %s34
    %p38 = pneg %p32
    %p39 = scmp.eq.s32.totalorder %s9, 31
    %p40 = por %p38, %p39
    %p41 = scmp.ne.s32.totalorder %s33, %s36
    %p42 = scmp.eq.s32.totalorder %s9, 0
    %p43 = por %p41, %p42
    %p44 = scmp.ne.s32.totalorder %s33, %s36
    %p45 = scmp.eq.s32.totalorder %s14, 31
    %p46 = por %p44, %p45
    %p47 = scmp.ne.s32.totalorder %s36, %s37
    %p48 = scmp.eq.s32.totalorder %s14, 0
    %p49 = por %p47, %p48
    %p50 = scmp.ne.s32.totalorder %s36, %s37
    %p51 = scmp.eq.s32.totalorder %s15, 31
    %p52 = por %p50, %p51
    %p54 = scmp.ne.s32.totalorder %s37, %s53
    %p55 = scmp.eq.s32.totalorder %s15, 0
    %p56 = por %p54, %p55
    %s57 = ssub.s32 %s16, %s28
    %p58 = scmp.eq.s32.totalorder %s57, 0
    %s60 = sadd.s32 %s59, 1
    %s61 = scalar_select %p58, %s59, %s60
    %p64 = pneg %p58
    %p65 = scmp.eq.s32.totalorder %s9, 31
    %p66 = por %p64, %p65
    %p67 = scmp.ne.s32.totalorder %s59, %s62
    %p68 = scmp.eq.s32.totalorder %s9, 0
    %p69 = por %p67, %p68
    %p70 = scmp.ne.s32.totalorder %s59, %s62
    %p71 = scmp.eq.s32.totalorder %s14, 31
    %p72 = por %p70, %p71
    %p73 = scmp.ne.s32.totalorder %s62, %s63
    %p74 = scmp.eq.s32.totalorder %s14, 0
    %p75 = por %p73, %p74
    %p76 = scmp.ne.s32.totalorder %s62, %s63
    %p77 = scmp.eq.s32.totalorder %s15, 31
    %p78 = por %p76, %p77
    %p80 = scmp.ne.s32.totalorder %s63, %s79
    %p81 = scmp.eq.s32.totalorder %s15, 0
    %p82 = por %p80, %p81
    %s83 = ssub.s32 %s16, %s28
    %p84 = scmp.eq.s32.totalorder %s83, 0
    %s86 = sadd.s32 %s85, 1
    %s87 = scalar_select %p84, %s85, %s86
    %p90 = pneg %p84
    %p91 = scmp.eq.s32.totalorder %s9, 31
    %p92 = por %p90, %p91
    %p93 = scmp.ne.s32.totalorder %s85, %s88
    %p94 = scmp.eq.s32.totalorder %s9, 0
    %p95 = por %p93, %p94
    %p96 = scmp.ne.s32.totalorder %s85, %s88
    %p97 = scmp.eq.s32.totalorder %s14, 31
    %p98 = por %p96, %p97
    %p99 = scmp.ne.s32.totalorder %s88, %s89
    %p100 = scmp.eq.s32.totalorder %s14, 0
    %p101 = por %p99, %p100
    %p102 = scmp.ne.s32.totalorder %s88, %s89
    %p103 = scmp.eq.s32.totalorder %s15, 31
    %p104 = por %p102, %p103
    %p106 = scmp.ne.s32.totalorder %s89, %s105
    %p107 = scmp.eq.s32.totalorder %s15, 0
    %p108 = por %p106, %p107
    %s109 = ssub.s32 %s16, %s28
    %s110 = ssub.s32 %s17, %s24
    %s111 = sor.u32 %s109, %s110
    %p112 = scmp.eq.s32.totalorder %s111, 0
    %s114 = sadd.s32 %s113, 1
    %s115 = scalar_select %p112, %s113, %s114
    %p118 = pneg %p112
    %p119 = scmp.eq.s32.totalorder %s9, 31
    %p120 = por %p118, %p119
    %p121 = scmp.ne.s32.totalorder %s113, %s116
    %p122 = scmp.eq.s32.totalorder %s9, 0
    %p123 = por %p121, %p122
    %p124 = scmp.ne.s32.totalorder %s113, %s116
    %p125 = scmp.eq.s32.totalorder %s14, 31
    %p126 = por %p124, %p125
    %p127 = scmp.ne.s32.totalorder %s116, %s117
    %p128 = scmp.eq.s32.totalorder %s14, 0
    %p129 = por %p127, %p128
    %p130 = scmp.ne.s32.totalorder %s116, %s117
    %p131 = scmp.eq.s32.totalorder %s15, 31
    %p132 = por %p130, %p131
    %p134 = scmp.ne.s32.totalorder %s117, %s133
    %p135 = scmp.eq.s32.totalorder %s15, 0
    %p136 = por %p134, %p135
    %p137 = scmp.le.s32.totalorder 1, %s9
    %p138 = scmp.lt.s32.totalorder %s9, 33
    %p139 = pnand %p137, %p138
    %p140 = pneg %p139
    // Predicated region
    $region9: #{_lambda_.37} parent=5 // pred_check
      _
    $region10: #{_lambda_.37} parent=5 // pred_check_branch
      %142 = sbr.rel (%p139) target = $region12
    $region11: #{_lambda_.37} parent=5 // pred_region
      %s143 = ssub.s32 %s9, 1
    $region12: #{_lambda_.37} parent=5 // pred_fallthru
      _
    %p144 = scmp.lt.s32.totalorder %s9, 32
    // Predicated region
    $region13: #{_lambda_.37} parent=5 // pred_check
      %p145 = pneg %p144
    $region14: #{_lambda_.37} parent=5 // pred_check_branch
      %147 = sbr.rel (%p145) target = $region16
    $region15: #{_lambda_.37} parent=5 // pred_region
      // Predicated region
      $region17: #{_lambda_.37} parent=15 // pred_check
        %p148 = pneg %p43
      $region18: #{_lambda_.37} parent=15 // pred_check_branch
        %150 = sbr.rel (%p148) target = $region20
      $region19: #{_lambda_.37} parent=15 // pred_region
        %p151 = scmp.lt.s32.totalorder %s16, 1
        %s152 = scalar_select %p151, %s16, 1
        %p153 = scmp.lt.s32.totalorder %s17, 15
        %s154 = scalar_select %p153, %s17, 15
        %s155 = smul.addr %s152, 16
        %s156 = sadd.s32 %s154, %s155
        %s157 = smul.addr %s156, 2
        %s158 = scalar_lea.vmem %s0, %s157
      $region20: #{_lambda_.37} parent=15 // pred_fallthru
        _
      // Predicated region
      $region21: #{_lambda_.37} parent=15 // pred_check
        %p159 = pneg %p69
      $region22: #{_lambda_.37} parent=15 // pred_check_branch
        %161 = sbr.rel (%p159) target = $region24
      $region23: #{_lambda_.37} parent=15 // pred_region
        %p162 = scmp.lt.s32.totalorder %s16, 1
        %s163 = scalar_select %p162, %s16, 1
        %s164 = smul.addr %s163, 4
        %s165 = smul.addr %s164, 8
        %s166 = scalar_lea.vmem %s1, %s165
      $region24: #{_lambda_.37} parent=15 // pred_fallthru
        _
      // Predicated region
      $region25: #{_lambda_.37} parent=15 // pred_check
        %p167 = pneg %p95
      $region26: #{_lambda_.37} parent=15 // pred_check_branch
        %169 = sbr.rel (%p167) target = $region28
      $region27: #{_lambda_.37} parent=15 // pred_region
        %p170 = scmp.lt.s32.totalorder %s16, 1
        %s171 = scalar_select %p170, %s16, 1
        %s172 = scalar_lea.vmem %s2, %s171
      $region28: #{_lambda_.37} parent=15 // pred_fallthru
        _
    $region16: #{_lambda_.37} parent=5 // pred_fallthru
      _
    %p173 = scmp.le.s32.totalorder 1, %s9
    %p174 = scmp.lt.s32.totalorder %s9, 33
    %p175 = pnand %p173, %p174
    %p176 = pneg %p175
    // Predicated region
    $region29: #{_lambda_.37} parent=5 // pred_check
      _
    $region30: #{_lambda_.37} parent=5 // pred_check_branch
      %178 = sbr.rel (%p175) target = $region32
    $region31: #{_lambda_.37} parent=5 // pred_region
      %s179 = ssub.s32 %s9, 1
      %p180 = scmp.lt.s32.totalorder %s18, 1
      %s181 = scalar_select %p180, %s18, 1
      %p182 = scmp.lt.s32.totalorder %s19, 15
      %s183 = scalar_select %p182, %s19, 15
      %s184 = smul.addr %s181, 16
      %s185 = sadd.s32 %s183, %s184
      %s186 = smul.addr %s185, 2
      %s187 = scalar_lea.vmem %s0, %s186
      %p188 = pneg %p49
      %p189 = pneg %p46
      %p190 = scmp.lt.s32.totalorder %s18, 1
      %s191 = scalar_select %p190, %s18, 1
      %s192 = smul.addr %s191, 4
      %s193 = smul.addr %s192, 8
      %s194 = scalar_lea.vmem %s1, %s193
      %p195 = pneg %p75
      %p196 = pneg %p72
      %p197 = scmp.lt.s32.totalorder %s18, 1
      %s198 = scalar_select %p197, %s18, 1
      %s199 = scalar_lea.vmem %s2, %s198
      %p200 = pneg %p101
      %p201 = pneg %p98
      %p202 = pneg %p129
      %p203 = pneg %p126
      %p204 = scmp.lt.s32.totalorder %s18, 1
      %s205 = scalar_select %p204, %s18, 1
      %p206 = scmp.lt.s32.totalorder %s19, 15
      %s207 = scalar_select %p206, %s19, 15
      %s208 = smul.addr %s205, 16
      %s209 = sadd.s32 %s207, %s208
      %s210 = smul.addr %s209, 2
      %s211 = scalar_lea.vmem %s3, %s210
      %p212 = scmp.lt.s32.totalorder %s18, 1
      %s213 = scalar_select %p212, %s18, 1
      %p214 = scmp.lt.s32.totalorder %s19, 15
      %s215 = scalar_select %p214, %s19, 15
      %s216 = smul.addr %s213, 16
      %s217 = sadd.s32 %s215, %s216
      %s218 = smul.addr %s217, 2
      %s219 = scalar_lea.vmem %s0, %s218
      %p220 = scmp.lt.s32.totalorder %s18, 1
      %s221 = scalar_select %p220, %s18, 1
      %s222 = smul.addr %s221, 4
      %s223 = smul.addr %s222, 8
      %s224 = scalar_lea.vmem %s1, %s223
      %p225 = scmp.lt.s32.totalorder %s18, 1
      %s226 = scalar_select %p225, %s18, 1
      %s227 = scalar_lea.vmem %s2, %s226
      %p228 = scmp.lt.s32.totalorder %s18, 1
      %s229 = scalar_select %p228, %s18, 1
      %p230 = scmp.lt.s32.totalorder %s19, 15
      %s231 = scalar_select %p230, %s19, 15
      %s232 = smul.addr %s229, 16
      %s233 = sadd.s32 %s231, %s232
      %s234 = smul.addr %s233, 2
      %s235 = scalar_lea.vmem %s3, %s234
      %p236 = scmp.eq.s32.totalorder %s19, 0
      // Predicated region
      $region33: #{_lambda_.37} parent=31 // pred_check
        %p237 = pneg %p236
      $region34: #{_lambda_.37} parent=31 // pred_check_branch
        %239 = sbr.rel (%p237) target = $region36
      $region35: #{_lambda_.37} parent=31 // pred_region
        %vm240 = vcmask 254976
        %241 = vst.msk [vmem:[#allocation2] sm:$0x3] %vm240, 0.0
        %242 = vst.msk [vmem:[#allocation3] sm:$0x3] %vm240, 0.0
      $region36: #{_lambda_.37} parent=31 // pred_fallthru
        _
      %v243 = vld [vmem:[#allocation2] sm:$0x3]
      %v244 = vld [vmem:[%s224] sm:$0xff]
      %v245 = vld [vmem:[%s224 + $0x8] sm:$0xff]
      %v246 = vld [vmem:[%s224 + $0x10] sm:$0xff]
      %v247 = vld [vmem:[%s224 + $0x18] sm:$0xff]
      %v248 = vld [vmem:[%s227] sm:$0x1]
      %v250 = vperm.slane %v248, 0
      %vm252 = vcmask 261120
      %v254 = vsel %vm252, %v243, 0
      %256 = vmatpush.msra.mxu0 0.0
      %257 = vmatpush.msra.mxu0 0.0
      %258 = vmatpush.msra.mxu0 0.0
      %259 = vmatpush.msra.mxu0 0.0
      %260 = vmatpush.msra.mxu0 0.0
      %261 = vmatpush.msra.mxu0 0.0
      %262 = vmatpush.msra.mxu0 0.0
      %263 = vmatpush.msra.mxu0 0.0
      %264 = vmatpush.msra.mxu0 0.0
      %265 = vmatpush.msra.mxu0 0.0
      %266 = vmatpush.msra.mxu0 0.0
      %267 = vmatpush.msra.mxu0 0.0
      %268 = vmatpush.msra.mxu0 %v247
      %269 = vmatpush.msra.mxu0 %v246
      %270 = vmatpush.msra.mxu0 %v245
      %271 = vmatpush.msra.mxu0 %v244
      %272 = vmatmul.f32.gmra.mxu0 %v254
      %v273 = vpop.f32.mrf.mxu0
      %v274 = vadd.f32 %v250, %v273
      %275 = vdwg.mxu0
      %v276 = vld [vmem:[%s219] sm:$0x3]
      %v277 = vadd.f32 %v276, %v274
      %v278 = vxor.u32 %v277, 2147483648
      %v279 = vmul.f32 %v278, 1.442695
      %v280 = vpow.pop %v279
      %v281 = vadd.f32 %v280, 1.0
      %v282 = vrcp.pop %v281
      %v283 = vmul.f32 %v281, %v282
      %v284 = vsub.f32 1.0, %v283
      %v285 = vmul.f32 %v282, %v284
      %v286 = vadd.f32 %v282, %v285
      %vm287 = vweird.f32 %v281
      %vm288 = vweird.f32 %v282
      %vm289 = vmor %vm287, %vm288
      %v290 = vsel %vm289, %v282, %v286
      %v291 = vand.u32 2147483647, %v281
      %vm292 = vcmp.eq.f32.partialorder %v291, 8.507059e+37
      %v293 = vand.u32 %v281, 2147483648
      %v294 = vor.u32 1.1754944e-38, %v293
      %v295 = vsel %vm292, %v294, %v290
      %v296 = vmul.f32 1.0, %v295
      %v297 = vtanh.pop %v277
      %v298 = vld [vmem:[#allocation3] sm:$0x3]
      %300 = vrot.lane.b32.xlu0 %v298, 32
      %v301 = vpop.permute.xlu0 %300
      %v303 = vmul.f32 %v296, %v301
      %305 = vrot.lane.b32.xlu0 %v297, 64
      %v306 = vpop.permute.xlu0 %305
      %v308 = vmul.f32 %v296, %v306
      %310 = vrot.lane.b32.xlu0 %v308, 32
      %v311 = vpop.permute.xlu0 %310
      %v313 = vadd.f32 %v303, %v311
      %315 = vrot.lane.b32.xlu0 %v313, 96
      %v316 = vpop.permute.xlu0 %315
      %vm318 = vcmask 254976
      %319 = vst.msk [vmem:[#allocation3] sm:$0x3] %vm318, %v316
      %v320 = vtanh.pop %v313
      %322 = vrot.lane.b32.xlu0 %v320, 64
      %v323 = vpop.permute.xlu0 %322
      %v325 = vmul.f32 %v296, %v323
      %327 = vrot.lane.b32.xlu0 %v325, 32
      %v328 = vpop.permute.xlu0 %327
      %330 = vst.msk [vmem:[#allocation2] sm:$0x3] %vm318, %v328
      %331 = vst.msk [vmem:[%s235] sm:$0x3] %vm318, %v328
      %p332 = scmp.lt.s32.totalorder %s18, 1
      %s333 = scalar_select %p332, %s18, 1
      %p334 = scmp.lt.s32.totalorder %s19, 15
      %s335 = scalar_select %p334, %s19, 15
      %s336 = smul.addr %s333, 16
      %s337 = sadd.s32 %s335, %s336
      %s338 = smul.addr %s337, 2
      %s339 = scalar_lea.vmem %s3, %s338
      // Predicated region
      $region37: #{_lambda_.37} parent=31 // pred_check
        %p340 = pneg %p126
      $region38: #{_lambda_.37} parent=31 // pred_check_branch
        %342 = sbr.rel (%p340) target = $region40
      $region39: #{_lambda_.37} parent=31 // pred_region
        _
      $region40: #{_lambda_.37} parent=31 // pred_fallthru
        _
    $region32: #{_lambda_.37} parent=5 // pred_fallthru
      _
    %p343 = scmp.le.s32.totalorder 2, %s9
    // Predicated region
    $region41: #{_lambda_.37} parent=5 // pred_check
      %p344 = pneg %p343
    $region42: #{_lambda_.37} parent=5 // pred_check_branch
      %346 = sbr.rel (%p344) target = $region44
    $region43: #{_lambda_.37} parent=5 // pred_region
      %s347 = ssub.s32 %s9, 2
      // Predicated region
      $region45: #{_lambda_.37} parent=43 // pred_check
        %p348 = pneg %p132
      $region46: #{_lambda_.37} parent=43 // pred_check_branch
        %350 = sbr.rel (%p348) target = $region48
      $region47: #{_lambda_.37} parent=43 // pred_region
        %p351 = scmp.lt.s32.totalorder %s20, 1
        %s352 = scalar_select %p351, %s20, 1
        %p353 = scmp.lt.s32.totalorder %s21, 15
        %s354 = scalar_select %p353, %s21, 15
        %s355 = smul.addr %s352, 16
        %s356 = sadd.s32 %s354, %s355
        %s357 = smul.addr %s356, 2
        %s358 = scalar_lea.vmem %s3, %s357
      $region48: #{_lambda_.37} parent=43 // pred_fallthru
        _
    $region44: #{_lambda_.37} parent=5 // pred_fallthru
      _
  $region6: #{_lambda_.37} parent=0 // loop_footer
    %s13 = sadd.s32 1, %s9
  $region7: #{_lambda_.37} parent=0 // loop_footer_branch
    %8 = sbr.rel target = $region3
  $region8: #{_lambda_.37} parent=0 // loop_exit
    _

</llo_original>
